<compile_context>
chip_gen: v7x
topology: tpu7x:2x2x1
jax: 0.10.0
libtpu: 0.0.40
codegen_flags: <defaults>
</compile_context>

<pallas_src>
import jax
import jax.numpy as jnp
from jax import lax
from jax.experimental import pallas as pl
from jax.experimental.pallas import tpu as pltpu


def _round_up(x, m):
    return (x + m - 1) // m * m


def _conv3x3_fused(pad_ref, cols_ref, w_ref, H, W, Cp):
    """3x3 'same' conv as 3 K-fused matmuls (one per kernel row).

    pad_ref:  (1, H+2, W+2, Cp) bf16, spatially padded by 1 (halo zeroed)
    cols_ref: (1, H, W, 3*Cp)   bf16 scratch - im2col of the 3 kw taps
    w_ref:    (3, 3*Cp, Cp)     bf16, HWIO reshaped so the kw taps live in
                                the contraction dim (K = 3*Cp)
    returns   (1, H, W, Cp)     f32 value; the 3 row contributions are
                                accumulated in values (no f32 scratch RMW).
    """
    contract = (((3,), (0,)), ((), ()))
    acc = None
    for kh in range(3):
        # Gather the 3 kw-shifted slabs along the (lane-aligned) channel axis.
        for kw in range(3):
            cols_ref[:, :, :, kw * Cp:(kw + 1) * Cp] = \
                pad_ref[:, kh:kh + H, kw:kw + W, :]
        contrib = lax.dot_general(
            cols_ref[...], w_ref[kh],
            dimension_numbers=contract,
            preferred_element_type=jnp.float32)
        acc = contrib if acc is None else acc + contrib
    return acc


def basic_block_kernel(x_ref,     # (1, H, W, Cp)      bf16 input tile
                       w1_ref,    # (3, 3*Cp, Cp)      bf16, BN1 scale folded
                       b1_ref,    # (1, Cp)            f32 folded BN1 bias
                       w2_ref,    # (3, 3*Cp, Cp)      bf16, BN2 scale folded
                       b2_ref,    # (1, Cp)            f32 folded BN2 bias
                       out_ref,   # (1, H, W, Cp)      bf16 output tile
                       pad_ref,   # scratch (1, H+2, W+2, Cp) bf16
                       cols_ref): # scratch (1, H, W, 3*Cp)   bf16
    _, H, W, Cp = x_ref.shape
    Hp, Wp = H + 2, W + 2

    # ---- in-kernel halo padding -------------------------------------------
    # Zero only the 1-wide border.  Kept per grid iteration on purpose:
    # hoisting it behind pl.when(program_id == 0) would break under megacore
    # "parallel" semantics (the second core never runs step 0).
    zrow = jnp.zeros((1, 1, Wp, Cp), jnp.bfloat16)
    zcol = jnp.zeros((1, Hp, 1, Cp), jnp.bfloat16)
    pad_ref[:, 0:1, :, :] = zrow
    pad_ref[:, H + 1:H + 2, :, :] = zrow
    pad_ref[:, :, 0:1, :] = zcol
    pad_ref[:, :, W + 1:W + 2, :] = zcol
    pad_ref[:, 1:1 + H, 1:1 + W, :] = x_ref[...]

    # ---- conv1 (+ folded BN1) + bias + ReLU --------------------------------
    out1 = jnp.maximum(
        _conv3x3_fused(pad_ref, cols_ref, w1_ref, H, W, Cp) + b1_ref[...],
        0.0)

    # ---- reuse the padded scratch for conv2's input (halo already zero) ----
    pad_ref[:, 1:1 + H, 1:1 + W, :] = out1.astype(jnp.bfloat16)

    # ---- conv2 (+ folded BN2) + bias + residual + ReLU ---------------------
    out2 = _conv3x3_fused(pad_ref, cols_ref, w2_ref, H, W, Cp)
    # NOTE: identity read from the bf16 channel-padded input (extra bf16
    # rounding on the skip path; acceptable for inference).
    res = out2 + b2_ref[...] + x_ref[...].astype(jnp.float32)
    out_ref[...] = jnp.maximum(res, 0.0).astype(out_ref.dtype)


def _vmem_limit_bytes(H, W, Cp):
    """Scoped-VMEM budget computed from the actual blocks + scratch."""
    bf16 = 2
    x_blk = H * W * Cp * bf16 * 2                  # input block, double-buffered
    o_blk = H * W * Cp * bf16 * 2                  # output block, double-buffered
    w_blk = 2 * (9 * Cp * Cp * bf16) * 2           # two resident weights, 2 bufs
    b_blk = 2 * (Cp * 4) * 2                       # two resident biases
    pad_s = (H + 2) * (W + 2) * Cp * bf16          # halo-padded scratch
    col_s = H * W * 3 * Cp * bf16                  # im2col scratch
    vals = 2 * H * W * Cp * 4                      # f32 accumulator value headroom
    need = x_blk + o_blk + w_blk + b_blk + pad_s + col_s + vals
    # 2x margin for compiler-managed temporaries; clamp to a limit that is
    # valid on every chip (<= 64 MiB physical per TC on v7x).
    return int(min(max(need * 2, 16 * 1024 * 1024), 64 * 1024 * 1024))


@jax.jit
def basic_block_pallas(x_nchw, w1_oihw, g1, b1, m1, v1,
                       w2_oihw, g2, b2, m2, v2, eps=1e-5):
    N, C, H, W = x_nchw.shape
    # Only the default BasicBlock config is supported: stride=1, no
    # downsample, inplanes == planes.  Fail loudly on anything else.
    assert w1_oihw.shape == (C, C, 3, 3) and w2_oihw.shape == (C, C, 3, 3), (
        "basic_block_pallas supports only stride=1, inplanes==planes, "
        f"no-downsample; got w1 {w1_oihw.shape}, w2 {w2_oihw.shape}, C={C}")

    Cp = max(128, _round_up(C, 128))   # lane-dense channel dim

    # ---- fold BN (inference mode): scale into weights, keep only a bias ----
    s1 = g1 / jnp.sqrt(v1 + eps)
    s2 = g2 / jnp.sqrt(v2 + eps)
    bb1 = b1 - m1 * s1
    bb2 = b2 - m2 * s2

    # PyTorch OIHW -> HWIO, fold scale on the output channel, pad channels,
    # then reshape so (kw, c_in) forms the contraction axis: (3, 3*Cp, Cp).
    w1 = jnp.transpose(w1_oihw, (2, 3, 1, 0)) * s1[None, None, None, :]
    w2 = jnp.transpose(w2_oihw, (2, 3, 1, 0)) * s2[None, None, None, :]
    w1 = jnp.pad(w1, ((0, 0), (0, 0), (0, Cp - C), (0, Cp - C)))
    w2 = jnp.pad(w2, ((0, 0), (0, 0), (0, Cp - C), (0, Cp - C)))
    w1 = w1.reshape(3, 3 * Cp, Cp).astype(jnp.bfloat16)
    w2 = w2.reshape(3, 3 * Cp, Cp).astype(jnp.bfloat16)
    bb1p = jnp.pad(bb1, (0, Cp - C)).reshape(1, Cp).astype(jnp.float32)
    bb2p = jnp.pad(bb2, (0, Cp - C)).reshape(1, Cp).astype(jnp.float32)

    # Activations: NCHW -> NHWC, channel pad only (spatial halo built
    # in-kernel), bf16.  Single activation array shipped per image.
    x_nhwc = jnp.transpose(x_nchw, (0, 2, 3, 1))
    x_in = jnp.pad(x_nhwc, ((0, 0), (0, 0), (0, 0), (0, Cp - C))).astype(jnp.bfloat16)

    grid_spec = pltpu.PrefetchScalarGridSpec(
        num_scalar_prefetch=0,
        grid=(N,),
        in_specs=[
            pl.BlockSpec((1, H, W, Cp), lambda n: (n, 0, 0, 0)),
            pl.BlockSpec((3, 3 * Cp, Cp), lambda n: (0, 0, 0)),   # resident
            pl.BlockSpec((1, Cp), lambda n: (0, 0)),              # resident
            pl.BlockSpec((3, 3 * Cp, Cp), lambda n: (0, 0, 0)),   # resident
            pl.BlockSpec((1, Cp), lambda n: (0, 0)),              # resident
        ],
        out_specs=pl.BlockSpec((1, H, W, Cp), lambda n: (n, 0, 0, 0)),
        scratch_shapes=[
            pltpu.VMEM((1, H + 2, W + 2, Cp), jnp.bfloat16),   # halo-padded buf
            pltpu.VMEM((1, H, W, 3 * Cp), jnp.bfloat16),       # im2col buf
        ],
    )

    out_nhwc = pl.pallas_call(
        basic_block_kernel,
        out_shape=jax.ShapeDtypeStruct((N, H, W, Cp), jnp.bfloat16),
        grid_spec=grid_spec,
        compiler_params=pltpu.CompilerParams(
            dimension_semantics=("parallel",),   # megacore split over batch
            vmem_limit_bytes=_vmem_limit_bytes(H, W, Cp),
        ),
    )(x_in, w1, bb1p, w2, bb2p)

    out_nhwc = out_nhwc[..., :C].astype(jnp.float32)
    return jnp.transpose(out_nhwc, (0, 3, 1, 2))   # back to NCHW


# ----------------------------------------------------------------------------
# Pure-JAX f32 reference (same math) for a correctness check.
# ----------------------------------------------------------------------------
def basic_block_ref(x, w1, g1, b1, m1, v1, w2, g2, b2, m2, v2, eps=1e-5):
    def conv(a, w):
        return lax.conv_general_dilated(
            a, w, window_strides=(1, 1), padding=((1, 1), (1, 1)),
            dimension_numbers=('NCHW', 'OIHW', 'NCHW'))

    def bn(a, g, b, m, v):
        s = g / jnp.sqrt(v + eps)
        return a * s[None, :, None, None] + (b - m * s)[None, :, None, None]

    out = jax.nn.relu(bn(conv(x, w1), g1, b1, m1, v1))
    out = bn(conv(out, w2), g2, b2, m2, v2)
    return jax.nn.relu(out + x)


if __name__ == "__main__":
    key = jax.random.PRNGKey(0)
    N, C, H, W = 2, 8, 16, 16   # inplanes == planes, stride=1, no downsample

    ks = jax.random.split(key, 8)
    x = jax.random.normal(ks[0], (N, C, H, W), jnp.float32)

    # conv weights: PyTorch shape (out, in, 3, 3)
    w1 = jax.random.normal(ks[1], (C, C, 3, 3), jnp.float32) * 0.1
    w2 = jax.random.normal(ks[2], (C, C, 3, 3), jnp.float32) * 0.1

    # BN parameters
    g1 = jax.random.uniform(ks[3], (C,), jnp.float32, 0.5, 1.5)
    b1 = jax.random.normal(ks[4], (C,), jnp.float32) * 0.1
    m1 = jax.random.normal(ks[5], (C,), jnp.float32) * 0.1
    v1 = jax.random.uniform(ks[6], (C,), jnp.float32, 0.5, 1.5)
    g2 = jnp.ones((C,), jnp.float32) * 1.1
    b2 = jnp.zeros((C,), jnp.float32) + 0.05
    m2 = jnp.zeros((C,), jnp.float32) - 0.02
    v2 = jnp.ones((C,), jnp.float32) * 0.9

    out = basic_block_pallas(x, w1, g1, b1, m1, v1, w2, g2, b2, m2, v2)
    out = jax.block_until_ready(out)

    ref = basic_block_ref(x, w1, g1, b1, m1, v1, w2, g2, b2, m2, v2)
    assert out.shape == (N, C, H, W)
    max_err = float(jnp.max(jnp.abs(out - ref)))
    # bf16 matmul operands + bf16 output store -> relaxed tolerance vs f32 ref.
    assert jnp.allclose(out, ref, atol=5e-2, rtol=5e-2), (
        f"mismatch vs reference, max abs err = {max_err}")

    print("KERNEL_OK")
</pallas_src>

<mosaic_0001>
module attributes {stable_mosaic.version = 11 : i64} {
  func.func @basic_block_kernel(%arg0: i32, %arg1: memref<1x16x16x128xbf16, #tpu.memory_space<vmem>>, %arg2: memref<3x384x128xbf16, #tpu.memory_space<vmem>>, %arg3: memref<1x128xf32, #tpu.memory_space<vmem>>, %arg4: memref<3x384x128xbf16, #tpu.memory_space<vmem>>, %arg5: memref<1x128xf32, #tpu.memory_space<vmem>>, %arg6: memref<1x16x16x128xbf16, #tpu.memory_space<vmem>>, %arg7: memref<1x18x18x128xbf16, #tpu.memory_space<vmem>>, %arg8: memref<1x16x16x384xbf16, #tpu.memory_space<vmem>>) attributes {dimension_semantics = [#tpu.dimension_semantics<parallel>], iteration_bounds = array<i64: 2>, scalar_prefetch = 0 : i64, scratch_operands = 2 : i64, tpu.core_type = #tpu.core_type<tc>, window_params = [{transform_indices = @transform_0, window_bounds = array<i64: 1, 16, 16, 128>}, {pipeline_mode = #tpu.pipeline_mode<synchronous>, transform_indices = @transform_1, window_bounds = array<i64: 3, 384, 128>}, {pipeline_mode = #tpu.pipeline_mode<synchronous>, transform_indices = @transform_2, window_bounds = array<i64: 1, 128>}, {pipeline_mode = #tpu.pipeline_mode<synchronous>, transform_indices = @transform_3, window_bounds = array<i64: 3, 384, 128>}, {pipeline_mode = #tpu.pipeline_mode<synchronous>, transform_indices = @transform_4, window_bounds = array<i64: 1, 128>}, {transform_indices = @transform_5, window_bounds = array<i64: 1, 16, 16, 128>}]} {
    %cst = arith.constant 0.000000e+00 : bf16
    %0 = vector.broadcast %cst : bf16 to vector<1x1x18x128xbf16>
    %cst_0 = arith.constant 0.000000e+00 : bf16
    %1 = vector.broadcast %cst_0 : bf16 to vector<1x18x1x128xbf16>
    %c0 = arith.constant 0 : index
    %c0_1 = arith.constant 0 : index
    %c0_2 = arith.constant 0 : index
    %c0_3 = arith.constant 0 : index
    %2 = vector.load %arg7[%c0, %c0_1, %c0_2, %c0_3] : memref<1x18x18x128xbf16, #tpu.memory_space<vmem>>, vector<1x1x18x128xbf16>
    tpu.vector_store %arg7[%c0, %c0_1, %c0_2, %c0_3], %0 {strides = array<i32>} : memref<1x18x18x128xbf16, #tpu.memory_space<vmem>>, vector<1x1x18x128xbf16>,
    %c0_4 = arith.constant 0 : index
    %c17 = arith.constant 17 : index
    %c0_5 = arith.constant 0 : index
    %c0_6 = arith.constant 0 : index
    %3 = vector.load %arg7[%c0_4, %c17, %c0_5, %c0_6] : memref<1x18x18x128xbf16, #tpu.memory_space<vmem>>, vector<1x1x18x128xbf16>
    tpu.vector_store %arg7[%c0_4, %c17, %c0_5, %c0_6], %0 {strides = array<i32>} : memref<1x18x18x128xbf16, #tpu.memory_space<vmem>>, vector<1x1x18x128xbf16>,
    %c0_7 = arith.constant 0 : index
    %c0_8 = arith.constant 0 : index
    %c0_9 = arith.constant 0 : index
    %c0_10 = arith.constant 0 : index
    %4 = vector.load %arg7[%c0_7, %c0_8, %c0_9, %c0_10] : memref<1x18x18x128xbf16, #tpu.memory_space<vmem>>, vector<1x18x1x128xbf16>
    tpu.vector_store %arg7[%c0_7, %c0_8, %c0_9, %c0_10], %1 {strides = array<i32>} : memref<1x18x18x128xbf16, #tpu.memory_space<vmem>>, vector<1x18x1x128xbf16>,
    %c0_11 = arith.constant 0 : index
    %c0_12 = arith.constant 0 : index
    %c17_13 = arith.constant 17 : index
    %c0_14 = arith.constant 0 : index
    %5 = vector.load %arg7[%c0_11, %c0_12, %c17_13, %c0_14] : memref<1x18x18x128xbf16, #tpu.memory_space<vmem>>, vector<1x18x1x128xbf16>
    tpu.vector_store %arg7[%c0_11, %c0_12, %c17_13, %c0_14], %1 {strides = array<i32>} : memref<1x18x18x128xbf16, #tpu.memory_space<vmem>>, vector<1x18x1x128xbf16>,
    %c0_15 = arith.constant 0 : index
    %c0_16 = arith.constant 0 : index
    %c0_17 = arith.constant 0 : index
    %c0_18 = arith.constant 0 : index
    %6 = vector.load %arg1[%c0_15, %c0_16, %c0_17, %c0_18] : memref<1x16x16x128xbf16, #tpu.memory_space<vmem>>, vector<1x16x16x128xbf16>
    %c0_19 = arith.constant 0 : index
    %c1 = arith.constant 1 : index
    %c1_20 = arith.constant 1 : index
    %c0_21 = arith.constant 0 : index
    %7 = vector.load %arg7[%c0_19, %c1, %c1_20, %c0_21] : memref<1x18x18x128xbf16, #tpu.memory_space<vmem>>, vector<1x16x16x128xbf16>
    tpu.vector_store %arg7[%c0_19, %c1, %c1_20, %c0_21], %6 {strides = array<i32>} : memref<1x18x18x128xbf16, #tpu.memory_space<vmem>>, vector<1x16x16x128xbf16>,
    %c0_22 = arith.constant 0 : index
    %c0_23 = arith.constant 0 : index
    %c0_24 = arith.constant 0 : index
    %c0_25 = arith.constant 0 : index
    %8 = vector.load %arg7[%c0_22, %c0_23, %c0_24, %c0_25] : memref<1x18x18x128xbf16, #tpu.memory_space<vmem>>, vector<1x16x16x128xbf16>
    %c0_26 = arith.constant 0 : index
    %c0_27 = arith.constant 0 : index
    %c0_28 = arith.constant 0 : index
    %c0_29 = arith.constant 0 : index
    %9 = vector.load %arg8[%c0_26, %c0_27, %c0_28, %c0_29] : memref<1x16x16x384xbf16, #tpu.memory_space<vmem>>, vector<1x16x16x128xbf16>
    tpu.vector_store %arg8[%c0_26, %c0_27, %c0_28, %c0_29], %8 {strides = array<i32>} : memref<1x16x16x384xbf16, #tpu.memory_space<vmem>>, vector<1x16x16x128xbf16>,
    %c0_30 = arith.constant 0 : index
    %c0_31 = arith.constant 0 : index
    %c1_32 = arith.constant 1 : index
    %c0_33 = arith.constant 0 : index
    %10 = vector.load %arg7[%c0_30, %c0_31, %c1_32, %c0_33] : memref<1x18x18x128xbf16, #tpu.memory_space<vmem>>, vector<1x16x16x128xbf16>
    %c0_34 = arith.constant 0 : index
    %c0_35 = arith.constant 0 : index
    %c0_36 = arith.constant 0 : index
    %c128 = arith.constant 128 : index
    %11 = vector.load %arg8[%c0_34, %c0_35, %c0_36, %c128] : memref<1x16x16x384xbf16, #tpu.memory_space<vmem>>, vector<1x16x16x128xbf16>
    tpu.vector_store %arg8[%c0_34, %c0_35, %c0_36, %c128], %10 {strides = array<i32>} : memref<1x16x16x384xbf16, #tpu.memory_space<vmem>>, vector<1x16x16x128xbf16>,
    %c0_37 = arith.constant 0 : index
    %c0_38 = arith.constant 0 : index
    %c2 = arith.constant 2 : index
    %c0_39 = arith.constant 0 : index
    %12 = vector.load %arg7[%c0_37, %c0_38, %c2, %c0_39] : memref<1x18x18x128xbf16, #tpu.memory_space<vmem>>, vector<1x16x16x128xbf16>
    %c0_40 = arith.constant 0 : index
    %c0_41 = arith.constant 0 : index
    %c0_42 = arith.constant 0 : index
    %c256 = arith.constant 256 : index
    %13 = vector.load %arg8[%c0_40, %c0_41, %c0_42, %c256] : memref<1x16x16x384xbf16, #tpu.memory_space<vmem>>, vector<1x16x16x128xbf16>
    tpu.vector_store %arg8[%c0_40, %c0_41, %c0_42, %c256], %12 {strides = array<i32>} : memref<1x16x16x384xbf16, #tpu.memory_space<vmem>>, vector<1x16x16x128xbf16>,
    %c0_43 = arith.constant 0 : index
    %c0_44 = arith.constant 0 : index
    %c0_45 = arith.constant 0 : index
    %c0_46 = arith.constant 0 : index
    %14 = vector.load %arg8[%c0_43, %c0_44, %c0_45, %c0_46] : memref<1x16x16x384xbf16, #tpu.memory_space<vmem>>, vector<1x16x16x384xbf16>
    %c0_47 = arith.constant 0 : index
    %c0_48 = arith.constant 0 : index
    %c0_49 = arith.constant 0 : index
    %15 = vector.load %arg2[%c0_47, %c0_48, %c0_49] : memref<3x384x128xbf16, #tpu.memory_space<vmem>>, vector<1x384x128xbf16>
    %16 = vector.shape_cast %15 : vector<1x384x128xbf16> to vector<384x128xbf16>
    %cst_50 = arith.constant dense<0.000000e+00> : vector<1x16x16x128xf32>
    %17 = tpu.matmul %14, %16, %cst_50 {dimension_numbers = #tpu.dot_dimension_numbers<[3], [0], [0, 1, 2], [1], [0, 0, 0, 1, 0, 2, 1, 1], [], []>} : vector<1x16x16x384xbf16>, vector<384x128xbf16>, vector<1x16x16x128xf32> -> vector<1x16x16x128xf32>
    %c0_51 = arith.constant 0 : index
    %c1_52 = arith.constant 1 : index
    %c0_53 = arith.constant 0 : index
    %c0_54 = arith.constant 0 : index
    %18 = vector.load %arg7[%c0_51, %c1_52, %c0_53, %c0_54] : memref<1x18x18x128xbf16, #tpu.memory_space<vmem>>, vector<1x16x16x128xbf16>
    %c0_55 = arith.constant 0 : index
    %c0_56 = arith.constant 0 : index
    %c0_57 = arith.constant 0 : index
    %c0_58 = arith.constant 0 : index
    %19 = vector.load %arg8[%c0_55, %c0_56, %c0_57, %c0_58] : memref<1x16x16x384xbf16, #tpu.memory_space<vmem>>, vector<1x16x16x128xbf16>
    tpu.vector_store %arg8[%c0_55, %c0_56, %c0_57, %c0_58], %18 {strides = array<i32>} : memref<1x16x16x384xbf16, #tpu.memory_space<vmem>>, vector<1x16x16x128xbf16>,
    %c0_59 = arith.constant 0 : index
    %c1_60 = arith.constant 1 : index
    %c1_61 = arith.constant 1 : index
    %c0_62 = arith.constant 0 : index
    %20 = vector.load %arg7[%c0_59, %c1_60, %c1_61, %c0_62] : memref<1x18x18x128xbf16, #tpu.memory_space<vmem>>, vector<1x16x16x128xbf16>
    %c0_63 = arith.constant 0 : index
    %c0_64 = arith.constant 0 : index
    %c0_65 = arith.constant 0 : index
    %c128_66 = arith.constant 128 : index
    %21 = vector.load %arg8[%c0_63, %c0_64, %c0_65, %c128_66] : memref<1x16x16x384xbf16, #tpu.memory_space<vmem>>, vector<1x16x16x128xbf16>
    tpu.vector_store %arg8[%c0_63, %c0_64, %c0_65, %c128_66], %20 {strides = array<i32>} : memref<1x16x16x384xbf16, #tpu.memory_space<vmem>>, vector<1x16x16x128xbf16>,
    %c0_67 = arith.constant 0 : index
    %c1_68 = arith.constant 1 : index
    %c2_69 = arith.constant 2 : index
    %c0_70 = arith.constant 0 : index
    %22 = vector.load %arg7[%c0_67, %c1_68, %c2_69, %c0_70] : memref<1x18x18x128xbf16, #tpu.memory_space<vmem>>, vector<1x16x16x128xbf16>
    %c0_71 = arith.constant 0 : index
    %c0_72 = arith.constant 0 : index
    %c0_73 = arith.constant 0 : index
    %c256_74 = arith.constant 256 : index
    %23 = vector.load %arg8[%c0_71, %c0_72, %c0_73, %c256_74] : memref<1x16x16x384xbf16, #tpu.memory_space<vmem>>, vector<1x16x16x128xbf16>
    tpu.vector_store %arg8[%c0_71, %c0_72, %c0_73, %c256_74], %22 {strides = array<i32>} : memref<1x16x16x384xbf16, #tpu.memory_space<vmem>>, vector<1x16x16x128xbf16>,
    %c0_75 = arith.constant 0 : index
    %c0_76 = arith.constant 0 : index
    %c0_77 = arith.constant 0 : index
    %c0_78 = arith.constant 0 : index
    %24 = vector.load %arg8[%c0_75, %c0_76, %c0_77, %c0_78] : memref<1x16x16x384xbf16, #tpu.memory_space<vmem>>, vector<1x16x16x384xbf16>
    %c1_79 = arith.constant 1 : index
    %c0_80 = arith.constant 0 : index
    %c0_81 = arith.constant 0 : index
    %25 = vector.load %arg2[%c1_79, %c0_80, %c0_81] : memref<3x384x128xbf16, #tpu.memory_space<vmem>>, vector<1x384x128xbf16>
    %26 = vector.shape_cast %25 : vector<1x384x128xbf16> to vector<384x128xbf16>
    %cst_82 = arith.constant dense<0.000000e+00> : vector<1x16x16x128xf32>
    %27 = tpu.matmul %24, %26, %cst_82 {dimension_numbers = #tpu.dot_dimension_numbers<[3], [0], [0, 1, 2], [1], [0, 0, 0, 1, 0, 2, 1, 1], [], []>} : vector<1x16x16x384xbf16>, vector<384x128xbf16>, vector<1x16x16x128xf32> -> vector<1x16x16x128xf32>
    %28 = arith.addf %17, %27 : vector<1x16x16x128xf32>
    %c0_83 = arith.constant 0 : index
    %c2_84 = arith.constant 2 : index
    %c0_85 = arith.constant 0 : index
    %c0_86 = arith.constant 0 : index
    %29 = vector.load %arg7[%c0_83, %c2_84, %c0_85, %c0_86] : memref<1x18x18x128xbf16, #tpu.memory_space<vmem>>, vector<1x16x16x128xbf16>
    %c0_87 = arith.constant 0 : index
    %c0_88 = arith.constant 0 : index
    %c0_89 = arith.constant 0 : index
    %c0_90 = arith.constant 0 : index
    %30 = vector.load %arg8[%c0_87, %c0_88, %c0_89, %c0_90] : memref<1x16x16x384xbf16, #tpu.memory_space<vmem>>, vector<1x16x16x128xbf16>
    tpu.vector_store %arg8[%c0_87, %c0_88, %c0_89, %c0_90], %29 {strides = array<i32>} : memref<1x16x16x384xbf16, #tpu.memory_space<vmem>>, vector<1x16x16x128xbf16>,
    %c0_91 = arith.constant 0 : index
    %c2_92 = arith.constant 2 : index
    %c1_93 = arith.constant 1 : index
    %c0_94 = arith.constant 0 : index
    %31 = vector.load %arg7[%c0_91, %c2_92, %c1_93, %c0_94] : memref<1x18x18x128xbf16, #tpu.memory_space<vmem>>, vector<1x16x16x128xbf16>
    %c0_95 = arith.constant 0 : index
    %c0_96 = arith.constant 0 : index
    %c0_97 = arith.constant 0 : index
    %c128_98 = arith.constant 128 : index
    %32 = vector.load %arg8[%c0_95, %c0_96, %c0_97, %c128_98] : memref<1x16x16x384xbf16, #tpu.memory_space<vmem>>, vector<1x16x16x128xbf16>
    tpu.vector_store %arg8[%c0_95, %c0_96, %c0_97, %c128_98], %31 {strides = array<i32>} : memref<1x16x16x384xbf16, #tpu.memory_space<vmem>>, vector<1x16x16x128xbf16>,
    %c0_99 = arith.constant 0 : index
    %c2_100 = arith.constant 2 : index
    %c2_101 = arith.constant 2 : index
    %c0_102 = arith.constant 0 : index
    %33 = vector.load %arg7[%c0_99, %c2_100, %c2_101, %c0_102] : memref<1x18x18x128xbf16, #tpu.memory_space<vmem>>, vector<1x16x16x128xbf16>
    %c0_103 = arith.constant 0 : index
    %c0_104 = arith.constant 0 : index
    %c0_105 = arith.constant 0 : index
    %c256_106 = arith.constant 256 : index
    %34 = vector.load %arg8[%c0_103, %c0_104, %c0_105, %c256_106] : memref<1x16x16x384xbf16, #tpu.memory_space<vmem>>, vector<1x16x16x128xbf16>
    tpu.vector_store %arg8[%c0_103, %c0_104, %c0_105, %c256_106], %33 {strides = array<i32>} : memref<1x16x16x384xbf16, #tpu.memory_space<vmem>>, vector<1x16x16x128xbf16>,
    %c0_107 = arith.constant 0 : index
    %c0_108 = arith.constant 0 : index
    %c0_109 = arith.constant 0 : index
    %c0_110 = arith.constant 0 : index
    %35 = vector.load %arg8[%c0_107, %c0_108, %c0_109, %c0_110] : memref<1x16x16x384xbf16, #tpu.memory_space<vmem>>, vector<1x16x16x384xbf16>
    %c2_111 = arith.constant 2 : index
    %c0_112 = arith.constant 0 : index
    %c0_113 = arith.constant 0 : index
    %36 = vector.load %arg2[%c2_111, %c0_112, %c0_113] : memref<3x384x128xbf16, #tpu.memory_space<vmem>>, vector<1x384x128xbf16>
    %37 = vector.shape_cast %36 : vector<1x384x128xbf16> to vector<384x128xbf16>
    %cst_114 = arith.constant dense<0.000000e+00> : vector<1x16x16x128xf32>
    %38 = tpu.matmul %35, %37, %cst_114 {dimension_numbers = #tpu.dot_dimension_numbers<[3], [0], [0, 1, 2], [1], [0, 0, 0, 1, 0, 2, 1, 1], [], []>} : vector<1x16x16x384xbf16>, vector<384x128xbf16>, vector<1x16x16x128xf32> -> vector<1x16x16x128xf32>
    %39 = arith.addf %28, %38 : vector<1x16x16x128xf32>
    %c0_115 = arith.constant 0 : index
    %c0_116 = arith.constant 0 : index
    %40 = vector.load %arg3[%c0_115, %c0_116] : memref<1x128xf32, #tpu.memory_space<vmem>>, vector<1x128xf32>
    %41 = vector.shape_cast %40 : vector<1x128xf32> to vector<1x1x1x128xf32>
    %42 = vector.broadcast %41 : vector<1x1x1x128xf32> to vector<1x16x16x128xf32>
    %43 = arith.addf %39, %42 : vector<1x16x16x128xf32>
    %cst_117 = arith.constant 0.000000e+00 : f32
    %44 = vector.broadcast %cst_117 : f32 to vector<1x16x16x128xf32>
    %45 = arith.maximumf %43, %44 : vector<1x16x16x128xf32>
    %46 = arith.truncf %45 : vector<1x16x16x128xf32> to vector<1x16x16x128xbf16>
    %c0_118 = arith.constant 0 : index
    %c1_119 = arith.constant 1 : index
    %c1_120 = arith.constant 1 : index
    %c0_121 = arith.constant 0 : index
    %47 = vector.load %arg7[%c0_118, %c1_119, %c1_120, %c0_121] : memref<1x18x18x128xbf16, #tpu.memory_space<vmem>>, vector<1x16x16x128xbf16>
    tpu.vector_store %arg7[%c0_118, %c1_119, %c1_120, %c0_121], %46 {strides = array<i32>} : memref<1x18x18x128xbf16, #tpu.memory_space<vmem>>, vector<1x16x16x128xbf16>,
    %c0_122 = arith.constant 0 : index
    %c0_123 = arith.constant 0 : index
    %c0_124 = arith.constant 0 : index
    %c0_125 = arith.constant 0 : index
    %48 = vector.load %arg7[%c0_122, %c0_123, %c0_124, %c0_125] : memref<1x18x18x128xbf16, #tpu.memory_space<vmem>>, vector<1x16x16x128xbf16>
    %c0_126 = arith.constant 0 : index
    %c0_127 = arith.constant 0 : index
    %c0_128 = arith.constant 0 : index
    %c0_129 = arith.constant 0 : index
    %49 = vector.load %arg8[%c0_126, %c0_127, %c0_128, %c0_129] : memref<1x16x16x384xbf16, #tpu.memory_space<vmem>>, vector<1x16x16x128xbf16>
    tpu.vector_store %arg8[%c0_126, %c0_127, %c0_128, %c0_129], %48 {strides = array<i32>} : memref<1x16x16x384xbf16, #tpu.memory_space<vmem>>, vector<1x16x16x128xbf16>,
    %c0_130 = arith.constant 0 : index
    %c0_131 = arith.constant 0 : index
    %c1_132 = arith.constant 1 : index
    %c0_133 = arith.constant 0 : index
    %50 = vector.load %arg7[%c0_130, %c0_131, %c1_132, %c0_133] : memref<1x18x18x128xbf16, #tpu.memory_space<vmem>>, vector<1x16x16x128xbf16>
    %c0_134 = arith.constant 0 : index
    %c0_135 = arith.constant 0 : index
    %c0_136 = arith.constant 0 : index
    %c128_137 = arith.constant 128 : index
    %51 = vector.load %arg8[%c0_134, %c0_135, %c0_136, %c128_137] : memref<1x16x16x384xbf16, #tpu.memory_space<vmem>>, vector<1x16x16x128xbf16>
    tpu.vector_store %arg8[%c0_134, %c0_135, %c0_136, %c128_137], %50 {strides = array<i32>} : memref<1x16x16x384xbf16, #tpu.memory_space<vmem>>, vector<1x16x16x128xbf16>,
    %c0_138 = arith.constant 0 : index
    %c0_139 = arith.constant 0 : index
    %c2_140 = arith.constant 2 : index
    %c0_141 = arith.constant 0 : index
    %52 = vector.load %arg7[%c0_138, %c0_139, %c2_140, %c0_141] : memref<1x18x18x128xbf16, #tpu.memory_space<vmem>>, vector<1x16x16x128xbf16>
    %c0_142 = arith.constant 0 : index
    %c0_143 = arith.constant 0 : index
    %c0_144 = arith.constant 0 : index
    %c256_145 = arith.constant 256 : index
    %53 = vector.load %arg8[%c0_142, %c0_143, %c0_144, %c256_145] : memref<1x16x16x384xbf16, #tpu.memory_space<vmem>>, vector<1x16x16x128xbf16>
    tpu.vector_store %arg8[%c0_142, %c0_143, %c0_144, %c256_145], %52 {strides = array<i32>} : memref<1x16x16x384xbf16, #tpu.memory_space<vmem>>, vector<1x16x16x128xbf16>,
    %c0_146 = arith.constant 0 : index
    %c0_147 = arith.constant 0 : index
    %c0_148 = arith.constant 0 : index
    %c0_149 = arith.constant 0 : index
    %54 = vector.load %arg8[%c0_146, %c0_147, %c0_148, %c0_149] : memref<1x16x16x384xbf16, #tpu.memory_space<vmem>>, vector<1x16x16x384xbf16>
    %c0_150 = arith.constant 0 : index
    %c0_151 = arith.constant 0 : index
    %c0_152 = arith.constant 0 : index
    %55 = vector.load %arg4[%c0_150, %c0_151, %c0_152] : memref<3x384x128xbf16, #tpu.memory_space<vmem>>, vector<1x384x128xbf16>
    %56 = vector.shape_cast %55 : vector<1x384x128xbf16> to vector<384x128xbf16>
    %cst_153 = arith.constant dense<0.000000e+00> : vector<1x16x16x128xf32>
    %57 = tpu.matmul %54, %56, %cst_153 {dimension_numbers = #tpu.dot_dimension_numbers<[3], [0], [0, 1, 2], [1], [0, 0, 0, 1, 0, 2, 1, 1], [], []>} : vector<1x16x16x384xbf16>, vector<384x128xbf16>, vector<1x16x16x128xf32> -> vector<1x16x16x128xf32>
    %c0_154 = arith.constant 0 : index
    %c1_155 = arith.constant 1 : index
    %c0_156 = arith.constant 0 : index
    %c0_157 = arith.constant 0 : index
    %58 = vector.load %arg7[%c0_154, %c1_155, %c0_156, %c0_157] : memref<1x18x18x128xbf16, #tpu.memory_space<vmem>>, vector<1x16x16x128xbf16>
    %c0_158 = arith.constant 0 : index
    %c0_159 = arith.constant 0 : index
    %c0_160 = arith.constant 0 : index
    %c0_161 = arith.constant 0 : index
    %59 = vector.load %arg8[%c0_158, %c0_159, %c0_160, %c0_161] : memref<1x16x16x384xbf16, #tpu.memory_space<vmem>>, vector<1x16x16x128xbf16>
    tpu.vector_store %arg8[%c0_158, %c0_159, %c0_160, %c0_161], %58 {strides = array<i32>} : memref<1x16x16x384xbf16, #tpu.memory_space<vmem>>, vector<1x16x16x128xbf16>,
    %c0_162 = arith.constant 0 : index
    %c1_163 = arith.constant 1 : index
    %c1_164 = arith.constant 1 : index
    %c0_165 = arith.constant 0 : index
    %60 = vector.load %arg7[%c0_162, %c1_163, %c1_164, %c0_165] : memref<1x18x18x128xbf16, #tpu.memory_space<vmem>>, vector<1x16x16x128xbf16>
    %c0_166 = arith.constant 0 : index
    %c0_167 = arith.constant 0 : index
    %c0_168 = arith.constant 0 : index
    %c128_169 = arith.constant 128 : index
    %61 = vector.load %arg8[%c0_166, %c0_167, %c0_168, %c128_169] : memref<1x16x16x384xbf16, #tpu.memory_space<vmem>>, vector<1x16x16x128xbf16>
    tpu.vector_store %arg8[%c0_166, %c0_167, %c0_168, %c128_169], %60 {strides = array<i32>} : memref<1x16x16x384xbf16, #tpu.memory_space<vmem>>, vector<1x16x16x128xbf16>,
    %c0_170 = arith.constant 0 : index
    %c1_171 = arith.constant 1 : index
    %c2_172 = arith.constant 2 : index
    %c0_173 = arith.constant 0 : index
    %62 = vector.load %arg7[%c0_170, %c1_171, %c2_172, %c0_173] : memref<1x18x18x128xbf16, #tpu.memory_space<vmem>>, vector<1x16x16x128xbf16>
    %c0_174 = arith.constant 0 : index
    %c0_175 = arith.constant 0 : index
    %c0_176 = arith.constant 0 : index
    %c256_177 = arith.constant 256 : index
    %63 = vector.load %arg8[%c0_174, %c0_175, %c0_176, %c256_177] : memref<1x16x16x384xbf16, #tpu.memory_space<vmem>>, vector<1x16x16x128xbf16>
    tpu.vector_store %arg8[%c0_174, %c0_175, %c0_176, %c256_177], %62 {strides = array<i32>} : memref<1x16x16x384xbf16, #tpu.memory_space<vmem>>, vector<1x16x16x128xbf16>,
    %c0_178 = arith.constant 0 : index
    %c0_179 = arith.constant 0 : index
    %c0_180 = arith.constant 0 : index
    %c0_181 = arith.constant 0 : index
    %64 = vector.load %arg8[%c0_178, %c0_179, %c0_180, %c0_181] : memref<1x16x16x384xbf16, #tpu.memory_space<vmem>>, vector<1x16x16x384xbf16>
    %c1_182 = arith.constant 1 : index
    %c0_183 = arith.constant 0 : index
    %c0_184 = arith.constant 0 : index
    %65 = vector.load %arg4[%c1_182, %c0_183, %c0_184] : memref<3x384x128xbf16, #tpu.memory_space<vmem>>, vector<1x384x128xbf16>
    %66 = vector.shape_cast %65 : vector<1x384x128xbf16> to vector<384x128xbf16>
    %cst_185 = arith.constant dense<0.000000e+00> : vector<1x16x16x128xf32>
    %67 = tpu.matmul %64, %66, %cst_185 {dimension_numbers = #tpu.dot_dimension_numbers<[3], [0], [0, 1, 2], [1], [0, 0, 0, 1, 0, 2, 1, 1], [], []>} : vector<1x16x16x384xbf16>, vector<384x128xbf16>, vector<1x16x16x128xf32> -> vector<1x16x16x128xf32>
    %68 = arith.addf %57, %67 : vector<1x16x16x128xf32>
    %c0_186 = arith.constant 0 : index
    %c2_187 = arith.constant 2 : index
    %c0_188 = arith.constant 0 : index
    %c0_189 = arith.constant 0 : index
    %69 = vector.load %arg7[%c0_186, %c2_187, %c0_188, %c0_189] : memref<1x18x18x128xbf16, #tpu.memory_space<vmem>>, vector<1x16x16x128xbf16>
    %c0_190 = arith.constant 0 : index
    %c0_191 = arith.constant 0 : index
    %c0_192 = arith.constant 0 : index
    %c0_193 = arith.constant 0 : index
    %70 = vector.load %arg8[%c0_190, %c0_191, %c0_192, %c0_193] : memref<1x16x16x384xbf16, #tpu.memory_space<vmem>>, vector<1x16x16x128xbf16>
    tpu.vector_store %arg8[%c0_190, %c0_191, %c0_192, %c0_193], %69 {strides = array<i32>} : memref<1x16x16x384xbf16, #tpu.memory_space<vmem>>, vector<1x16x16x128xbf16>,
    %c0_194 = arith.constant 0 : index
    %c2_195 = arith.constant 2 : index
    %c1_196 = arith.constant 1 : index
    %c0_197 = arith.constant 0 : index
    %71 = vector.load %arg7[%c0_194, %c2_195, %c1_196, %c0_197] : memref<1x18x18x128xbf16, #tpu.memory_space<vmem>>, vector<1x16x16x128xbf16>
    %c0_198 = arith.constant 0 : index
    %c0_199 = arith.constant 0 : index
    %c0_200 = arith.constant 0 : index
    %c128_201 = arith.constant 128 : index
    %72 = vector.load %arg8[%c0_198, %c0_199, %c0_200, %c128_201] : memref<1x16x16x384xbf16, #tpu.memory_space<vmem>>, vector<1x16x16x128xbf16>
    tpu.vector_store %arg8[%c0_198, %c0_199, %c0_200, %c128_201], %71 {strides = array<i32>} : memref<1x16x16x384xbf16, #tpu.memory_space<vmem>>, vector<1x16x16x128xbf16>,
    %c0_202 = arith.constant 0 : index
    %c2_203 = arith.constant 2 : index
    %c2_204 = arith.constant 2 : index
    %c0_205 = arith.constant 0 : index
    %73 = vector.load %arg7[%c0_202, %c2_203, %c2_204, %c0_205] : memref<1x18x18x128xbf16, #tpu.memory_space<vmem>>, vector<1x16x16x128xbf16>
    %c0_206 = arith.constant 0 : index
    %c0_207 = arith.constant 0 : index
    %c0_208 = arith.constant 0 : index
    %c256_209 = arith.constant 256 : index
    %74 = vector.load %arg8[%c0_206, %c0_207, %c0_208, %c256_209] : memref<1x16x16x384xbf16, #tpu.memory_space<vmem>>, vector<1x16x16x128xbf16>
    tpu.vector_store %arg8[%c0_206, %c0_207, %c0_208, %c256_209], %73 {strides = array<i32>} : memref<1x16x16x384xbf16, #tpu.memory_space<vmem>>, vector<1x16x16x128xbf16>,
    %c0_210 = arith.constant 0 : index
    %c0_211 = arith.constant 0 : index
    %c0_212 = arith.constant 0 : index
    %c0_213 = arith.constant 0 : index
    %75 = vector.load %arg8[%c0_210, %c0_211, %c0_212, %c0_213] : memref<1x16x16x384xbf16, #tpu.memory_space<vmem>>, vector<1x16x16x384xbf16>
    %c2_214 = arith.constant 2 : index
    %c0_215 = arith.constant 0 : index
    %c0_216 = arith.constant 0 : index
    %76 = vector.load %arg4[%c2_214, %c0_215, %c0_216] : memref<3x384x128xbf16, #tpu.memory_space<vmem>>, vector<1x384x128xbf16>
    %77 = vector.shape_cast %76 : vector<1x384x128xbf16> to vector<384x128xbf16>
    %cst_217 = arith.constant dense<0.000000e+00> : vector<1x16x16x128xf32>
    %78 = tpu.matmul %75, %77, %cst_217 {dimension_numbers = #tpu.dot_dimension_numbers<[3], [0], [0, 1, 2], [1], [0, 0, 0, 1, 0, 2, 1, 1], [], []>} : vector<1x16x16x384xbf16>, vector<384x128xbf16>, vector<1x16x16x128xf32> -> vector<1x16x16x128xf32>
    %79 = arith.addf %68, %78 : vector<1x16x16x128xf32>
    %c0_218 = arith.constant 0 : index
    %c0_219 = arith.constant 0 : index
    %80 = vector.load %arg5[%c0_218, %c0_219] : memref<1x128xf32, #tpu.memory_space<vmem>>, vector<1x128xf32>
    %81 = vector.shape_cast %80 : vector<1x128xf32> to vector<1x1x1x128xf32>
    %82 = vector.broadcast %81 : vector<1x1x1x128xf32> to vector<1x16x16x128xf32>
    %83 = arith.addf %79, %82 : vector<1x16x16x128xf32>
    %c0_220 = arith.constant 0 : index
    %c0_221 = arith.constant 0 : index
    %c0_222 = arith.constant 0 : index
    %c0_223 = arith.constant 0 : index
    %84 = vector.load %arg1[%c0_220, %c0_221, %c0_222, %c0_223] : memref<1x16x16x128xbf16, #tpu.memory_space<vmem>>, vector<1x16x16x128xbf16>
    %85 = arith.extf %84 : vector<1x16x16x128xbf16> to vector<1x16x16x128xf32>
    %86 = arith.addf %83, %85 : vector<1x16x16x128xf32>
    %cst_224 = arith.constant 0.000000e+00 : f32
    %87 = vector.broadcast %cst_224 : f32 to vector<1x16x16x128xf32>
    %88 = arith.maximumf %86, %87 : vector<1x16x16x128xf32>
    %89 = arith.truncf %88 : vector<1x16x16x128xf32> to vector<1x16x16x128xbf16>
    %c0_225 = arith.constant 0 : index
    %c0_226 = arith.constant 0 : index
    %c0_227 = arith.constant 0 : index
    %c0_228 = arith.constant 0 : index
    %90 = vector.load %arg6[%c0_225, %c0_226, %c0_227, %c0_228] : memref<1x16x16x128xbf16, #tpu.memory_space<vmem>>, vector<1x16x16x128xbf16>
    tpu.vector_store %arg6[%c0_225, %c0_226, %c0_227, %c0_228], %89 {strides = array<i32>} : memref<1x16x16x128xbf16, #tpu.memory_space<vmem>>, vector<1x16x16x128xbf16>,
    return
  }
  func.func @transform_0(%arg0: i32) -> (i32, i32, i32, i32) {
    %c0_i32 = arith.constant 0 : i32
    %c0_i32_0 = arith.constant 0 : i32
    %c0_i32_1 = arith.constant 0 : i32
    %c0_i32_2 = arith.constant 0 : i32
    return %arg0, %c0_i32, %c0_i32_0, %c0_i32_1 : i32, i32, i32, i32
  }
  func.func @transform_1(%arg0: i32) -> (i32, i32, i32) {
    %c0_i32 = arith.constant 0 : i32
    %c0_i32_0 = arith.constant 0 : i32
    %c0_i32_1 = arith.constant 0 : i32
    %c0_i32_2 = arith.constant 0 : i32
    return %c0_i32, %c0_i32_0, %c0_i32_1 : i32, i32, i32
  }
  func.func @transform_2(%arg0: i32) -> (i32, i32) {
    %c0_i32 = arith.constant 0 : i32
    %c0_i32_0 = arith.constant 0 : i32
    %c0_i32_1 = arith.constant 0 : i32
    return %c0_i32, %c0_i32_0 : i32, i32
  }
  func.func @transform_3(%arg0: i32) -> (i32, i32, i32) {
    %c0_i32 = arith.constant 0 : i32
    %c0_i32_0 = arith.constant 0 : i32
    %c0_i32_1 = arith.constant 0 : i32
    %c0_i32_2 = arith.constant 0 : i32
    return %c0_i32, %c0_i32_0, %c0_i32_1 : i32, i32, i32
  }
  func.func @transform_4(%arg0: i32) -> (i32, i32) {
    %c0_i32 = arith.constant 0 : i32
    %c0_i32_0 = arith.constant 0 : i32
    %c0_i32_1 = arith.constant 0 : i32
    return %c0_i32, %c0_i32_0 : i32, i32
  }
  func.func @transform_5(%arg0: i32) -> (i32, i32, i32, i32) {
    %c0_i32 = arith.constant 0 : i32
    %c0_i32_0 = arith.constant 0 : i32
    %c0_i32_1 = arith.constant 0 : i32
    %c0_i32_2 = arith.constant 0 : i32
    return %arg0, %c0_i32, %c0_i32_0, %c0_i32_1 : i32, i32, i32, i32
  }
}

</mosaic_0001>

<llo_original>
// kernel: basic_block_pallas.1
$region0: #{basic_block_pallas.1}
  #allocation0 [shape = 'u32[]', space=smem, size = 0x4, offset = 0x4, fixed_abs, tag = 'smem constant byte address 0x4 - core index']
  #allocation1 [shape = 'u32[144,128]{1,0:T(1,128)}', space=vmem, size = 0x12000, scoped, tag = 'internal scratch']
  #allocation2 [shape = 'bf16[1,18,18,128]{3,2,1,0:T(8,128)(2,1)}', space=vmem, size = 0x1b000, scoped, tag = 'scratch operand']
  #allocation3 [shape = 'bf16[1,16,16,384]{3,2,1,0:T(16,128)(2,1)}', space=vmem, size = 0x30000, scoped, tag = 'scratch operand']
  %s0 = inlined_call_operand.vmem [shape: bf16[2,16,16,128], index: 0, kind: input, shape index: {}]
  %s1 = inlined_call_operand.vmem [shape: bf16[3,384,128], index: 1, kind: input, shape index: {}]
  %s2 = inlined_call_operand.vmem [shape: f32[1,128], index: 2, kind: input, shape index: {}]
  %s3 = inlined_call_operand.vmem [shape: bf16[3,384,128], index: 3, kind: input, shape index: {}]
  %s4 = inlined_call_operand.vmem [shape: f32[1,128], index: 4, kind: input, shape index: {}]
  %s5 = inlined_call_operand.vmem [shape: bf16[2,16,16,128], index: 5, kind: output, shape index: {}]
  %s6 = sld [smem:[#allocation0]]
  $region53: #{basic_block_pallas.1} parent=0
    _
  %s8 = ssub.s32 1, %s6
  %s9 = scalar_select 0, %s8, %s6
  loop: start=0, step=1, limit=4
  $region2: #{basic_block_pallas.1} parent=0 // loop_pre_header
    _
  $region3: #{basic_block_pallas.1} parent=0 // loop_header
    %s11 = sphi 0, %s15
    %p12 = scmp.ge.s32.totalorder %s11, 4
    %s21 = sphi 0, %s23
    %s24 = sphi 0, %s21
    %s25 = sphi 0, %s24
    %s41 = sphi 0, %s25
    %s45 = sphi 0, %s45
    %s47 = sphi 0, %s45
    %s48 = sphi 0, %s47
    %s62 = sphi 0, %s48
    %s66 = sphi 0, %s66
    %s68 = sphi 0, %s66
    %s69 = sphi 0, %s68
    %s83 = sphi 0, %s69
    %s87 = sphi 0, %s87
    %s89 = sphi 0, %s87
    %s90 = sphi 0, %s89
    %s104 = sphi 0, %s90
    %s108 = sphi 0, %s108
    %s110 = sphi 0, %s108
    %s111 = sphi 0, %s110
    %s125 = sphi 0, %s111
    %s131 = sphi 0, %s133
    %s134 = sphi 0, %s131
    %s135 = sphi 0, %s134
    %s151 = sphi 0, %s135
  $region4: #{basic_block_pallas.1} parent=0 // loop_header_branch
    %14 = sbr.rel (%p12) target = $region8
  $region5: #{basic_block_pallas.1} parent=0 // loop_body
    %s16 = ssub.s32 %s11, 1
    %s17 = ssub.s32 %s11, 2
    %s18 = sadd.s32 %s11, 1
    %s19 = ssub.s32 %s11, %s18
    %p20 = scmp.eq.s32.totalorder %s19, 0
    %s22 = sadd.s32 %s21, 1
    %s23 = scalar_select %p20, %s21, %s22
    %p26 = pneg %p20
    %p27 = scmp.eq.s32.totalorder %s11, 1
    %p28 = por %p26, %p27
    %p29 = scmp.ne.s32.totalorder %s21, %s24
    %p30 = scmp.eq.s32.totalorder %s11, 0
    %p31 = por %p29, %p30
    %p32 = scmp.ne.s32.totalorder %s21, %s24
    %p33 = scmp.eq.s32.totalorder %s16, 1
    %p34 = por %p32, %p33
    %p35 = scmp.ne.s32.totalorder %s24, %s25
    %p36 = scmp.eq.s32.totalorder %s16, 0
    %p37 = por %p35, %p36
    %p38 = scmp.ne.s32.totalorder %s24, %s25
    %p39 = scmp.eq.s32.totalorder %s17, 1
    %p40 = por %p38, %p39
    %p42 = scmp.ne.s32.totalorder %s25, %s41
    %p43 = scmp.eq.s32.totalorder %s17, 0
    %p44 = por %p42, %p43
    %s46 = sadd.s32 %s45, 1
    %p49 = scmp.eq.s32.totalorder %s11, 1
    %p50 = scmp.ne.s32.totalorder %s45, %s47
    %p51 = scmp.eq.s32.totalorder %s11, 0
    %p52 = por %p50, %p51
    %p53 = scmp.ne.s32.totalorder %s45, %s47
    %p54 = scmp.eq.s32.totalorder %s16, 1
    %p55 = por %p53, %p54
    %p56 = scmp.ne.s32.totalorder %s47, %s48
    %p57 = scmp.eq.s32.totalorder %s16, 0
    %p58 = por %p56, %p57
    %p59 = scmp.ne.s32.totalorder %s47, %s48
    %p60 = scmp.eq.s32.totalorder %s17, 1
    %p61 = por %p59, %p60
    %p63 = scmp.ne.s32.totalorder %s48, %s62
    %p64 = scmp.eq.s32.totalorder %s17, 0
    %p65 = por %p63, %p64
    %s67 = sadd.s32 %s66, 1
    %p70 = scmp.eq.s32.totalorder %s11, 1
    %p71 = scmp.ne.s32.totalorder %s66, %s68
    %p72 = scmp.eq.s32.totalorder %s11, 0
    %p73 = por %p71, %p72
    %p74 = scmp.ne.s32.totalorder %s66, %s68
    %p75 = scmp.eq.s32.totalorder %s16, 1
    %p76 = por %p74, %p75
    %p77 = scmp.ne.s32.totalorder %s68, %s69
    %p78 = scmp.eq.s32.totalorder %s16, 0
    %p79 = por %p77, %p78
    %p80 = scmp.ne.s32.totalorder %s68, %s69
    %p81 = scmp.eq.s32.totalorder %s17, 1
    %p82 = por %p80, %p81
    %p84 = scmp.ne.s32.totalorder %s69, %s83
    %p85 = scmp.eq.s32.totalorder %s17, 0
    %p86 = por %p84, %p85
    %s88 = sadd.s32 %s87, 1
    %p91 = scmp.eq.s32.totalorder %s11, 1
    %p92 = scmp.ne.s32.totalorder %s87, %s89
    %p93 = scmp.eq.s32.totalorder %s11, 0
    %p94 = por %p92, %p93
    %p95 = scmp.ne.s32.totalorder %s87, %s89
    %p96 = scmp.eq.s32.totalorder %s16, 1
    %p97 = por %p95, %p96
    %p98 = scmp.ne.s32.totalorder %s89, %s90
    %p99 = scmp.eq.s32.totalorder %s16, 0
    %p100 = por %p98, %p99
    %p101 = scmp.ne.s32.totalorder %s89, %s90
    %p102 = scmp.eq.s32.totalorder %s17, 1
    %p103 = por %p101, %p102
    %p105 = scmp.ne.s32.totalorder %s90, %s104
    %p106 = scmp.eq.s32.totalorder %s17, 0
    %p107 = por %p105, %p106
    %s109 = sadd.s32 %s108, 1
    %p112 = scmp.eq.s32.totalorder %s11, 1
    %p113 = scmp.ne.s32.totalorder %s108, %s110
    %p114 = scmp.eq.s32.totalorder %s11, 0
    %p115 = por %p113, %p114
    %p116 = scmp.ne.s32.totalorder %s108, %s110
    %p117 = scmp.eq.s32.totalorder %s16, 1
    %p118 = por %p116, %p117
    %p119 = scmp.ne.s32.totalorder %s110, %s111
    %p120 = scmp.eq.s32.totalorder %s16, 0
    %p121 = por %p119, %p120
    %p122 = scmp.ne.s32.totalorder %s110, %s111
    %p123 = scmp.eq.s32.totalorder %s17, 1
    %p124 = por %p122, %p123
    %p126 = scmp.ne.s32.totalorder %s111, %s125
    %p127 = scmp.eq.s32.totalorder %s17, 0
    %p128 = por %p126, %p127
    %s129 = ssub.s32 %s11, %s18
    %p130 = scmp.eq.s32.totalorder %s129, 0
    %s132 = sadd.s32 %s131, 1
    %s133 = scalar_select %p130, %s131, %s132
    %p136 = pneg %p130
    %p137 = scmp.eq.s32.totalorder %s11, 1
    %p138 = por %p136, %p137
    %p139 = scmp.ne.s32.totalorder %s131, %s134
    %p140 = scmp.eq.s32.totalorder %s11, 0
    %p141 = por %p139, %p140
    %p142 = scmp.ne.s32.totalorder %s131, %s134
    %p143 = scmp.eq.s32.totalorder %s16, 1
    %p144 = por %p142, %p143
    %p145 = scmp.ne.s32.totalorder %s134, %s135
    %p146 = scmp.eq.s32.totalorder %s16, 0
    %p147 = por %p145, %p146
    %p148 = scmp.ne.s32.totalorder %s134, %s135
    %p149 = scmp.eq.s32.totalorder %s17, 1
    %p150 = por %p148, %p149
    %p152 = scmp.ne.s32.totalorder %s135, %s151
    %p153 = scmp.eq.s32.totalorder %s17, 0
    %p154 = por %p152, %p153
    %p155 = scmp.le.s32.totalorder 1, %s11
    %p156 = scmp.lt.s32.totalorder %s11, 3
    %p157 = pnand %p155, %p156
    %p158 = pneg %p157
    // Predicated region
    $region9: #{basic_block_pallas.1} parent=5 // pred_check
      _
    $region10: #{basic_block_pallas.1} parent=5 // pred_check_branch
      %160 = sbr.rel (%p157) target = $region12
    $region11: #{basic_block_pallas.1} parent=5 // pred_region
      %s161 = ssub.s32 %s11, 1
      // Predicated region
      $region13: #{basic_block_pallas.1} parent=11 // pred_check
        %p162 = pneg %p58
      $region14: #{basic_block_pallas.1} parent=11 // pred_check_branch
        %164 = sbr.rel (%p162) target = $region16
      $region15: #{basic_block_pallas.1} parent=11 // pred_region
        _
      $region16: #{basic_block_pallas.1} parent=11 // pred_fallthru
        _
      // Predicated region
      $region17: #{basic_block_pallas.1} parent=11 // pred_check
        %p165 = pneg %p79
      $region18: #{basic_block_pallas.1} parent=11 // pred_check_branch
        %167 = sbr.rel (%p165) target = $region20
      $region19: #{basic_block_pallas.1} parent=11 // pred_region
        _
      $region20: #{basic_block_pallas.1} parent=11 // pred_fallthru
        _
      // Predicated region
      $region21: #{basic_block_pallas.1} parent=11 // pred_check
        %p168 = pneg %p100
      $region22: #{basic_block_pallas.1} parent=11 // pred_check_branch
        %170 = sbr.rel (%p168) target = $region24
      $region23: #{basic_block_pallas.1} parent=11 // pred_region
        _
      $region24: #{basic_block_pallas.1} parent=11 // pred_fallthru
        _
      // Predicated region
      $region25: #{basic_block_pallas.1} parent=11 // pred_check
        %p171 = pneg %p121
      $region26: #{basic_block_pallas.1} parent=11 // pred_check_branch
        %173 = sbr.rel (%p171) target = $region28
      $region27: #{basic_block_pallas.1} parent=11 // pred_region
        _
      $region28: #{basic_block_pallas.1} parent=11 // pred_fallthru
        _
    $region12: #{basic_block_pallas.1} parent=5 // pred_fallthru
      _
    %p174 = scmp.lt.s32.totalorder %s11, 2
    // Predicated region
    $region29: #{basic_block_pallas.1} parent=5 // pred_check
      %p175 = pneg %p174
    $region30: #{basic_block_pallas.1} parent=5 // pred_check_branch
      %177 = sbr.rel (%p175) target = $region32
    $region31: #{basic_block_pallas.1} parent=5 // pred_region
      // Predicated region
      $region33: #{basic_block_pallas.1} parent=31 // pred_check
        %p178 = pneg %p31
      $region34: #{basic_block_pallas.1} parent=31 // pred_check_branch
        %180 = sbr.rel (%p178) target = $region36
      $region35: #{basic_block_pallas.1} parent=31 // pred_region
        %p181 = scmp.lt.s32.totalorder %s11, 1
        %s182 = scalar_select %p181, %s11, 1
        %s183 = smul.addr %s182, 32
        %s184 = smul.addr %s183, 4
        %s185 = scalar_lea.vmem %s0, %s184
      $region36: #{basic_block_pallas.1} parent=31 // pred_fallthru
        _
    $region32: #{basic_block_pallas.1} parent=5 // pred_fallthru
      _
    %p186 = scmp.le.s32.totalorder 1, %s11
    %p187 = scmp.lt.s32.totalorder %s11, 3
    %p188 = pnand %p186, %p187
    %p189 = pneg %p188
    // Predicated region
    $region37: #{basic_block_pallas.1} parent=5 // pred_check
      _
    $region38: #{basic_block_pallas.1} parent=5 // pred_check_branch
      %191 = sbr.rel (%p188) target = $region40
    $region39: #{basic_block_pallas.1} parent=5 // pred_region
      %s192 = ssub.s32 %s11, 1
      %p193 = scmp.lt.s32.totalorder %s16, 1
      %s194 = scalar_select %p193, %s16, 1
      %s195 = smul.addr %s194, 32
      %s196 = smul.addr %s195, 4
      %s197 = scalar_lea.vmem %s0, %s196
      %p198 = pneg %p37
      %p199 = pneg %p34
      %p200 = pneg %p58
      %p201 = pneg %p55
      %p202 = pneg %p79
      %p203 = pneg %p76
      %p204 = pneg %p100
      %p205 = pneg %p97
      %p206 = pneg %p121
      %p207 = pneg %p118
      %p208 = pneg %p147
      %p209 = pneg %p144
      %p210 = scmp.lt.s32.totalorder %s16, 1
      %s211 = scalar_select %p210, %s16, 1
      %s212 = smul.addr %s211, 32
      %s213 = smul.addr %s212, 4
      %s214 = scalar_lea.vmem %s5, %s213
      %p215 = scmp.lt.s32.totalorder %s16, 1
      %s216 = scalar_select %p215, %s16, 1
      %s217 = smul.addr %s216, 32
      %s218 = smul.addr %s217, 4
      %s219 = scalar_lea.vmem %s0, %s218
      %p220 = scmp.lt.s32.totalorder %s16, 1
      %s221 = scalar_select %p220, %s16, 1
      %s222 = smul.addr %s221, 32
      %s223 = smul.addr %s222, 4
      %s224 = scalar_lea.vmem %s5, %s223
      %226 = vst [vmem:[#allocation2] sm:$0xf] 0
      %227 = vst [vmem:[#allocation2 + $0x4] sm:$0xf] 0
      %228 = vst [vmem:[#allocation2 + $0x8] sm:$0x1] 0
      %s229 = scalar_lea.vmem [#allocation2], 204
      %230 = vst [vmem:[%s229] sm:$0xf] 0
      %231 = vst [vmem:[%s229 + $0x4] sm:$0xf] 0
      %232 = vst [vmem:[%s229 + $0x8] sm:$0x1] 0
      %vm233 = vcmask 1040384
      %vm234 = vsmask.f32 256
      %vm235 = vmand %vm233, %vm234
      %v236 = vld [vmem:[#allocation2] sm:$0x1]
      %v237 = vsel %vm235, 0, %v236
      %238 = vst [vmem:[#allocation2] sm:$0x1] %v237
      %v239 = vld [vmem:[#allocation2 + $0xc] sm:$0x1]
      %v240 = vsel %vm235, 0, %v239
      %241 = vst [vmem:[#allocation2 + $0xc] sm:$0x1] %v240
      %v242 = vld [vmem:[#allocation2 + $0x18] sm:$0x1]
      %v243 = vsel %vm235, 0, %v242
      %244 = vst [vmem:[#allocation2 + $0x18] sm:$0x1] %v243
      %v245 = vld [vmem:[#allocation2 + $0x24] sm:$0x1]
      %v246 = vsel %vm235, 0, %v245
      %247 = vst [vmem:[#allocation2 + $0x24] sm:$0x1] %v246
      %v248 = vld [vmem:[#allocation2 + $0x30] sm:$0x1]
      %v249 = vsel %vm235, 0, %v248
      %250 = vst [vmem:[#allocation2 + $0x30] sm:$0x1] %v249
      %v251 = vld [vmem:[#allocation2 + $0x3c] sm:$0x1]
      %v252 = vsel %vm235, 0, %v251
      %253 = vst [vmem:[#allocation2 + $0x3c] sm:$0x1] %v252
      %v254 = vld [vmem:[#allocation2 + $0x48] sm:$0x1]
      %v255 = vsel %vm235, 0, %v254
      %256 = vst [vmem:[#allocation2 + $0x48] sm:$0x1] %v255
      %v257 = vld [vmem:[#allocation2 + $0x54] sm:$0x1]
      %v258 = vsel %vm235, 0, %v257
      %259 = vst [vmem:[#allocation2 + $0x54] sm:$0x1] %v258
      %v260 = vld [vmem:[#allocation2 + $0x60] sm:$0x1]
      %v261 = vsel %vm235, 0, %v260
      %262 = vst [vmem:[#allocation2 + $0x60] sm:$0x1] %v261
      %v263 = vld [vmem:[#allocation2 + $0x6c] sm:$0x1]
      %v264 = vsel %vm235, 0, %v263
      %265 = vst [vmem:[#allocation2 + $0x6c] sm:$0x1] %v264
      %v266 = vld [vmem:[#allocation2 + $0x78] sm:$0x1]
      %v267 = vsel %vm235, 0, %v266
      %268 = vst [vmem:[#allocation2 + $0x78] sm:$0x1] %v267
      %v269 = vld [vmem:[#allocation2 + $0x84] sm:$0x1]
      %v270 = vsel %vm235, 0, %v269
      %271 = vst [vmem:[#allocation2 + $0x84] sm:$0x1] %v270
      %v272 = vld [vmem:[#allocation2 + $0x90] sm:$0x1]
      %v273 = vsel %vm235, 0, %v272
      %274 = vst [vmem:[#allocation2 + $0x90] sm:$0x1] %v273
      %v275 = vld [vmem:[#allocation2 + $0x9c] sm:$0x1]
      %v276 = vsel %vm235, 0, %v275
      %277 = vst [vmem:[#allocation2 + $0x9c] sm:$0x1] %v276
      %v278 = vld [vmem:[#allocation2 + $0xa8] sm:$0x1]
      %v279 = vsel %vm235, 0, %v278
      %280 = vst [vmem:[#allocation2 + $0xa8] sm:$0x1] %v279
      %v281 = vld [vmem:[#allocation2 + $0xb4] sm:$0x1]
      %v282 = vsel %vm235, 0, %v281
      %283 = vst [vmem:[#allocation2 + $0xb4] sm:$0x1] %v282
      %v284 = vld [vmem:[#allocation2 + $0xc0] sm:$0x1]
      %v285 = vsel %vm235, 0, %v284
      %286 = vst [vmem:[#allocation2 + $0xc0] sm:$0x1] %v285
      %v287 = vld [vmem:[#allocation2 + $0xcc] sm:$0x1]
      %v288 = vsel %vm235, 0, %v287
      %289 = vst [vmem:[#allocation2 + $0xcc] sm:$0x1] %v288
      %vm290 = vsmask.f32 7938
      %vm291 = vmand %vm233, %vm290
      %v292 = vld [vmem:[#allocation2 + $0x8] sm:$0x1]
      %v293 = vsel %vm291, 0, %v292
      %294 = vst [vmem:[#allocation2 + $0x8] sm:$0x1] %v293
      %v295 = vld [vmem:[#allocation2 + $0x14] sm:$0x1]
      %v296 = vsel %vm291, 0, %v295
      %297 = vst [vmem:[#allocation2 + $0x14] sm:$0x1] %v296
      %v298 = vld [vmem:[#allocation2 + $0x20] sm:$0x1]
      %v299 = vsel %vm291, 0, %v298
      %300 = vst [vmem:[#allocation2 + $0x20] sm:$0x1] %v299
      %v301 = vld [vmem:[#allocation2 + $0x2c] sm:$0x1]
      %v302 = vsel %vm291, 0, %v301
      %303 = vst [vmem:[#allocation2 + $0x2c] sm:$0x1] %v302
      %v304 = vld [vmem:[#allocation2 + $0x38] sm:$0x1]
      %v305 = vsel %vm291, 0, %v304
      %306 = vst [vmem:[#allocation2 + $0x38] sm:$0x1] %v305
      %v307 = vld [vmem:[#allocation2 + $0x44] sm:$0x1]
      %v308 = vsel %vm291, 0, %v307
      %309 = vst [vmem:[#allocation2 + $0x44] sm:$0x1] %v308
      %v310 = vld [vmem:[#allocation2 + $0x50] sm:$0x1]
      %v311 = vsel %vm291, 0, %v310
      %312 = vst [vmem:[#allocation2 + $0x50] sm:$0x1] %v311
      %v313 = vld [vmem:[#allocation2 + $0x5c] sm:$0x1]
      %v314 = vsel %vm291, 0, %v313
      %315 = vst [vmem:[#allocation2 + $0x5c] sm:$0x1] %v314
      %v316 = vld [vmem:[#allocation2 + $0x68] sm:$0x1]
      %v317 = vsel %vm291, 0, %v316
      %318 = vst [vmem:[#allocation2 + $0x68] sm:$0x1] %v317
      %v319 = vld [vmem:[#allocation2 + $0x74] sm:$0x1]
      %v320 = vsel %vm291, 0, %v319
      %321 = vst [vmem:[#allocation2 + $0x74] sm:$0x1] %v320
      %v322 = vld [vmem:[#allocation2 + $0x80] sm:$0x1]
      %v323 = vsel %vm291, 0, %v322
      %324 = vst [vmem:[#allocation2 + $0x80] sm:$0x1] %v323
      %v325 = vld [vmem:[#allocation2 + $0x8c] sm:$0x1]
      %v326 = vsel %vm291, 0, %v325
      %327 = vst [vmem:[#allocation2 + $0x8c] sm:$0x1] %v326
      %v328 = vld [vmem:[#allocation2 + $0x98] sm:$0x1]
      %v329 = vsel %vm291, 0, %v328
      %330 = vst [vmem:[#allocation2 + $0x98] sm:$0x1] %v329
      %v331 = vld [vmem:[#allocation2 + $0xa4] sm:$0x1]
      %v332 = vsel %vm291, 0, %v331
      %333 = vst [vmem:[#allocation2 + $0xa4] sm:$0x1] %v332
      %v334 = vld [vmem:[#allocation2 + $0xb0] sm:$0x1]
      %v335 = vsel %vm291, 0, %v334
      %336 = vst [vmem:[#allocation2 + $0xb0] sm:$0x1] %v335
      %v337 = vld [vmem:[#allocation2 + $0xbc] sm:$0x1]
      %v338 = vsel %vm291, 0, %v337
      %339 = vst [vmem:[#allocation2 + $0xbc] sm:$0x1] %v338
      %v340 = vld [vmem:[#allocation2 + $0xc8] sm:$0x1]
      %v341 = vsel %vm291, 0, %v340
      %342 = vst [vmem:[#allocation2 + $0xc8] sm:$0x1] %v341
      %v343 = vld [vmem:[#allocation2 + $0xd4] sm:$0x1]
      %v344 = vsel %vm291, 0, %v343
      %345 = vst [vmem:[#allocation2 + $0xd4] sm:$0x1] %v344
      %v346 = vld [vmem:[%s219] sm:$0xf]
      %v347 = vld [vmem:[%s219 + $0x4] sm:$0xf]
      %v348 = vld [vmem:[%s219 + $0x8] sm:$0xf]
      %v349 = vld [vmem:[%s219 + $0xc] sm:$0xf]
      %v350 = vld [vmem:[%s219 + $0x10] sm:$0xf]
      %v351 = vld [vmem:[%s219 + $0x14] sm:$0xf]
      %v352 = vld [vmem:[%s219 + $0x18] sm:$0xf]
      %v353 = vld [vmem:[%s219 + $0x1c] sm:$0xf]
      %v354 = vld [vmem:[%s219 + $0x20] sm:$0xf]
      %v355 = vld [vmem:[%s219 + $0x24] sm:$0xf]
      %v356 = vld [vmem:[%s219 + $0x28] sm:$0xf]
      %v357 = vld [vmem:[%s219 + $0x2c] sm:$0xf]
      %v358 = vld [vmem:[%s219 + $0x30] sm:$0xf]
      %v359 = vld [vmem:[%s219 + $0x34] sm:$0xf]
      %v360 = vld [vmem:[%s219 + $0x38] sm:$0xf]
      %v361 = vld [vmem:[%s219 + $0x3c] sm:$0xf]
      %v362 = vld [vmem:[%s219 + $0x40] sm:$0xf]
      %v363 = vld [vmem:[%s219 + $0x44] sm:$0xf]
      %v364 = vld [vmem:[%s219 + $0x48] sm:$0xf]
      %v365 = vld [vmem:[%s219 + $0x4c] sm:$0xf]
      %v366 = vld [vmem:[%s219 + $0x50] sm:$0xf]
      %v367 = vld [vmem:[%s219 + $0x54] sm:$0xf]
      %v368 = vld [vmem:[%s219 + $0x58] sm:$0xf]
      %v369 = vld [vmem:[%s219 + $0x5c] sm:$0xf]
      %v370 = vld [vmem:[%s219 + $0x60] sm:$0xf]
      %v371 = vld [vmem:[%s219 + $0x64] sm:$0xf]
      %v372 = vld [vmem:[%s219 + $0x68] sm:$0xf]
      %v373 = vld [vmem:[%s219 + $0x6c] sm:$0xf]
      %v374 = vld [vmem:[%s219 + $0x70] sm:$0xf]
      %v375 = vld [vmem:[%s219 + $0x74] sm:$0xf]
      %v376 = vld [vmem:[%s219 + $0x78] sm:$0xf]
      %v377 = vld [vmem:[%s219 + $0x7c] sm:$0xf]
      %vm378 = vsmask.f32 4368
      %vm379 = vmor %vm234, %vm378
      %v381 = vshrl.u32 %v346, 16
      %v383 = vrot.slane %v381, 7
      %v384 = vshll.u32 %v346, 16
      %v386 = vor.u32 %v383, %v384
      %v387 = vrot.slane %v383, 4
      %v389 = vshrl.u32 %v347, 16
      %v391 = vrot.slane %v389, 7
      %v392 = vshll.u32 %v347, 16
      %v394 = vor.u32 %v391, %v392
      %v395 = vsel %vm379, %v387, %v394
      %v396 = vrot.slane %v391, 4
      %v398 = vshrl.u32 %v348, 16
      %v400 = vrot.slane %v398, 7
      %v401 = vshll.u32 %v348, 16
      %v403 = vor.u32 %v400, %v401
      %v404 = vrot.slane %v400, 4
      %v406 = vshrl.u32 %v349, 16
      %v408 = vrot.slane %v406, 7
      %v409 = vshll.u32 %v349, 16
      %v411 = vor.u32 %v408, %v409
      %v412 = vsel %vm379, %v404, %v411
      %v413 = vrot.slane %v408, 4
      %v415 = vshrl.u32 %v350, 16
      %v417 = vrot.slane %v415, 7
      %v418 = vshll.u32 %v350, 16
      %v420 = vor.u32 %v417, %v418
      %v421 = vrot.slane %v417, 4
      %v423 = vshrl.u32 %v351, 16
      %v425 = vrot.slane %v423, 7
      %v426 = vshll.u32 %v351, 16
      %v428 = vor.u32 %v425, %v426
      %v429 = vsel %vm379, %v421, %v428
      %v430 = vrot.slane %v425, 4
      %v432 = vshrl.u32 %v352, 16
      %v434 = vrot.slane %v432, 7
      %v435 = vshll.u32 %v352, 16
      %v437 = vor.u32 %v434, %v435
      %v438 = vrot.slane %v434, 4
      %v440 = vshrl.u32 %v353, 16
      %v442 = vrot.slane %v440, 7
      %v443 = vshll.u32 %v353, 16
      %v445 = vor.u32 %v442, %v443
      %v446 = vsel %vm379, %v438, %v445
      %v447 = vrot.slane %v442, 4
      %v449 = vshrl.u32 %v354, 16
      %v451 = vrot.slane %v449, 7
      %v452 = vshll.u32 %v354, 16
      %v454 = vor.u32 %v451, %v452
      %v455 = vrot.slane %v451, 4
      %v457 = vshrl.u32 %v355, 16
      %v459 = vrot.slane %v457, 7
      %v460 = vshll.u32 %v355, 16
      %v462 = vor.u32 %v459, %v460
      %v463 = vsel %vm379, %v455, %v462
      %v464 = vrot.slane %v459, 4
      %v466 = vshrl.u32 %v356, 16
      %v468 = vrot.slane %v466, 7
      %v469 = vshll.u32 %v356, 16
      %v471 = vor.u32 %v468, %v469
      %v472 = vrot.slane %v468, 4
      %v474 = vshrl.u32 %v357, 16
      %v476 = vrot.slane %v474, 7
      %v477 = vshll.u32 %v357, 16
      %v479 = vor.u32 %v476, %v477
      %v480 = vsel %vm379, %v472, %v479
      %v481 = vrot.slane %v476, 4
      %v483 = vshrl.u32 %v358, 16
      %v485 = vrot.slane %v483, 7
      %v486 = vshll.u32 %v358, 16
      %v488 = vor.u32 %v485, %v486
      %v489 = vrot.slane %v485, 4
      %v491 = vshrl.u32 %v359, 16
      %v493 = vrot.slane %v491, 7
      %v494 = vshll.u32 %v359, 16
      %v496 = vor.u32 %v493, %v494
      %v497 = vsel %vm379, %v489, %v496
      %v498 = vrot.slane %v493, 4
      %v500 = vshrl.u32 %v360, 16
      %v502 = vrot.slane %v500, 7
      %v503 = vshll.u32 %v360, 16
      %v505 = vor.u32 %v502, %v503
      %v506 = vrot.slane %v502, 4
      %v508 = vshrl.u32 %v361, 16
      %v510 = vrot.slane %v508, 7
      %v511 = vshll.u32 %v361, 16
      %v513 = vor.u32 %v510, %v511
      %v514 = vsel %vm379, %v506, %v513
      %v515 = vrot.slane %v510, 4
      %v517 = vshrl.u32 %v362, 16
      %v519 = vrot.slane %v517, 7
      %v520 = vshll.u32 %v362, 16
      %v522 = vor.u32 %v519, %v520
      %v523 = vrot.slane %v519, 4
      %v525 = vshrl.u32 %v363, 16
      %v527 = vrot.slane %v525, 7
      %v528 = vshll.u32 %v363, 16
      %v530 = vor.u32 %v527, %v528
      %v531 = vsel %vm379, %v523, %v530
      %v532 = vrot.slane %v527, 4
      %v534 = vshrl.u32 %v364, 16
      %v536 = vrot.slane %v534, 7
      %v537 = vshll.u32 %v364, 16
      %v539 = vor.u32 %v536, %v537
      %v540 = vrot.slane %v536, 4
      %v542 = vshrl.u32 %v365, 16
      %v544 = vrot.slane %v542, 7
      %v545 = vshll.u32 %v365, 16
      %v547 = vor.u32 %v544, %v545
      %v548 = vsel %vm379, %v540, %v547
      %v549 = vrot.slane %v544, 4
      %v551 = vshrl.u32 %v366, 16
      %v553 = vrot.slane %v551, 7
      %v554 = vshll.u32 %v366, 16
      %v556 = vor.u32 %v553, %v554
      %v557 = vrot.slane %v553, 4
      %v559 = vshrl.u32 %v367, 16
      %v561 = vrot.slane %v559, 7
      %v562 = vshll.u32 %v367, 16
      %v564 = vor.u32 %v561, %v562
      %v565 = vsel %vm379, %v557, %v564
      %v566 = vrot.slane %v561, 4
      %v568 = vshrl.u32 %v368, 16
      %v570 = vrot.slane %v568, 7
      %v571 = vshll.u32 %v368, 16
      %v573 = vor.u32 %v570, %v571
      %v574 = vrot.slane %v570, 4
      %v576 = vshrl.u32 %v369, 16
      %v578 = vrot.slane %v576, 7
      %v579 = vshll.u32 %v369, 16
      %v581 = vor.u32 %v578, %v579
      %v582 = vsel %vm379, %v574, %v581
      %v583 = vrot.slane %v578, 4
      %v585 = vshrl.u32 %v370, 16
      %v587 = vrot.slane %v585, 7
      %v588 = vshll.u32 %v370, 16
      %v590 = vor.u32 %v587, %v588
      %v591 = vrot.slane %v587, 4
      %v593 = vshrl.u32 %v371, 16
      %v595 = vrot.slane %v593, 7
      %v596 = vshll.u32 %v371, 16
      %v598 = vor.u32 %v595, %v596
      %v599 = vsel %vm379, %v591, %v598
      %v600 = vrot.slane %v595, 4
      %v602 = vshrl.u32 %v372, 16
      %v604 = vrot.slane %v602, 7
      %v605 = vshll.u32 %v372, 16
      %v607 = vor.u32 %v604, %v605
      %v608 = vrot.slane %v604, 4
      %v610 = vshrl.u32 %v373, 16
      %v612 = vrot.slane %v610, 7
      %v613 = vshll.u32 %v373, 16
      %v615 = vor.u32 %v612, %v613
      %v616 = vsel %vm379, %v608, %v615
      %v617 = vrot.slane %v612, 4
      %v619 = vshrl.u32 %v374, 16
      %v621 = vrot.slane %v619, 7
      %v622 = vshll.u32 %v374, 16
      %v624 = vor.u32 %v621, %v622
      %v625 = vrot.slane %v621, 4
      %v627 = vshrl.u32 %v375, 16
      %v629 = vrot.slane %v627, 7
      %v630 = vshll.u32 %v375, 16
      %v632 = vor.u32 %v629, %v630
      %v633 = vsel %vm379, %v625, %v632
      %v634 = vrot.slane %v629, 4
      %v636 = vshrl.u32 %v376, 16
      %v638 = vrot.slane %v636, 7
      %v639 = vshll.u32 %v376, 16
      %v641 = vor.u32 %v638, %v639
      %v642 = vrot.slane %v638, 4
      %v644 = vshrl.u32 %v377, 16
      %v646 = vrot.slane %v644, 7
      %v647 = vshll.u32 %v377, 16
      %v649 = vor.u32 %v646, %v647
      %v650 = vsel %vm379, %v642, %v649
      %v651 = vrot.slane %v646, 4
      %s700 = scalar_lea.vmem [#allocation2], 12
      %vm701 = vcmask 1043456
      %vm702 = vmand %vm701, %vm290
      %v703 = vld [vmem:[%s700] sm:$0xf]
      %v704 = vsel %vm702, %v386, %v703
      %705 = vst [vmem:[%s700] sm:$0xf] %v704
      %706 = vst [vmem:[%s700 + $0x4] sm:$0xf] %v395
      %v707 = vld [vmem:[%s700 + $0x8] sm:$0x1]
      %v708 = vsel %vm235, %v396, %v707
      %709 = vst [vmem:[%s700 + $0x8] sm:$0x1] %v708
      %v710 = vld [vmem:[%s700 + $0xc] sm:$0xf]
      %v711 = vsel %vm702, %v403, %v710
      %712 = vst [vmem:[%s700 + $0xc] sm:$0xf] %v711
      %713 = vst [vmem:[%s700 + $0x10] sm:$0xf] %v412
      %v714 = vld [vmem:[%s700 + $0x14] sm:$0x1]
      %v715 = vsel %vm235, %v413, %v714
      %716 = vst [vmem:[%s700 + $0x14] sm:$0x1] %v715
      %v717 = vld [vmem:[%s700 + $0x18] sm:$0xf]
      %v718 = vsel %vm702, %v420, %v717
      %719 = vst [vmem:[%s700 + $0x18] sm:$0xf] %v718
      %720 = vst [vmem:[%s700 + $0x1c] sm:$0xf] %v429
      %v721 = vld [vmem:[%s700 + $0x20] sm:$0x1]
      %v722 = vsel %vm235, %v430, %v721
      %723 = vst [vmem:[%s700 + $0x20] sm:$0x1] %v722
      %v724 = vld [vmem:[%s700 + $0x24] sm:$0xf]
      %v725 = vsel %vm702, %v437, %v724
      %726 = vst [vmem:[%s700 + $0x24] sm:$0xf] %v725
      %727 = vst [vmem:[%s700 + $0x28] sm:$0xf] %v446
      %v728 = vld [vmem:[%s700 + $0x2c] sm:$0x1]
      %v729 = vsel %vm235, %v447, %v728
      %730 = vst [vmem:[%s700 + $0x2c] sm:$0x1] %v729
      %v731 = vld [vmem:[%s700 + $0x30] sm:$0xf]
      %v732 = vsel %vm702, %v454, %v731
      %733 = vst [vmem:[%s700 + $0x30] sm:$0xf] %v732
      %734 = vst [vmem:[%s700 + $0x34] sm:$0xf] %v463
      %v735 = vld [vmem:[%s700 + $0x38] sm:$0x1]
      %v736 = vsel %vm235, %v464, %v735
      %737 = vst [vmem:[%s700 + $0x38] sm:$0x1] %v736
      %v738 = vld [vmem:[%s700 + $0x3c] sm:$0xf]
      %v739 = vsel %vm702, %v471, %v738
      %740 = vst [vmem:[%s700 + $0x3c] sm:$0xf] %v739
      %741 = vst [vmem:[%s700 + $0x40] sm:$0xf] %v480
      %v742 = vld [vmem:[%s700 + $0x44] sm:$0x1]
      %v743 = vsel %vm235, %v481, %v742
      %744 = vst [vmem:[%s700 + $0x44] sm:$0x1] %v743
      %v745 = vld [vmem:[%s700 + $0x48] sm:$0xf]
      %v746 = vsel %vm702, %v488, %v745
      %747 = vst [vmem:[%s700 + $0x48] sm:$0xf] %v746
      %748 = vst [vmem:[%s700 + $0x4c] sm:$0xf] %v497
      %v749 = vld [vmem:[%s700 + $0x50] sm:$0x1]
      %v750 = vsel %vm235, %v498, %v749
      %751 = vst [vmem:[%s700 + $0x50] sm:$0x1] %v750
      %v752 = vld [vmem:[%s700 + $0x54] sm:$0xf]
      %v753 = vsel %vm702, %v505, %v752
      %754 = vst [vmem:[%s700 + $0x54] sm:$0xf] %v753
      %755 = vst [vmem:[%s700 + $0x58] sm:$0xf] %v514
      %v756 = vld [vmem:[%s700 + $0x5c] sm:$0x1]
      %v757 = vsel %vm235, %v515, %v756
      %758 = vst [vmem:[%s700 + $0x5c] sm:$0x1] %v757
      %v759 = vld [vmem:[%s700 + $0x60] sm:$0xf]
      %v760 = vsel %vm702, %v522, %v759
      %761 = vst [vmem:[%s700 + $0x60] sm:$0xf] %v760
      %762 = vst [vmem:[%s700 + $0x64] sm:$0xf] %v531
      %v763 = vld [vmem:[%s700 + $0x68] sm:$0x1]
      %v764 = vsel %vm235, %v532, %v763
      %765 = vst [vmem:[%s700 + $0x68] sm:$0x1] %v764
      %v766 = vld [vmem:[%s700 + $0x6c] sm:$0xf]
      %v767 = vsel %vm702, %v539, %v766
      %768 = vst [vmem:[%s700 + $0x6c] sm:$0xf] %v767
      %769 = vst [vmem:[%s700 + $0x70] sm:$0xf] %v548
      %v770 = vld [vmem:[%s700 + $0x74] sm:$0x1]
      %v771 = vsel %vm235, %v549, %v770
      %772 = vst [vmem:[%s700 + $0x74] sm:$0x1] %v771
      %v773 = vld [vmem:[%s700 + $0x78] sm:$0xf]
      %v774 = vsel %vm702, %v556, %v773
      %775 = vst [vmem:[%s700 + $0x78] sm:$0xf] %v774
      %776 = vst [vmem:[%s700 + $0x7c] sm:$0xf] %v565
      %v777 = vld [vmem:[%s700 + $0x80] sm:$0x1]
      %v778 = vsel %vm235, %v566, %v777
      %779 = vst [vmem:[%s700 + $0x80] sm:$0x1] %v778
      %v780 = vld [vmem:[%s700 + $0x84] sm:$0xf]
      %v781 = vsel %vm702, %v573, %v780
      %782 = vst [vmem:[%s700 + $0x84] sm:$0xf] %v781
      %783 = vst [vmem:[%s700 + $0x88] sm:$0xf] %v582
      %v784 = vld [vmem:[%s700 + $0x8c] sm:$0x1]
      %v785 = vsel %vm235, %v583, %v784
      %786 = vst [vmem:[%s700 + $0x8c] sm:$0x1] %v785
      %v787 = vld [vmem:[%s700 + $0x90] sm:$0xf]
      %v788 = vsel %vm702, %v590, %v787
      %789 = vst [vmem:[%s700 + $0x90] sm:$0xf] %v788
      %790 = vst [vmem:[%s700 + $0x94] sm:$0xf] %v599
      %v791 = vld [vmem:[%s700 + $0x98] sm:$0x1]
      %v792 = vsel %vm235, %v600, %v791
      %793 = vst [vmem:[%s700 + $0x98] sm:$0x1] %v792
      %v794 = vld [vmem:[%s700 + $0x9c] sm:$0xf]
      %v795 = vsel %vm702, %v607, %v794
      %796 = vst [vmem:[%s700 + $0x9c] sm:$0xf] %v795
      %797 = vst [vmem:[%s700 + $0xa0] sm:$0xf] %v616
      %v798 = vld [vmem:[%s700 + $0xa4] sm:$0x1]
      %v799 = vsel %vm235, %v617, %v798
      %800 = vst [vmem:[%s700 + $0xa4] sm:$0x1] %v799
      %v801 = vld [vmem:[%s700 + $0xa8] sm:$0xf]
      %v802 = vsel %vm702, %v624, %v801
      %803 = vst [vmem:[%s700 + $0xa8] sm:$0xf] %v802
      %804 = vst [vmem:[%s700 + $0xac] sm:$0xf] %v633
      %v805 = vld [vmem:[%s700 + $0xb0] sm:$0x1]
      %v806 = vsel %vm235, %v634, %v805
      %807 = vst [vmem:[%s700 + $0xb0] sm:$0x1] %v806
      %v808 = vld [vmem:[%s700 + $0xb4] sm:$0xf]
      %v809 = vsel %vm702, %v641, %v808
      %810 = vst [vmem:[%s700 + $0xb4] sm:$0xf] %v809
      %811 = vst [vmem:[%s700 + $0xb8] sm:$0xf] %v650
      %v812 = vld [vmem:[%s700 + $0xbc] sm:$0x1]
      %v813 = vsel %vm235, %v651, %v812
      %814 = vst [vmem:[%s700 + $0xbc] sm:$0x1] %v813
      %v815 = vld [vmem:[#allocation2] sm:$0xf]
      %v816 = vld [vmem:[#allocation2 + $0x4] sm:$0xf]
      %v817 = vld [vmem:[#allocation2 + $0xc] sm:$0xf]
      %v818 = vld [vmem:[#allocation2 + $0x10] sm:$0xf]
      %v819 = vld [vmem:[#allocation2 + $0x18] sm:$0xf]
      %v820 = vld [vmem:[#allocation2 + $0x1c] sm:$0xf]
      %v821 = vld [vmem:[#allocation2 + $0x24] sm:$0xf]
      %v822 = vld [vmem:[#allocation2 + $0x28] sm:$0xf]
      %v823 = vld [vmem:[#allocation2 + $0x30] sm:$0xf]
      %v824 = vld [vmem:[#allocation2 + $0x34] sm:$0xf]
      %v825 = vld [vmem:[#allocation2 + $0x3c] sm:$0xf]
      %v826 = vld [vmem:[#allocation2 + $0x40] sm:$0xf]
      %v827 = vld [vmem:[#allocation2 + $0x48] sm:$0xf]
      %v828 = vld [vmem:[#allocation2 + $0x4c] sm:$0xf]
      %v829 = vld [vmem:[#allocation2 + $0x54] sm:$0xf]
      %v830 = vld [vmem:[#allocation2 + $0x58] sm:$0xf]
      %v831 = vld [vmem:[#allocation2 + $0x60] sm:$0xf]
      %v832 = vld [vmem:[#allocation2 + $0x64] sm:$0xf]
      %v833 = vld [vmem:[#allocation2 + $0x6c] sm:$0xf]
      %v834 = vld [vmem:[#allocation2 + $0x70] sm:$0xf]
      %v835 = vld [vmem:[#allocation2 + $0x78] sm:$0xf]
      %v836 = vld [vmem:[#allocation2 + $0x7c] sm:$0xf]
      %v837 = vld [vmem:[#allocation2 + $0x84] sm:$0xf]
      %v838 = vld [vmem:[#allocation2 + $0x88] sm:$0xf]
      %v839 = vld [vmem:[#allocation2 + $0x90] sm:$0xf]
      %v840 = vld [vmem:[#allocation2 + $0x94] sm:$0xf]
      %v841 = vld [vmem:[#allocation2 + $0x9c] sm:$0xf]
      %v842 = vld [vmem:[#allocation2 + $0xa0] sm:$0xf]
      %v843 = vld [vmem:[#allocation2 + $0xa8] sm:$0xf]
      %v844 = vld [vmem:[#allocation2 + $0xac] sm:$0xf]
      %v845 = vld [vmem:[#allocation2 + $0xb4] sm:$0xf]
      %v846 = vld [vmem:[#allocation2 + $0xb8] sm:$0xf]
      %v879 = vunpack.c.l.b16 %v815
      %v880 = vunpack.c.l.b16 %v816
      %v881 = vunpack.c.l.b16 %v817
      %v882 = vunpack.c.l.b16 %v818
      %v883 = vunpack.c.l.b16 %v819
      %v884 = vunpack.c.l.b16 %v820
      %v885 = vunpack.c.l.b16 %v821
      %v886 = vunpack.c.l.b16 %v822
      %v887 = vunpack.c.l.b16 %v823
      %v888 = vunpack.c.l.b16 %v824
      %v889 = vunpack.c.l.b16 %v825
      %v890 = vunpack.c.l.b16 %v826
      %v891 = vunpack.c.l.b16 %v827
      %v892 = vunpack.c.l.b16 %v828
      %v893 = vunpack.c.l.b16 %v829
      %v894 = vunpack.c.l.b16 %v830
      %v895 = vunpack.c.l.b16 %v831
      %v896 = vunpack.c.l.b16 %v832
      %v897 = vunpack.c.l.b16 %v833
      %v898 = vunpack.c.l.b16 %v834
      %v899 = vunpack.c.l.b16 %v835
      %v900 = vunpack.c.l.b16 %v836
      %v901 = vunpack.c.l.b16 %v837
      %v902 = vunpack.c.l.b16 %v838
      %v903 = vunpack.c.l.b16 %v839
      %v904 = vunpack.c.l.b16 %v840
      %v905 = vunpack.c.l.b16 %v841
      %v906 = vunpack.c.l.b16 %v842
      %v907 = vunpack.c.l.b16 %v843
      %v908 = vunpack.c.l.b16 %v844
      %v909 = vunpack.c.l.b16 %v845
      %v910 = vunpack.c.l.b16 %v846
      %v911 = vpack.c.b16 %v880, %v879
      %v912 = vpack.c.b16 %v882, %v881
      %v913 = vpack.c.b16 %v884, %v883
      %v914 = vpack.c.b16 %v886, %v885
      %v915 = vpack.c.b16 %v888, %v887
      %v916 = vpack.c.b16 %v890, %v889
      %v917 = vpack.c.b16 %v892, %v891
      %v918 = vpack.c.b16 %v894, %v893
      %v919 = vpack.c.b16 %v896, %v895
      %v920 = vpack.c.b16 %v898, %v897
      %v921 = vpack.c.b16 %v900, %v899
      %v922 = vpack.c.b16 %v902, %v901
      %v923 = vpack.c.b16 %v904, %v903
      %v924 = vpack.c.b16 %v906, %v905
      %v925 = vpack.c.b16 %v908, %v907
      %v926 = vpack.c.b16 %v910, %v909
      %943 = vst [vmem:[#allocation3] sm:$0xff] %v911
      %944 = vst [vmem:[#allocation3 + $0x18] sm:$0xff] %v912
      %945 = vst [vmem:[#allocation3 + $0x30] sm:$0xff] %v913
      %946 = vst [vmem:[#allocation3 + $0x48] sm:$0xff] %v914
      %947 = vst [vmem:[#allocation3 + $0x60] sm:$0xff] %v915
      %948 = vst [vmem:[#allocation3 + $0x78] sm:$0xff] %v916
      %949 = vst [vmem:[#allocation3 + $0x90] sm:$0xff] %v917
      %950 = vst [vmem:[#allocation3 + $0xa8] sm:$0xff] %v918
      %951 = vst [vmem:[#allocation3 + $0xc0] sm:$0xff] %v919
      %952 = vst [vmem:[#allocation3 + $0xd8] sm:$0xff] %v920
      %953 = vst [vmem:[#allocation3 + $0xf0] sm:$0xff] %v921
      %954 = vst [vmem:[#allocation3 + $0x108] sm:$0xff] %v922
      %955 = vst [vmem:[#allocation3 + $0x120] sm:$0xff] %v923
      %956 = vst [vmem:[#allocation3 + $0x138] sm:$0xff] %v924
      %957 = vst [vmem:[#allocation3 + $0x150] sm:$0xff] %v925
      %958 = vst [vmem:[#allocation3 + $0x168] sm:$0xff] %v926
      %v959 = vld [vmem:[#allocation2] sm:$0xf]
      %v960 = vld [vmem:[#allocation2 + $0x4] sm:$0xf]
      %v961 = vld [vmem:[#allocation2 + $0x8] sm:$0x1]
      %v962 = vld [vmem:[#allocation2 + $0xc] sm:$0xf]
      %v963 = vld [vmem:[#allocation2 + $0x10] sm:$0xf]
      %v964 = vld [vmem:[#allocation2 + $0x14] sm:$0x1]
      %v965 = vld [vmem:[#allocation2 + $0x18] sm:$0xf]
      %v966 = vld [vmem:[#allocation2 + $0x1c] sm:$0xf]
      %v967 = vld [vmem:[#allocation2 + $0x20] sm:$0x1]
      %v968 = vld [vmem:[#allocation2 + $0x24] sm:$0xf]
      %v969 = vld [vmem:[#allocation2 + $0x28] sm:$0xf]
      %v970 = vld [vmem:[#allocation2 + $0x2c] sm:$0x1]
      %v971 = vld [vmem:[#allocation2 + $0x30] sm:$0xf]
      %v972 = vld [vmem:[#allocation2 + $0x34] sm:$0xf]
      %v973 = vld [vmem:[#allocation2 + $0x38] sm:$0x1]
      %v974 = vld [vmem:[#allocation2 + $0x3c] sm:$0xf]
      %v975 = vld [vmem:[#allocation2 + $0x40] sm:$0xf]
      %v976 = vld [vmem:[#allocation2 + $0x44] sm:$0x1]
      %v977 = vld [vmem:[#allocation2 + $0x48] sm:$0xf]
      %v978 = vld [vmem:[#allocation2 + $0x4c] sm:$0xf]
      %v979 = vld [vmem:[#allocation2 + $0x50] sm:$0x1]
      %v980 = vld [vmem:[#allocation2 + $0x54] sm:$0xf]
      %v981 = vld [vmem:[#allocation2 + $0x58] sm:$0xf]
      %v982 = vld [vmem:[#allocation2 + $0x5c] sm:$0x1]
      %v983 = vld [vmem:[#allocation2 + $0x60] sm:$0xf]
      %v984 = vld [vmem:[#allocation2 + $0x64] sm:$0xf]
      %v985 = vld [vmem:[#allocation2 + $0x68] sm:$0x1]
      %v986 = vld [vmem:[#allocation2 + $0x6c] sm:$0xf]
      %v987 = vld [vmem:[#allocation2 + $0x70] sm:$0xf]
      %v988 = vld [vmem:[#allocation2 + $0x74] sm:$0x1]
      %v989 = vld [vmem:[#allocation2 + $0x78] sm:$0xf]
      %v990 = vld [vmem:[#allocation2 + $0x7c] sm:$0xf]
      %v991 = vld [vmem:[#allocation2 + $0x80] sm:$0x1]
      %v992 = vld [vmem:[#allocation2 + $0x84] sm:$0xf]
      %v993 = vld [vmem:[#allocation2 + $0x88] sm:$0xf]
      %v994 = vld [vmem:[#allocation2 + $0x8c] sm:$0x1]
      %v995 = vld [vmem:[#allocation2 + $0x90] sm:$0xf]
      %v996 = vld [vmem:[#allocation2 + $0x94] sm:$0xf]
      %v997 = vld [vmem:[#allocation2 + $0x98] sm:$0x1]
      %v998 = vld [vmem:[#allocation2 + $0x9c] sm:$0xf]
      %v999 = vld [vmem:[#allocation2 + $0xa0] sm:$0xf]
      %v1000 = vld [vmem:[#allocation2 + $0xa4] sm:$0x1]
      %v1001 = vld [vmem:[#allocation2 + $0xa8] sm:$0xf]
      %v1002 = vld [vmem:[#allocation2 + $0xac] sm:$0xf]
      %v1003 = vld [vmem:[#allocation2 + $0xb0] sm:$0x1]
      %v1004 = vld [vmem:[#allocation2 + $0xb4] sm:$0xf]
      %v1005 = vld [vmem:[#allocation2 + $0xb8] sm:$0xf]
      %v1006 = vld [vmem:[#allocation2 + $0xbc] sm:$0x1]
      %v1055 = vunpack.c.l.b16 %v959
      %v1056 = vunpack.c.l.b16 %v960
      %v1057 = vunpack.c.l.b16 %v961
      %v1058 = vunpack.c.l.b16 %v962
      %v1059 = vunpack.c.l.b16 %v963
      %v1060 = vunpack.c.l.b16 %v964
      %v1061 = vunpack.c.l.b16 %v965
      %v1062 = vunpack.c.l.b16 %v966
      %v1063 = vunpack.c.l.b16 %v967
      %v1064 = vunpack.c.l.b16 %v968
      %v1065 = vunpack.c.l.b16 %v969
      %v1066 = vunpack.c.l.b16 %v970
      %v1067 = vunpack.c.l.b16 %v971
      %v1068 = vunpack.c.l.b16 %v972
      %v1069 = vunpack.c.l.b16 %v973
      %v1070 = vunpack.c.l.b16 %v974
      %v1071 = vunpack.c.l.b16 %v975
      %v1072 = vunpack.c.l.b16 %v976
      %v1073 = vunpack.c.l.b16 %v977
      %v1074 = vunpack.c.l.b16 %v978
      %v1075 = vunpack.c.l.b16 %v979
      %v1076 = vunpack.c.l.b16 %v980
      %v1077 = vunpack.c.l.b16 %v981
      %v1078 = vunpack.c.l.b16 %v982
      %v1079 = vunpack.c.l.b16 %v983
      %v1080 = vunpack.c.l.b16 %v984
      %v1081 = vunpack.c.l.b16 %v985
      %v1082 = vunpack.c.l.b16 %v986
      %v1083 = vunpack.c.l.b16 %v987
      %v1084 = vunpack.c.l.b16 %v988
      %v1085 = vunpack.c.l.b16 %v989
      %v1086 = vunpack.c.l.b16 %v990
      %v1087 = vunpack.c.l.b16 %v991
      %v1088 = vunpack.c.l.b16 %v992
      %v1089 = vunpack.c.l.b16 %v993
      %v1090 = vunpack.c.l.b16 %v994
      %v1091 = vunpack.c.l.b16 %v995
      %v1092 = vunpack.c.l.b16 %v996
      %v1093 = vunpack.c.l.b16 %v997
      %v1094 = vunpack.c.l.b16 %v998
      %v1095 = vunpack.c.l.b16 %v999
      %v1096 = vunpack.c.l.b16 %v1000
      %v1097 = vunpack.c.l.b16 %v1001
      %v1098 = vunpack.c.l.b16 %v1002
      %v1099 = vunpack.c.l.b16 %v1003
      %v1100 = vunpack.c.l.b16 %v1004
      %v1101 = vunpack.c.l.b16 %v1005
      %v1102 = vunpack.c.l.b16 %v1006
      %v1103 = vpack.c.b16 %v1056, %v1055
      %v1104 = vpack.c.b16 %v1057, %v1057
      %v1105 = vpack.c.b16 %v1059, %v1058
      %v1106 = vpack.c.b16 %v1060, %v1060
      %v1107 = vpack.c.b16 %v1062, %v1061
      %v1108 = vpack.c.b16 %v1063, %v1063
      %v1109 = vpack.c.b16 %v1065, %v1064
      %v1110 = vpack.c.b16 %v1066, %v1066
      %v1111 = vpack.c.b16 %v1068, %v1067
      %v1112 = vpack.c.b16 %v1069, %v1069
      %v1113 = vpack.c.b16 %v1071, %v1070
      %v1114 = vpack.c.b16 %v1072, %v1072
      %v1115 = vpack.c.b16 %v1074, %v1073
      %v1116 = vpack.c.b16 %v1075, %v1075
      %v1117 = vpack.c.b16 %v1077, %v1076
      %v1118 = vpack.c.b16 %v1078, %v1078
      %v1119 = vpack.c.b16 %v1080, %v1079
      %v1120 = vpack.c.b16 %v1081, %v1081
      %v1121 = vpack.c.b16 %v1083, %v1082
      %v1122 = vpack.c.b16 %v1084, %v1084
      %v1123 = vpack.c.b16 %v1086, %v1085
      %v1124 = vpack.c.b16 %v1087, %v1087
      %v1125 = vpack.c.b16 %v1089, %v1088
      %v1126 = vpack.c.b16 %v1090, %v1090
      %v1127 = vpack.c.b16 %v1092, %v1091
      %v1128 = vpack.c.b16 %v1093, %v1093
      %v1129 = vpack.c.b16 %v1095, %v1094
      %v1130 = vpack.c.b16 %v1096, %v1096
      %v1131 = vpack.c.b16 %v1098, %v1097
      %v1132 = vpack.c.b16 %v1099, %v1099
      %v1133 = vpack.c.b16 %v1101, %v1100
      %v1134 = vpack.c.b16 %v1102, %v1102
      %vm1135 = vsmask.f32 7424
      %v1137 = vshrl.u32 %v1103, 16
      %v1139 = vshll.u32 %v1103, 16
      %v1141 = vrot.slane %v1139, 1
      %v1142 = vor.u32 %v1137, %v1141
      %v1144 = vshll.u32 %v1104, 16
      %v1146 = vrot.slane %v1144, 1
      %v1147 = vsel %vm1135, %v1142, %v1146
      %v1149 = vshrl.u32 %v1105, 16
      %v1151 = vshll.u32 %v1105, 16
      %v1153 = vrot.slane %v1151, 1
      %v1154 = vor.u32 %v1149, %v1153
      %v1156 = vshll.u32 %v1106, 16
      %v1158 = vrot.slane %v1156, 1
      %v1159 = vsel %vm1135, %v1154, %v1158
      %v1161 = vshrl.u32 %v1107, 16
      %v1163 = vshll.u32 %v1107, 16
      %v1165 = vrot.slane %v1163, 1
      %v1166 = vor.u32 %v1161, %v1165
      %v1168 = vshll.u32 %v1108, 16
      %v1170 = vrot.slane %v1168, 1
      %v1171 = vsel %vm1135, %v1166, %v1170
      %v1173 = vshrl.u32 %v1109, 16
      %v1175 = vshll.u32 %v1109, 16
      %v1177 = vrot.slane %v1175, 1
      %v1178 = vor.u32 %v1173, %v1177
      %v1180 = vshll.u32 %v1110, 16
      %v1182 = vrot.slane %v1180, 1
      %v1183 = vsel %vm1135, %v1178, %v1182
      %v1185 = vshrl.u32 %v1111, 16
      %v1187 = vshll.u32 %v1111, 16
      %v1189 = vrot.slane %v1187, 1
      %v1190 = vor.u32 %v1185, %v1189
      %v1192 = vshll.u32 %v1112, 16
      %v1194 = vrot.slane %v1192, 1
      %v1195 = vsel %vm1135, %v1190, %v1194
      %v1197 = vshrl.u32 %v1113, 16
      %v1199 = vshll.u32 %v1113, 16
      %v1201 = vrot.slane %v1199, 1
      %v1202 = vor.u32 %v1197, %v1201
      %v1204 = vshll.u32 %v1114, 16
      %v1206 = vrot.slane %v1204, 1
      %v1207 = vsel %vm1135, %v1202, %v1206
      %v1209 = vshrl.u32 %v1115, 16
      %v1211 = vshll.u32 %v1115, 16
      %v1213 = vrot.slane %v1211, 1
      %v1214 = vor.u32 %v1209, %v1213
      %v1216 = vshll.u32 %v1116, 16
      %v1218 = vrot.slane %v1216, 1
      %v1219 = vsel %vm1135, %v1214, %v1218
      %v1221 = vshrl.u32 %v1117, 16
      %v1223 = vshll.u32 %v1117, 16
      %v1225 = vrot.slane %v1223, 1
      %v1226 = vor.u32 %v1221, %v1225
      %v1228 = vshll.u32 %v1118, 16
      %v1230 = vrot.slane %v1228, 1
      %v1231 = vsel %vm1135, %v1226, %v1230
      %v1233 = vshrl.u32 %v1119, 16
      %v1235 = vshll.u32 %v1119, 16
      %v1237 = vrot.slane %v1235, 1
      %v1238 = vor.u32 %v1233, %v1237
      %v1240 = vshll.u32 %v1120, 16
      %v1242 = vrot.slane %v1240, 1
      %v1243 = vsel %vm1135, %v1238, %v1242
      %v1245 = vshrl.u32 %v1121, 16
      %v1247 = vshll.u32 %v1121, 16
      %v1249 = vrot.slane %v1247, 1
      %v1250 = vor.u32 %v1245, %v1249
      %v1252 = vshll.u32 %v1122, 16
      %v1254 = vrot.slane %v1252, 1
      %v1255 = vsel %vm1135, %v1250, %v1254
      %v1257 = vshrl.u32 %v1123, 16
      %v1259 = vshll.u32 %v1123, 16
      %v1261 = vrot.slane %v1259, 1
      %v1262 = vor.u32 %v1257, %v1261
      %v1264 = vshll.u32 %v1124, 16
      %v1266 = vrot.slane %v1264, 1
      %v1267 = vsel %vm1135, %v1262, %v1266
      %v1269 = vshrl.u32 %v1125, 16
      %v1271 = vshll.u32 %v1125, 16
      %v1273 = vrot.slane %v1271, 1
      %v1274 = vor.u32 %v1269, %v1273
      %v1276 = vshll.u32 %v1126, 16
      %v1278 = vrot.slane %v1276, 1
      %v1279 = vsel %vm1135, %v1274, %v1278
      %v1281 = vshrl.u32 %v1127, 16
      %v1283 = vshll.u32 %v1127, 16
      %v1285 = vrot.slane %v1283, 1
      %v1286 = vor.u32 %v1281, %v1285
      %v1288 = vshll.u32 %v1128, 16
      %v1290 = vrot.slane %v1288, 1
      %v1291 = vsel %vm1135, %v1286, %v1290
      %v1293 = vshrl.u32 %v1129, 16
      %v1295 = vshll.u32 %v1129, 16
      %v1297 = vrot.slane %v1295, 1
      %v1298 = vor.u32 %v1293, %v1297
      %v1300 = vshll.u32 %v1130, 16
      %v1302 = vrot.slane %v1300, 1
      %v1303 = vsel %vm1135, %v1298, %v1302
      %v1305 = vshrl.u32 %v1131, 16
      %v1307 = vshll.u32 %v1131, 16
      %v1309 = vrot.slane %v1307, 1
      %v1310 = vor.u32 %v1305, %v1309
      %v1312 = vshll.u32 %v1132, 16
      %v1314 = vrot.slane %v1312, 1
      %v1315 = vsel %vm1135, %v1310, %v1314
      %v1317 = vshrl.u32 %v1133, 16
      %v1319 = vshll.u32 %v1133, 16
      %v1321 = vrot.slane %v1319, 1
      %v1322 = vor.u32 %v1317, %v1321
      %v1324 = vshll.u32 %v1134, 16
      %v1326 = vrot.slane %v1324, 1
      %v1327 = vsel %vm1135, %v1322, %v1326
      %1344 = vst [vmem:[#allocation3 + $0x8] sm:$0xff] %v1147
      %1345 = vst [vmem:[#allocation3 + $0x20] sm:$0xff] %v1159
      %1346 = vst [vmem:[#allocation3 + $0x38] sm:$0xff] %v1171
      %1347 = vst [vmem:[#allocation3 + $0x50] sm:$0xff] %v1183
      %1348 = vst [vmem:[#allocation3 + $0x68] sm:$0xff] %v1195
      %1349 = vst [vmem:[#allocation3 + $0x80] sm:$0xff] %v1207
      %1350 = vst [vmem:[#allocation3 + $0x98] sm:$0xff] %v1219
      %1351 = vst [vmem:[#allocation3 + $0xb0] sm:$0xff] %v1231
      %1352 = vst [vmem:[#allocation3 + $0xc8] sm:$0xff] %v1243
      %1353 = vst [vmem:[#allocation3 + $0xe0] sm:$0xff] %v1255
      %1354 = vst [vmem:[#allocation3 + $0xf8] sm:$0xff] %v1267
      %1355 = vst [vmem:[#allocation3 + $0x110] sm:$0xff] %v1279
      %1356 = vst [vmem:[#allocation3 + $0x128] sm:$0xff] %v1291
      %1357 = vst [vmem:[#allocation3 + $0x140] sm:$0xff] %v1303
      %1358 = vst [vmem:[#allocation3 + $0x158] sm:$0xff] %v1315
      %1359 = vst [vmem:[#allocation3 + $0x170] sm:$0xff] %v1327
      %v1360 = vld [vmem:[#allocation2] sm:$0xe]
      %v1361 = vld [vmem:[#allocation2 + $0x4] sm:$0xf]
      %v1362 = vld [vmem:[#allocation2 + $0x8] sm:$0x1]
      %v1363 = vld [vmem:[#allocation2 + $0xc] sm:$0xe]
      %v1364 = vld [vmem:[#allocation2 + $0x10] sm:$0xf]
      %v1365 = vld [vmem:[#allocation2 + $0x14] sm:$0x1]
      %v1366 = vld [vmem:[#allocation2 + $0x18] sm:$0xe]
      %v1367 = vld [vmem:[#allocation2 + $0x1c] sm:$0xf]
      %v1368 = vld [vmem:[#allocation2 + $0x20] sm:$0x1]
      %v1369 = vld [vmem:[#allocation2 + $0x24] sm:$0xe]
      %v1370 = vld [vmem:[#allocation2 + $0x28] sm:$0xf]
      %v1371 = vld [vmem:[#allocation2 + $0x2c] sm:$0x1]
      %v1372 = vld [vmem:[#allocation2 + $0x30] sm:$0xe]
      %v1373 = vld [vmem:[#allocation2 + $0x34] sm:$0xf]
      %v1374 = vld [vmem:[#allocation2 + $0x38] sm:$0x1]
      %v1375 = vld [vmem:[#allocation2 + $0x3c] sm:$0xe]
      %v1376 = vld [vmem:[#allocation2 + $0x40] sm:$0xf]
      %v1377 = vld [vmem:[#allocation2 + $0x44] sm:$0x1]
      %v1378 = vld [vmem:[#allocation2 + $0x48] sm:$0xe]
      %v1379 = vld [vmem:[#allocation2 + $0x4c] sm:$0xf]
      %v1380 = vld [vmem:[#allocation2 + $0x50] sm:$0x1]
      %v1381 = vld [vmem:[#allocation2 + $0x54] sm:$0xe]
      %v1382 = vld [vmem:[#allocation2 + $0x58] sm:$0xf]
      %v1383 = vld [vmem:[#allocation2 + $0x5c] sm:$0x1]
      %v1384 = vld [vmem:[#allocation2 + $0x60] sm:$0xe]
      %v1385 = vld [vmem:[#allocation2 + $0x64] sm:$0xf]
      %v1386 = vld [vmem:[#allocation2 + $0x68] sm:$0x1]
      %v1387 = vld [vmem:[#allocation2 + $0x6c] sm:$0xe]
      %v1388 = vld [vmem:[#allocation2 + $0x70] sm:$0xf]
      %v1389 = vld [vmem:[#allocation2 + $0x74] sm:$0x1]
      %v1390 = vld [vmem:[#allocation2 + $0x78] sm:$0xe]
      %v1391 = vld [vmem:[#allocation2 + $0x7c] sm:$0xf]
      %v1392 = vld [vmem:[#allocation2 + $0x80] sm:$0x1]
      %v1393 = vld [vmem:[#allocation2 + $0x84] sm:$0xe]
      %v1394 = vld [vmem:[#allocation2 + $0x88] sm:$0xf]
      %v1395 = vld [vmem:[#allocation2 + $0x8c] sm:$0x1]
      %v1396 = vld [vmem:[#allocation2 + $0x90] sm:$0xe]
      %v1397 = vld [vmem:[#allocation2 + $0x94] sm:$0xf]
      %v1398 = vld [vmem:[#allocation2 + $0x98] sm:$0x1]
      %v1399 = vld [vmem:[#allocation2 + $0x9c] sm:$0xe]
      %v1400 = vld [vmem:[#allocation2 + $0xa0] sm:$0xf]
      %v1401 = vld [vmem:[#allocation2 + $0xa4] sm:$0x1]
      %v1402 = vld [vmem:[#allocation2 + $0xa8] sm:$0xe]
      %v1403 = vld [vmem:[#allocation2 + $0xac] sm:$0xf]
      %v1404 = vld [vmem:[#allocation2 + $0xb0] sm:$0x1]
      %v1405 = vld [vmem:[#allocation2 + $0xb4] sm:$0xe]
      %v1406 = vld [vmem:[#allocation2 + $0xb8] sm:$0xf]
      %v1407 = vld [vmem:[#allocation2 + $0xbc] sm:$0x1]
      %v1456 = vunpack.c.l.b16 %v1360
      %v1457 = vunpack.c.l.b16 %v1361
      %v1458 = vunpack.c.l.b16 %v1362
      %v1459 = vunpack.c.l.b16 %v1363
      %v1460 = vunpack.c.l.b16 %v1364
      %v1461 = vunpack.c.l.b16 %v1365
      %v1462 = vunpack.c.l.b16 %v1366
      %v1463 = vunpack.c.l.b16 %v1367
      %v1464 = vunpack.c.l.b16 %v1368
      %v1465 = vunpack.c.l.b16 %v1369
      %v1466 = vunpack.c.l.b16 %v1370
      %v1467 = vunpack.c.l.b16 %v1371
      %v1468 = vunpack.c.l.b16 %v1372
      %v1469 = vunpack.c.l.b16 %v1373
      %v1470 = vunpack.c.l.b16 %v1374
      %v1471 = vunpack.c.l.b16 %v1375
      %v1472 = vunpack.c.l.b16 %v1376
      %v1473 = vunpack.c.l.b16 %v1377
      %v1474 = vunpack.c.l.b16 %v1378
      %v1475 = vunpack.c.l.b16 %v1379
      %v1476 = vunpack.c.l.b16 %v1380
      %v1477 = vunpack.c.l.b16 %v1381
      %v1478 = vunpack.c.l.b16 %v1382
      %v1479 = vunpack.c.l.b16 %v1383
      %v1480 = vunpack.c.l.b16 %v1384
      %v1481 = vunpack.c.l.b16 %v1385
      %v1482 = vunpack.c.l.b16 %v1386
      %v1483 = vunpack.c.l.b16 %v1387
      %v1484 = vunpack.c.l.b16 %v1388
      %v1485 = vunpack.c.l.b16 %v1389
      %v1486 = vunpack.c.l.b16 %v1390
      %v1487 = vunpack.c.l.b16 %v1391
      %v1488 = vunpack.c.l.b16 %v1392
      %v1489 = vunpack.c.l.b16 %v1393
      %v1490 = vunpack.c.l.b16 %v1394
      %v1491 = vunpack.c.l.b16 %v1395
      %v1492 = vunpack.c.l.b16 %v1396
      %v1493 = vunpack.c.l.b16 %v1397
      %v1494 = vunpack.c.l.b16 %v1398
      %v1495 = vunpack.c.l.b16 %v1399
      %v1496 = vunpack.c.l.b16 %v1400
      %v1497 = vunpack.c.l.b16 %v1401
      %v1498 = vunpack.c.l.b16 %v1402
      %v1499 = vunpack.c.l.b16 %v1403
      %v1500 = vunpack.c.l.b16 %v1404
      %v1501 = vunpack.c.l.b16 %v1405
      %v1502 = vunpack.c.l.b16 %v1406
      %v1503 = vunpack.c.l.b16 %v1407
      %v1504 = vpack.c.b16 %v1457, %v1456
      %v1505 = vpack.c.b16 %v1458, %v1458
      %v1506 = vpack.c.b16 %v1460, %v1459
      %v1507 = vpack.c.b16 %v1461, %v1461
      %v1508 = vpack.c.b16 %v1463, %v1462
      %v1509 = vpack.c.b16 %v1464, %v1464
      %v1510 = vpack.c.b16 %v1466, %v1465
      %v1511 = vpack.c.b16 %v1467, %v1467
      %v1512 = vpack.c.b16 %v1469, %v1468
      %v1513 = vpack.c.b16 %v1470, %v1470
      %v1514 = vpack.c.b16 %v1472, %v1471
      %v1515 = vpack.c.b16 %v1473, %v1473
      %v1516 = vpack.c.b16 %v1475, %v1474
      %v1517 = vpack.c.b16 %v1476, %v1476
      %v1518 = vpack.c.b16 %v1478, %v1477
      %v1519 = vpack.c.b16 %v1479, %v1479
      %v1520 = vpack.c.b16 %v1481, %v1480
      %v1521 = vpack.c.b16 %v1482, %v1482
      %v1522 = vpack.c.b16 %v1484, %v1483
      %v1523 = vpack.c.b16 %v1485, %v1485
      %v1524 = vpack.c.b16 %v1487, %v1486
      %v1525 = vpack.c.b16 %v1488, %v1488
      %v1526 = vpack.c.b16 %v1490, %v1489
      %v1527 = vpack.c.b16 %v1491, %v1491
      %v1528 = vpack.c.b16 %v1493, %v1492
      %v1529 = vpack.c.b16 %v1494, %v1494
      %v1530 = vpack.c.b16 %v1496, %v1495
      %v1531 = vpack.c.b16 %v1497, %v1497
      %v1532 = vpack.c.b16 %v1499, %v1498
      %v1533 = vpack.c.b16 %v1500, %v1500
      %v1534 = vpack.c.b16 %v1502, %v1501
      %v1535 = vpack.c.b16 %v1503, %v1503
      %vm1536 = vcmask 1046528
      %v1537 = vrot.slane %v1504, 1
      %v1538 = vrot.slane %v1505, 1
      %v1539 = vsel %vm1536, %v1537, %v1538
      %v1540 = vrot.slane %v1506, 1
      %v1541 = vrot.slane %v1507, 1
      %v1542 = vsel %vm1536, %v1540, %v1541
      %v1543 = vrot.slane %v1508, 1
      %v1544 = vrot.slane %v1509, 1
      %v1545 = vsel %vm1536, %v1543, %v1544
      %v1546 = vrot.slane %v1510, 1
      %v1547 = vrot.slane %v1511, 1
      %v1548 = vsel %vm1536, %v1546, %v1547
      %v1549 = vrot.slane %v1512, 1
      %v1550 = vrot.slane %v1513, 1
      %v1551 = vsel %vm1536, %v1549, %v1550
      %v1552 = vrot.slane %v1514, 1
      %v1553 = vrot.slane %v1515, 1
      %v1554 = vsel %vm1536, %v1552, %v1553
      %v1555 = vrot.slane %v1516, 1
      %v1556 = vrot.slane %v1517, 1
      %v1557 = vsel %vm1536, %v1555, %v1556
      %v1558 = vrot.slane %v1518, 1
      %v1559 = vrot.slane %v1519, 1
      %v1560 = vsel %vm1536, %v1558, %v1559
      %v1561 = vrot.slane %v1520, 1
      %v1562 = vrot.slane %v1521, 1
      %v1563 = vsel %vm1536, %v1561, %v1562
      %v1564 = vrot.slane %v1522, 1
      %v1565 = vrot.slane %v1523, 1
      %v1566 = vsel %vm1536, %v1564, %v1565
      %v1567 = vrot.slane %v1524, 1
      %v1568 = vrot.slane %v1525, 1
      %v1569 = vsel %vm1536, %v1567, %v1568
      %v1570 = vrot.slane %v1526, 1
      %v1571 = vrot.slane %v1527, 1
      %v1572 = vsel %vm1536, %v1570, %v1571
      %v1573 = vrot.slane %v1528, 1
      %v1574 = vrot.slane %v1529, 1
      %v1575 = vsel %vm1536, %v1573, %v1574
      %v1576 = vrot.slane %v1530, 1
      %v1577 = vrot.slane %v1531, 1
      %v1578 = vsel %vm1536, %v1576, %v1577
      %v1579 = vrot.slane %v1532, 1
      %v1580 = vrot.slane %v1533, 1
      %v1581 = vsel %vm1536, %v1579, %v1580
      %v1582 = vrot.slane %v1534, 1
      %v1583 = vrot.slane %v1535, 1
      %v1584 = vsel %vm1536, %v1582, %v1583
      %1601 = vst [vmem:[#allocation3 + $0x10] sm:$0xff] %v1539
      %1602 = vst [vmem:[#allocation3 + $0x28] sm:$0xff] %v1542
      %1603 = vst [vmem:[#allocation3 + $0x40] sm:$0xff] %v1545
      %1604 = vst [vmem:[#allocation3 + $0x58] sm:$0xff] %v1548
      %1605 = vst [vmem:[#allocation3 + $0x70] sm:$0xff] %v1551
      %1606 = vst [vmem:[#allocation3 + $0x88] sm:$0xff] %v1554
      %1607 = vst [vmem:[#allocation3 + $0xa0] sm:$0xff] %v1557
      %1608 = vst [vmem:[#allocation3 + $0xb8] sm:$0xff] %v1560
      %1609 = vst [vmem:[#allocation3 + $0xd0] sm:$0xff] %v1563
      %1610 = vst [vmem:[#allocation3 + $0xe8] sm:$0xff] %v1566
      %1611 = vst [vmem:[#allocation3 + $0x100] sm:$0xff] %v1569
      %1612 = vst [vmem:[#allocation3 + $0x118] sm:$0xff] %v1572
      %1613 = vst [vmem:[#allocation3 + $0x130] sm:$0xff] %v1575
      %1614 = vst [vmem:[#allocation3 + $0x148] sm:$0xff] %v1578
      %1615 = vst [vmem:[#allocation3 + $0x160] sm:$0xff] %v1581
      %1616 = vst [vmem:[#allocation3 + $0x178] sm:$0xff] %v1584
      %v1617 = vld [vmem:[#allocation3] sm:$0xff]
      %v1618 = vld [vmem:[#allocation3 + $0x8] sm:$0xff]
      %v1619 = vld [vmem:[#allocation3 + $0x10] sm:$0xff]
      %v1620 = vld [vmem:[#allocation3 + $0x18] sm:$0xff]
      %v1621 = vld [vmem:[#allocation3 + $0x20] sm:$0xff]
      %v1622 = vld [vmem:[#allocation3 + $0x28] sm:$0xff]
      %v1623 = vld [vmem:[#allocation3 + $0x30] sm:$0xff]
      %v1624 = vld [vmem:[#allocation3 + $0x38] sm:$0xff]
      %v1625 = vld [vmem:[#allocation3 + $0x40] sm:$0xff]
      %v1626 = vld [vmem:[#allocation3 + $0x48] sm:$0xff]
      %v1627 = vld [vmem:[#allocation3 + $0x50] sm:$0xff]
      %v1628 = vld [vmem:[#allocation3 + $0x58] sm:$0xff]
      %v1629 = vld [vmem:[#allocation3 + $0x60] sm:$0xff]
      %v1630 = vld [vmem:[#allocation3 + $0x68] sm:$0xff]
      %v1631 = vld [vmem:[#allocation3 + $0x70] sm:$0xff]
      %v1632 = vld [vmem:[#allocation3 + $0x78] sm:$0xff]
      %v1633 = vld [vmem:[#allocation3 + $0x80] sm:$0xff]
      %v1634 = vld [vmem:[#allocation3 + $0x88] sm:$0xff]
      %v1635 = vld [vmem:[#allocation3 + $0x90] sm:$0xff]
      %v1636 = vld [vmem:[#allocation3 + $0x98] sm:$0xff]
      %v1637 = vld [vmem:[#allocation3 + $0xa0] sm:$0xff]
      %v1638 = vld [vmem:[#allocation3 + $0xa8] sm:$0xff]
      %v1639 = vld [vmem:[#allocation3 + $0xb0] sm:$0xff]
      %v1640 = vld [vmem:[#allocation3 + $0xb8] sm:$0xff]
      %v1641 = vld [vmem:[#allocation3 + $0xc0] sm:$0xff]
      %v1642 = vld [vmem:[#allocation3 + $0xc8] sm:$0xff]
      %v1643 = vld [vmem:[#allocation3 + $0xd0] sm:$0xff]
      %v1644 = vld [vmem:[#allocation3 + $0xd8] sm:$0xff]
      %v1645 = vld [vmem:[#allocation3 + $0xe0] sm:$0xff]
      %v1646 = vld [vmem:[#allocation3 + $0xe8] sm:$0xff]
      %v1647 = vld [vmem:[#allocation3 + $0xf0] sm:$0xff]
      %v1648 = vld [vmem:[#allocation3 + $0xf8] sm:$0xff]
      %v1649 = vld [vmem:[#allocation3 + $0x100] sm:$0xff]
      %v1650 = vld [vmem:[#allocation3 + $0x108] sm:$0xff]
      %v1651 = vld [vmem:[#allocation3 + $0x110] sm:$0xff]
      %v1652 = vld [vmem:[#allocation3 + $0x118] sm:$0xff]
      %v1653 = vld [vmem:[#allocation3 + $0x120] sm:$0xff]
      %v1654 = vld [vmem:[#allocation3 + $0x128] sm:$0xff]
      %v1655 = vld [vmem:[#allocation3 + $0x130] sm:$0xff]
      %v1656 = vld [vmem:[#allocation3 + $0x138] sm:$0xff]
      %v1657 = vld [vmem:[#allocation3 + $0x140] sm:$0xff]
      %v1658 = vld [vmem:[#allocation3 + $0x148] sm:$0xff]
      %v1659 = vld [vmem:[#allocation3 + $0x150] sm:$0xff]
      %v1660 = vld [vmem:[#allocation3 + $0x158] sm:$0xff]
      %v1661 = vld [vmem:[#allocation3 + $0x160] sm:$0xff]
      %v1662 = vld [vmem:[#allocation3 + $0x168] sm:$0xff]
      %v1663 = vld [vmem:[#allocation3 + $0x170] sm:$0xff]
      %v1664 = vld [vmem:[#allocation3 + $0x178] sm:$0xff]
      %v1665 = vld [vmem:[%s1] sm:$0xf]
      %v1666 = vld [vmem:[%s1 + $0x4] sm:$0xf]
      %v1667 = vld [vmem:[%s1 + $0x8] sm:$0xf]
      %v1668 = vld [vmem:[%s1 + $0xc] sm:$0xf]
      %v1669 = vld [vmem:[%s1 + $0x10] sm:$0xf]
      %v1670 = vld [vmem:[%s1 + $0x14] sm:$0xf]
      %v1671 = vld [vmem:[%s1 + $0x18] sm:$0xf]
      %v1672 = vld [vmem:[%s1 + $0x1c] sm:$0xf]
      %v1673 = vld [vmem:[%s1 + $0x20] sm:$0xf]
      %v1674 = vld [vmem:[%s1 + $0x24] sm:$0xf]
      %v1675 = vld [vmem:[%s1 + $0x28] sm:$0xf]
      %v1676 = vld [vmem:[%s1 + $0x2c] sm:$0xf]
      %v1677 = vld [vmem:[%s1 + $0x30] sm:$0xf]
      %v1678 = vld [vmem:[%s1 + $0x34] sm:$0xf]
      %v1679 = vld [vmem:[%s1 + $0x38] sm:$0xf]
      %v1680 = vld [vmem:[%s1 + $0x3c] sm:$0xf]
      %v1681 = vld [vmem:[%s1 + $0x40] sm:$0xf]
      %v1682 = vld [vmem:[%s1 + $0x44] sm:$0xf]
      %v1683 = vld [vmem:[%s1 + $0x48] sm:$0xf]
      %v1684 = vld [vmem:[%s1 + $0x4c] sm:$0xf]
      %v1685 = vld [vmem:[%s1 + $0x50] sm:$0xf]
      %v1686 = vld [vmem:[%s1 + $0x54] sm:$0xf]
      %v1687 = vld [vmem:[%s1 + $0x58] sm:$0xf]
      %v1688 = vld [vmem:[%s1 + $0x5c] sm:$0xf]
      %v1689 = vld [vmem:[%s1 + $0x60] sm:$0xf]
      %v1690 = vld [vmem:[%s1 + $0x64] sm:$0xf]
      %v1691 = vld [vmem:[%s1 + $0x68] sm:$0xf]
      %v1692 = vld [vmem:[%s1 + $0x6c] sm:$0xf]
      %v1693 = vld [vmem:[%s1 + $0x70] sm:$0xf]
      %v1694 = vld [vmem:[%s1 + $0x74] sm:$0xf]
      %v1695 = vld [vmem:[%s1 + $0x78] sm:$0xf]
      %v1696 = vld [vmem:[%s1 + $0x7c] sm:$0xf]
      %v1697 = vld [vmem:[%s1 + $0x80] sm:$0xf]
      %v1698 = vld [vmem:[%s1 + $0x84] sm:$0xf]
      %v1699 = vld [vmem:[%s1 + $0x88] sm:$0xf]
      %v1700 = vld [vmem:[%s1 + $0x8c] sm:$0xf]
      %v1701 = vld [vmem:[%s1 + $0x90] sm:$0xf]
      %v1702 = vld [vmem:[%s1 + $0x94] sm:$0xf]
      %v1703 = vld [vmem:[%s1 + $0x98] sm:$0xf]
      %v1704 = vld [vmem:[%s1 + $0x9c] sm:$0xf]
      %v1705 = vld [vmem:[%s1 + $0xa0] sm:$0xf]
      %v1706 = vld [vmem:[%s1 + $0xa4] sm:$0xf]
      %v1707 = vld [vmem:[%s1 + $0xa8] sm:$0xf]
      %v1708 = vld [vmem:[%s1 + $0xac] sm:$0xf]
      %v1709 = vld [vmem:[%s1 + $0xb0] sm:$0xf]
      %v1710 = vld [vmem:[%s1 + $0xb4] sm:$0xf]
      %v1711 = vld [vmem:[%s1 + $0xb8] sm:$0xf]
      %v1712 = vld [vmem:[%s1 + $0xbc] sm:$0xf]
      %v1713 = vld [vmem:[%s700] sm:$0xf]
      %v1714 = vld [vmem:[%s700 + $0x4] sm:$0xf]
      %v1715 = vld [vmem:[%s700 + $0xc] sm:$0xf]
      %v1716 = vld [vmem:[%s700 + $0x10] sm:$0xf]
      %v1717 = vld [vmem:[%s700 + $0x18] sm:$0xf]
      %v1718 = vld [vmem:[%s700 + $0x1c] sm:$0xf]
      %v1719 = vld [vmem:[%s700 + $0x24] sm:$0xf]
      %v1720 = vld [vmem:[%s700 + $0x28] sm:$0xf]
      %v1721 = vld [vmem:[%s700 + $0x30] sm:$0xf]
      %v1722 = vld [vmem:[%s700 + $0x34] sm:$0xf]
      %v1723 = vld [vmem:[%s700 + $0x3c] sm:$0xf]
      %v1724 = vld [vmem:[%s700 + $0x40] sm:$0xf]
      %v1725 = vld [vmem:[%s700 + $0x48] sm:$0xf]
      %v1726 = vld [vmem:[%s700 + $0x4c] sm:$0xf]
      %v1727 = vld [vmem:[%s700 + $0x54] sm:$0xf]
      %v1728 = vld [vmem:[%s700 + $0x58] sm:$0xf]
      %v1729 = vld [vmem:[%s700 + $0x60] sm:$0xf]
      %v1730 = vld [vmem:[%s700 + $0x64] sm:$0xf]
      %v1731 = vld [vmem:[%s700 + $0x6c] sm:$0xf]
      %v1732 = vld [vmem:[%s700 + $0x70] sm:$0xf]
      %v1733 = vld [vmem:[%s700 + $0x78] sm:$0xf]
      %v1734 = vld [vmem:[%s700 + $0x7c] sm:$0xf]
      %v1735 = vld [vmem:[%s700 + $0x84] sm:$0xf]
      %v1736 = vld [vmem:[%s700 + $0x88] sm:$0xf]
      %v1737 = vld [vmem:[%s700 + $0x90] sm:$0xf]
      %v1738 = vld [vmem:[%s700 + $0x94] sm:$0xf]
      %v1739 = vld [vmem:[%s700 + $0x9c] sm:$0xf]
      %v1740 = vld [vmem:[%s700 + $0xa0] sm:$0xf]
      %v1741 = vld [vmem:[%s700 + $0xa8] sm:$0xf]
      %v1742 = vld [vmem:[%s700 + $0xac] sm:$0xf]
      %v1743 = vld [vmem:[%s700 + $0xb4] sm:$0xf]
      %v1744 = vld [vmem:[%s700 + $0xb8] sm:$0xf]
      %v1777 = vunpack.c.l.b16 %v1713
      %v1778 = vunpack.c.l.b16 %v1714
      %v1779 = vunpack.c.l.b16 %v1715
      %v1780 = vunpack.c.l.b16 %v1716
      %v1781 = vunpack.c.l.b16 %v1717
      %v1782 = vunpack.c.l.b16 %v1718
      %v1783 = vunpack.c.l.b16 %v1719
      %v1784 = vunpack.c.l.b16 %v1720
      %v1785 = vunpack.c.l.b16 %v1721
      %v1786 = vunpack.c.l.b16 %v1722
      %v1787 = vunpack.c.l.b16 %v1723
      %v1788 = vunpack.c.l.b16 %v1724
      %v1789 = vunpack.c.l.b16 %v1725
      %v1790 = vunpack.c.l.b16 %v1726
      %v1791 = vunpack.c.l.b16 %v1727
      %v1792 = vunpack.c.l.b16 %v1728
      %v1793 = vunpack.c.l.b16 %v1729
      %v1794 = vunpack.c.l.b16 %v1730
      %v1795 = vunpack.c.l.b16 %v1731
      %v1796 = vunpack.c.l.b16 %v1732
      %v1797 = vunpack.c.l.b16 %v1733
      %v1798 = vunpack.c.l.b16 %v1734
      %v1799 = vunpack.c.l.b16 %v1735
      %v1800 = vunpack.c.l.b16 %v1736
      %v1801 = vunpack.c.l.b16 %v1737
      %v1802 = vunpack.c.l.b16 %v1738
      %v1803 = vunpack.c.l.b16 %v1739
      %v1804 = vunpack.c.l.b16 %v1740
      %v1805 = vunpack.c.l.b16 %v1741
      %v1806 = vunpack.c.l.b16 %v1742
      %v1807 = vunpack.c.l.b16 %v1743
      %v1808 = vunpack.c.l.b16 %v1744
      %v1809 = vpack.c.b16 %v1778, %v1777
      %v1810 = vpack.c.b16 %v1780, %v1779
      %v1811 = vpack.c.b16 %v1782, %v1781
      %v1812 = vpack.c.b16 %v1784, %v1783
      %v1813 = vpack.c.b16 %v1786, %v1785
      %v1814 = vpack.c.b16 %v1788, %v1787
      %v1815 = vpack.c.b16 %v1790, %v1789
      %v1816 = vpack.c.b16 %v1792, %v1791
      %v1817 = vpack.c.b16 %v1794, %v1793
      %v1818 = vpack.c.b16 %v1796, %v1795
      %v1819 = vpack.c.b16 %v1798, %v1797
      %v1820 = vpack.c.b16 %v1800, %v1799
      %v1821 = vpack.c.b16 %v1802, %v1801
      %v1822 = vpack.c.b16 %v1804, %v1803
      %v1823 = vpack.c.b16 %v1806, %v1805
      %v1824 = vpack.c.b16 %v1808, %v1807
      %1841 = vst [vmem:[#allocation3] sm:$0xff] %v1809
      %1842 = vst [vmem:[#allocation3 + $0x18] sm:$0xff] %v1810
      %1843 = vst [vmem:[#allocation3 + $0x30] sm:$0xff] %v1811
      %1844 = vst [vmem:[#allocation3 + $0x48] sm:$0xff] %v1812
      %1845 = vst [vmem:[#allocation3 + $0x60] sm:$0xff] %v1813
      %1846 = vst [vmem:[#allocation3 + $0x78] sm:$0xff] %v1814
      %1847 = vst [vmem:[#allocation3 + $0x90] sm:$0xff] %v1815
      %1848 = vst [vmem:[#allocation3 + $0xa8] sm:$0xff] %v1816
      %1849 = vst [vmem:[#allocation3 + $0xc0] sm:$0xff] %v1817
      %1850 = vst [vmem:[#allocation3 + $0xd8] sm:$0xff] %v1818
      %1851 = vst [vmem:[#allocation3 + $0xf0] sm:$0xff] %v1819
      %1852 = vst [vmem:[#allocation3 + $0x108] sm:$0xff] %v1820
      %1853 = vst [vmem:[#allocation3 + $0x120] sm:$0xff] %v1821
      %1854 = vst [vmem:[#allocation3 + $0x138] sm:$0xff] %v1822
      %1855 = vst [vmem:[#allocation3 + $0x150] sm:$0xff] %v1823
      %1856 = vst [vmem:[#allocation3 + $0x168] sm:$0xff] %v1824
      %v1857 = vld [vmem:[%s700] sm:$0xf]
      %v1858 = vld [vmem:[%s700 + $0x4] sm:$0xf]
      %v1859 = vld [vmem:[%s700 + $0x8] sm:$0x1]
      %v1860 = vld [vmem:[%s700 + $0xc] sm:$0xf]
      %v1861 = vld [vmem:[%s700 + $0x10] sm:$0xf]
      %v1862 = vld [vmem:[%s700 + $0x14] sm:$0x1]
      %v1863 = vld [vmem:[%s700 + $0x18] sm:$0xf]
      %v1864 = vld [vmem:[%s700 + $0x1c] sm:$0xf]
      %v1865 = vld [vmem:[%s700 + $0x20] sm:$0x1]
      %v1866 = vld [vmem:[%s700 + $0x24] sm:$0xf]
      %v1867 = vld [vmem:[%s700 + $0x28] sm:$0xf]
      %v1868 = vld [vmem:[%s700 + $0x2c] sm:$0x1]
      %v1869 = vld [vmem:[%s700 + $0x30] sm:$0xf]
      %v1870 = vld [vmem:[%s700 + $0x34] sm:$0xf]
      %v1871 = vld [vmem:[%s700 + $0x38] sm:$0x1]
      %v1872 = vld [vmem:[%s700 + $0x3c] sm:$0xf]
      %v1873 = vld [vmem:[%s700 + $0x40] sm:$0xf]
      %v1874 = vld [vmem:[%s700 + $0x44] sm:$0x1]
      %v1875 = vld [vmem:[%s700 + $0x48] sm:$0xf]
      %v1876 = vld [vmem:[%s700 + $0x4c] sm:$0xf]
      %v1877 = vld [vmem:[%s700 + $0x50] sm:$0x1]
      %v1878 = vld [vmem:[%s700 + $0x54] sm:$0xf]
      %v1879 = vld [vmem:[%s700 + $0x58] sm:$0xf]
      %v1880 = vld [vmem:[%s700 + $0x5c] sm:$0x1]
      %v1881 = vld [vmem:[%s700 + $0x60] sm:$0xf]
      %v1882 = vld [vmem:[%s700 + $0x64] sm:$0xf]
      %v1883 = vld [vmem:[%s700 + $0x68] sm:$0x1]
      %v1884 = vld [vmem:[%s700 + $0x6c] sm:$0xf]
      %v1885 = vld [vmem:[%s700 + $0x70] sm:$0xf]
      %v1886 = vld [vmem:[%s700 + $0x74] sm:$0x1]
      %v1887 = vld [vmem:[%s700 + $0x78] sm:$0xf]
      %v1888 = vld [vmem:[%s700 + $0x7c] sm:$0xf]
      %v1889 = vld [vmem:[%s700 + $0x80] sm:$0x1]
      %v1890 = vld [vmem:[%s700 + $0x84] sm:$0xf]
      %v1891 = vld [vmem:[%s700 + $0x88] sm:$0xf]
      %v1892 = vld [vmem:[%s700 + $0x8c] sm:$0x1]
      %v1893 = vld [vmem:[%s700 + $0x90] sm:$0xf]
      %v1894 = vld [vmem:[%s700 + $0x94] sm:$0xf]
      %v1895 = vld [vmem:[%s700 + $0x98] sm:$0x1]
      %v1896 = vld [vmem:[%s700 + $0x9c] sm:$0xf]
      %v1897 = vld [vmem:[%s700 + $0xa0] sm:$0xf]
      %v1898 = vld [vmem:[%s700 + $0xa4] sm:$0x1]
      %v1899 = vld [vmem:[%s700 + $0xa8] sm:$0xf]
      %v1900 = vld [vmem:[%s700 + $0xac] sm:$0xf]
      %v1901 = vld [vmem:[%s700 + $0xb0] sm:$0x1]
      %v1902 = vld [vmem:[%s700 + $0xb4] sm:$0xf]
      %v1903 = vld [vmem:[%s700 + $0xb8] sm:$0xf]
      %v1904 = vld [vmem:[%s700 + $0xbc] sm:$0x1]
      %v1953 = vunpack.c.l.b16 %v1857
      %v1954 = vunpack.c.l.b16 %v1858
      %v1955 = vunpack.c.l.b16 %v1859
      %v1956 = vunpack.c.l.b16 %v1860
      %v1957 = vunpack.c.l.b16 %v1861
      %v1958 = vunpack.c.l.b16 %v1862
      %v1959 = vunpack.c.l.b16 %v1863
      %v1960 = vunpack.c.l.b16 %v1864
      %v1961 = vunpack.c.l.b16 %v1865
      %v1962 = vunpack.c.l.b16 %v1866
      %v1963 = vunpack.c.l.b16 %v1867
      %v1964 = vunpack.c.l.b16 %v1868
      %v1965 = vunpack.c.l.b16 %v1869
      %v1966 = vunpack.c.l.b16 %v1870
      %v1967 = vunpack.c.l.b16 %v1871
      %v1968 = vunpack.c.l.b16 %v1872
      %v1969 = vunpack.c.l.b16 %v1873
      %v1970 = vunpack.c.l.b16 %v1874
      %v1971 = vunpack.c.l.b16 %v1875
      %v1972 = vunpack.c.l.b16 %v1876
      %v1973 = vunpack.c.l.b16 %v1877
      %v1974 = vunpack.c.l.b16 %v1878
      %v1975 = vunpack.c.l.b16 %v1879
      %v1976 = vunpack.c.l.b16 %v1880
      %v1977 = vunpack.c.l.b16 %v1881
      %v1978 = vunpack.c.l.b16 %v1882
      %v1979 = vunpack.c.l.b16 %v1883
      %v1980 = vunpack.c.l.b16 %v1884
      %v1981 = vunpack.c.l.b16 %v1885
      %v1982 = vunpack.c.l.b16 %v1886
      %v1983 = vunpack.c.l.b16 %v1887
      %v1984 = vunpack.c.l.b16 %v1888
      %v1985 = vunpack.c.l.b16 %v1889
      %v1986 = vunpack.c.l.b16 %v1890
      %v1987 = vunpack.c.l.b16 %v1891
      %v1988 = vunpack.c.l.b16 %v1892
      %v1989 = vunpack.c.l.b16 %v1893
      %v1990 = vunpack.c.l.b16 %v1894
      %v1991 = vunpack.c.l.b16 %v1895
      %v1992 = vunpack.c.l.b16 %v1896
      %v1993 = vunpack.c.l.b16 %v1897
      %v1994 = vunpack.c.l.b16 %v1898
      %v1995 = vunpack.c.l.b16 %v1899
      %v1996 = vunpack.c.l.b16 %v1900
      %v1997 = vunpack.c.l.b16 %v1901
      %v1998 = vunpack.c.l.b16 %v1902
      %v1999 = vunpack.c.l.b16 %v1903
      %v2000 = vunpack.c.l.b16 %v1904
      %v2001 = vpack.c.b16 %v1954, %v1953
      %v2002 = vpack.c.b16 %v1955, %v1955
      %v2003 = vpack.c.b16 %v1957, %v1956
      %v2004 = vpack.c.b16 %v1958, %v1958
      %v2005 = vpack.c.b16 %v1960, %v1959
      %v2006 = vpack.c.b16 %v1961, %v1961
      %v2007 = vpack.c.b16 %v1963, %v1962
      %v2008 = vpack.c.b16 %v1964, %v1964
      %v2009 = vpack.c.b16 %v1966, %v1965
      %v2010 = vpack.c.b16 %v1967, %v1967
      %v2011 = vpack.c.b16 %v1969, %v1968
      %v2012 = vpack.c.b16 %v1970, %v1970
      %v2013 = vpack.c.b16 %v1972, %v1971
      %v2014 = vpack.c.b16 %v1973, %v1973
      %v2015 = vpack.c.b16 %v1975, %v1974
      %v2016 = vpack.c.b16 %v1976, %v1976
      %v2017 = vpack.c.b16 %v1978, %v1977
      %v2018 = vpack.c.b16 %v1979, %v1979
      %v2019 = vpack.c.b16 %v1981, %v1980
      %v2020 = vpack.c.b16 %v1982, %v1982
      %v2021 = vpack.c.b16 %v1984, %v1983
      %v2022 = vpack.c.b16 %v1985, %v1985
      %v2023 = vpack.c.b16 %v1987, %v1986
      %v2024 = vpack.c.b16 %v1988, %v1988
      %v2025 = vpack.c.b16 %v1990, %v1989
      %v2026 = vpack.c.b16 %v1991, %v1991
      %v2027 = vpack.c.b16 %v1993, %v1992
      %v2028 = vpack.c.b16 %v1994, %v1994
      %v2029 = vpack.c.b16 %v1996, %v1995
      %v2030 = vpack.c.b16 %v1997, %v1997
      %v2031 = vpack.c.b16 %v1999, %v1998
      %v2032 = vpack.c.b16 %v2000, %v2000
      %v2034 = vshrl.u32 %v2001, 16
      %v2036 = vshll.u32 %v2001, 16
      %v2038 = vrot.slane %v2036, 1
      %v2039 = vor.u32 %v2034, %v2038
      %v2041 = vshll.u32 %v2002, 16
      %v2043 = vrot.slane %v2041, 1
      %v2044 = vsel %vm1135, %v2039, %v2043
      %v2046 = vshrl.u32 %v2003, 16
      %v2048 = vshll.u32 %v2003, 16
      %v2050 = vrot.slane %v2048, 1
      %v2051 = vor.u32 %v2046, %v2050
      %v2053 = vshll.u32 %v2004, 16
      %v2055 = vrot.slane %v2053, 1
      %v2056 = vsel %vm1135, %v2051, %v2055
      %v2058 = vshrl.u32 %v2005, 16
      %v2060 = vshll.u32 %v2005, 16
      %v2062 = vrot.slane %v2060, 1
      %v2063 = vor.u32 %v2058, %v2062
      %v2065 = vshll.u32 %v2006, 16
      %v2067 = vrot.slane %v2065, 1
      %v2068 = vsel %vm1135, %v2063, %v2067
      %v2070 = vshrl.u32 %v2007, 16
      %v2072 = vshll.u32 %v2007, 16
      %v2074 = vrot.slane %v2072, 1
      %v2075 = vor.u32 %v2070, %v2074
      %v2077 = vshll.u32 %v2008, 16
      %v2079 = vrot.slane %v2077, 1
      %v2080 = vsel %vm1135, %v2075, %v2079
      %v2082 = vshrl.u32 %v2009, 16
      %v2084 = vshll.u32 %v2009, 16
      %v2086 = vrot.slane %v2084, 1
      %v2087 = vor.u32 %v2082, %v2086
      %v2089 = vshll.u32 %v2010, 16
      %v2091 = vrot.slane %v2089, 1
      %v2092 = vsel %vm1135, %v2087, %v2091
      %v2094 = vshrl.u32 %v2011, 16
      %v2096 = vshll.u32 %v2011, 16
      %v2098 = vrot.slane %v2096, 1
      %v2099 = vor.u32 %v2094, %v2098
      %v2101 = vshll.u32 %v2012, 16
      %v2103 = vrot.slane %v2101, 1
      %v2104 = vsel %vm1135, %v2099, %v2103
      %v2106 = vshrl.u32 %v2013, 16
      %v2108 = vshll.u32 %v2013, 16
      %v2110 = vrot.slane %v2108, 1
      %v2111 = vor.u32 %v2106, %v2110
      %v2113 = vshll.u32 %v2014, 16
      %v2115 = vrot.slane %v2113, 1
      %v2116 = vsel %vm1135, %v2111, %v2115
      %v2118 = vshrl.u32 %v2015, 16
      %v2120 = vshll.u32 %v2015, 16
      %v2122 = vrot.slane %v2120, 1
      %v2123 = vor.u32 %v2118, %v2122
      %v2125 = vshll.u32 %v2016, 16
      %v2127 = vrot.slane %v2125, 1
      %v2128 = vsel %vm1135, %v2123, %v2127
      %v2130 = vshrl.u32 %v2017, 16
      %v2132 = vshll.u32 %v2017, 16
      %v2134 = vrot.slane %v2132, 1
      %v2135 = vor.u32 %v2130, %v2134
      %v2137 = vshll.u32 %v2018, 16
      %v2139 = vrot.slane %v2137, 1
      %v2140 = vsel %vm1135, %v2135, %v2139
      %v2142 = vshrl.u32 %v2019, 16
      %v2144 = vshll.u32 %v2019, 16
      %v2146 = vrot.slane %v2144, 1
      %v2147 = vor.u32 %v2142, %v2146
      %v2149 = vshll.u32 %v2020, 16
      %v2151 = vrot.slane %v2149, 1
      %v2152 = vsel %vm1135, %v2147, %v2151
      %v2154 = vshrl.u32 %v2021, 16
      %v2156 = vshll.u32 %v2021, 16
      %v2158 = vrot.slane %v2156, 1
      %v2159 = vor.u32 %v2154, %v2158
      %v2161 = vshll.u32 %v2022, 16
      %v2163 = vrot.slane %v2161, 1
      %v2164 = vsel %vm1135, %v2159, %v2163
      %v2166 = vshrl.u32 %v2023, 16
      %v2168 = vshll.u32 %v2023, 16
      %v2170 = vrot.slane %v2168, 1
      %v2171 = vor.u32 %v2166, %v2170
      %v2173 = vshll.u32 %v2024, 16
      %v2175 = vrot.slane %v2173, 1
      %v2176 = vsel %vm1135, %v2171, %v2175
      %v2178 = vshrl.u32 %v2025, 16
      %v2180 = vshll.u32 %v2025, 16
      %v2182 = vrot.slane %v2180, 1
      %v2183 = vor.u32 %v2178, %v2182
      %v2185 = vshll.u32 %v2026, 16
      %v2187 = vrot.slane %v2185, 1
      %v2188 = vsel %vm1135, %v2183, %v2187
      %v2190 = vshrl.u32 %v2027, 16
      %v2192 = vshll.u32 %v2027, 16
      %v2194 = vrot.slane %v2192, 1
      %v2195 = vor.u32 %v2190, %v2194
      %v2197 = vshll.u32 %v2028, 16
      %v2199 = vrot.slane %v2197, 1
      %v2200 = vsel %vm1135, %v2195, %v2199
      %v2202 = vshrl.u32 %v2029, 16
      %v2204 = vshll.u32 %v2029, 16
      %v2206 = vrot.slane %v2204, 1
      %v2207 = vor.u32 %v2202, %v2206
      %v2209 = vshll.u32 %v2030, 16
      %v2211 = vrot.slane %v2209, 1
      %v2212 = vsel %vm1135, %v2207, %v2211
      %v2214 = vshrl.u32 %v2031, 16
      %v2216 = vshll.u32 %v2031, 16
      %v2218 = vrot.slane %v2216, 1
      %v2219 = vor.u32 %v2214, %v2218
      %v2221 = vshll.u32 %v2032, 16
      %v2223 = vrot.slane %v2221, 1
      %v2224 = vsel %vm1135, %v2219, %v2223
      %2241 = vst [vmem:[#allocation3 + $0x8] sm:$0xff] %v2044
      %2242 = vst [vmem:[#allocation3 + $0x20] sm:$0xff] %v2056
      %2243 = vst [vmem:[#allocation3 + $0x38] sm:$0xff] %v2068
      %2244 = vst [vmem:[#allocation3 + $0x50] sm:$0xff] %v2080
      %2245 = vst [vmem:[#allocation3 + $0x68] sm:$0xff] %v2092
      %2246 = vst [vmem:[#allocation3 + $0x80] sm:$0xff] %v2104
      %2247 = vst [vmem:[#allocation3 + $0x98] sm:$0xff] %v2116
      %2248 = vst [vmem:[#allocation3 + $0xb0] sm:$0xff] %v2128
      %2249 = vst [vmem:[#allocation3 + $0xc8] sm:$0xff] %v2140
      %2250 = vst [vmem:[#allocation3 + $0xe0] sm:$0xff] %v2152
      %2251 = vst [vmem:[#allocation3 + $0xf8] sm:$0xff] %v2164
      %2252 = vst [vmem:[#allocation3 + $0x110] sm:$0xff] %v2176
      %2253 = vst [vmem:[#allocation3 + $0x128] sm:$0xff] %v2188
      %2254 = vst [vmem:[#allocation3 + $0x140] sm:$0xff] %v2200
      %2255 = vst [vmem:[#allocation3 + $0x158] sm:$0xff] %v2212
      %2256 = vst [vmem:[#allocation3 + $0x170] sm:$0xff] %v2224
      %v2257 = vld [vmem:[%s700] sm:$0xe]
      %v2258 = vld [vmem:[%s700 + $0x4] sm:$0xf]
      %v2259 = vld [vmem:[%s700 + $0x8] sm:$0x1]
      %v2260 = vld [vmem:[%s700 + $0xc] sm:$0xe]
      %v2261 = vld [vmem:[%s700 + $0x10] sm:$0xf]
      %v2262 = vld [vmem:[%s700 + $0x14] sm:$0x1]
      %v2263 = vld [vmem:[%s700 + $0x18] sm:$0xe]
      %v2264 = vld [vmem:[%s700 + $0x1c] sm:$0xf]
      %v2265 = vld [vmem:[%s700 + $0x20] sm:$0x1]
      %v2266 = vld [vmem:[%s700 + $0x24] sm:$0xe]
      %v2267 = vld [vmem:[%s700 + $0x28] sm:$0xf]
      %v2268 = vld [vmem:[%s700 + $0x2c] sm:$0x1]
      %v2269 = vld [vmem:[%s700 + $0x30] sm:$0xe]
      %v2270 = vld [vmem:[%s700 + $0x34] sm:$0xf]
      %v2271 = vld [vmem:[%s700 + $0x38] sm:$0x1]
      %v2272 = vld [vmem:[%s700 + $0x3c] sm:$0xe]
      %v2273 = vld [vmem:[%s700 + $0x40] sm:$0xf]
      %v2274 = vld [vmem:[%s700 + $0x44] sm:$0x1]
      %v2275 = vld [vmem:[%s700 + $0x48] sm:$0xe]
      %v2276 = vld [vmem:[%s700 + $0x4c] sm:$0xf]
      %v2277 = vld [vmem:[%s700 + $0x50] sm:$0x1]
      %v2278 = vld [vmem:[%s700 + $0x54] sm:$0xe]
      %v2279 = vld [vmem:[%s700 + $0x58] sm:$0xf]
      %v2280 = vld [vmem:[%s700 + $0x5c] sm:$0x1]
      %v2281 = vld [vmem:[%s700 + $0x60] sm:$0xe]
      %v2282 = vld [vmem:[%s700 + $0x64] sm:$0xf]
      %v2283 = vld [vmem:[%s700 + $0x68] sm:$0x1]
      %v2284 = vld [vmem:[%s700 + $0x6c] sm:$0xe]
      %v2285 = vld [vmem:[%s700 + $0x70] sm:$0xf]
      %v2286 = vld [vmem:[%s700 + $0x74] sm:$0x1]
      %v2287 = vld [vmem:[%s700 + $0x78] sm:$0xe]
      %v2288 = vld [vmem:[%s700 + $0x7c] sm:$0xf]
      %v2289 = vld [vmem:[%s700 + $0x80] sm:$0x1]
      %v2290 = vld [vmem:[%s700 + $0x84] sm:$0xe]
      %v2291 = vld [vmem:[%s700 + $0x88] sm:$0xf]
      %v2292 = vld [vmem:[%s700 + $0x8c] sm:$0x1]
      %v2293 = vld [vmem:[%s700 + $0x90] sm:$0xe]
      %v2294 = vld [vmem:[%s700 + $0x94] sm:$0xf]
      %v2295 = vld [vmem:[%s700 + $0x98] sm:$0x1]
      %v2296 = vld [vmem:[%s700 + $0x9c] sm:$0xe]
      %v2297 = vld [vmem:[%s700 + $0xa0] sm:$0xf]
      %v2298 = vld [vmem:[%s700 + $0xa4] sm:$0x1]
      %v2299 = vld [vmem:[%s700 + $0xa8] sm:$0xe]
      %v2300 = vld [vmem:[%s700 + $0xac] sm:$0xf]
      %v2301 = vld [vmem:[%s700 + $0xb0] sm:$0x1]
      %v2302 = vld [vmem:[%s700 + $0xb4] sm:$0xe]
      %v2303 = vld [vmem:[%s700 + $0xb8] sm:$0xf]
      %v2304 = vld [vmem:[%s700 + $0xbc] sm:$0x1]
      %v2353 = vunpack.c.l.b16 %v2257
      %v2354 = vunpack.c.l.b16 %v2258
      %v2355 = vunpack.c.l.b16 %v2259
      %v2356 = vunpack.c.l.b16 %v2260
      %v2357 = vunpack.c.l.b16 %v2261
      %v2358 = vunpack.c.l.b16 %v2262
      %v2359 = vunpack.c.l.b16 %v2263
      %v2360 = vunpack.c.l.b16 %v2264
      %v2361 = vunpack.c.l.b16 %v2265
      %v2362 = vunpack.c.l.b16 %v2266
      %v2363 = vunpack.c.l.b16 %v2267
      %v2364 = vunpack.c.l.b16 %v2268
      %v2365 = vunpack.c.l.b16 %v2269
      %v2366 = vunpack.c.l.b16 %v2270
      %v2367 = vunpack.c.l.b16 %v2271
      %v2368 = vunpack.c.l.b16 %v2272
      %v2369 = vunpack.c.l.b16 %v2273
      %v2370 = vunpack.c.l.b16 %v2274
      %v2371 = vunpack.c.l.b16 %v2275
      %v2372 = vunpack.c.l.b16 %v2276
      %v2373 = vunpack.c.l.b16 %v2277
      %v2374 = vunpack.c.l.b16 %v2278
      %v2375 = vunpack.c.l.b16 %v2279
      %v2376 = vunpack.c.l.b16 %v2280
      %v2377 = vunpack.c.l.b16 %v2281
      %v2378 = vunpack.c.l.b16 %v2282
      %v2379 = vunpack.c.l.b16 %v2283
      %v2380 = vunpack.c.l.b16 %v2284
      %v2381 = vunpack.c.l.b16 %v2285
      %v2382 = vunpack.c.l.b16 %v2286
      %v2383 = vunpack.c.l.b16 %v2287
      %v2384 = vunpack.c.l.b16 %v2288
      %v2385 = vunpack.c.l.b16 %v2289
      %v2386 = vunpack.c.l.b16 %v2290
      %v2387 = vunpack.c.l.b16 %v2291
      %v2388 = vunpack.c.l.b16 %v2292
      %v2389 = vunpack.c.l.b16 %v2293
      %v2390 = vunpack.c.l.b16 %v2294
      %v2391 = vunpack.c.l.b16 %v2295
      %v2392 = vunpack.c.l.b16 %v2296
      %v2393 = vunpack.c.l.b16 %v2297
      %v2394 = vunpack.c.l.b16 %v2298
      %v2395 = vunpack.c.l.b16 %v2299
      %v2396 = vunpack.c.l.b16 %v2300
      %v2397 = vunpack.c.l.b16 %v2301
      %v2398 = vunpack.c.l.b16 %v2302
      %v2399 = vunpack.c.l.b16 %v2303
      %v2400 = vunpack.c.l.b16 %v2304
      %v2401 = vpack.c.b16 %v2354, %v2353
      %v2402 = vpack.c.b16 %v2355, %v2355
      %v2403 = vpack.c.b16 %v2357, %v2356
      %v2404 = vpack.c.b16 %v2358, %v2358
      %v2405 = vpack.c.b16 %v2360, %v2359
      %v2406 = vpack.c.b16 %v2361, %v2361
      %v2407 = vpack.c.b16 %v2363, %v2362
      %v2408 = vpack.c.b16 %v2364, %v2364
      %v2409 = vpack.c.b16 %v2366, %v2365
      %v2410 = vpack.c.b16 %v2367, %v2367
      %v2411 = vpack.c.b16 %v2369, %v2368
      %v2412 = vpack.c.b16 %v2370, %v2370
      %v2413 = vpack.c.b16 %v2372, %v2371
      %v2414 = vpack.c.b16 %v2373, %v2373
      %v2415 = vpack.c.b16 %v2375, %v2374
      %v2416 = vpack.c.b16 %v2376, %v2376
      %v2417 = vpack.c.b16 %v2378, %v2377
      %v2418 = vpack.c.b16 %v2379, %v2379
      %v2419 = vpack.c.b16 %v2381, %v2380
      %v2420 = vpack.c.b16 %v2382, %v2382
      %v2421 = vpack.c.b16 %v2384, %v2383
      %v2422 = vpack.c.b16 %v2385, %v2385
      %v2423 = vpack.c.b16 %v2387, %v2386
      %v2424 = vpack.c.b16 %v2388, %v2388
      %v2425 = vpack.c.b16 %v2390, %v2389
      %v2426 = vpack.c.b16 %v2391, %v2391
      %v2427 = vpack.c.b16 %v2393, %v2392
      %v2428 = vpack.c.b16 %v2394, %v2394
      %v2429 = vpack.c.b16 %v2396, %v2395
      %v2430 = vpack.c.b16 %v2397, %v2397
      %v2431 = vpack.c.b16 %v2399, %v2398
      %v2432 = vpack.c.b16 %v2400, %v2400
      %v2433 = vrot.slane %v2401, 1
      %v2434 = vrot.slane %v2402, 1
      %v2435 = vsel %vm1536, %v2433, %v2434
      %v2436 = vrot.slane %v2403, 1
      %v2437 = vrot.slane %v2404, 1
      %v2438 = vsel %vm1536, %v2436, %v2437
      %v2439 = vrot.slane %v2405, 1
      %v2440 = vrot.slane %v2406, 1
      %v2441 = vsel %vm1536, %v2439, %v2440
      %v2442 = vrot.slane %v2407, 1
      %v2443 = vrot.slane %v2408, 1
      %v2444 = vsel %vm1536, %v2442, %v2443
      %v2445 = vrot.slane %v2409, 1
      %v2446 = vrot.slane %v2410, 1
      %v2447 = vsel %vm1536, %v2445, %v2446
      %v2448 = vrot.slane %v2411, 1
      %v2449 = vrot.slane %v2412, 1
      %v2450 = vsel %vm1536, %v2448, %v2449
      %v2451 = vrot.slane %v2413, 1
      %v2452 = vrot.slane %v2414, 1
      %v2453 = vsel %vm1536, %v2451, %v2452
      %v2454 = vrot.slane %v2415, 1
      %v2455 = vrot.slane %v2416, 1
      %v2456 = vsel %vm1536, %v2454, %v2455
      %v2457 = vrot.slane %v2417, 1
      %v2458 = vrot.slane %v2418, 1
      %v2459 = vsel %vm1536, %v2457, %v2458
      %v2460 = vrot.slane %v2419, 1
      %v2461 = vrot.slane %v2420, 1
      %v2462 = vsel %vm1536, %v2460, %v2461
      %v2463 = vrot.slane %v2421, 1
      %v2464 = vrot.slane %v2422, 1
      %v2465 = vsel %vm1536, %v2463, %v2464
      %v2466 = vrot.slane %v2423, 1
      %v2467 = vrot.slane %v2424, 1
      %v2468 = vsel %vm1536, %v2466, %v2467
      %v2469 = vrot.slane %v2425, 1
      %v2470 = vrot.slane %v2426, 1
      %v2471 = vsel %vm1536, %v2469, %v2470
      %v2472 = vrot.slane %v2427, 1
      %v2473 = vrot.slane %v2428, 1
      %v2474 = vsel %vm1536, %v2472, %v2473
      %v2475 = vrot.slane %v2429, 1
      %v2476 = vrot.slane %v2430, 1
      %v2477 = vsel %vm1536, %v2475, %v2476
      %v2478 = vrot.slane %v2431, 1
      %v2479 = vrot.slane %v2432, 1
      %v2480 = vsel %vm1536, %v2478, %v2479
      %2497 = vst [vmem:[#allocation3 + $0x10] sm:$0xff] %v2435
      %2498 = vst [vmem:[#allocation3 + $0x28] sm:$0xff] %v2438
      %2499 = vst [vmem:[#allocation3 + $0x40] sm:$0xff] %v2441
      %2500 = vst [vmem:[#allocation3 + $0x58] sm:$0xff] %v2444
      %2501 = vst [vmem:[#allocation3 + $0x70] sm:$0xff] %v2447
      %2502 = vst [vmem:[#allocation3 + $0x88] sm:$0xff] %v2450
      %2503 = vst [vmem:[#allocation3 + $0xa0] sm:$0xff] %v2453
      %2504 = vst [vmem:[#allocation3 + $0xb8] sm:$0xff] %v2456
      %2505 = vst [vmem:[#allocation3 + $0xd0] sm:$0xff] %v2459
      %2506 = vst [vmem:[#allocation3 + $0xe8] sm:$0xff] %v2462
      %2507 = vst [vmem:[#allocation3 + $0x100] sm:$0xff] %v2465
      %2508 = vst [vmem:[#allocation3 + $0x118] sm:$0xff] %v2468
      %2509 = vst [vmem:[#allocation3 + $0x130] sm:$0xff] %v2471
      %2510 = vst [vmem:[#allocation3 + $0x148] sm:$0xff] %v2474
      %2511 = vst [vmem:[#allocation3 + $0x160] sm:$0xff] %v2477
      %2512 = vst [vmem:[#allocation3 + $0x178] sm:$0xff] %v2480
      %v2513 = vld [vmem:[#allocation3] sm:$0xff]
      %v2514 = vld [vmem:[#allocation3 + $0x8] sm:$0xff]
      %v2515 = vld [vmem:[#allocation3 + $0x10] sm:$0xff]
      %v2516 = vld [vmem:[#allocation3 + $0x18] sm:$0xff]
      %v2517 = vld [vmem:[#allocation3 + $0x20] sm:$0xff]
      %v2518 = vld [vmem:[#allocation3 + $0x28] sm:$0xff]
      %v2519 = vld [vmem:[#allocation3 + $0x30] sm:$0xff]
      %v2520 = vld [vmem:[#allocation3 + $0x38] sm:$0xff]
      %v2521 = vld [vmem:[#allocation3 + $0x40] sm:$0xff]
      %v2522 = vld [vmem:[#allocation3 + $0x48] sm:$0xff]
      %v2523 = vld [vmem:[#allocation3 + $0x50] sm:$0xff]
      %v2524 = vld [vmem:[#allocation3 + $0x58] sm:$0xff]
      %v2525 = vld [vmem:[#allocation3 + $0x60] sm:$0xff]
      %v2526 = vld [vmem:[#allocation3 + $0x68] sm:$0xff]
      %v2527 = vld [vmem:[#allocation3 + $0x70] sm:$0xff]
      %v2528 = vld [vmem:[#allocation3 + $0x78] sm:$0xff]
      %v2529 = vld [vmem:[#allocation3 + $0x80] sm:$0xff]
      %v2530 = vld [vmem:[#allocation3 + $0x88] sm:$0xff]
      %v2531 = vld [vmem:[#allocation3 + $0x90] sm:$0xff]
      %v2532 = vld [vmem:[#allocation3 + $0x98] sm:$0xff]
      %v2533 = vld [vmem:[#allocation3 + $0xa0] sm:$0xff]
      %v2534 = vld [vmem:[#allocation3 + $0xa8] sm:$0xff]
      %v2535 = vld [vmem:[#allocation3 + $0xb0] sm:$0xff]
      %v2536 = vld [vmem:[#allocation3 + $0xb8] sm:$0xff]
      %v2537 = vld [vmem:[#allocation3 + $0xc0] sm:$0xff]
      %v2538 = vld [vmem:[#allocation3 + $0xc8] sm:$0xff]
      %v2539 = vld [vmem:[#allocation3 + $0xd0] sm:$0xff]
      %v2540 = vld [vmem:[#allocation3 + $0xd8] sm:$0xff]
      %v2541 = vld [vmem:[#allocation3 + $0xe0] sm:$0xff]
      %v2542 = vld [vmem:[#allocation3 + $0xe8] sm:$0xff]
      %v2543 = vld [vmem:[#allocation3 + $0xf0] sm:$0xff]
      %v2544 = vld [vmem:[#allocation3 + $0xf8] sm:$0xff]
      %v2545 = vld [vmem:[#allocation3 + $0x100] sm:$0xff]
      %v2546 = vld [vmem:[#allocation3 + $0x108] sm:$0xff]
      %v2547 = vld [vmem:[#allocation3 + $0x110] sm:$0xff]
      %v2548 = vld [vmem:[#allocation3 + $0x118] sm:$0xff]
      %v2549 = vld [vmem:[#allocation3 + $0x120] sm:$0xff]
      %v2550 = vld [vmem:[#allocation3 + $0x128] sm:$0xff]
      %v2551 = vld [vmem:[#allocation3 + $0x130] sm:$0xff]
      %v2552 = vld [vmem:[#allocation3 + $0x138] sm:$0xff]
      %v2553 = vld [vmem:[#allocation3 + $0x140] sm:$0xff]
      %v2554 = vld [vmem:[#allocation3 + $0x148] sm:$0xff]
      %v2555 = vld [vmem:[#allocation3 + $0x150] sm:$0xff]
      %v2556 = vld [vmem:[#allocation3 + $0x158] sm:$0xff]
      %v2557 = vld [vmem:[#allocation3 + $0x160] sm:$0xff]
      %v2558 = vld [vmem:[#allocation3 + $0x168] sm:$0xff]
      %v2559 = vld [vmem:[#allocation3 + $0x170] sm:$0xff]
      %v2560 = vld [vmem:[#allocation3 + $0x178] sm:$0xff]
      %s2561 = scalar_lea.vmem %s1, 192
      %v2562 = vld [vmem:[%s2561] sm:$0xf]
      %v2563 = vld [vmem:[%s2561 + $0x4] sm:$0xf]
      %v2564 = vld [vmem:[%s2561 + $0x8] sm:$0xf]
      %v2565 = vld [vmem:[%s2561 + $0xc] sm:$0xf]
      %v2566 = vld [vmem:[%s2561 + $0x10] sm:$0xf]
      %v2567 = vld [vmem:[%s2561 + $0x14] sm:$0xf]
      %v2568 = vld [vmem:[%s2561 + $0x18] sm:$0xf]
      %v2569 = vld [vmem:[%s2561 + $0x1c] sm:$0xf]
      %v2570 = vld [vmem:[%s2561 + $0x20] sm:$0xf]
      %v2571 = vld [vmem:[%s2561 + $0x24] sm:$0xf]
      %v2572 = vld [vmem:[%s2561 + $0x28] sm:$0xf]
      %v2573 = vld [vmem:[%s2561 + $0x2c] sm:$0xf]
      %v2574 = vld [vmem:[%s2561 + $0x30] sm:$0xf]
      %v2575 = vld [vmem:[%s2561 + $0x34] sm:$0xf]
      %v2576 = vld [vmem:[%s2561 + $0x38] sm:$0xf]
      %v2577 = vld [vmem:[%s2561 + $0x3c] sm:$0xf]
      %v2578 = vld [vmem:[%s2561 + $0x40] sm:$0xf]
      %v2579 = vld [vmem:[%s2561 + $0x44] sm:$0xf]
      %v2580 = vld [vmem:[%s2561 + $0x48] sm:$0xf]
      %v2581 = vld [vmem:[%s2561 + $0x4c] sm:$0xf]
      %v2582 = vld [vmem:[%s2561 + $0x50] sm:$0xf]
      %v2583 = vld [vmem:[%s2561 + $0x54] sm:$0xf]
      %v2584 = vld [vmem:[%s2561 + $0x58] sm:$0xf]
      %v2585 = vld [vmem:[%s2561 + $0x5c] sm:$0xf]
      %v2586 = vld [vmem:[%s2561 + $0x60] sm:$0xf]
      %v2587 = vld [vmem:[%s2561 + $0x64] sm:$0xf]
      %v2588 = vld [vmem:[%s2561 + $0x68] sm:$0xf]
      %v2589 = vld [vmem:[%s2561 + $0x6c] sm:$0xf]
      %v2590 = vld [vmem:[%s2561 + $0x70] sm:$0xf]
      %v2591 = vld [vmem:[%s2561 + $0x74] sm:$0xf]
      %v2592 = vld [vmem:[%s2561 + $0x78] sm:$0xf]
      %v2593 = vld [vmem:[%s2561 + $0x7c] sm:$0xf]
      %v2594 = vld [vmem:[%s2561 + $0x80] sm:$0xf]
      %v2595 = vld [vmem:[%s2561 + $0x84] sm:$0xf]
      %v2596 = vld [vmem:[%s2561 + $0x88] sm:$0xf]
      %v2597 = vld [vmem:[%s2561 + $0x8c] sm:$0xf]
      %v2598 = vld [vmem:[%s2561 + $0x90] sm:$0xf]
      %v2599 = vld [vmem:[%s2561 + $0x94] sm:$0xf]
      %v2600 = vld [vmem:[%s2561 + $0x98] sm:$0xf]
      %v2601 = vld [vmem:[%s2561 + $0x9c] sm:$0xf]
      %v2602 = vld [vmem:[%s2561 + $0xa0] sm:$0xf]
      %v2603 = vld [vmem:[%s2561 + $0xa4] sm:$0xf]
      %v2604 = vld [vmem:[%s2561 + $0xa8] sm:$0xf]
      %v2605 = vld [vmem:[%s2561 + $0xac] sm:$0xf]
      %v2606 = vld [vmem:[%s2561 + $0xb0] sm:$0xf]
      %v2607 = vld [vmem:[%s2561 + $0xb4] sm:$0xf]
      %v2608 = vld [vmem:[%s2561 + $0xb8] sm:$0xf]
      %v2609 = vld [vmem:[%s2561 + $0xbc] sm:$0xf]
      %v2658 = vunpack.c.l.b16 %v2562
      %v2659 = vunpack.c.l.b16 %v2563
      %v2660 = vunpack.c.l.b16 %v2564
      %v2661 = vunpack.c.l.b16 %v2565
      %v2662 = vunpack.c.l.b16 %v2566
      %v2663 = vunpack.c.l.b16 %v2567
      %v2664 = vunpack.c.l.b16 %v2568
      %v2665 = vunpack.c.l.b16 %v2569
      %v2666 = vunpack.c.l.b16 %v2570
      %v2667 = vunpack.c.l.b16 %v2571
      %v2668 = vunpack.c.l.b16 %v2572
      %v2669 = vunpack.c.l.b16 %v2573
      %v2670 = vunpack.c.l.b16 %v2574
      %v2671 = vunpack.c.l.b16 %v2575
      %v2672 = vunpack.c.l.b16 %v2576
      %v2673 = vunpack.c.l.b16 %v2577
      %v2674 = vunpack.c.l.b16 %v2578
      %v2675 = vunpack.c.l.b16 %v2579
      %v2676 = vunpack.c.l.b16 %v2580
      %v2677 = vunpack.c.l.b16 %v2581
      %v2678 = vunpack.c.l.b16 %v2582
      %v2679 = vunpack.c.l.b16 %v2583
      %v2680 = vunpack.c.l.b16 %v2584
      %v2681 = vunpack.c.l.b16 %v2585
      %v2682 = vunpack.c.l.b16 %v2586
      %v2683 = vunpack.c.l.b16 %v2587
      %v2684 = vunpack.c.l.b16 %v2588
      %v2685 = vunpack.c.l.b16 %v2589
      %v2686 = vunpack.c.l.b16 %v2590
      %v2687 = vunpack.c.l.b16 %v2591
      %v2688 = vunpack.c.l.b16 %v2592
      %v2689 = vunpack.c.l.b16 %v2593
      %v2690 = vunpack.c.l.b16 %v2594
      %v2691 = vunpack.c.l.b16 %v2595
      %v2692 = vunpack.c.l.b16 %v2596
      %v2693 = vunpack.c.l.b16 %v2597
      %v2694 = vunpack.c.l.b16 %v2598
      %v2695 = vunpack.c.l.b16 %v2599
      %v2696 = vunpack.c.l.b16 %v2600
      %v2697 = vunpack.c.l.b16 %v2601
      %v2698 = vunpack.c.l.b16 %v2602
      %v2699 = vunpack.c.l.b16 %v2603
      %v2700 = vunpack.c.l.b16 %v2604
      %v2701 = vunpack.c.l.b16 %v2605
      %v2702 = vunpack.c.l.b16 %v2606
      %v2703 = vunpack.c.l.b16 %v2607
      %v2704 = vunpack.c.l.b16 %v2608
      %v2705 = vunpack.c.l.b16 %v2609
      %v2706 = vpack.c.b16 %v2659, %v2658
      %v2707 = vpack.c.b16 %v2661, %v2660
      %v2708 = vpack.c.b16 %v2663, %v2662
      %v2709 = vpack.c.b16 %v2665, %v2664
      %v2710 = vpack.c.b16 %v2667, %v2666
      %v2711 = vpack.c.b16 %v2669, %v2668
      %v2712 = vpack.c.b16 %v2671, %v2670
      %v2713 = vpack.c.b16 %v2673, %v2672
      %v2714 = vpack.c.b16 %v2675, %v2674
      %v2715 = vpack.c.b16 %v2677, %v2676
      %v2716 = vpack.c.b16 %v2679, %v2678
      %v2717 = vpack.c.b16 %v2681, %v2680
      %v2718 = vpack.c.b16 %v2683, %v2682
      %v2719 = vpack.c.b16 %v2685, %v2684
      %v2720 = vpack.c.b16 %v2687, %v2686
      %v2721 = vpack.c.b16 %v2689, %v2688
      %v2722 = vpack.c.b16 %v2691, %v2690
      %v2723 = vpack.c.b16 %v2693, %v2692
      %v2724 = vpack.c.b16 %v2695, %v2694
      %v2725 = vpack.c.b16 %v2697, %v2696
      %v2726 = vpack.c.b16 %v2699, %v2698
      %v2727 = vpack.c.b16 %v2701, %v2700
      %v2728 = vpack.c.b16 %v2703, %v2702
      %v2729 = vpack.c.b16 %v2705, %v2704
      %2754 = vmatprep.subr.bf16.mxu0 0
      %2755 = vmatpush1.bf16.msra.mxu0 %v2706
      %2756 = vmatprep.subr.bf16.mxu0 0
      %2757 = vmatpush1.bf16.msra.mxu0 %v2707
      %2758 = vmatprep.subr.bf16.mxu0 0
      %2759 = vmatpush1.bf16.msra.mxu0 %v2708
      %2760 = vmatprep.subr.bf16.mxu0 0
      %2761 = vmatpush1.bf16.msra.mxu0 %v2709
      %2762 = vmatprep.subr.bf16.mxu0 0
      %2763 = vmatpush1.bf16.msra.mxu0 %v2710
      %2764 = vmatprep.subr.bf16.mxu0 0
      %2765 = vmatpush1.bf16.msra.mxu0 %v2711
      %2766 = vmatprep.subr.bf16.mxu0 0
      %2767 = vmatpush1.bf16.msra.mxu0 %v2712
      %2768 = vmatprep.subr.bf16.mxu0 0
      %2769 = vmatpush1.bf16.msra.mxu0 %v2713
      %2770 = vmatprep.subr.bf16.mxu0 0
      %2771 = vmatpush1.bf16.msra.mxu0 %v2714
      %2772 = vmatprep.subr.bf16.mxu0 0
      %2773 = vmatpush1.bf16.msra.mxu0 %v2715
      %2774 = vmatprep.subr.bf16.mxu0 0
      %2775 = vmatpush1.bf16.msra.mxu0 %v2716
      %2776 = vmatprep.subr.bf16.mxu0 0
      %2777 = vmatpush1.bf16.msra.mxu0 %v2717
      %2778 = vmatprep.subr.bf16.mxu0 0
      %2779 = vmatpush1.bf16.msra.mxu0 %v2718
      %2780 = vmatprep.subr.bf16.mxu0 0
      %2781 = vmatpush1.bf16.msra.mxu0 %v2719
      %2782 = vmatprep.subr.bf16.mxu0 0
      %2783 = vmatpush1.bf16.msra.mxu0 %v2720
      %2784 = vmatprep.subr.bf16.mxu0 0
      %2785 = vmatpush1.bf16.msra.mxu0 %v2721
      %2786 = vmatprep.mubr.bf16.mxu0 %v2514
      %2787 = vmatmul.mubr.bf16.gmra.mrb[0].mxu0 %v2513
      %v2788 = vpop.f32.mrb[0].mxu0
      %v2789 = vadd.f32 0.0, %v2788
      %v2790 = vpop.f32.mrb[0].mxu0
      %v2791 = vpop.f32.mrb[0].mxu0
      %v2792 = vadd.f32 0.0, %v2791
      %v2793 = vpop.f32.mrb[0].mxu0
      %2794 = vmatprep.mubr.bf16.mxu0 %v2517
      %2795 = vmatmul.mubr.bf16.gmra.mrb[0].mxu0 %v2516
      %v2796 = vpop.f32.mrb[0].mxu0
      %v2797 = vadd.f32 0.0, %v2796
      %v2798 = vpop.f32.mrb[0].mxu0
      %v2799 = vpop.f32.mrb[0].mxu0
      %v2800 = vadd.f32 0.0, %v2799
      %v2801 = vpop.f32.mrb[0].mxu0
      %2802 = vmatprep.mubr.bf16.mxu0 %v2520
      %2803 = vmatmul.mubr.bf16.gmra.mrb[0].mxu0 %v2519
      %v2804 = vpop.f32.mrb[0].mxu0
      %v2805 = vadd.f32 0.0, %v2804
      %v2806 = vpop.f32.mrb[0].mxu0
      %v2807 = vpop.f32.mrb[0].mxu0
      %v2808 = vadd.f32 0.0, %v2807
      %v2809 = vpop.f32.mrb[0].mxu0
      %2810 = vmatprep.mubr.bf16.mxu0 %v2523
      %2811 = vmatmul.mubr.bf16.gmra.mrb[0].mxu0 %v2522
      %v2812 = vpop.f32.mrb[0].mxu0
      %v2813 = vadd.f32 0.0, %v2812
      %v2814 = vpop.f32.mrb[0].mxu0
      %v2815 = vpop.f32.mrb[0].mxu0
      %v2816 = vadd.f32 0.0, %v2815
      %v2817 = vpop.f32.mrb[0].mxu0
      %2818 = vmatprep.mubr.bf16.mxu0 %v2526
      %2819 = vmatmul.mubr.bf16.gmra.mrb[0].mxu0 %v2525
      %v2820 = vpop.f32.mrb[0].mxu0
      %v2821 = vadd.f32 0.0, %v2820
      %v2822 = vpop.f32.mrb[0].mxu0
      %v2823 = vpop.f32.mrb[0].mxu0
      %v2824 = vadd.f32 0.0, %v2823
      %v2825 = vpop.f32.mrb[0].mxu0
      %2826 = vmatprep.mubr.bf16.mxu0 %v2529
      %2827 = vmatmul.mubr.bf16.gmra.mrb[0].mxu0 %v2528
      %v2828 = vpop.f32.mrb[0].mxu0
      %v2829 = vadd.f32 0.0, %v2828
      %v2830 = vpop.f32.mrb[0].mxu0
      %v2831 = vpop.f32.mrb[0].mxu0
      %v2832 = vadd.f32 0.0, %v2831
      %v2833 = vpop.f32.mrb[0].mxu0
      %2834 = vmatprep.mubr.bf16.mxu0 %v2532
      %2835 = vmatmul.mubr.bf16.gmra.mrb[0].mxu0 %v2531
      %v2836 = vpop.f32.mrb[0].mxu0
      %v2837 = vadd.f32 0.0, %v2836
      %v2838 = vpop.f32.mrb[0].mxu0
      %v2839 = vpop.f32.mrb[0].mxu0
      %v2840 = vadd.f32 0.0, %v2839
      %v2841 = vpop.f32.mrb[0].mxu0
      %2842 = vmatprep.mubr.bf16.mxu0 %v2535
      %2843 = vmatmul.mubr.bf16.gmra.mrb[0].mxu0 %v2534
      %v2844 = vpop.f32.mrb[0].mxu0
      %v2845 = vadd.f32 0.0, %v2844
      %v2846 = vpop.f32.mrb[0].mxu0
      %v2847 = vpop.f32.mrb[0].mxu0
      %v2848 = vadd.f32 0.0, %v2847
      %v2849 = vpop.f32.mrb[0].mxu0
      %2850 = vmatprep.mubr.bf16.mxu0 %v2538
      %2851 = vmatmul.mubr.bf16.gmra.mrb[0].mxu0 %v2537
      %v2852 = vpop.f32.mrb[0].mxu0
      %v2853 = vadd.f32 0.0, %v2852
      %v2854 = vpop.f32.mrb[0].mxu0
      %v2855 = vpop.f32.mrb[0].mxu0
      %v2856 = vadd.f32 0.0, %v2855
      %v2857 = vpop.f32.mrb[0].mxu0
      %2858 = vmatprep.mubr.bf16.mxu0 %v2541
      %2859 = vmatmul.mubr.bf16.gmra.mrb[0].mxu0 %v2540
      %v2860 = vpop.f32.mrb[0].mxu0
      %v2861 = vadd.f32 0.0, %v2860
      %v2862 = vpop.f32.mrb[0].mxu0
      %v2863 = vpop.f32.mrb[0].mxu0
      %v2864 = vadd.f32 0.0, %v2863
      %v2865 = vpop.f32.mrb[0].mxu0
      %2866 = vmatprep.mubr.bf16.mxu0 %v2544
      %2867 = vmatmul.mubr.bf16.gmra.mrb[0].mxu0 %v2543
      %v2868 = vpop.f32.mrb[0].mxu0
      %v2869 = vadd.f32 0.0, %v2868
      %v2870 = vpop.f32.mrb[0].mxu0
      %v2871 = vpop.f32.mrb[0].mxu0
      %v2872 = vadd.f32 0.0, %v2871
      %v2873 = vpop.f32.mrb[0].mxu0
      %2874 = vmatprep.mubr.bf16.mxu0 %v2547
      %2875 = vmatmul.mubr.bf16.gmra.mrb[0].mxu0 %v2546
      %v2876 = vpop.f32.mrb[0].mxu0
      %v2877 = vadd.f32 0.0, %v2876
      %v2878 = vpop.f32.mrb[0].mxu0
      %v2879 = vpop.f32.mrb[0].mxu0
      %v2880 = vadd.f32 0.0, %v2879
      %v2881 = vpop.f32.mrb[0].mxu0
      %2882 = vmatprep.mubr.bf16.mxu0 %v2550
      %2883 = vmatmul.mubr.bf16.gmra.mrb[0].mxu0 %v2549
      %v2884 = vpop.f32.mrb[0].mxu0
      %v2885 = vadd.f32 0.0, %v2884
      %v2886 = vpop.f32.mrb[0].mxu0
      %v2887 = vpop.f32.mrb[0].mxu0
      %v2888 = vadd.f32 0.0, %v2887
      %v2889 = vpop.f32.mrb[0].mxu0
      %2890 = vmatprep.mubr.bf16.mxu0 %v2553
      %2891 = vmatmul.mubr.bf16.gmra.mrb[0].mxu0 %v2552
      %v2892 = vpop.f32.mrb[0].mxu0
      %v2893 = vadd.f32 0.0, %v2892
      %v2894 = vpop.f32.mrb[0].mxu0
      %v2895 = vpop.f32.mrb[0].mxu0
      %v2896 = vadd.f32 0.0, %v2895
      %v2897 = vpop.f32.mrb[0].mxu0
      %2898 = vmatprep.mubr.bf16.mxu0 %v2556
      %2899 = vmatmul.mubr.bf16.gmra.mrb[0].mxu0 %v2555
      %v2900 = vpop.f32.mrb[0].mxu0
      %v2901 = vadd.f32 0.0, %v2900
      %v2902 = vpop.f32.mrb[0].mxu0
      %v2903 = vpop.f32.mrb[0].mxu0
      %v2904 = vadd.f32 0.0, %v2903
      %v2905 = vpop.f32.mrb[0].mxu0
      %2906 = vmatprep.mubr.bf16.mxu0 %v2559
      %2907 = vmatmul.mubr.bf16.gmra.mrb[0].mxu0 %v2558
      %v2908 = vpop.f32.mrb[0].mxu0
      %v2909 = vadd.f32 0.0, %v2908
      %v2910 = vpop.f32.mrb[0].mxu0
      %v2911 = vpop.f32.mrb[0].mxu0
      %v2912 = vadd.f32 0.0, %v2911
      %v2913 = vpop.f32.mrb[0].mxu0
      %2914 = vdwg.mxu0
      %2915 = vmatprep.subr.bf16.mxu0 0
      %2916 = vmatpush1.bf16.msra.mxu0 %v2722
      %2917 = vmatprep.subr.bf16.mxu0 0
      %2918 = vmatpush1.bf16.msra.mxu0 %v2723
      %2919 = vmatprep.subr.bf16.mxu0 0
      %2920 = vmatpush1.bf16.msra.mxu0 %v2724
      %2921 = vmatprep.subr.bf16.mxu0 0
      %2922 = vmatpush1.bf16.msra.mxu0 %v2725
      %2923 = vmatprep.subr.bf16.mxu0 0
      %2924 = vmatpush1.bf16.msra.mxu0 %v2726
      %2925 = vmatprep.subr.bf16.mxu0 0
      %2926 = vmatpush1.bf16.msra.mxu0 %v2727
      %2927 = vmatprep.subr.bf16.mxu0 0
      %2928 = vmatpush1.bf16.msra.mxu0 %v2728
      %2929 = vmatprep.subr.bf16.mxu0 0
      %2930 = vmatpush1.bf16.msra.mxu0 %v2729
      %2931 = vmatprep.subr.bf16.mxu0 0
      %2932 = vmatpush1.bf16.msra.mxu0 0
      %2933 = vmatprep.subr.bf16.mxu0 0
      %2934 = vmatpush1.bf16.msra.mxu0 0
      %2935 = vmatprep.subr.bf16.mxu0 0
      %2936 = vmatpush1.bf16.msra.mxu0 0
      %2937 = vmatprep.subr.bf16.mxu0 0
      %2938 = vmatpush1.bf16.msra.mxu0 0
      %2939 = vmatprep.subr.bf16.mxu0 0
      %2940 = vmatpush1.bf16.msra.mxu0 0
      %2941 = vmatprep.subr.bf16.mxu0 0
      %2942 = vmatpush1.bf16.msra.mxu0 0
      %2943 = vmatprep.subr.bf16.mxu0 0
      %2944 = vmatpush1.bf16.msra.mxu0 0
      %2945 = vmatprep.subr.bf16.mxu0 0
      %2946 = vmatpush1.bf16.msra.mxu0 0
      %2947 = vmatprep.mubr.bf16.mxu0 0
      %2948 = vmatmul.mubr.bf16.gmra.mrb[0].mxu0 %v2515
      %v2949 = vpop.f32.mrb[0].mxu0
      %v2950 = vadd.f32 %v2789, %v2949
      %v2951 = vpop.f32.mrb[0].mxu0
      %v2952 = vpop.f32.mrb[0].mxu0
      %v2953 = vadd.f32 %v2792, %v2952
      %v2954 = vpop.f32.mrb[0].mxu0
      %2955 = vmatprep.mubr.bf16.mxu0 0
      %2956 = vmatmul.mubr.bf16.gmra.mrb[0].mxu0 %v2518
      %v2957 = vpop.f32.mrb[0].mxu0
      %v2958 = vadd.f32 %v2797, %v2957
      %v2959 = vpop.f32.mrb[0].mxu0
      %v2960 = vpop.f32.mrb[0].mxu0
      %v2961 = vadd.f32 %v2800, %v2960
      %v2962 = vpop.f32.mrb[0].mxu0
      %2963 = vmatprep.mubr.bf16.mxu0 0
      %2964 = vmatmul.mubr.bf16.gmra.mrb[0].mxu0 %v2521
      %v2965 = vpop.f32.mrb[0].mxu0
      %v2966 = vadd.f32 %v2805, %v2965
      %v2967 = vpop.f32.mrb[0].mxu0
      %v2968 = vpop.f32.mrb[0].mxu0
      %v2969 = vadd.f32 %v2808, %v2968
      %v2970 = vpop.f32.mrb[0].mxu0
      %2971 = vmatprep.mubr.bf16.mxu0 0
      %2972 = vmatmul.mubr.bf16.gmra.mrb[0].mxu0 %v2524
      %v2973 = vpop.f32.mrb[0].mxu0
      %v2974 = vadd.f32 %v2813, %v2973
      %v2975 = vpop.f32.mrb[0].mxu0
      %v2976 = vpop.f32.mrb[0].mxu0
      %v2977 = vadd.f32 %v2816, %v2976
      %v2978 = vpop.f32.mrb[0].mxu0
      %2979 = vmatprep.mubr.bf16.mxu0 0
      %2980 = vmatmul.mubr.bf16.gmra.mrb[0].mxu0 %v2527
      %v2981 = vpop.f32.mrb[0].mxu0
      %v2982 = vadd.f32 %v2821, %v2981
      %v2983 = vpop.f32.mrb[0].mxu0
      %v2984 = vpop.f32.mrb[0].mxu0
      %v2985 = vadd.f32 %v2824, %v2984
      %v2986 = vpop.f32.mrb[0].mxu0
      %2987 = vmatprep.mubr.bf16.mxu0 0
      %2988 = vmatmul.mubr.bf16.gmra.mrb[0].mxu0 %v2530
      %v2989 = vpop.f32.mrb[0].mxu0
      %v2990 = vadd.f32 %v2829, %v2989
      %v2991 = vpop.f32.mrb[0].mxu0
      %v2992 = vpop.f32.mrb[0].mxu0
      %v2993 = vadd.f32 %v2832, %v2992
      %v2994 = vpop.f32.mrb[0].mxu0
      %2995 = vmatprep.mubr.bf16.mxu0 0
      %2996 = vmatmul.mubr.bf16.gmra.mrb[0].mxu0 %v2533
      %v2997 = vpop.f32.mrb[0].mxu0
      %v2998 = vadd.f32 %v2837, %v2997
      %v2999 = vpop.f32.mrb[0].mxu0
      %v3000 = vpop.f32.mrb[0].mxu0
      %v3001 = vadd.f32 %v2840, %v3000
      %v3002 = vpop.f32.mrb[0].mxu0
      %3003 = vmatprep.mubr.bf16.mxu0 0
      %3004 = vmatmul.mubr.bf16.gmra.mrb[0].mxu0 %v2536
      %v3005 = vpop.f32.mrb[0].mxu0
      %v3006 = vadd.f32 %v2845, %v3005
      %v3007 = vpop.f32.mrb[0].mxu0
      %v3008 = vpop.f32.mrb[0].mxu0
      %v3009 = vadd.f32 %v2848, %v3008
      %v3010 = vpop.f32.mrb[0].mxu0
      %3011 = vmatprep.mubr.bf16.mxu0 0
      %3012 = vmatmul.mubr.bf16.gmra.mrb[0].mxu0 %v2539
      %v3013 = vpop.f32.mrb[0].mxu0
      %v3014 = vadd.f32 %v2853, %v3013
      %v3015 = vpop.f32.mrb[0].mxu0
      %v3016 = vpop.f32.mrb[0].mxu0
      %v3017 = vadd.f32 %v2856, %v3016
      %v3018 = vpop.f32.mrb[0].mxu0
      %3019 = vmatprep.mubr.bf16.mxu0 0
      %3020 = vmatmul.mubr.bf16.gmra.mrb[0].mxu0 %v2542
      %v3021 = vpop.f32.mrb[0].mxu0
      %v3022 = vadd.f32 %v2861, %v3021
      %v3023 = vpop.f32.mrb[0].mxu0
      %v3024 = vpop.f32.mrb[0].mxu0
      %v3025 = vadd.f32 %v2864, %v3024
      %v3026 = vpop.f32.mrb[0].mxu0
      %3027 = vmatprep.mubr.bf16.mxu0 0
      %3028 = vmatmul.mubr.bf16.gmra.mrb[0].mxu0 %v2545
      %v3029 = vpop.f32.mrb[0].mxu0
      %v3030 = vadd.f32 %v2869, %v3029
      %v3031 = vpop.f32.mrb[0].mxu0
      %v3032 = vpop.f32.mrb[0].mxu0
      %v3033 = vadd.f32 %v2872, %v3032
      %v3034 = vpop.f32.mrb[0].mxu0
      %3035 = vmatprep.mubr.bf16.mxu0 0
      %3036 = vmatmul.mubr.bf16.gmra.mrb[0].mxu0 %v2548
      %v3037 = vpop.f32.mrb[0].mxu0
      %v3038 = vadd.f32 %v2877, %v3037
      %v3039 = vpop.f32.mrb[0].mxu0
      %v3040 = vpop.f32.mrb[0].mxu0
      %v3041 = vadd.f32 %v2880, %v3040
      %v3042 = vpop.f32.mrb[0].mxu0
      %3043 = vmatprep.mubr.bf16.mxu0 0
      %3044 = vmatmul.mubr.bf16.gmra.mrb[0].mxu0 %v2551
      %v3045 = vpop.f32.mrb[0].mxu0
      %v3046 = vadd.f32 %v2885, %v3045
      %v3047 = vpop.f32.mrb[0].mxu0
      %v3048 = vpop.f32.mrb[0].mxu0
      %v3049 = vadd.f32 %v2888, %v3048
      %v3050 = vpop.f32.mrb[0].mxu0
      %3051 = vmatprep.mubr.bf16.mxu0 0
      %3052 = vmatmul.mubr.bf16.gmra.mrb[0].mxu0 %v2554
      %v3053 = vpop.f32.mrb[0].mxu0
      %v3054 = vadd.f32 %v2893, %v3053
      %v3055 = vpop.f32.mrb[0].mxu0
      %v3056 = vpop.f32.mrb[0].mxu0
      %v3057 = vadd.f32 %v2896, %v3056
      %v3058 = vpop.f32.mrb[0].mxu0
      %3059 = vmatprep.mubr.bf16.mxu0 0
      %3060 = vmatmul.mubr.bf16.gmra.mrb[0].mxu0 %v2557
      %v3061 = vpop.f32.mrb[0].mxu0
      %v3062 = vadd.f32 %v2901, %v3061
      %v3063 = vpop.f32.mrb[0].mxu0
      %v3064 = vpop.f32.mrb[0].mxu0
      %v3065 = vadd.f32 %v2904, %v3064
      %v3066 = vpop.f32.mrb[0].mxu0
      %3067 = vmatprep.mubr.bf16.mxu0 0
      %3068 = vmatmul.mubr.bf16.gmra.mrb[0].mxu0 %v2560
      %v3069 = vpop.f32.mrb[0].mxu0
      %v3070 = vadd.f32 %v2909, %v3069
      %v3071 = vpop.f32.mrb[0].mxu0
      %v3072 = vpop.f32.mrb[0].mxu0
      %v3073 = vadd.f32 %v2912, %v3072
      %v3074 = vpop.f32.mrb[0].mxu0
      %3075 = vdwg.mxu0
      %v3124 = vunpack.c.l.b16 %v1665
      %v3125 = vunpack.c.l.b16 %v1666
      %v3126 = vunpack.c.l.b16 %v1667
      %v3127 = vunpack.c.l.b16 %v1668
      %v3128 = vunpack.c.l.b16 %v1669
      %v3129 = vunpack.c.l.b16 %v1670
      %v3130 = vunpack.c.l.b16 %v1671
      %v3131 = vunpack.c.l.b16 %v1672
      %v3132 = vunpack.c.l.b16 %v1673
      %v3133 = vunpack.c.l.b16 %v1674
      %v3134 = vunpack.c.l.b16 %v1675
      %v3135 = vunpack.c.l.b16 %v1676
      %v3136 = vunpack.c.l.b16 %v1677
      %v3137 = vunpack.c.l.b16 %v1678
      %v3138 = vunpack.c.l.b16 %v1679
      %v3139 = vunpack.c.l.b16 %v1680
      %v3140 = vunpack.c.l.b16 %v1681
      %v3141 = vunpack.c.l.b16 %v1682
      %v3142 = vunpack.c.l.b16 %v1683
      %v3143 = vunpack.c.l.b16 %v1684
      %v3144 = vunpack.c.l.b16 %v1685
      %v3145 = vunpack.c.l.b16 %v1686
      %v3146 = vunpack.c.l.b16 %v1687
      %v3147 = vunpack.c.l.b16 %v1688
      %v3148 = vunpack.c.l.b16 %v1689
      %v3149 = vunpack.c.l.b16 %v1690
      %v3150 = vunpack.c.l.b16 %v1691
      %v3151 = vunpack.c.l.b16 %v1692
      %v3152 = vunpack.c.l.b16 %v1693
      %v3153 = vunpack.c.l.b16 %v1694
      %v3154 = vunpack.c.l.b16 %v1695
      %v3155 = vunpack.c.l.b16 %v1696
      %v3156 = vunpack.c.l.b16 %v1697
      %v3157 = vunpack.c.l.b16 %v1698
      %v3158 = vunpack.c.l.b16 %v1699
      %v3159 = vunpack.c.l.b16 %v1700
      %v3160 = vunpack.c.l.b16 %v1701
      %v3161 = vunpack.c.l.b16 %v1702
      %v3162 = vunpack.c.l.b16 %v1703
      %v3163 = vunpack.c.l.b16 %v1704
      %v3164 = vunpack.c.l.b16 %v1705
      %v3165 = vunpack.c.l.b16 %v1706
      %v3166 = vunpack.c.l.b16 %v1707
      %v3167 = vunpack.c.l.b16 %v1708
      %v3168 = vunpack.c.l.b16 %v1709
      %v3169 = vunpack.c.l.b16 %v1710
      %v3170 = vunpack.c.l.b16 %v1711
      %v3171 = vunpack.c.l.b16 %v1712
      %v3172 = vpack.c.b16 %v3125, %v3124
      %v3173 = vpack.c.b16 %v3127, %v3126
      %v3174 = vpack.c.b16 %v3129, %v3128
      %v3175 = vpack.c.b16 %v3131, %v3130
      %v3176 = vpack.c.b16 %v3133, %v3132
      %v3177 = vpack.c.b16 %v3135, %v3134
      %v3178 = vpack.c.b16 %v3137, %v3136
      %v3179 = vpack.c.b16 %v3139, %v3138
      %v3180 = vpack.c.b16 %v3141, %v3140
      %v3181 = vpack.c.b16 %v3143, %v3142
      %v3182 = vpack.c.b16 %v3145, %v3144
      %v3183 = vpack.c.b16 %v3147, %v3146
      %v3184 = vpack.c.b16 %v3149, %v3148
      %v3185 = vpack.c.b16 %v3151, %v3150
      %v3186 = vpack.c.b16 %v3153, %v3152
      %v3187 = vpack.c.b16 %v3155, %v3154
      %v3188 = vpack.c.b16 %v3157, %v3156
      %v3189 = vpack.c.b16 %v3159, %v3158
      %v3190 = vpack.c.b16 %v3161, %v3160
      %v3191 = vpack.c.b16 %v3163, %v3162
      %v3192 = vpack.c.b16 %v3165, %v3164
      %v3193 = vpack.c.b16 %v3167, %v3166
      %v3194 = vpack.c.b16 %v3169, %v3168
      %v3195 = vpack.c.b16 %v3171, %v3170
      %3220 = vmatprep.subr.bf16.mxu0 0
      %3221 = vmatpush1.bf16.msra.mxu0 %v3172
      %3222 = vmatprep.subr.bf16.mxu0 0
      %3223 = vmatpush1.bf16.msra.mxu0 %v3173
      %3224 = vmatprep.subr.bf16.mxu0 0
      %3225 = vmatpush1.bf16.msra.mxu0 %v3174
      %3226 = vmatprep.subr.bf16.mxu0 0
      %3227 = vmatpush1.bf16.msra.mxu0 %v3175
      %3228 = vmatprep.subr.bf16.mxu0 0
      %3229 = vmatpush1.bf16.msra.mxu0 %v3176
      %3230 = vmatprep.subr.bf16.mxu0 0
      %3231 = vmatpush1.bf16.msra.mxu0 %v3177
      %3232 = vmatprep.subr.bf16.mxu0 0
      %3233 = vmatpush1.bf16.msra.mxu0 %v3178
      %3234 = vmatprep.subr.bf16.mxu0 0
      %3235 = vmatpush1.bf16.msra.mxu0 %v3179
      %3236 = vmatprep.subr.bf16.mxu0 0
      %3237 = vmatpush1.bf16.msra.mxu0 %v3180
      %3238 = vmatprep.subr.bf16.mxu0 0
      %3239 = vmatpush1.bf16.msra.mxu0 %v3181
      %3240 = vmatprep.subr.bf16.mxu0 0
      %3241 = vmatpush1.bf16.msra.mxu0 %v3182
      %3242 = vmatprep.subr.bf16.mxu0 0
      %3243 = vmatpush1.bf16.msra.mxu0 %v3183
      %3244 = vmatprep.subr.bf16.mxu0 0
      %3245 = vmatpush1.bf16.msra.mxu0 %v3184
      %3246 = vmatprep.subr.bf16.mxu0 0
      %3247 = vmatpush1.bf16.msra.mxu0 %v3185
      %3248 = vmatprep.subr.bf16.mxu0 0
      %3249 = vmatpush1.bf16.msra.mxu0 %v3186
      %3250 = vmatprep.subr.bf16.mxu0 0
      %3251 = vmatpush1.bf16.msra.mxu0 %v3187
      %3252 = vmatprep.mubr.bf16.mxu0 %v1618
      %3253 = vmatmul.mubr.bf16.gmra.mrb[0].mxu0 %v1617
      %v3254 = vpop.f32.mrb[0].mxu0
      %v3255 = vadd.f32 %v2950, %v3254
      %v3256 = vpop.f32.mrb[0].mxu0
      %v3257 = vpop.f32.mrb[0].mxu0
      %v3258 = vadd.f32 %v2953, %v3257
      %v3259 = vpop.f32.mrb[0].mxu0
      %3260 = vmatprep.mubr.bf16.mxu0 %v1621
      %3261 = vmatmul.mubr.bf16.gmra.mrb[0].mxu0 %v1620
      %v3262 = vpop.f32.mrb[0].mxu0
      %v3263 = vadd.f32 %v2958, %v3262
      %v3264 = vpop.f32.mrb[0].mxu0
      %v3265 = vpop.f32.mrb[0].mxu0
      %v3266 = vadd.f32 %v2961, %v3265
      %v3267 = vpop.f32.mrb[0].mxu0
      %3268 = vmatprep.mubr.bf16.mxu0 %v1624
      %3269 = vmatmul.mubr.bf16.gmra.mrb[0].mxu0 %v1623
      %v3270 = vpop.f32.mrb[0].mxu0
      %v3271 = vadd.f32 %v2966, %v3270
      %v3272 = vpop.f32.mrb[0].mxu0
      %v3273 = vpop.f32.mrb[0].mxu0
      %v3274 = vadd.f32 %v2969, %v3273
      %v3275 = vpop.f32.mrb[0].mxu0
      %3276 = vmatprep.mubr.bf16.mxu0 %v1627
      %3277 = vmatmul.mubr.bf16.gmra.mrb[0].mxu0 %v1626
      %v3278 = vpop.f32.mrb[0].mxu0
      %v3279 = vadd.f32 %v2974, %v3278
      %v3280 = vpop.f32.mrb[0].mxu0
      %v3281 = vpop.f32.mrb[0].mxu0
      %v3282 = vadd.f32 %v2977, %v3281
      %v3283 = vpop.f32.mrb[0].mxu0
      %3284 = vmatprep.mubr.bf16.mxu0 %v1630
      %3285 = vmatmul.mubr.bf16.gmra.mrb[0].mxu0 %v1629
      %v3286 = vpop.f32.mrb[0].mxu0
      %v3287 = vadd.f32 %v2982, %v3286
      %v3288 = vpop.f32.mrb[0].mxu0
      %v3289 = vpop.f32.mrb[0].mxu0
      %v3290 = vadd.f32 %v2985, %v3289
      %v3291 = vpop.f32.mrb[0].mxu0
      %3292 = vmatprep.mubr.bf16.mxu0 %v1633
      %3293 = vmatmul.mubr.bf16.gmra.mrb[0].mxu0 %v1632
      %v3294 = vpop.f32.mrb[0].mxu0
      %v3295 = vadd.f32 %v2990, %v3294
      %v3296 = vpop.f32.mrb[0].mxu0
      %v3297 = vpop.f32.mrb[0].mxu0
      %v3298 = vadd.f32 %v2993, %v3297
      %v3299 = vpop.f32.mrb[0].mxu0
      %3300 = vmatprep.mubr.bf16.mxu0 %v1636
      %3301 = vmatmul.mubr.bf16.gmra.mrb[0].mxu0 %v1635
      %v3302 = vpop.f32.mrb[0].mxu0
      %v3303 = vadd.f32 %v2998, %v3302
      %v3304 = vpop.f32.mrb[0].mxu0
      %v3305 = vpop.f32.mrb[0].mxu0
      %v3306 = vadd.f32 %v3001, %v3305
      %v3307 = vpop.f32.mrb[0].mxu0
      %3308 = vmatprep.mubr.bf16.mxu0 %v1639
      %3309 = vmatmul.mubr.bf16.gmra.mrb[0].mxu0 %v1638
      %v3310 = vpop.f32.mrb[0].mxu0
      %v3311 = vadd.f32 %v3006, %v3310
      %v3312 = vpop.f32.mrb[0].mxu0
      %v3313 = vpop.f32.mrb[0].mxu0
      %v3314 = vadd.f32 %v3009, %v3313
      %v3315 = vpop.f32.mrb[0].mxu0
      %3316 = vmatprep.mubr.bf16.mxu0 %v1642
      %3317 = vmatmul.mubr.bf16.gmra.mrb[0].mxu0 %v1641
      %v3318 = vpop.f32.mrb[0].mxu0
      %v3319 = vadd.f32 %v3014, %v3318
      %v3320 = vpop.f32.mrb[0].mxu0
      %v3321 = vpop.f32.mrb[0].mxu0
      %v3322 = vadd.f32 %v3017, %v3321
      %v3323 = vpop.f32.mrb[0].mxu0
      %3324 = vmatprep.mubr.bf16.mxu0 %v1645
      %3325 = vmatmul.mubr.bf16.gmra.mrb[0].mxu0 %v1644
      %v3326 = vpop.f32.mrb[0].mxu0
      %v3327 = vadd.f32 %v3022, %v3326
      %v3328 = vpop.f32.mrb[0].mxu0
      %v3329 = vpop.f32.mrb[0].mxu0
      %v3330 = vadd.f32 %v3025, %v3329
      %v3331 = vpop.f32.mrb[0].mxu0
      %3332 = vmatprep.mubr.bf16.mxu0 %v1648
      %3333 = vmatmul.mubr.bf16.gmra.mrb[0].mxu0 %v1647
      %v3334 = vpop.f32.mrb[0].mxu0
      %v3335 = vadd.f32 %v3030, %v3334
      %v3336 = vpop.f32.mrb[0].mxu0
      %v3337 = vpop.f32.mrb[0].mxu0
      %v3338 = vadd.f32 %v3033, %v3337
      %v3339 = vpop.f32.mrb[0].mxu0
      %3340 = vmatprep.mubr.bf16.mxu0 %v1651
      %3341 = vmatmul.mubr.bf16.gmra.mrb[0].mxu0 %v1650
      %v3342 = vpop.f32.mrb[0].mxu0
      %v3343 = vadd.f32 %v3038, %v3342
      %v3344 = vpop.f32.mrb[0].mxu0
      %v3345 = vpop.f32.mrb[0].mxu0
      %v3346 = vadd.f32 %v3041, %v3345
      %v3347 = vpop.f32.mrb[0].mxu0
      %3348 = vmatprep.mubr.bf16.mxu0 %v1654
      %3349 = vmatmul.mubr.bf16.gmra.mrb[0].mxu0 %v1653
      %v3350 = vpop.f32.mrb[0].mxu0
      %v3351 = vadd.f32 %v3046, %v3350
      %v3352 = vpop.f32.mrb[0].mxu0
      %v3353 = vpop.f32.mrb[0].mxu0
      %v3354 = vadd.f32 %v3049, %v3353
      %v3355 = vpop.f32.mrb[0].mxu0
      %3356 = vmatprep.mubr.bf16.mxu0 %v1657
      %3357 = vmatmul.mubr.bf16.gmra.mrb[0].mxu0 %v1656
      %v3358 = vpop.f32.mrb[0].mxu0
      %v3359 = vadd.f32 %v3054, %v3358
      %v3360 = vpop.f32.mrb[0].mxu0
      %v3361 = vpop.f32.mrb[0].mxu0
      %v3362 = vadd.f32 %v3057, %v3361
      %v3363 = vpop.f32.mrb[0].mxu0
      %3364 = vmatprep.mubr.bf16.mxu0 %v1660
      %3365 = vmatmul.mubr.bf16.gmra.mrb[0].mxu0 %v1659
      %v3366 = vpop.f32.mrb[0].mxu0
      %v3367 = vadd.f32 %v3062, %v3366
      %v3368 = vpop.f32.mrb[0].mxu0
      %v3369 = vpop.f32.mrb[0].mxu0
      %v3370 = vadd.f32 %v3065, %v3369
      %v3371 = vpop.f32.mrb[0].mxu0
      %3372 = vmatprep.mubr.bf16.mxu0 %v1663
      %3373 = vmatmul.mubr.bf16.gmra.mrb[0].mxu0 %v1662
      %v3374 = vpop.f32.mrb[0].mxu0
      %v3375 = vadd.f32 %v3070, %v3374
      %v3376 = vpop.f32.mrb[0].mxu0
      %v3377 = vpop.f32.mrb[0].mxu0
      %v3378 = vadd.f32 %v3073, %v3377
      %v3379 = vpop.f32.mrb[0].mxu0
      %3380 = vdwg.mxu0
      %3381 = vmatprep.subr.bf16.mxu0 0
      %3382 = vmatpush1.bf16.msra.mxu0 %v3188
      %3383 = vmatprep.subr.bf16.mxu0 0
      %3384 = vmatpush1.bf16.msra.mxu0 %v3189
      %3385 = vmatprep.subr.bf16.mxu0 0
      %3386 = vmatpush1.bf16.msra.mxu0 %v3190
      %3387 = vmatprep.subr.bf16.mxu0 0
      %3388 = vmatpush1.bf16.msra.mxu0 %v3191
      %3389 = vmatprep.subr.bf16.mxu0 0
      %3390 = vmatpush1.bf16.msra.mxu0 %v3192
      %3391 = vmatprep.subr.bf16.mxu0 0
      %3392 = vmatpush1.bf16.msra.mxu0 %v3193
      %3393 = vmatprep.subr.bf16.mxu0 0
      %3394 = vmatpush1.bf16.msra.mxu0 %v3194
      %3395 = vmatprep.subr.bf16.mxu0 0
      %3396 = vmatpush1.bf16.msra.mxu0 %v3195
      %3397 = vmatprep.subr.bf16.mxu0 0
      %3398 = vmatpush1.bf16.msra.mxu0 0
      %3399 = vmatprep.subr.bf16.mxu0 0
      %3400 = vmatpush1.bf16.msra.mxu0 0
      %3401 = vmatprep.subr.bf16.mxu0 0
      %3402 = vmatpush1.bf16.msra.mxu0 0
      %3403 = vmatprep.subr.bf16.mxu0 0
      %3404 = vmatpush1.bf16.msra.mxu0 0
      %3405 = vmatprep.subr.bf16.mxu0 0
      %3406 = vmatpush1.bf16.msra.mxu0 0
      %3407 = vmatprep.subr.bf16.mxu0 0
      %3408 = vmatpush1.bf16.msra.mxu0 0
      %3409 = vmatprep.subr.bf16.mxu0 0
      %3410 = vmatpush1.bf16.msra.mxu0 0
      %3411 = vmatprep.subr.bf16.mxu0 0
      %3412 = vmatpush1.bf16.msra.mxu0 0
      %3413 = vmatprep.mubr.bf16.mxu0 0
      %3414 = vmatmul.mubr.bf16.gmra.mrb[0].mxu0 %v1619
      %v3415 = vpop.f32.mrb[0].mxu0
      %v3416 = vadd.f32 %v3255, %v3415
      %v3417 = vpop.f32.mrb[0].mxu0
      %v3418 = vpop.f32.mrb[0].mxu0
      %v3419 = vadd.f32 %v3258, %v3418
      %v3420 = vpop.f32.mrb[0].mxu0
      %3421 = vmatprep.mubr.bf16.mxu0 0
      %3422 = vmatmul.mubr.bf16.gmra.mrb[0].mxu0 %v1622
      %v3423 = vpop.f32.mrb[0].mxu0
      %v3424 = vadd.f32 %v3263, %v3423
      %v3425 = vpop.f32.mrb[0].mxu0
      %v3426 = vpop.f32.mrb[0].mxu0
      %v3427 = vadd.f32 %v3266, %v3426
      %v3428 = vpop.f32.mrb[0].mxu0
      %3429 = vmatprep.mubr.bf16.mxu0 0
      %3430 = vmatmul.mubr.bf16.gmra.mrb[0].mxu0 %v1625
      %v3431 = vpop.f32.mrb[0].mxu0
      %v3432 = vadd.f32 %v3271, %v3431
      %v3433 = vpop.f32.mrb[0].mxu0
      %v3434 = vpop.f32.mrb[0].mxu0
      %v3435 = vadd.f32 %v3274, %v3434
      %v3436 = vpop.f32.mrb[0].mxu0
      %3437 = vmatprep.mubr.bf16.mxu0 0
      %3438 = vmatmul.mubr.bf16.gmra.mrb[0].mxu0 %v1628
      %v3439 = vpop.f32.mrb[0].mxu0
      %v3440 = vadd.f32 %v3279, %v3439
      %v3441 = vpop.f32.mrb[0].mxu0
      %v3442 = vpop.f32.mrb[0].mxu0
      %v3443 = vadd.f32 %v3282, %v3442
      %v3444 = vpop.f32.mrb[0].mxu0
      %3445 = vmatprep.mubr.bf16.mxu0 0
      %3446 = vmatmul.mubr.bf16.gmra.mrb[0].mxu0 %v1631
      %v3447 = vpop.f32.mrb[0].mxu0
      %v3448 = vadd.f32 %v3287, %v3447
      %v3449 = vpop.f32.mrb[0].mxu0
      %v3450 = vpop.f32.mrb[0].mxu0
      %v3451 = vadd.f32 %v3290, %v3450
      %v3452 = vpop.f32.mrb[0].mxu0
      %3453 = vmatprep.mubr.bf16.mxu0 0
      %3454 = vmatmul.mubr.bf16.gmra.mrb[0].mxu0 %v1634
      %v3455 = vpop.f32.mrb[0].mxu0
      %v3456 = vadd.f32 %v3295, %v3455
      %v3457 = vpop.f32.mrb[0].mxu0
      %v3458 = vpop.f32.mrb[0].mxu0
      %v3459 = vadd.f32 %v3298, %v3458
      %v3460 = vpop.f32.mrb[0].mxu0
      %3461 = vmatprep.mubr.bf16.mxu0 0
      %3462 = vmatmul.mubr.bf16.gmra.mrb[0].mxu0 %v1637
      %v3463 = vpop.f32.mrb[0].mxu0
      %v3464 = vadd.f32 %v3303, %v3463
      %v3465 = vpop.f32.mrb[0].mxu0
      %v3466 = vpop.f32.mrb[0].mxu0
      %v3467 = vadd.f32 %v3306, %v3466
      %v3468 = vpop.f32.mrb[0].mxu0
      %3469 = vmatprep.mubr.bf16.mxu0 0
      %3470 = vmatmul.mubr.bf16.gmra.mrb[0].mxu0 %v1640
      %v3471 = vpop.f32.mrb[0].mxu0
      %v3472 = vadd.f32 %v3311, %v3471
      %v3473 = vpop.f32.mrb[0].mxu0
      %v3474 = vpop.f32.mrb[0].mxu0
      %v3475 = vadd.f32 %v3314, %v3474
      %v3476 = vpop.f32.mrb[0].mxu0
      %3477 = vmatprep.mubr.bf16.mxu0 0
      %3478 = vmatmul.mubr.bf16.gmra.mrb[0].mxu0 %v1643
      %v3479 = vpop.f32.mrb[0].mxu0
      %v3480 = vadd.f32 %v3319, %v3479
      %v3481 = vpop.f32.mrb[0].mxu0
      %v3482 = vpop.f32.mrb[0].mxu0
      %v3483 = vadd.f32 %v3322, %v3482
      %v3484 = vpop.f32.mrb[0].mxu0
      %3485 = vmatprep.mubr.bf16.mxu0 0
      %3486 = vmatmul.mubr.bf16.gmra.mrb[0].mxu0 %v1646
      %v3487 = vpop.f32.mrb[0].mxu0
      %v3488 = vadd.f32 %v3327, %v3487
      %v3489 = vpop.f32.mrb[0].mxu0
      %v3490 = vpop.f32.mrb[0].mxu0
      %v3491 = vadd.f32 %v3330, %v3490
      %v3492 = vpop.f32.mrb[0].mxu0
      %3493 = vmatprep.mubr.bf16.mxu0 0
      %3494 = vmatmul.mubr.bf16.gmra.mrb[0].mxu0 %v1649
      %v3495 = vpop.f32.mrb[0].mxu0
      %v3496 = vadd.f32 %v3335, %v3495
      %v3497 = vpop.f32.mrb[0].mxu0
      %v3498 = vpop.f32.mrb[0].mxu0
      %v3499 = vadd.f32 %v3338, %v3498
      %v3500 = vpop.f32.mrb[0].mxu0
      %3501 = vmatprep.mubr.bf16.mxu0 0
      %3502 = vmatmul.mubr.bf16.gmra.mrb[0].mxu0 %v1652
      %v3503 = vpop.f32.mrb[0].mxu0
      %v3504 = vadd.f32 %v3343, %v3503
      %v3505 = vpop.f32.mrb[0].mxu0
      %v3506 = vpop.f32.mrb[0].mxu0
      %v3507 = vadd.f32 %v3346, %v3506
      %v3508 = vpop.f32.mrb[0].mxu0
      %3509 = vmatprep.mubr.bf16.mxu0 0
      %3510 = vmatmul.mubr.bf16.gmra.mrb[0].mxu0 %v1655
      %v3511 = vpop.f32.mrb[0].mxu0
      %v3512 = vadd.f32 %v3351, %v3511
      %v3513 = vpop.f32.mrb[0].mxu0
      %v3514 = vpop.f32.mrb[0].mxu0
      %v3515 = vadd.f32 %v3354, %v3514
      %v3516 = vpop.f32.mrb[0].mxu0
      %3517 = vmatprep.mubr.bf16.mxu0 0
      %3518 = vmatmul.mubr.bf16.gmra.mrb[0].mxu0 %v1658
      %v3519 = vpop.f32.mrb[0].mxu0
      %v3520 = vadd.f32 %v3359, %v3519
      %v3521 = vpop.f32.mrb[0].mxu0
      %v3522 = vpop.f32.mrb[0].mxu0
      %v3523 = vadd.f32 %v3362, %v3522
      %v3524 = vpop.f32.mrb[0].mxu0
      %3525 = vmatprep.mubr.bf16.mxu0 0
      %3526 = vmatmul.mubr.bf16.gmra.mrb[0].mxu0 %v1661
      %v3527 = vpop.f32.mrb[0].mxu0
      %v3528 = vadd.f32 %v3367, %v3527
      %v3529 = vpop.f32.mrb[0].mxu0
      %v3530 = vpop.f32.mrb[0].mxu0
      %v3531 = vadd.f32 %v3370, %v3530
      %v3532 = vpop.f32.mrb[0].mxu0
      %3533 = vmatprep.mubr.bf16.mxu0 0
      %3534 = vmatmul.mubr.bf16.gmra.mrb[0].mxu0 %v1664
      %v3535 = vpop.f32.mrb[0].mxu0
      %v3536 = vadd.f32 %v3375, %v3535
      %v3537 = vpop.f32.mrb[0].mxu0
      %v3538 = vpop.f32.mrb[0].mxu0
      %v3539 = vadd.f32 %v3378, %v3538
      %v3540 = vpop.f32.mrb[0].mxu0
      %3541 = vdwg.mxu0
      %s3542 = scalar_lea.vmem [#allocation2], 24
      %v3543 = vld [vmem:[%s3542] sm:$0xf]
      %v3544 = vld [vmem:[%s3542 + $0x4] sm:$0xf]
      %v3545 = vld [vmem:[%s3542 + $0xc] sm:$0xf]
      %v3546 = vld [vmem:[%s3542 + $0x10] sm:$0xf]
      %v3547 = vld [vmem:[%s3542 + $0x18] sm:$0xf]
      %v3548 = vld [vmem:[%s3542 + $0x1c] sm:$0xf]
      %v3549 = vld [vmem:[%s3542 + $0x24] sm:$0xf]
      %v3550 = vld [vmem:[%s3542 + $0x28] sm:$0xf]
      %v3551 = vld [vmem:[%s3542 + $0x30] sm:$0xf]
      %v3552 = vld [vmem:[%s3542 + $0x34] sm:$0xf]
      %v3553 = vld [vmem:[%s3542 + $0x3c] sm:$0xf]
      %v3554 = vld [vmem:[%s3542 + $0x40] sm:$0xf]
      %v3555 = vld [vmem:[%s3542 + $0x48] sm:$0xf]
      %v3556 = vld [vmem:[%s3542 + $0x4c] sm:$0xf]
      %v3557 = vld [vmem:[%s3542 + $0x54] sm:$0xf]
      %v3558 = vld [vmem:[%s3542 + $0x58] sm:$0xf]
      %v3559 = vld [vmem:[%s3542 + $0x60] sm:$0xf]
      %v3560 = vld [vmem:[%s3542 + $0x64] sm:$0xf]
      %v3561 = vld [vmem:[%s3542 + $0x6c] sm:$0xf]
      %v3562 = vld [vmem:[%s3542 + $0x70] sm:$0xf]
      %v3563 = vld [vmem:[%s3542 + $0x78] sm:$0xf]
      %v3564 = vld [vmem:[%s3542 + $0x7c] sm:$0xf]
      %v3565 = vld [vmem:[%s3542 + $0x84] sm:$0xf]
      %v3566 = vld [vmem:[%s3542 + $0x88] sm:$0xf]
      %v3567 = vld [vmem:[%s3542 + $0x90] sm:$0xf]
      %v3568 = vld [vmem:[%s3542 + $0x94] sm:$0xf]
      %v3569 = vld [vmem:[%s3542 + $0x9c] sm:$0xf]
      %v3570 = vld [vmem:[%s3542 + $0xa0] sm:$0xf]
      %v3571 = vld [vmem:[%s3542 + $0xa8] sm:$0xf]
      %v3572 = vld [vmem:[%s3542 + $0xac] sm:$0xf]
      %v3573 = vld [vmem:[%s3542 + $0xb4] sm:$0xf]
      %v3574 = vld [vmem:[%s3542 + $0xb8] sm:$0xf]
      %v3607 = vunpack.c.l.b16 %v3543
      %v3608 = vunpack.c.l.b16 %v3544
      %v3609 = vunpack.c.l.b16 %v3545
      %v3610 = vunpack.c.l.b16 %v3546
      %v3611 = vunpack.c.l.b16 %v3547
      %v3612 = vunpack.c.l.b16 %v3548
      %v3613 = vunpack.c.l.b16 %v3549
      %v3614 = vunpack.c.l.b16 %v3550
      %v3615 = vunpack.c.l.b16 %v3551
      %v3616 = vunpack.c.l.b16 %v3552
      %v3617 = vunpack.c.l.b16 %v3553
      %v3618 = vunpack.c.l.b16 %v3554
      %v3619 = vunpack.c.l.b16 %v3555
      %v3620 = vunpack.c.l.b16 %v3556
      %v3621 = vunpack.c.l.b16 %v3557
      %v3622 = vunpack.c.l.b16 %v3558
      %v3623 = vunpack.c.l.b16 %v3559
      %v3624 = vunpack.c.l.b16 %v3560
      %v3625 = vunpack.c.l.b16 %v3561
      %v3626 = vunpack.c.l.b16 %v3562
      %v3627 = vunpack.c.l.b16 %v3563
      %v3628 = vunpack.c.l.b16 %v3564
      %v3629 = vunpack.c.l.b16 %v3565
      %v3630 = vunpack.c.l.b16 %v3566
      %v3631 = vunpack.c.l.b16 %v3567
      %v3632 = vunpack.c.l.b16 %v3568
      %v3633 = vunpack.c.l.b16 %v3569
      %v3634 = vunpack.c.l.b16 %v3570
      %v3635 = vunpack.c.l.b16 %v3571
      %v3636 = vunpack.c.l.b16 %v3572
      %v3637 = vunpack.c.l.b16 %v3573
      %v3638 = vunpack.c.l.b16 %v3574
      %v3639 = vpack.c.b16 %v3608, %v3607
      %v3640 = vpack.c.b16 %v3610, %v3609
      %v3641 = vpack.c.b16 %v3612, %v3611
      %v3642 = vpack.c.b16 %v3614, %v3613
      %v3643 = vpack.c.b16 %v3616, %v3615
      %v3644 = vpack.c.b16 %v3618, %v3617
      %v3645 = vpack.c.b16 %v3620, %v3619
      %v3646 = vpack.c.b16 %v3622, %v3621
      %v3647 = vpack.c.b16 %v3624, %v3623
      %v3648 = vpack.c.b16 %v3626, %v3625
      %v3649 = vpack.c.b16 %v3628, %v3627
      %v3650 = vpack.c.b16 %v3630, %v3629
      %v3651 = vpack.c.b16 %v3632, %v3631
      %v3652 = vpack.c.b16 %v3634, %v3633
      %v3653 = vpack.c.b16 %v3636, %v3635
      %v3654 = vpack.c.b16 %v3638, %v3637
      %3671 = vst [vmem:[#allocation3] sm:$0xff] %v3639
      %3672 = vst [vmem:[#allocation3 + $0x18] sm:$0xff] %v3640
      %3673 = vst [vmem:[#allocation3 + $0x30] sm:$0xff] %v3641
      %3674 = vst [vmem:[#allocation3 + $0x48] sm:$0xff] %v3642
      %3675 = vst [vmem:[#allocation3 + $0x60] sm:$0xff] %v3643
      %3676 = vst [vmem:[#allocation3 + $0x78] sm:$0xff] %v3644
      %3677 = vst [vmem:[#allocation3 + $0x90] sm:$0xff] %v3645
      %3678 = vst [vmem:[#allocation3 + $0xa8] sm:$0xff] %v3646
      %3679 = vst [vmem:[#allocation3 + $0xc0] sm:$0xff] %v3647
      %3680 = vst [vmem:[#allocation3 + $0xd8] sm:$0xff] %v3648
      %3681 = vst [vmem:[#allocation3 + $0xf0] sm:$0xff] %v3649
      %3682 = vst [vmem:[#allocation3 + $0x108] sm:$0xff] %v3650
      %3683 = vst [vmem:[#allocation3 + $0x120] sm:$0xff] %v3651
      %3684 = vst [vmem:[#allocation3 + $0x138] sm:$0xff] %v3652
      %3685 = vst [vmem:[#allocation3 + $0x150] sm:$0xff] %v3653
      %3686 = vst [vmem:[#allocation3 + $0x168] sm:$0xff] %v3654
      %v3687 = vld [vmem:[%s3542] sm:$0xf]
      %v3688 = vld [vmem:[%s3542 + $0x4] sm:$0xf]
      %v3689 = vld [vmem:[%s3542 + $0x8] sm:$0x1]
      %v3690 = vld [vmem:[%s3542 + $0xc] sm:$0xf]
      %v3691 = vld [vmem:[%s3542 + $0x10] sm:$0xf]
      %v3692 = vld [vmem:[%s3542 + $0x14] sm:$0x1]
      %v3693 = vld [vmem:[%s3542 + $0x18] sm:$0xf]
      %v3694 = vld [vmem:[%s3542 + $0x1c] sm:$0xf]
      %v3695 = vld [vmem:[%s3542 + $0x20] sm:$0x1]
      %v3696 = vld [vmem:[%s3542 + $0x24] sm:$0xf]
      %v3697 = vld [vmem:[%s3542 + $0x28] sm:$0xf]
      %v3698 = vld [vmem:[%s3542 + $0x2c] sm:$0x1]
      %v3699 = vld [vmem:[%s3542 + $0x30] sm:$0xf]
      %v3700 = vld [vmem:[%s3542 + $0x34] sm:$0xf]
      %v3701 = vld [vmem:[%s3542 + $0x38] sm:$0x1]
      %v3702 = vld [vmem:[%s3542 + $0x3c] sm:$0xf]
      %v3703 = vld [vmem:[%s3542 + $0x40] sm:$0xf]
      %v3704 = vld [vmem:[%s3542 + $0x44] sm:$0x1]
      %v3705 = vld [vmem:[%s3542 + $0x48] sm:$0xf]
      %v3706 = vld [vmem:[%s3542 + $0x4c] sm:$0xf]
      %v3707 = vld [vmem:[%s3542 + $0x50] sm:$0x1]
      %v3708 = vld [vmem:[%s3542 + $0x54] sm:$0xf]
      %v3709 = vld [vmem:[%s3542 + $0x58] sm:$0xf]
      %v3710 = vld [vmem:[%s3542 + $0x5c] sm:$0x1]
      %v3711 = vld [vmem:[%s3542 + $0x60] sm:$0xf]
      %v3712 = vld [vmem:[%s3542 + $0x64] sm:$0xf]
      %v3713 = vld [vmem:[%s3542 + $0x68] sm:$0x1]
      %v3714 = vld [vmem:[%s3542 + $0x6c] sm:$0xf]
      %v3715 = vld [vmem:[%s3542 + $0x70] sm:$0xf]
      %v3716 = vld [vmem:[%s3542 + $0x74] sm:$0x1]
      %v3717 = vld [vmem:[%s3542 + $0x78] sm:$0xf]
      %v3718 = vld [vmem:[%s3542 + $0x7c] sm:$0xf]
      %v3719 = vld [vmem:[%s3542 + $0x80] sm:$0x1]
      %v3720 = vld [vmem:[%s3542 + $0x84] sm:$0xf]
      %v3721 = vld [vmem:[%s3542 + $0x88] sm:$0xf]
      %v3722 = vld [vmem:[%s3542 + $0x8c] sm:$0x1]
      %v3723 = vld [vmem:[%s3542 + $0x90] sm:$0xf]
      %v3724 = vld [vmem:[%s3542 + $0x94] sm:$0xf]
      %v3725 = vld [vmem:[%s3542 + $0x98] sm:$0x1]
      %v3726 = vld [vmem:[%s3542 + $0x9c] sm:$0xf]
      %v3727 = vld [vmem:[%s3542 + $0xa0] sm:$0xf]
      %v3728 = vld [vmem:[%s3542 + $0xa4] sm:$0x1]
      %v3729 = vld [vmem:[%s3542 + $0xa8] sm:$0xf]
      %v3730 = vld [vmem:[%s3542 + $0xac] sm:$0xf]
      %v3731 = vld [vmem:[%s3542 + $0xb0] sm:$0x1]
      %v3732 = vld [vmem:[%s3542 + $0xb4] sm:$0xf]
      %v3733 = vld [vmem:[%s3542 + $0xb8] sm:$0xf]
      %v3734 = vld [vmem:[%s3542 + $0xbc] sm:$0x1]
      %v3783 = vunpack.c.l.b16 %v3687
      %v3784 = vunpack.c.l.b16 %v3688
      %v3785 = vunpack.c.l.b16 %v3689
      %v3786 = vunpack.c.l.b16 %v3690
      %v3787 = vunpack.c.l.b16 %v3691
      %v3788 = vunpack.c.l.b16 %v3692
      %v3789 = vunpack.c.l.b16 %v3693
      %v3790 = vunpack.c.l.b16 %v3694
      %v3791 = vunpack.c.l.b16 %v3695
      %v3792 = vunpack.c.l.b16 %v3696
      %v3793 = vunpack.c.l.b16 %v3697
      %v3794 = vunpack.c.l.b16 %v3698
      %v3795 = vunpack.c.l.b16 %v3699
      %v3796 = vunpack.c.l.b16 %v3700
      %v3797 = vunpack.c.l.b16 %v3701
      %v3798 = vunpack.c.l.b16 %v3702
      %v3799 = vunpack.c.l.b16 %v3703
      %v3800 = vunpack.c.l.b16 %v3704
      %v3801 = vunpack.c.l.b16 %v3705
      %v3802 = vunpack.c.l.b16 %v3706
      %v3803 = vunpack.c.l.b16 %v3707
      %v3804 = vunpack.c.l.b16 %v3708
      %v3805 = vunpack.c.l.b16 %v3709
      %v3806 = vunpack.c.l.b16 %v3710
      %v3807 = vunpack.c.l.b16 %v3711
      %v3808 = vunpack.c.l.b16 %v3712
      %v3809 = vunpack.c.l.b16 %v3713
      %v3810 = vunpack.c.l.b16 %v3714
      %v3811 = vunpack.c.l.b16 %v3715
      %v3812 = vunpack.c.l.b16 %v3716
      %v3813 = vunpack.c.l.b16 %v3717
      %v3814 = vunpack.c.l.b16 %v3718
      %v3815 = vunpack.c.l.b16 %v3719
      %v3816 = vunpack.c.l.b16 %v3720
      %v3817 = vunpack.c.l.b16 %v3721
      %v3818 = vunpack.c.l.b16 %v3722
      %v3819 = vunpack.c.l.b16 %v3723
      %v3820 = vunpack.c.l.b16 %v3724
      %v3821 = vunpack.c.l.b16 %v3725
      %v3822 = vunpack.c.l.b16 %v3726
      %v3823 = vunpack.c.l.b16 %v3727
      %v3824 = vunpack.c.l.b16 %v3728
      %v3825 = vunpack.c.l.b16 %v3729
      %v3826 = vunpack.c.l.b16 %v3730
      %v3827 = vunpack.c.l.b16 %v3731
      %v3828 = vunpack.c.l.b16 %v3732
      %v3829 = vunpack.c.l.b16 %v3733
      %v3830 = vunpack.c.l.b16 %v3734
      %v3831 = vpack.c.b16 %v3784, %v3783
      %v3832 = vpack.c.b16 %v3785, %v3785
      %v3833 = vpack.c.b16 %v3787, %v3786
      %v3834 = vpack.c.b16 %v3788, %v3788
      %v3835 = vpack.c.b16 %v3790, %v3789
      %v3836 = vpack.c.b16 %v3791, %v3791
      %v3837 = vpack.c.b16 %v3793, %v3792
      %v3838 = vpack.c.b16 %v3794, %v3794
      %v3839 = vpack.c.b16 %v3796, %v3795
      %v3840 = vpack.c.b16 %v3797, %v3797
      %v3841 = vpack.c.b16 %v3799, %v3798
      %v3842 = vpack.c.b16 %v3800, %v3800
      %v3843 = vpack.c.b16 %v3802, %v3801
      %v3844 = vpack.c.b16 %v3803, %v3803
      %v3845 = vpack.c.b16 %v3805, %v3804
      %v3846 = vpack.c.b16 %v3806, %v3806
      %v3847 = vpack.c.b16 %v3808, %v3807
      %v3848 = vpack.c.b16 %v3809, %v3809
      %v3849 = vpack.c.b16 %v3811, %v3810
      %v3850 = vpack.c.b16 %v3812, %v3812
      %v3851 = vpack.c.b16 %v3814, %v3813
      %v3852 = vpack.c.b16 %v3815, %v3815
      %v3853 = vpack.c.b16 %v3817, %v3816
      %v3854 = vpack.c.b16 %v3818, %v3818
      %v3855 = vpack.c.b16 %v3820, %v3819
      %v3856 = vpack.c.b16 %v3821, %v3821
      %v3857 = vpack.c.b16 %v3823, %v3822
      %v3858 = vpack.c.b16 %v3824, %v3824
      %v3859 = vpack.c.b16 %v3826, %v3825
      %v3860 = vpack.c.b16 %v3827, %v3827
      %v3861 = vpack.c.b16 %v3829, %v3828
      %v3862 = vpack.c.b16 %v3830, %v3830
      %v3864 = vshrl.u32 %v3831, 16
      %v3866 = vshll.u32 %v3831, 16
      %v3868 = vrot.slane %v3866, 1
      %v3869 = vor.u32 %v3864, %v3868
      %v3871 = vshll.u32 %v3832, 16
      %v3873 = vrot.slane %v3871, 1
      %v3874 = vsel %vm1135, %v3869, %v3873
      %v3876 = vshrl.u32 %v3833, 16
      %v3878 = vshll.u32 %v3833, 16
      %v3880 = vrot.slane %v3878, 1
      %v3881 = vor.u32 %v3876, %v3880
      %v3883 = vshll.u32 %v3834, 16
      %v3885 = vrot.slane %v3883, 1
      %v3886 = vsel %vm1135, %v3881, %v3885
      %v3888 = vshrl.u32 %v3835, 16
      %v3890 = vshll.u32 %v3835, 16
      %v3892 = vrot.slane %v3890, 1
      %v3893 = vor.u32 %v3888, %v3892
      %v3895 = vshll.u32 %v3836, 16
      %v3897 = vrot.slane %v3895, 1
      %v3898 = vsel %vm1135, %v3893, %v3897
      %v3900 = vshrl.u32 %v3837, 16
      %v3902 = vshll.u32 %v3837, 16
      %v3904 = vrot.slane %v3902, 1
      %v3905 = vor.u32 %v3900, %v3904
      %v3907 = vshll.u32 %v3838, 16
      %v3909 = vrot.slane %v3907, 1
      %v3910 = vsel %vm1135, %v3905, %v3909
      %v3912 = vshrl.u32 %v3839, 16
      %v3914 = vshll.u32 %v3839, 16
      %v3916 = vrot.slane %v3914, 1
      %v3917 = vor.u32 %v3912, %v3916
      %v3919 = vshll.u32 %v3840, 16
      %v3921 = vrot.slane %v3919, 1
      %v3922 = vsel %vm1135, %v3917, %v3921
      %v3924 = vshrl.u32 %v3841, 16
      %v3926 = vshll.u32 %v3841, 16
      %v3928 = vrot.slane %v3926, 1
      %v3929 = vor.u32 %v3924, %v3928
      %v3931 = vshll.u32 %v3842, 16
      %v3933 = vrot.slane %v3931, 1
      %v3934 = vsel %vm1135, %v3929, %v3933
      %v3936 = vshrl.u32 %v3843, 16
      %v3938 = vshll.u32 %v3843, 16
      %v3940 = vrot.slane %v3938, 1
      %v3941 = vor.u32 %v3936, %v3940
      %v3943 = vshll.u32 %v3844, 16
      %v3945 = vrot.slane %v3943, 1
      %v3946 = vsel %vm1135, %v3941, %v3945
      %v3948 = vshrl.u32 %v3845, 16
      %v3950 = vshll.u32 %v3845, 16
      %v3952 = vrot.slane %v3950, 1
      %v3953 = vor.u32 %v3948, %v3952
      %v3955 = vshll.u32 %v3846, 16
      %v3957 = vrot.slane %v3955, 1
      %v3958 = vsel %vm1135, %v3953, %v3957
      %v3960 = vshrl.u32 %v3847, 16
      %v3962 = vshll.u32 %v3847, 16
      %v3964 = vrot.slane %v3962, 1
      %v3965 = vor.u32 %v3960, %v3964
      %v3967 = vshll.u32 %v3848, 16
      %v3969 = vrot.slane %v3967, 1
      %v3970 = vsel %vm1135, %v3965, %v3969
      %v3972 = vshrl.u32 %v3849, 16
      %v3974 = vshll.u32 %v3849, 16
      %v3976 = vrot.slane %v3974, 1
      %v3977 = vor.u32 %v3972, %v3976
      %v3979 = vshll.u32 %v3850, 16
      %v3981 = vrot.slane %v3979, 1
      %v3982 = vsel %vm1135, %v3977, %v3981
      %v3984 = vshrl.u32 %v3851, 16
      %v3986 = vshll.u32 %v3851, 16
      %v3988 = vrot.slane %v3986, 1
      %v3989 = vor.u32 %v3984, %v3988
      %v3991 = vshll.u32 %v3852, 16
      %v3993 = vrot.slane %v3991, 1
      %v3994 = vsel %vm1135, %v3989, %v3993
      %v3996 = vshrl.u32 %v3853, 16
      %v3998 = vshll.u32 %v3853, 16
      %v4000 = vrot.slane %v3998, 1
      %v4001 = vor.u32 %v3996, %v4000
      %v4003 = vshll.u32 %v3854, 16
      %v4005 = vrot.slane %v4003, 1
      %v4006 = vsel %vm1135, %v4001, %v4005
      %v4008 = vshrl.u32 %v3855, 16
      %v4010 = vshll.u32 %v3855, 16
      %v4012 = vrot.slane %v4010, 1
      %v4013 = vor.u32 %v4008, %v4012
      %v4015 = vshll.u32 %v3856, 16
      %v4017 = vrot.slane %v4015, 1
      %v4018 = vsel %vm1135, %v4013, %v4017
      %v4020 = vshrl.u32 %v3857, 16
      %v4022 = vshll.u32 %v3857, 16
      %v4024 = vrot.slane %v4022, 1
      %v4025 = vor.u32 %v4020, %v4024
      %v4027 = vshll.u32 %v3858, 16
      %v4029 = vrot.slane %v4027, 1
      %v4030 = vsel %vm1135, %v4025, %v4029
      %v4032 = vshrl.u32 %v3859, 16
      %v4034 = vshll.u32 %v3859, 16
      %v4036 = vrot.slane %v4034, 1
      %v4037 = vor.u32 %v4032, %v4036
      %v4039 = vshll.u32 %v3860, 16
      %v4041 = vrot.slane %v4039, 1
      %v4042 = vsel %vm1135, %v4037, %v4041
      %v4044 = vshrl.u32 %v3861, 16
      %v4046 = vshll.u32 %v3861, 16
      %v4048 = vrot.slane %v4046, 1
      %v4049 = vor.u32 %v4044, %v4048
      %v4051 = vshll.u32 %v3862, 16
      %v4053 = vrot.slane %v4051, 1
      %v4054 = vsel %vm1135, %v4049, %v4053
      %4071 = vst [vmem:[#allocation3 + $0x8] sm:$0xff] %v3874
      %4072 = vst [vmem:[#allocation3 + $0x20] sm:$0xff] %v3886
      %4073 = vst [vmem:[#allocation3 + $0x38] sm:$0xff] %v3898
      %4074 = vst [vmem:[#allocation3 + $0x50] sm:$0xff] %v3910
      %4075 = vst [vmem:[#allocation3 + $0x68] sm:$0xff] %v3922
      %4076 = vst [vmem:[#allocation3 + $0x80] sm:$0xff] %v3934
      %4077 = vst [vmem:[#allocation3 + $0x98] sm:$0xff] %v3946
      %4078 = vst [vmem:[#allocation3 + $0xb0] sm:$0xff] %v3958
      %4079 = vst [vmem:[#allocation3 + $0xc8] sm:$0xff] %v3970
      %4080 = vst [vmem:[#allocation3 + $0xe0] sm:$0xff] %v3982
      %4081 = vst [vmem:[#allocation3 + $0xf8] sm:$0xff] %v3994
      %4082 = vst [vmem:[#allocation3 + $0x110] sm:$0xff] %v4006
      %4083 = vst [vmem:[#allocation3 + $0x128] sm:$0xff] %v4018
      %4084 = vst [vmem:[#allocation3 + $0x140] sm:$0xff] %v4030
      %4085 = vst [vmem:[#allocation3 + $0x158] sm:$0xff] %v4042
      %4086 = vst [vmem:[#allocation3 + $0x170] sm:$0xff] %v4054
      %v4087 = vld [vmem:[%s3542] sm:$0xe]
      %v4088 = vld [vmem:[%s3542 + $0x4] sm:$0xf]
      %v4089 = vld [vmem:[%s3542 + $0x8] sm:$0x1]
      %v4090 = vld [vmem:[%s3542 + $0xc] sm:$0xe]
      %v4091 = vld [vmem:[%s3542 + $0x10] sm:$0xf]
      %v4092 = vld [vmem:[%s3542 + $0x14] sm:$0x1]
      %v4093 = vld [vmem:[%s3542 + $0x18] sm:$0xe]
      %v4094 = vld [vmem:[%s3542 + $0x1c] sm:$0xf]
      %v4095 = vld [vmem:[%s3542 + $0x20] sm:$0x1]
      %v4096 = vld [vmem:[%s3542 + $0x24] sm:$0xe]
      %v4097 = vld [vmem:[%s3542 + $0x28] sm:$0xf]
      %v4098 = vld [vmem:[%s3542 + $0x2c] sm:$0x1]
      %v4099 = vld [vmem:[%s3542 + $0x30] sm:$0xe]
      %v4100 = vld [vmem:[%s3542 + $0x34] sm:$0xf]
      %v4101 = vld [vmem:[%s3542 + $0x38] sm:$0x1]
      %v4102 = vld [vmem:[%s3542 + $0x3c] sm:$0xe]
      %v4103 = vld [vmem:[%s3542 + $0x40] sm:$0xf]
      %v4104 = vld [vmem:[%s3542 + $0x44] sm:$0x1]
      %v4105 = vld [vmem:[%s3542 + $0x48] sm:$0xe]
      %v4106 = vld [vmem:[%s3542 + $0x4c] sm:$0xf]
      %v4107 = vld [vmem:[%s3542 + $0x50] sm:$0x1]
      %v4108 = vld [vmem:[%s3542 + $0x54] sm:$0xe]
      %v4109 = vld [vmem:[%s3542 + $0x58] sm:$0xf]
      %v4110 = vld [vmem:[%s3542 + $0x5c] sm:$0x1]
      %v4111 = vld [vmem:[%s3542 + $0x60] sm:$0xe]
      %v4112 = vld [vmem:[%s3542 + $0x64] sm:$0xf]
      %v4113 = vld [vmem:[%s3542 + $0x68] sm:$0x1]
      %v4114 = vld [vmem:[%s3542 + $0x6c] sm:$0xe]
      %v4115 = vld [vmem:[%s3542 + $0x70] sm:$0xf]
      %v4116 = vld [vmem:[%s3542 + $0x74] sm:$0x1]
      %v4117 = vld [vmem:[%s3542 + $0x78] sm:$0xe]
      %v4118 = vld [vmem:[%s3542 + $0x7c] sm:$0xf]
      %v4119 = vld [vmem:[%s3542 + $0x80] sm:$0x1]
      %v4120 = vld [vmem:[%s3542 + $0x84] sm:$0xe]
      %v4121 = vld [vmem:[%s3542 + $0x88] sm:$0xf]
      %v4122 = vld [vmem:[%s3542 + $0x8c] sm:$0x1]
      %v4123 = vld [vmem:[%s3542 + $0x90] sm:$0xe]
      %v4124 = vld [vmem:[%s3542 + $0x94] sm:$0xf]
      %v4125 = vld [vmem:[%s3542 + $0x98] sm:$0x1]
      %v4126 = vld [vmem:[%s3542 + $0x9c] sm:$0xe]
      %v4127 = vld [vmem:[%s3542 + $0xa0] sm:$0xf]
      %v4128 = vld [vmem:[%s3542 + $0xa4] sm:$0x1]
      %v4129 = vld [vmem:[%s3542 + $0xa8] sm:$0xe]
      %v4130 = vld [vmem:[%s3542 + $0xac] sm:$0xf]
      %v4131 = vld [vmem:[%s3542 + $0xb0] sm:$0x1]
      %v4132 = vld [vmem:[%s3542 + $0xb4] sm:$0xe]
      %v4133 = vld [vmem:[%s3542 + $0xb8] sm:$0xf]
      %v4134 = vld [vmem:[%s3542 + $0xbc] sm:$0x1]
      %v4183 = vunpack.c.l.b16 %v4087
      %v4184 = vunpack.c.l.b16 %v4088
      %v4185 = vunpack.c.l.b16 %v4089
      %v4186 = vunpack.c.l.b16 %v4090
      %v4187 = vunpack.c.l.b16 %v4091
      %v4188 = vunpack.c.l.b16 %v4092
      %v4189 = vunpack.c.l.b16 %v4093
      %v4190 = vunpack.c.l.b16 %v4094
      %v4191 = vunpack.c.l.b16 %v4095
      %v4192 = vunpack.c.l.b16 %v4096
      %v4193 = vunpack.c.l.b16 %v4097
      %v4194 = vunpack.c.l.b16 %v4098
      %v4195 = vunpack.c.l.b16 %v4099
      %v4196 = vunpack.c.l.b16 %v4100
      %v4197 = vunpack.c.l.b16 %v4101
      %v4198 = vunpack.c.l.b16 %v4102
      %v4199 = vunpack.c.l.b16 %v4103
      %v4200 = vunpack.c.l.b16 %v4104
      %v4201 = vunpack.c.l.b16 %v4105
      %v4202 = vunpack.c.l.b16 %v4106
      %v4203 = vunpack.c.l.b16 %v4107
      %v4204 = vunpack.c.l.b16 %v4108
      %v4205 = vunpack.c.l.b16 %v4109
      %v4206 = vunpack.c.l.b16 %v4110
      %v4207 = vunpack.c.l.b16 %v4111
      %v4208 = vunpack.c.l.b16 %v4112
      %v4209 = vunpack.c.l.b16 %v4113
      %v4210 = vunpack.c.l.b16 %v4114
      %v4211 = vunpack.c.l.b16 %v4115
      %v4212 = vunpack.c.l.b16 %v4116
      %v4213 = vunpack.c.l.b16 %v4117
      %v4214 = vunpack.c.l.b16 %v4118
      %v4215 = vunpack.c.l.b16 %v4119
      %v4216 = vunpack.c.l.b16 %v4120
      %v4217 = vunpack.c.l.b16 %v4121
      %v4218 = vunpack.c.l.b16 %v4122
      %v4219 = vunpack.c.l.b16 %v4123
      %v4220 = vunpack.c.l.b16 %v4124
      %v4221 = vunpack.c.l.b16 %v4125
      %v4222 = vunpack.c.l.b16 %v4126
      %v4223 = vunpack.c.l.b16 %v4127
      %v4224 = vunpack.c.l.b16 %v4128
      %v4225 = vunpack.c.l.b16 %v4129
      %v4226 = vunpack.c.l.b16 %v4130
      %v4227 = vunpack.c.l.b16 %v4131
      %v4228 = vunpack.c.l.b16 %v4132
      %v4229 = vunpack.c.l.b16 %v4133
      %v4230 = vunpack.c.l.b16 %v4134
      %v4231 = vpack.c.b16 %v4184, %v4183
      %v4232 = vpack.c.b16 %v4185, %v4185
      %v4233 = vpack.c.b16 %v4187, %v4186
      %v4234 = vpack.c.b16 %v4188, %v4188
      %v4235 = vpack.c.b16 %v4190, %v4189
      %v4236 = vpack.c.b16 %v4191, %v4191
      %v4237 = vpack.c.b16 %v4193, %v4192
      %v4238 = vpack.c.b16 %v4194, %v4194
      %v4239 = vpack.c.b16 %v4196, %v4195
      %v4240 = vpack.c.b16 %v4197, %v4197
      %v4241 = vpack.c.b16 %v4199, %v4198
      %v4242 = vpack.c.b16 %v4200, %v4200
      %v4243 = vpack.c.b16 %v4202, %v4201
      %v4244 = vpack.c.b16 %v4203, %v4203
      %v4245 = vpack.c.b16 %v4205, %v4204
      %v4246 = vpack.c.b16 %v4206, %v4206
      %v4247 = vpack.c.b16 %v4208, %v4207
      %v4248 = vpack.c.b16 %v4209, %v4209
      %v4249 = vpack.c.b16 %v4211, %v4210
      %v4250 = vpack.c.b16 %v4212, %v4212
      %v4251 = vpack.c.b16 %v4214, %v4213
      %v4252 = vpack.c.b16 %v4215, %v4215
      %v4253 = vpack.c.b16 %v4217, %v4216
      %v4254 = vpack.c.b16 %v4218, %v4218
      %v4255 = vpack.c.b16 %v4220, %v4219
      %v4256 = vpack.c.b16 %v4221, %v4221
      %v4257 = vpack.c.b16 %v4223, %v4222
      %v4258 = vpack.c.b16 %v4224, %v4224
      %v4259 = vpack.c.b16 %v4226, %v4225
      %v4260 = vpack.c.b16 %v4227, %v4227
      %v4261 = vpack.c.b16 %v4229, %v4228
      %v4262 = vpack.c.b16 %v4230, %v4230
      %v4263 = vrot.slane %v4231, 1
      %v4264 = vrot.slane %v4232, 1
      %v4265 = vsel %vm1536, %v4263, %v4264
      %v4266 = vrot.slane %v4233, 1
      %v4267 = vrot.slane %v4234, 1
      %v4268 = vsel %vm1536, %v4266, %v4267
      %v4269 = vrot.slane %v4235, 1
      %v4270 = vrot.slane %v4236, 1
      %v4271 = vsel %vm1536, %v4269, %v4270
      %v4272 = vrot.slane %v4237, 1
      %v4273 = vrot.slane %v4238, 1
      %v4274 = vsel %vm1536, %v4272, %v4273
      %v4275 = vrot.slane %v4239, 1
      %v4276 = vrot.slane %v4240, 1
      %v4277 = vsel %vm1536, %v4275, %v4276
      %v4278 = vrot.slane %v4241, 1
      %v4279 = vrot.slane %v4242, 1
      %v4280 = vsel %vm1536, %v4278, %v4279
      %v4281 = vrot.slane %v4243, 1
      %v4282 = vrot.slane %v4244, 1
      %v4283 = vsel %vm1536, %v4281, %v4282
      %v4284 = vrot.slane %v4245, 1
      %v4285 = vrot.slane %v4246, 1
      %v4286 = vsel %vm1536, %v4284, %v4285
      %v4287 = vrot.slane %v4247, 1
      %v4288 = vrot.slane %v4248, 1
      %v4289 = vsel %vm1536, %v4287, %v4288
      %v4290 = vrot.slane %v4249, 1
      %v4291 = vrot.slane %v4250, 1
      %v4292 = vsel %vm1536, %v4290, %v4291
      %v4293 = vrot.slane %v4251, 1
      %v4294 = vrot.slane %v4252, 1
      %v4295 = vsel %vm1536, %v4293, %v4294
      %v4296 = vrot.slane %v4253, 1
      %v4297 = vrot.slane %v4254, 1
      %v4298 = vsel %vm1536, %v4296, %v4297
      %v4299 = vrot.slane %v4255, 1
      %v4300 = vrot.slane %v4256, 1
      %v4301 = vsel %vm1536, %v4299, %v4300
      %v4302 = vrot.slane %v4257, 1
      %v4303 = vrot.slane %v4258, 1
      %v4304 = vsel %vm1536, %v4302, %v4303
      %v4305 = vrot.slane %v4259, 1
      %v4306 = vrot.slane %v4260, 1
      %v4307 = vsel %vm1536, %v4305, %v4306
      %v4308 = vrot.slane %v4261, 1
      %v4309 = vrot.slane %v4262, 1
      %v4310 = vsel %vm1536, %v4308, %v4309
      %4327 = vst [vmem:[#allocation3 + $0x10] sm:$0xff] %v4265
      %4328 = vst [vmem:[#allocation3 + $0x28] sm:$0xff] %v4268
      %4329 = vst [vmem:[#allocation3 + $0x40] sm:$0xff] %v4271
      %4330 = vst [vmem:[#allocation3 + $0x58] sm:$0xff] %v4274
      %4331 = vst [vmem:[#allocation3 + $0x70] sm:$0xff] %v4277
      %4332 = vst [vmem:[#allocation3 + $0x88] sm:$0xff] %v4280
      %4333 = vst [vmem:[#allocation3 + $0xa0] sm:$0xff] %v4283
      %4334 = vst [vmem:[#allocation3 + $0xb8] sm:$0xff] %v4286
      %4335 = vst [vmem:[#allocation3 + $0xd0] sm:$0xff] %v4289
      %4336 = vst [vmem:[#allocation3 + $0xe8] sm:$0xff] %v4292
      %4337 = vst [vmem:[#allocation3 + $0x100] sm:$0xff] %v4295
      %4338 = vst [vmem:[#allocation3 + $0x118] sm:$0xff] %v4298
      %4339 = vst [vmem:[#allocation3 + $0x130] sm:$0xff] %v4301
      %4340 = vst [vmem:[#allocation3 + $0x148] sm:$0xff] %v4304
      %4341 = vst [vmem:[#allocation3 + $0x160] sm:$0xff] %v4307
      %4342 = vst [vmem:[#allocation3 + $0x178] sm:$0xff] %v4310
      %v4343 = vld [vmem:[#allocation3] sm:$0xff]
      %v4344 = vld [vmem:[#allocation3 + $0x8] sm:$0xff]
      %v4345 = vld [vmem:[#allocation3 + $0x10] sm:$0xff]
      %v4346 = vld [vmem:[#allocation3 + $0x18] sm:$0xff]
      %v4347 = vld [vmem:[#allocation3 + $0x20] sm:$0xff]
      %v4348 = vld [vmem:[#allocation3 + $0x28] sm:$0xff]
      %v4349 = vld [vmem:[#allocation3 + $0x30] sm:$0xff]
      %v4350 = vld [vmem:[#allocation3 + $0x38] sm:$0xff]
      %v4351 = vld [vmem:[#allocation3 + $0x40] sm:$0xff]
      %v4352 = vld [vmem:[#allocation3 + $0x48] sm:$0xff]
      %v4353 = vld [vmem:[#allocation3 + $0x50] sm:$0xff]
      %v4354 = vld [vmem:[#allocation3 + $0x58] sm:$0xff]
      %v4355 = vld [vmem:[#allocation3 + $0x60] sm:$0xff]
      %v4356 = vld [vmem:[#allocation3 + $0x68] sm:$0xff]
      %v4357 = vld [vmem:[#allocation3 + $0x70] sm:$0xff]
      %v4358 = vld [vmem:[#allocation3 + $0x78] sm:$0xff]
      %v4359 = vld [vmem:[#allocation3 + $0x80] sm:$0xff]
      %v4360 = vld [vmem:[#allocation3 + $0x88] sm:$0xff]
      %v4361 = vld [vmem:[#allocation3 + $0x90] sm:$0xff]
      %v4362 = vld [vmem:[#allocation3 + $0x98] sm:$0xff]
      %v4363 = vld [vmem:[#allocation3 + $0xa0] sm:$0xff]
      %v4364 = vld [vmem:[#allocation3 + $0xa8] sm:$0xff]
      %v4365 = vld [vmem:[#allocation3 + $0xb0] sm:$0xff]
      %v4366 = vld [vmem:[#allocation3 + $0xb8] sm:$0xff]
      %v4367 = vld [vmem:[#allocation3 + $0xc0] sm:$0xff]
      %v4368 = vld [vmem:[#allocation3 + $0xc8] sm:$0xff]
      %v4369 = vld [vmem:[#allocation3 + $0xd0] sm:$0xff]
      %v4370 = vld [vmem:[#allocation3 + $0xd8] sm:$0xff]
      %v4371 = vld [vmem:[#allocation3 + $0xe0] sm:$0xff]
      %v4372 = vld [vmem:[#allocation3 + $0xe8] sm:$0xff]
      %v4373 = vld [vmem:[#allocation3 + $0xf0] sm:$0xff]
      %v4374 = vld [vmem:[#allocation3 + $0xf8] sm:$0xff]
      %v4375 = vld [vmem:[#allocation3 + $0x100] sm:$0xff]
      %v4376 = vld [vmem:[#allocation3 + $0x108] sm:$0xff]
      %v4377 = vld [vmem:[#allocation3 + $0x110] sm:$0xff]
      %v4378 = vld [vmem:[#allocation3 + $0x118] sm:$0xff]
      %v4379 = vld [vmem:[#allocation3 + $0x120] sm:$0xff]
      %v4380 = vld [vmem:[#allocation3 + $0x128] sm:$0xff]
      %v4381 = vld [vmem:[#allocation3 + $0x130] sm:$0xff]
      %v4382 = vld [vmem:[#allocation3 + $0x138] sm:$0xff]
      %v4383 = vld [vmem:[#allocation3 + $0x140] sm:$0xff]
      %v4384 = vld [vmem:[#allocation3 + $0x148] sm:$0xff]
      %v4385 = vld [vmem:[#allocation3 + $0x150] sm:$0xff]
      %v4386 = vld [vmem:[#allocation3 + $0x158] sm:$0xff]
      %v4387 = vld [vmem:[#allocation3 + $0x160] sm:$0xff]
      %v4388 = vld [vmem:[#allocation3 + $0x168] sm:$0xff]
      %v4389 = vld [vmem:[#allocation3 + $0x170] sm:$0xff]
      %v4390 = vld [vmem:[#allocation3 + $0x178] sm:$0xff]
      %s4391 = scalar_lea.vmem %s1, 384
      %v4392 = vld [vmem:[%s4391] sm:$0xf]
      %v4393 = vld [vmem:[%s4391 + $0x4] sm:$0xf]
      %v4394 = vld [vmem:[%s4391 + $0x8] sm:$0xf]
      %v4395 = vld [vmem:[%s4391 + $0xc] sm:$0xf]
      %v4396 = vld [vmem:[%s4391 + $0x10] sm:$0xf]
      %v4397 = vld [vmem:[%s4391 + $0x14] sm:$0xf]
      %v4398 = vld [vmem:[%s4391 + $0x18] sm:$0xf]
      %v4399 = vld [vmem:[%s4391 + $0x1c] sm:$0xf]
      %v4400 = vld [vmem:[%s4391 + $0x20] sm:$0xf]
      %v4401 = vld [vmem:[%s4391 + $0x24] sm:$0xf]
      %v4402 = vld [vmem:[%s4391 + $0x28] sm:$0xf]
      %v4403 = vld [vmem:[%s4391 + $0x2c] sm:$0xf]
      %v4404 = vld [vmem:[%s4391 + $0x30] sm:$0xf]
      %v4405 = vld [vmem:[%s4391 + $0x34] sm:$0xf]
      %v4406 = vld [vmem:[%s4391 + $0x38] sm:$0xf]
      %v4407 = vld [vmem:[%s4391 + $0x3c] sm:$0xf]
      %v4408 = vld [vmem:[%s4391 + $0x40] sm:$0xf]
      %v4409 = vld [vmem:[%s4391 + $0x44] sm:$0xf]
      %v4410 = vld [vmem:[%s4391 + $0x48] sm:$0xf]
      %v4411 = vld [vmem:[%s4391 + $0x4c] sm:$0xf]
      %v4412 = vld [vmem:[%s4391 + $0x50] sm:$0xf]
      %v4413 = vld [vmem:[%s4391 + $0x54] sm:$0xf]
      %v4414 = vld [vmem:[%s4391 + $0x58] sm:$0xf]
      %v4415 = vld [vmem:[%s4391 + $0x5c] sm:$0xf]
      %v4416 = vld [vmem:[%s4391 + $0x60] sm:$0xf]
      %v4417 = vld [vmem:[%s4391 + $0x64] sm:$0xf]
      %v4418 = vld [vmem:[%s4391 + $0x68] sm:$0xf]
      %v4419 = vld [vmem:[%s4391 + $0x6c] sm:$0xf]
      %v4420 = vld [vmem:[%s4391 + $0x70] sm:$0xf]
      %v4421 = vld [vmem:[%s4391 + $0x74] sm:$0xf]
      %v4422 = vld [vmem:[%s4391 + $0x78] sm:$0xf]
      %v4423 = vld [vmem:[%s4391 + $0x7c] sm:$0xf]
      %v4424 = vld [vmem:[%s4391 + $0x80] sm:$0xf]
      %v4425 = vld [vmem:[%s4391 + $0x84] sm:$0xf]
      %v4426 = vld [vmem:[%s4391 + $0x88] sm:$0xf]
      %v4427 = vld [vmem:[%s4391 + $0x8c] sm:$0xf]
      %v4428 = vld [vmem:[%s4391 + $0x90] sm:$0xf]
      %v4429 = vld [vmem:[%s4391 + $0x94] sm:$0xf]
      %v4430 = vld [vmem:[%s4391 + $0x98] sm:$0xf]
      %v4431 = vld [vmem:[%s4391 + $0x9c] sm:$0xf]
      %v4432 = vld [vmem:[%s4391 + $0xa0] sm:$0xf]
      %v4433 = vld [vmem:[%s4391 + $0xa4] sm:$0xf]
      %v4434 = vld [vmem:[%s4391 + $0xa8] sm:$0xf]
      %v4435 = vld [vmem:[%s4391 + $0xac] sm:$0xf]
      %v4436 = vld [vmem:[%s4391 + $0xb0] sm:$0xf]
      %v4437 = vld [vmem:[%s4391 + $0xb4] sm:$0xf]
      %v4438 = vld [vmem:[%s4391 + $0xb8] sm:$0xf]
      %v4439 = vld [vmem:[%s4391 + $0xbc] sm:$0xf]
      %v4488 = vunpack.c.l.b16 %v4392
      %v4489 = vunpack.c.l.b16 %v4393
      %v4490 = vunpack.c.l.b16 %v4394
      %v4491 = vunpack.c.l.b16 %v4395
      %v4492 = vunpack.c.l.b16 %v4396
      %v4493 = vunpack.c.l.b16 %v4397
      %v4494 = vunpack.c.l.b16 %v4398
      %v4495 = vunpack.c.l.b16 %v4399
      %v4496 = vunpack.c.l.b16 %v4400
      %v4497 = vunpack.c.l.b16 %v4401
      %v4498 = vunpack.c.l.b16 %v4402
      %v4499 = vunpack.c.l.b16 %v4403
      %v4500 = vunpack.c.l.b16 %v4404
      %v4501 = vunpack.c.l.b16 %v4405
      %v4502 = vunpack.c.l.b16 %v4406
      %v4503 = vunpack.c.l.b16 %v4407
      %v4504 = vunpack.c.l.b16 %v4408
      %v4505 = vunpack.c.l.b16 %v4409
      %v4506 = vunpack.c.l.b16 %v4410
      %v4507 = vunpack.c.l.b16 %v4411
      %v4508 = vunpack.c.l.b16 %v4412
      %v4509 = vunpack.c.l.b16 %v4413
      %v4510 = vunpack.c.l.b16 %v4414
      %v4511 = vunpack.c.l.b16 %v4415
      %v4512 = vunpack.c.l.b16 %v4416
      %v4513 = vunpack.c.l.b16 %v4417
      %v4514 = vunpack.c.l.b16 %v4418
      %v4515 = vunpack.c.l.b16 %v4419
      %v4516 = vunpack.c.l.b16 %v4420
      %v4517 = vunpack.c.l.b16 %v4421
      %v4518 = vunpack.c.l.b16 %v4422
      %v4519 = vunpack.c.l.b16 %v4423
      %v4520 = vunpack.c.l.b16 %v4424
      %v4521 = vunpack.c.l.b16 %v4425
      %v4522 = vunpack.c.l.b16 %v4426
      %v4523 = vunpack.c.l.b16 %v4427
      %v4524 = vunpack.c.l.b16 %v4428
      %v4525 = vunpack.c.l.b16 %v4429
      %v4526 = vunpack.c.l.b16 %v4430
      %v4527 = vunpack.c.l.b16 %v4431
      %v4528 = vunpack.c.l.b16 %v4432
      %v4529 = vunpack.c.l.b16 %v4433
      %v4530 = vunpack.c.l.b16 %v4434
      %v4531 = vunpack.c.l.b16 %v4435
      %v4532 = vunpack.c.l.b16 %v4436
      %v4533 = vunpack.c.l.b16 %v4437
      %v4534 = vunpack.c.l.b16 %v4438
      %v4535 = vunpack.c.l.b16 %v4439
      %v4536 = vpack.c.b16 %v4489, %v4488
      %v4537 = vpack.c.b16 %v4491, %v4490
      %v4538 = vpack.c.b16 %v4493, %v4492
      %v4539 = vpack.c.b16 %v4495, %v4494
      %v4540 = vpack.c.b16 %v4497, %v4496
      %v4541 = vpack.c.b16 %v4499, %v4498
      %v4542 = vpack.c.b16 %v4501, %v4500
      %v4543 = vpack.c.b16 %v4503, %v4502
      %v4544 = vpack.c.b16 %v4505, %v4504
      %v4545 = vpack.c.b16 %v4507, %v4506
      %v4546 = vpack.c.b16 %v4509, %v4508
      %v4547 = vpack.c.b16 %v4511, %v4510
      %v4548 = vpack.c.b16 %v4513, %v4512
      %v4549 = vpack.c.b16 %v4515, %v4514
      %v4550 = vpack.c.b16 %v4517, %v4516
      %v4551 = vpack.c.b16 %v4519, %v4518
      %v4552 = vpack.c.b16 %v4521, %v4520
      %v4553 = vpack.c.b16 %v4523, %v4522
      %v4554 = vpack.c.b16 %v4525, %v4524
      %v4555 = vpack.c.b16 %v4527, %v4526
      %v4556 = vpack.c.b16 %v4529, %v4528
      %v4557 = vpack.c.b16 %v4531, %v4530
      %v4558 = vpack.c.b16 %v4533, %v4532
      %v4559 = vpack.c.b16 %v4535, %v4534
      %4584 = vmatprep.subr.bf16.mxu0 0
      %4585 = vmatpush1.bf16.msra.mxu0 %v4536
      %4586 = vmatprep.subr.bf16.mxu0 0
      %4587 = vmatpush1.bf16.msra.mxu0 %v4537
      %4588 = vmatprep.subr.bf16.mxu0 0
      %4589 = vmatpush1.bf16.msra.mxu0 %v4538
      %4590 = vmatprep.subr.bf16.mxu0 0
      %4591 = vmatpush1.bf16.msra.mxu0 %v4539
      %4592 = vmatprep.subr.bf16.mxu0 0
      %4593 = vmatpush1.bf16.msra.mxu0 %v4540
      %4594 = vmatprep.subr.bf16.mxu0 0
      %4595 = vmatpush1.bf16.msra.mxu0 %v4541
      %4596 = vmatprep.subr.bf16.mxu0 0
      %4597 = vmatpush1.bf16.msra.mxu0 %v4542
      %4598 = vmatprep.subr.bf16.mxu0 0
      %4599 = vmatpush1.bf16.msra.mxu0 %v4543
      %4600 = vmatprep.subr.bf16.mxu0 0
      %4601 = vmatpush1.bf16.msra.mxu0 %v4544
      %4602 = vmatprep.subr.bf16.mxu0 0
      %4603 = vmatpush1.bf16.msra.mxu0 %v4545
      %4604 = vmatprep.subr.bf16.mxu0 0
      %4605 = vmatpush1.bf16.msra.mxu0 %v4546
      %4606 = vmatprep.subr.bf16.mxu0 0
      %4607 = vmatpush1.bf16.msra.mxu0 %v4547
      %4608 = vmatprep.subr.bf16.mxu0 0
      %4609 = vmatpush1.bf16.msra.mxu0 %v4548
      %4610 = vmatprep.subr.bf16.mxu0 0
      %4611 = vmatpush1.bf16.msra.mxu0 %v4549
      %4612 = vmatprep.subr.bf16.mxu0 0
      %4613 = vmatpush1.bf16.msra.mxu0 %v4550
      %4614 = vmatprep.subr.bf16.mxu0 0
      %4615 = vmatpush1.bf16.msra.mxu0 %v4551
      %4616 = vmatprep.mubr.bf16.mxu0 %v4344
      %4617 = vmatmul.mubr.bf16.gmra.mrb[0].mxu0 %v4343
      %v4618 = vpop.f32.mrb[0].mxu0
      %v4619 = vadd.f32 0.0, %v4618
      %v4620 = vpop.f32.mrb[0].mxu0
      %v4621 = vpop.f32.mrb[0].mxu0
      %v4622 = vadd.f32 0.0, %v4621
      %v4623 = vpop.f32.mrb[0].mxu0
      %4624 = vmatprep.mubr.bf16.mxu0 %v4347
      %4625 = vmatmul.mubr.bf16.gmra.mrb[0].mxu0 %v4346
      %v4626 = vpop.f32.mrb[0].mxu0
      %v4627 = vadd.f32 0.0, %v4626
      %v4628 = vpop.f32.mrb[0].mxu0
      %v4629 = vpop.f32.mrb[0].mxu0
      %v4630 = vadd.f32 0.0, %v4629
      %v4631 = vpop.f32.mrb[0].mxu0
      %4632 = vmatprep.mubr.bf16.mxu0 %v4350
      %4633 = vmatmul.mubr.bf16.gmra.mrb[0].mxu0 %v4349
      %v4634 = vpop.f32.mrb[0].mxu0
      %v4635 = vadd.f32 0.0, %v4634
      %v4636 = vpop.f32.mrb[0].mxu0
      %v4637 = vpop.f32.mrb[0].mxu0
      %v4638 = vadd.f32 0.0, %v4637
      %v4639 = vpop.f32.mrb[0].mxu0
      %4640 = vmatprep.mubr.bf16.mxu0 %v4353
      %4641 = vmatmul.mubr.bf16.gmra.mrb[0].mxu0 %v4352
      %v4642 = vpop.f32.mrb[0].mxu0
      %v4643 = vadd.f32 0.0, %v4642
      %v4644 = vpop.f32.mrb[0].mxu0
      %v4645 = vpop.f32.mrb[0].mxu0
      %v4646 = vadd.f32 0.0, %v4645
      %v4647 = vpop.f32.mrb[0].mxu0
      %4648 = vmatprep.mubr.bf16.mxu0 %v4356
      %4649 = vmatmul.mubr.bf16.gmra.mrb[0].mxu0 %v4355
      %v4650 = vpop.f32.mrb[0].mxu0
      %v4651 = vadd.f32 0.0, %v4650
      %v4652 = vpop.f32.mrb[0].mxu0
      %v4653 = vpop.f32.mrb[0].mxu0
      %v4654 = vadd.f32 0.0, %v4653
      %v4655 = vpop.f32.mrb[0].mxu0
      %4656 = vmatprep.mubr.bf16.mxu0 %v4359
      %4657 = vmatmul.mubr.bf16.gmra.mrb[0].mxu0 %v4358
      %v4658 = vpop.f32.mrb[0].mxu0
      %v4659 = vadd.f32 0.0, %v4658
      %v4660 = vpop.f32.mrb[0].mxu0
      %v4661 = vpop.f32.mrb[0].mxu0
      %v4662 = vadd.f32 0.0, %v4661
      %v4663 = vpop.f32.mrb[0].mxu0
      %4664 = vmatprep.mubr.bf16.mxu0 %v4362
      %4665 = vmatmul.mubr.bf16.gmra.mrb[0].mxu0 %v4361
      %v4666 = vpop.f32.mrb[0].mxu0
      %v4667 = vadd.f32 0.0, %v4666
      %v4668 = vpop.f32.mrb[0].mxu0
      %v4669 = vpop.f32.mrb[0].mxu0
      %v4670 = vadd.f32 0.0, %v4669
      %v4671 = vpop.f32.mrb[0].mxu0
      %4672 = vmatprep.mubr.bf16.mxu0 %v4365
      %4673 = vmatmul.mubr.bf16.gmra.mrb[0].mxu0 %v4364
      %v4674 = vpop.f32.mrb[0].mxu0
      %v4675 = vadd.f32 0.0, %v4674
      %v4676 = vpop.f32.mrb[0].mxu0
      %v4677 = vpop.f32.mrb[0].mxu0
      %v4678 = vadd.f32 0.0, %v4677
      %v4679 = vpop.f32.mrb[0].mxu0
      %4680 = vmatprep.mubr.bf16.mxu0 %v4368
      %4681 = vmatmul.mubr.bf16.gmra.mrb[0].mxu0 %v4367
      %v4682 = vpop.f32.mrb[0].mxu0
      %v4683 = vadd.f32 0.0, %v4682
      %v4684 = vpop.f32.mrb[0].mxu0
      %v4685 = vpop.f32.mrb[0].mxu0
      %v4686 = vadd.f32 0.0, %v4685
      %v4687 = vpop.f32.mrb[0].mxu0
      %4688 = vmatprep.mubr.bf16.mxu0 %v4371
      %4689 = vmatmul.mubr.bf16.gmra.mrb[0].mxu0 %v4370
      %v4690 = vpop.f32.mrb[0].mxu0
      %v4691 = vadd.f32 0.0, %v4690
      %v4692 = vpop.f32.mrb[0].mxu0
      %v4693 = vpop.f32.mrb[0].mxu0
      %v4694 = vadd.f32 0.0, %v4693
      %v4695 = vpop.f32.mrb[0].mxu0
      %4696 = vmatprep.mubr.bf16.mxu0 %v4374
      %4697 = vmatmul.mubr.bf16.gmra.mrb[0].mxu0 %v4373
      %v4698 = vpop.f32.mrb[0].mxu0
      %v4699 = vadd.f32 0.0, %v4698
      %v4700 = vpop.f32.mrb[0].mxu0
      %v4701 = vpop.f32.mrb[0].mxu0
      %v4702 = vadd.f32 0.0, %v4701
      %v4703 = vpop.f32.mrb[0].mxu0
      %4704 = vmatprep.mubr.bf16.mxu0 %v4377
      %4705 = vmatmul.mubr.bf16.gmra.mrb[0].mxu0 %v4376
      %v4706 = vpop.f32.mrb[0].mxu0
      %v4707 = vadd.f32 0.0, %v4706
      %v4708 = vpop.f32.mrb[0].mxu0
      %v4709 = vpop.f32.mrb[0].mxu0
      %v4710 = vadd.f32 0.0, %v4709
      %v4711 = vpop.f32.mrb[0].mxu0
      %4712 = vmatprep.mubr.bf16.mxu0 %v4380
      %4713 = vmatmul.mubr.bf16.gmra.mrb[0].mxu0 %v4379
      %v4714 = vpop.f32.mrb[0].mxu0
      %v4715 = vadd.f32 0.0, %v4714
      %v4716 = vpop.f32.mrb[0].mxu0
      %v4717 = vpop.f32.mrb[0].mxu0
      %v4718 = vadd.f32 0.0, %v4717
      %v4719 = vpop.f32.mrb[0].mxu0
      %4720 = vmatprep.mubr.bf16.mxu0 %v4383
      %4721 = vmatmul.mubr.bf16.gmra.mrb[0].mxu0 %v4382
      %v4722 = vpop.f32.mrb[0].mxu0
      %v4723 = vadd.f32 0.0, %v4722
      %v4724 = vpop.f32.mrb[0].mxu0
      %v4725 = vpop.f32.mrb[0].mxu0
      %v4726 = vadd.f32 0.0, %v4725
      %v4727 = vpop.f32.mrb[0].mxu0
      %4728 = vmatprep.mubr.bf16.mxu0 %v4386
      %4729 = vmatmul.mubr.bf16.gmra.mrb[0].mxu0 %v4385
      %v4730 = vpop.f32.mrb[0].mxu0
      %v4731 = vadd.f32 0.0, %v4730
      %v4732 = vpop.f32.mrb[0].mxu0
      %v4733 = vpop.f32.mrb[0].mxu0
      %v4734 = vadd.f32 0.0, %v4733
      %v4735 = vpop.f32.mrb[0].mxu0
      %4736 = vmatprep.mubr.bf16.mxu0 %v4389
      %4737 = vmatmul.mubr.bf16.gmra.mrb[0].mxu0 %v4388
      %v4738 = vpop.f32.mrb[0].mxu0
      %v4739 = vadd.f32 0.0, %v4738
      %v4740 = vpop.f32.mrb[0].mxu0
      %v4741 = vpop.f32.mrb[0].mxu0
      %v4742 = vadd.f32 0.0, %v4741
      %v4743 = vpop.f32.mrb[0].mxu0
      %4744 = vdwg.mxu0
      %4745 = vmatprep.subr.bf16.mxu0 0
      %4746 = vmatpush1.bf16.msra.mxu0 %v4552
      %4747 = vmatprep.subr.bf16.mxu0 0
      %4748 = vmatpush1.bf16.msra.mxu0 %v4553
      %4749 = vmatprep.subr.bf16.mxu0 0
      %4750 = vmatpush1.bf16.msra.mxu0 %v4554
      %4751 = vmatprep.subr.bf16.mxu0 0
      %4752 = vmatpush1.bf16.msra.mxu0 %v4555
      %4753 = vmatprep.subr.bf16.mxu0 0
      %4754 = vmatpush1.bf16.msra.mxu0 %v4556
      %4755 = vmatprep.subr.bf16.mxu0 0
      %4756 = vmatpush1.bf16.msra.mxu0 %v4557
      %4757 = vmatprep.subr.bf16.mxu0 0
      %4758 = vmatpush1.bf16.msra.mxu0 %v4558
      %4759 = vmatprep.subr.bf16.mxu0 0
      %4760 = vmatpush1.bf16.msra.mxu0 %v4559
      %4761 = vmatprep.subr.bf16.mxu0 0
      %4762 = vmatpush1.bf16.msra.mxu0 0
      %4763 = vmatprep.subr.bf16.mxu0 0
      %4764 = vmatpush1.bf16.msra.mxu0 0
      %4765 = vmatprep.subr.bf16.mxu0 0
      %4766 = vmatpush1.bf16.msra.mxu0 0
      %4767 = vmatprep.subr.bf16.mxu0 0
      %4768 = vmatpush1.bf16.msra.mxu0 0
      %4769 = vmatprep.subr.bf16.mxu0 0
      %4770 = vmatpush1.bf16.msra.mxu0 0
      %4771 = vmatprep.subr.bf16.mxu0 0
      %4772 = vmatpush1.bf16.msra.mxu0 0
      %4773 = vmatprep.subr.bf16.mxu0 0
      %4774 = vmatpush1.bf16.msra.mxu0 0
      %4775 = vmatprep.subr.bf16.mxu0 0
      %4776 = vmatpush1.bf16.msra.mxu0 0
      %4777 = vmatprep.mubr.bf16.mxu0 0
      %4778 = vmatmul.mubr.bf16.gmra.mrb[0].mxu0 %v4345
      %v4779 = vpop.f32.mrb[0].mxu0
      %v4780 = vadd.f32 %v4619, %v4779
      %v4781 = vpop.f32.mrb[0].mxu0
      %v4782 = vpop.f32.mrb[0].mxu0
      %v4783 = vadd.f32 %v4622, %v4782
      %v4784 = vpop.f32.mrb[0].mxu0
      %4785 = vmatprep.mubr.bf16.mxu0 0
      %4786 = vmatmul.mubr.bf16.gmra.mrb[0].mxu0 %v4348
      %v4787 = vpop.f32.mrb[0].mxu0
      %v4788 = vadd.f32 %v4627, %v4787
      %v4789 = vpop.f32.mrb[0].mxu0
      %v4790 = vpop.f32.mrb[0].mxu0
      %v4791 = vadd.f32 %v4630, %v4790
      %v4792 = vpop.f32.mrb[0].mxu0
      %4793 = vmatprep.mubr.bf16.mxu0 0
      %4794 = vmatmul.mubr.bf16.gmra.mrb[0].mxu0 %v4351
      %v4795 = vpop.f32.mrb[0].mxu0
      %v4796 = vadd.f32 %v4635, %v4795
      %v4797 = vpop.f32.mrb[0].mxu0
      %v4798 = vpop.f32.mrb[0].mxu0
      %v4799 = vadd.f32 %v4638, %v4798
      %v4800 = vpop.f32.mrb[0].mxu0
      %4801 = vmatprep.mubr.bf16.mxu0 0
      %4802 = vmatmul.mubr.bf16.gmra.mrb[0].mxu0 %v4354
      %v4803 = vpop.f32.mrb[0].mxu0
      %v4804 = vadd.f32 %v4643, %v4803
      %v4805 = vpop.f32.mrb[0].mxu0
      %v4806 = vpop.f32.mrb[0].mxu0
      %v4807 = vadd.f32 %v4646, %v4806
      %v4808 = vpop.f32.mrb[0].mxu0
      %4809 = vmatprep.mubr.bf16.mxu0 0
      %4810 = vmatmul.mubr.bf16.gmra.mrb[0].mxu0 %v4357
      %v4811 = vpop.f32.mrb[0].mxu0
      %v4812 = vadd.f32 %v4651, %v4811
      %v4813 = vpop.f32.mrb[0].mxu0
      %v4814 = vpop.f32.mrb[0].mxu0
      %v4815 = vadd.f32 %v4654, %v4814
      %v4816 = vpop.f32.mrb[0].mxu0
      %4817 = vmatprep.mubr.bf16.mxu0 0
      %4818 = vmatmul.mubr.bf16.gmra.mrb[0].mxu0 %v4360
      %v4819 = vpop.f32.mrb[0].mxu0
      %v4820 = vadd.f32 %v4659, %v4819
      %v4821 = vpop.f32.mrb[0].mxu0
      %v4822 = vpop.f32.mrb[0].mxu0
      %v4823 = vadd.f32 %v4662, %v4822
      %v4824 = vpop.f32.mrb[0].mxu0
      %4825 = vmatprep.mubr.bf16.mxu0 0
      %4826 = vmatmul.mubr.bf16.gmra.mrb[0].mxu0 %v4363
      %v4827 = vpop.f32.mrb[0].mxu0
      %v4828 = vadd.f32 %v4667, %v4827
      %v4829 = vpop.f32.mrb[0].mxu0
      %v4830 = vpop.f32.mrb[0].mxu0
      %v4831 = vadd.f32 %v4670, %v4830
      %v4832 = vpop.f32.mrb[0].mxu0
      %4833 = vmatprep.mubr.bf16.mxu0 0
      %4834 = vmatmul.mubr.bf16.gmra.mrb[0].mxu0 %v4366
      %v4835 = vpop.f32.mrb[0].mxu0
      %v4836 = vadd.f32 %v4675, %v4835
      %v4837 = vpop.f32.mrb[0].mxu0
      %v4838 = vpop.f32.mrb[0].mxu0
      %v4839 = vadd.f32 %v4678, %v4838
      %v4840 = vpop.f32.mrb[0].mxu0
      %4841 = vmatprep.mubr.bf16.mxu0 0
      %4842 = vmatmul.mubr.bf16.gmra.mrb[0].mxu0 %v4369
      %v4843 = vpop.f32.mrb[0].mxu0
      %v4844 = vadd.f32 %v4683, %v4843
      %v4845 = vpop.f32.mrb[0].mxu0
      %v4846 = vpop.f32.mrb[0].mxu0
      %v4847 = vadd.f32 %v4686, %v4846
      %v4848 = vpop.f32.mrb[0].mxu0
      %4849 = vmatprep.mubr.bf16.mxu0 0
      %4850 = vmatmul.mubr.bf16.gmra.mrb[0].mxu0 %v4372
      %v4851 = vpop.f32.mrb[0].mxu0
      %v4852 = vadd.f32 %v4691, %v4851
      %v4853 = vpop.f32.mrb[0].mxu0
      %v4854 = vpop.f32.mrb[0].mxu0
      %v4855 = vadd.f32 %v4694, %v4854
      %v4856 = vpop.f32.mrb[0].mxu0
      %4857 = vmatprep.mubr.bf16.mxu0 0
      %4858 = vmatmul.mubr.bf16.gmra.mrb[0].mxu0 %v4375
      %v4859 = vpop.f32.mrb[0].mxu0
      %v4860 = vadd.f32 %v4699, %v4859
      %v4861 = vpop.f32.mrb[0].mxu0
      %v4862 = vpop.f32.mrb[0].mxu0
      %v4863 = vadd.f32 %v4702, %v4862
      %v4864 = vpop.f32.mrb[0].mxu0
      %4865 = vmatprep.mubr.bf16.mxu0 0
      %4866 = vmatmul.mubr.bf16.gmra.mrb[0].mxu0 %v4378
      %v4867 = vpop.f32.mrb[0].mxu0
      %v4868 = vadd.f32 %v4707, %v4867
      %v4869 = vpop.f32.mrb[0].mxu0
      %v4870 = vpop.f32.mrb[0].mxu0
      %v4871 = vadd.f32 %v4710, %v4870
      %v4872 = vpop.f32.mrb[0].mxu0
      %4873 = vmatprep.mubr.bf16.mxu0 0
      %4874 = vmatmul.mubr.bf16.gmra.mrb[0].mxu0 %v4381
      %v4875 = vpop.f32.mrb[0].mxu0
      %v4876 = vadd.f32 %v4715, %v4875
      %v4877 = vpop.f32.mrb[0].mxu0
      %v4878 = vpop.f32.mrb[0].mxu0
      %v4879 = vadd.f32 %v4718, %v4878
      %v4880 = vpop.f32.mrb[0].mxu0
      %4881 = vmatprep.mubr.bf16.mxu0 0
      %4882 = vmatmul.mubr.bf16.gmra.mrb[0].mxu0 %v4384
      %v4883 = vpop.f32.mrb[0].mxu0
      %v4884 = vadd.f32 %v4723, %v4883
      %v4885 = vpop.f32.mrb[0].mxu0
      %v4886 = vpop.f32.mrb[0].mxu0
      %v4887 = vadd.f32 %v4726, %v4886
      %v4888 = vpop.f32.mrb[0].mxu0
      %4889 = vmatprep.mubr.bf16.mxu0 0
      %4890 = vmatmul.mubr.bf16.gmra.mrb[0].mxu0 %v4387
      %v4891 = vpop.f32.mrb[0].mxu0
      %v4892 = vadd.f32 %v4731, %v4891
      %v4893 = vpop.f32.mrb[0].mxu0
      %v4894 = vpop.f32.mrb[0].mxu0
      %v4895 = vadd.f32 %v4734, %v4894
      %v4896 = vpop.f32.mrb[0].mxu0
      %4897 = vmatprep.mubr.bf16.mxu0 0
      %4898 = vmatmul.mubr.bf16.gmra.mrb[0].mxu0 %v4390
      %v4899 = vpop.f32.mrb[0].mxu0
      %v4900 = vadd.f32 %v4739, %v4899
      %v4901 = vpop.f32.mrb[0].mxu0
      %v4902 = vpop.f32.mrb[0].mxu0
      %v4903 = vadd.f32 %v4742, %v4902
      %v4904 = vpop.f32.mrb[0].mxu0
      %4905 = vdwg.mxu0
      %v4906 = vadd.f32 %v3416, %v4780
      %v4907 = vadd.f32 %v3419, %v4783
      %v4908 = vadd.f32 %v3424, %v4788
      %v4909 = vadd.f32 %v3427, %v4791
      %v4910 = vadd.f32 %v3432, %v4796
      %v4911 = vadd.f32 %v3435, %v4799
      %v4912 = vadd.f32 %v3440, %v4804
      %v4913 = vadd.f32 %v3443, %v4807
      %v4914 = vadd.f32 %v3448, %v4812
      %v4915 = vadd.f32 %v3451, %v4815
      %v4916 = vadd.f32 %v3456, %v4820
      %v4917 = vadd.f32 %v3459, %v4823
      %v4918 = vadd.f32 %v3464, %v4828
      %v4919 = vadd.f32 %v3467, %v4831
      %v4920 = vadd.f32 %v3472, %v4836
      %v4921 = vadd.f32 %v3475, %v4839
      %v4922 = vadd.f32 %v3480, %v4844
      %v4923 = vadd.f32 %v3483, %v4847
      %v4924 = vadd.f32 %v3488, %v4852
      %v4925 = vadd.f32 %v3491, %v4855
      %v4926 = vadd.f32 %v3496, %v4860
      %v4927 = vadd.f32 %v3499, %v4863
      %v4928 = vadd.f32 %v3504, %v4868
      %v4929 = vadd.f32 %v3507, %v4871
      %v4930 = vadd.f32 %v3512, %v4876
      %v4931 = vadd.f32 %v3515, %v4879
      %v4932 = vadd.f32 %v3520, %v4884
      %v4933 = vadd.f32 %v3523, %v4887
      %v4934 = vadd.f32 %v3528, %v4892
      %v4935 = vadd.f32 %v3531, %v4895
      %v4936 = vadd.f32 %v3536, %v4900
      %v4937 = vadd.f32 %v3539, %v4903
      %v4938 = vld [vmem:[%s2] sm:$0x1]
      %v4940 = vlaneseq
      %v4941 = vshrl.u32 %v4940, 7
      %v4942 = vsub.s32 0, %v4941
      %v4943 = vrot.slane %v4938, %v4942
      %v4945 = vadd.f32 %v4906, %v4943
      %v4946 = vadd.f32 %v4907, %v4943
      %v4947 = vadd.f32 %v4908, %v4943
      %v4948 = vadd.f32 %v4909, %v4943
      %v4949 = vadd.f32 %v4910, %v4943
      %v4950 = vadd.f32 %v4911, %v4943
      %v4951 = vadd.f32 %v4912, %v4943
      %v4952 = vadd.f32 %v4913, %v4943
      %v4953 = vadd.f32 %v4914, %v4943
      %v4954 = vadd.f32 %v4915, %v4943
      %v4955 = vadd.f32 %v4916, %v4943
      %v4956 = vadd.f32 %v4917, %v4943
      %v4957 = vadd.f32 %v4918, %v4943
      %v4958 = vadd.f32 %v4919, %v4943
      %v4959 = vadd.f32 %v4920, %v4943
      %v4960 = vadd.f32 %v4921, %v4943
      %v4961 = vadd.f32 %v4922, %v4943
      %v4962 = vadd.f32 %v4923, %v4943
      %v4963 = vadd.f32 %v4924, %v4943
      %v4964 = vadd.f32 %v4925, %v4943
      %v4965 = vadd.f32 %v4926, %v4943
      %v4966 = vadd.f32 %v4927, %v4943
      %v4967 = vadd.f32 %v4928, %v4943
      %v4968 = vadd.f32 %v4929, %v4943
      %v4969 = vadd.f32 %v4930, %v4943
      %v4970 = vadd.f32 %v4931, %v4943
      %v4971 = vadd.f32 %v4932, %v4943
      %v4972 = vadd.f32 %v4933, %v4943
      %v4973 = vadd.f32 %v4934, %v4943
      %v4974 = vadd.f32 %v4935, %v4943
      %v4975 = vadd.f32 %v4936, %v4943
      %v4976 = vadd.f32 %v4937, %v4943
      %v4977 = vmax.f32 %v4945, 0.0
      %v4978 = vmax.f32 %v4946, 0.0
      %v4979 = vmax.f32 %v4947, 0.0
      %v4980 = vmax.f32 %v4948, 0.0
      %v4981 = vmax.f32 %v4949, 0.0
      %v4982 = vmax.f32 %v4950, 0.0
      %v4983 = vmax.f32 %v4951, 0.0
      %v4984 = vmax.f32 %v4952, 0.0
      %v4985 = vmax.f32 %v4953, 0.0
      %v4986 = vmax.f32 %v4954, 0.0
      %v4987 = vmax.f32 %v4955, 0.0
      %v4988 = vmax.f32 %v4956, 0.0
      %v4989 = vmax.f32 %v4957, 0.0
      %v4990 = vmax.f32 %v4958, 0.0
      %v4991 = vmax.f32 %v4959, 0.0
      %v4992 = vmax.f32 %v4960, 0.0
      %v4993 = vmax.f32 %v4961, 0.0
      %v4994 = vmax.f32 %v4962, 0.0
      %v4995 = vmax.f32 %v4963, 0.0
      %v4996 = vmax.f32 %v4964, 0.0
      %v4997 = vmax.f32 %v4965, 0.0
      %v4998 = vmax.f32 %v4966, 0.0
      %v4999 = vmax.f32 %v4967, 0.0
      %v5000 = vmax.f32 %v4968, 0.0
      %v5001 = vmax.f32 %v4969, 0.0
      %v5002 = vmax.f32 %v4970, 0.0
      %v5003 = vmax.f32 %v4971, 0.0
      %v5004 = vmax.f32 %v4972, 0.0
      %v5005 = vmax.f32 %v4973, 0.0
      %v5006 = vmax.f32 %v4974, 0.0
      %v5007 = vmax.f32 %v4975, 0.0
      %v5008 = vmax.f32 %v4976, 0.0
      %v5009 = vpack.c.bf16 %v4978, %v4977
      %v5010 = vpack.c.bf16 %v4980, %v4979
      %v5011 = vpack.c.bf16 %v4982, %v4981
      %v5012 = vpack.c.bf16 %v4984, %v4983
      %v5013 = vpack.c.bf16 %v4986, %v4985
      %v5014 = vpack.c.bf16 %v4988, %v4987
      %v5015 = vpack.c.bf16 %v4990, %v4989
      %v5016 = vpack.c.bf16 %v4992, %v4991
      %v5017 = vpack.c.bf16 %v4994, %v4993
      %v5018 = vpack.c.bf16 %v4996, %v4995
      %v5019 = vpack.c.bf16 %v4998, %v4997
      %v5020 = vpack.c.bf16 %v5000, %v4999
      %v5021 = vpack.c.bf16 %v5002, %v5001
      %v5022 = vpack.c.bf16 %v5004, %v5003
      %v5023 = vpack.c.bf16 %v5006, %v5005
      %v5024 = vpack.c.bf16 %v5008, %v5007
      %v5041 = vunpack.c.l.b16 %v5009
      %v5042 = vunpack.c.h.b16 %v5009
      %v5043 = vunpack.c.l.b16 %v5010
      %v5044 = vunpack.c.h.b16 %v5010
      %v5045 = vunpack.c.l.b16 %v5011
      %v5046 = vunpack.c.h.b16 %v5011
      %v5047 = vunpack.c.l.b16 %v5012
      %v5048 = vunpack.c.h.b16 %v5012
      %v5049 = vunpack.c.l.b16 %v5013
      %v5050 = vunpack.c.h.b16 %v5013
      %v5051 = vunpack.c.l.b16 %v5014
      %v5052 = vunpack.c.h.b16 %v5014
      %v5053 = vunpack.c.l.b16 %v5015
      %v5054 = vunpack.c.h.b16 %v5015
      %v5055 = vunpack.c.l.b16 %v5016
      %v5056 = vunpack.c.h.b16 %v5016
      %v5057 = vunpack.c.l.b16 %v5017
      %v5058 = vunpack.c.h.b16 %v5017
      %v5059 = vunpack.c.l.b16 %v5018
      %v5060 = vunpack.c.h.b16 %v5018
      %v5061 = vunpack.c.l.b16 %v5019
      %v5062 = vunpack.c.h.b16 %v5019
      %v5063 = vunpack.c.l.b16 %v5020
      %v5064 = vunpack.c.h.b16 %v5020
      %v5065 = vunpack.c.l.b16 %v5021
      %v5066 = vunpack.c.h.b16 %v5021
      %v5067 = vunpack.c.l.b16 %v5022
      %v5068 = vunpack.c.h.b16 %v5022
      %v5069 = vunpack.c.l.b16 %v5023
      %v5070 = vunpack.c.h.b16 %v5023
      %v5071 = vunpack.c.l.b16 %v5024
      %v5072 = vunpack.c.h.b16 %v5024
      %v5073 = vpack.c.b16 %v5041, %v5041
      %v5074 = vpack.c.b16 %v5042, %v5042
      %v5075 = vpack.c.b16 %v5043, %v5043
      %v5076 = vpack.c.b16 %v5044, %v5044
      %v5077 = vpack.c.b16 %v5045, %v5045
      %v5078 = vpack.c.b16 %v5046, %v5046
      %v5079 = vpack.c.b16 %v5047, %v5047
      %v5080 = vpack.c.b16 %v5048, %v5048
      %v5081 = vpack.c.b16 %v5049, %v5049
      %v5082 = vpack.c.b16 %v5050, %v5050
      %v5083 = vpack.c.b16 %v5051, %v5051
      %v5084 = vpack.c.b16 %v5052, %v5052
      %v5085 = vpack.c.b16 %v5053, %v5053
      %v5086 = vpack.c.b16 %v5054, %v5054
      %v5087 = vpack.c.b16 %v5055, %v5055
      %v5088 = vpack.c.b16 %v5056, %v5056
      %v5089 = vpack.c.b16 %v5057, %v5057
      %v5090 = vpack.c.b16 %v5058, %v5058
      %v5091 = vpack.c.b16 %v5059, %v5059
      %v5092 = vpack.c.b16 %v5060, %v5060
      %v5093 = vpack.c.b16 %v5061, %v5061
      %v5094 = vpack.c.b16 %v5062, %v5062
      %v5095 = vpack.c.b16 %v5063, %v5063
      %v5096 = vpack.c.b16 %v5064, %v5064
      %v5097 = vpack.c.b16 %v5065, %v5065
      %v5098 = vpack.c.b16 %v5066, %v5066
      %v5099 = vpack.c.b16 %v5067, %v5067
      %v5100 = vpack.c.b16 %v5068, %v5068
      %v5101 = vpack.c.b16 %v5069, %v5069
      %v5102 = vpack.c.b16 %v5070, %v5070
      %v5103 = vpack.c.b16 %v5071, %v5071
      %v5104 = vpack.c.b16 %v5072, %v5072
      %v5106 = vshrl.u32 %v5073, 16
      %v5108 = vrot.slane %v5106, 7
      %v5109 = vshll.u32 %v5073, 16
      %v5111 = vor.u32 %v5108, %v5109
      %v5112 = vrot.slane %v5108, 4
      %v5114 = vshrl.u32 %v5074, 16
      %v5116 = vrot.slane %v5114, 7
      %v5117 = vshll.u32 %v5074, 16
      %v5119 = vor.u32 %v5116, %v5117
      %v5120 = vsel %vm379, %v5112, %v5119
      %v5121 = vrot.slane %v5116, 4
      %v5123 = vshrl.u32 %v5075, 16
      %v5125 = vrot.slane %v5123, 7
      %v5126 = vshll.u32 %v5075, 16
      %v5128 = vor.u32 %v5125, %v5126
      %v5129 = vrot.slane %v5125, 4
      %v5131 = vshrl.u32 %v5076, 16
      %v5133 = vrot.slane %v5131, 7
      %v5134 = vshll.u32 %v5076, 16
      %v5136 = vor.u32 %v5133, %v5134
      %v5137 = vsel %vm379, %v5129, %v5136
      %v5138 = vrot.slane %v5133, 4
      %v5140 = vshrl.u32 %v5077, 16
      %v5142 = vrot.slane %v5140, 7
      %v5143 = vshll.u32 %v5077, 16
      %v5145 = vor.u32 %v5142, %v5143
      %v5146 = vrot.slane %v5142, 4
      %v5148 = vshrl.u32 %v5078, 16
      %v5150 = vrot.slane %v5148, 7
      %v5151 = vshll.u32 %v5078, 16
      %v5153 = vor.u32 %v5150, %v5151
      %v5154 = vsel %vm379, %v5146, %v5153
      %v5155 = vrot.slane %v5150, 4
      %v5157 = vshrl.u32 %v5079, 16
      %v5159 = vrot.slane %v5157, 7
      %v5160 = vshll.u32 %v5079, 16
      %v5162 = vor.u32 %v5159, %v5160
      %v5163 = vrot.slane %v5159, 4
      %v5165 = vshrl.u32 %v5080, 16
      %v5167 = vrot.slane %v5165, 7
      %v5168 = vshll.u32 %v5080, 16
      %v5170 = vor.u32 %v5167, %v5168
      %v5171 = vsel %vm379, %v5163, %v5170
      %v5172 = vrot.slane %v5167, 4
      %v5174 = vshrl.u32 %v5081, 16
      %v5176 = vrot.slane %v5174, 7
      %v5177 = vshll.u32 %v5081, 16
      %v5179 = vor.u32 %v5176, %v5177
      %v5180 = vrot.slane %v5176, 4
      %v5182 = vshrl.u32 %v5082, 16
      %v5184 = vrot.slane %v5182, 7
      %v5185 = vshll.u32 %v5082, 16
      %v5187 = vor.u32 %v5184, %v5185
      %v5188 = vsel %vm379, %v5180, %v5187
      %v5189 = vrot.slane %v5184, 4
      %v5191 = vshrl.u32 %v5083, 16
      %v5193 = vrot.slane %v5191, 7
      %v5194 = vshll.u32 %v5083, 16
      %v5196 = vor.u32 %v5193, %v5194
      %v5197 = vrot.slane %v5193, 4
      %v5199 = vshrl.u32 %v5084, 16
      %v5201 = vrot.slane %v5199, 7
      %v5202 = vshll.u32 %v5084, 16
      %v5204 = vor.u32 %v5201, %v5202
      %v5205 = vsel %vm379, %v5197, %v5204
      %v5206 = vrot.slane %v5201, 4
      %v5208 = vshrl.u32 %v5085, 16
      %v5210 = vrot.slane %v5208, 7
      %v5211 = vshll.u32 %v5085, 16
      %v5213 = vor.u32 %v5210, %v5211
      %v5214 = vrot.slane %v5210, 4
      %v5216 = vshrl.u32 %v5086, 16
      %v5218 = vrot.slane %v5216, 7
      %v5219 = vshll.u32 %v5086, 16
      %v5221 = vor.u32 %v5218, %v5219
      %v5222 = vsel %vm379, %v5214, %v5221
      %v5223 = vrot.slane %v5218, 4
      %v5225 = vshrl.u32 %v5087, 16
      %v5227 = vrot.slane %v5225, 7
      %v5228 = vshll.u32 %v5087, 16
      %v5230 = vor.u32 %v5227, %v5228
      %v5231 = vrot.slane %v5227, 4
      %v5233 = vshrl.u32 %v5088, 16
      %v5235 = vrot.slane %v5233, 7
      %v5236 = vshll.u32 %v5088, 16
      %v5238 = vor.u32 %v5235, %v5236
      %v5239 = vsel %vm379, %v5231, %v5238
      %v5240 = vrot.slane %v5235, 4
      %v5242 = vshrl.u32 %v5089, 16
      %v5244 = vrot.slane %v5242, 7
      %v5245 = vshll.u32 %v5089, 16
      %v5247 = vor.u32 %v5244, %v5245
      %v5248 = vrot.slane %v5244, 4
      %v5250 = vshrl.u32 %v5090, 16
      %v5252 = vrot.slane %v5250, 7
      %v5253 = vshll.u32 %v5090, 16
      %v5255 = vor.u32 %v5252, %v5253
      %v5256 = vsel %vm379, %v5248, %v5255
      %v5257 = vrot.slane %v5252, 4
      %v5259 = vshrl.u32 %v5091, 16
      %v5261 = vrot.slane %v5259, 7
      %v5262 = vshll.u32 %v5091, 16
      %v5264 = vor.u32 %v5261, %v5262
      %v5265 = vrot.slane %v5261, 4
      %v5267 = vshrl.u32 %v5092, 16
      %v5269 = vrot.slane %v5267, 7
      %v5270 = vshll.u32 %v5092, 16
      %v5272 = vor.u32 %v5269, %v5270
      %v5273 = vsel %vm379, %v5265, %v5272
      %v5274 = vrot.slane %v5269, 4
      %v5276 = vshrl.u32 %v5093, 16
      %v5278 = vrot.slane %v5276, 7
      %v5279 = vshll.u32 %v5093, 16
      %v5281 = vor.u32 %v5278, %v5279
      %v5282 = vrot.slane %v5278, 4
      %v5284 = vshrl.u32 %v5094, 16
      %v5286 = vrot.slane %v5284, 7
      %v5287 = vshll.u32 %v5094, 16
      %v5289 = vor.u32 %v5286, %v5287
      %v5290 = vsel %vm379, %v5282, %v5289
      %v5291 = vrot.slane %v5286, 4
      %v5293 = vshrl.u32 %v5095, 16
      %v5295 = vrot.slane %v5293, 7
      %v5296 = vshll.u32 %v5095, 16
      %v5298 = vor.u32 %v5295, %v5296
      %v5299 = vrot.slane %v5295, 4
      %v5301 = vshrl.u32 %v5096, 16
      %v5303 = vrot.slane %v5301, 7
      %v5304 = vshll.u32 %v5096, 16
      %v5306 = vor.u32 %v5303, %v5304
      %v5307 = vsel %vm379, %v5299, %v5306
      %v5308 = vrot.slane %v5303, 4
      %v5310 = vshrl.u32 %v5097, 16
      %v5312 = vrot.slane %v5310, 7
      %v5313 = vshll.u32 %v5097, 16
      %v5315 = vor.u32 %v5312, %v5313
      %v5316 = vrot.slane %v5312, 4
      %v5318 = vshrl.u32 %v5098, 16
      %v5320 = vrot.slane %v5318, 7
      %v5321 = vshll.u32 %v5098, 16
      %v5323 = vor.u32 %v5320, %v5321
      %v5324 = vsel %vm379, %v5316, %v5323
      %v5325 = vrot.slane %v5320, 4
      %v5327 = vshrl.u32 %v5099, 16
      %v5329 = vrot.slane %v5327, 7
      %v5330 = vshll.u32 %v5099, 16
      %v5332 = vor.u32 %v5329, %v5330
      %v5333 = vrot.slane %v5329, 4
      %v5335 = vshrl.u32 %v5100, 16
      %v5337 = vrot.slane %v5335, 7
      %v5338 = vshll.u32 %v5100, 16
      %v5340 = vor.u32 %v5337, %v5338
      %v5341 = vsel %vm379, %v5333, %v5340
      %v5342 = vrot.slane %v5337, 4
      %v5344 = vshrl.u32 %v5101, 16
      %v5346 = vrot.slane %v5344, 7
      %v5347 = vshll.u32 %v5101, 16
      %v5349 = vor.u32 %v5346, %v5347
      %v5350 = vrot.slane %v5346, 4
      %v5352 = vshrl.u32 %v5102, 16
      %v5354 = vrot.slane %v5352, 7
      %v5355 = vshll.u32 %v5102, 16
      %v5357 = vor.u32 %v5354, %v5355
      %v5358 = vsel %vm379, %v5350, %v5357
      %v5359 = vrot.slane %v5354, 4
      %v5361 = vshrl.u32 %v5103, 16
      %v5363 = vrot.slane %v5361, 7
      %v5364 = vshll.u32 %v5103, 16
      %v5366 = vor.u32 %v5363, %v5364
      %v5367 = vrot.slane %v5363, 4
      %v5369 = vshrl.u32 %v5104, 16
      %v5371 = vrot.slane %v5369, 7
      %v5372 = vshll.u32 %v5104, 16
      %v5374 = vor.u32 %v5371, %v5372
      %v5375 = vsel %vm379, %v5367, %v5374
      %v5376 = vrot.slane %v5371, 4
      %v5425 = vld [vmem:[%s700] sm:$0xf]
      %v5426 = vsel %vm702, %v5111, %v5425
      %5427 = vst [vmem:[%s700] sm:$0xf] %v5426
      %5428 = vst [vmem:[%s700 + $0x4] sm:$0xf] %v5120
      %v5429 = vld [vmem:[%s700 + $0x8] sm:$0x1]
      %v5430 = vsel %vm235, %v5121, %v5429
      %5431 = vst [vmem:[%s700 + $0x8] sm:$0x1] %v5430
      %v5432 = vld [vmem:[%s700 + $0xc] sm:$0xf]
      %v5433 = vsel %vm702, %v5128, %v5432
      %5434 = vst [vmem:[%s700 + $0xc] sm:$0xf] %v5433
      %5435 = vst [vmem:[%s700 + $0x10] sm:$0xf] %v5137
      %v5436 = vld [vmem:[%s700 + $0x14] sm:$0x1]
      %v5437 = vsel %vm235, %v5138, %v5436
      %5438 = vst [vmem:[%s700 + $0x14] sm:$0x1] %v5437
      %v5439 = vld [vmem:[%s700 + $0x18] sm:$0xf]
      %v5440 = vsel %vm702, %v5145, %v5439
      %5441 = vst [vmem:[%s700 + $0x18] sm:$0xf] %v5440
      %5442 = vst [vmem:[%s700 + $0x1c] sm:$0xf] %v5154
      %v5443 = vld [vmem:[%s700 + $0x20] sm:$0x1]
      %v5444 = vsel %vm235, %v5155, %v5443
      %5445 = vst [vmem:[%s700 + $0x20] sm:$0x1] %v5444
      %v5446 = vld [vmem:[%s700 + $0x24] sm:$0xf]
      %v5447 = vsel %vm702, %v5162, %v5446
      %5448 = vst [vmem:[%s700 + $0x24] sm:$0xf] %v5447
      %5449 = vst [vmem:[%s700 + $0x28] sm:$0xf] %v5171
      %v5450 = vld [vmem:[%s700 + $0x2c] sm:$0x1]
      %v5451 = vsel %vm235, %v5172, %v5450
      %5452 = vst [vmem:[%s700 + $0x2c] sm:$0x1] %v5451
      %v5453 = vld [vmem:[%s700 + $0x30] sm:$0xf]
      %v5454 = vsel %vm702, %v5179, %v5453
      %5455 = vst [vmem:[%s700 + $0x30] sm:$0xf] %v5454
      %5456 = vst [vmem:[%s700 + $0x34] sm:$0xf] %v5188
      %v5457 = vld [vmem:[%s700 + $0x38] sm:$0x1]
      %v5458 = vsel %vm235, %v5189, %v5457
      %5459 = vst [vmem:[%s700 + $0x38] sm:$0x1] %v5458
      %v5460 = vld [vmem:[%s700 + $0x3c] sm:$0xf]
      %v5461 = vsel %vm702, %v5196, %v5460
      %5462 = vst [vmem:[%s700 + $0x3c] sm:$0xf] %v5461
      %5463 = vst [vmem:[%s700 + $0x40] sm:$0xf] %v5205
      %v5464 = vld [vmem:[%s700 + $0x44] sm:$0x1]
      %v5465 = vsel %vm235, %v5206, %v5464
      %5466 = vst [vmem:[%s700 + $0x44] sm:$0x1] %v5465
      %v5467 = vld [vmem:[%s700 + $0x48] sm:$0xf]
      %v5468 = vsel %vm702, %v5213, %v5467
      %5469 = vst [vmem:[%s700 + $0x48] sm:$0xf] %v5468
      %5470 = vst [vmem:[%s700 + $0x4c] sm:$0xf] %v5222
      %v5471 = vld [vmem:[%s700 + $0x50] sm:$0x1]
      %v5472 = vsel %vm235, %v5223, %v5471
      %5473 = vst [vmem:[%s700 + $0x50] sm:$0x1] %v5472
      %v5474 = vld [vmem:[%s700 + $0x54] sm:$0xf]
      %v5475 = vsel %vm702, %v5230, %v5474
      %5476 = vst [vmem:[%s700 + $0x54] sm:$0xf] %v5475
      %5477 = vst [vmem:[%s700 + $0x58] sm:$0xf] %v5239
      %v5478 = vld [vmem:[%s700 + $0x5c] sm:$0x1]
      %v5479 = vsel %vm235, %v5240, %v5478
      %5480 = vst [vmem:[%s700 + $0x5c] sm:$0x1] %v5479
      %v5481 = vld [vmem:[%s700 + $0x60] sm:$0xf]
      %v5482 = vsel %vm702, %v5247, %v5481
      %5483 = vst [vmem:[%s700 + $0x60] sm:$0xf] %v5482
      %5484 = vst [vmem:[%s700 + $0x64] sm:$0xf] %v5256
      %v5485 = vld [vmem:[%s700 + $0x68] sm:$0x1]
      %v5486 = vsel %vm235, %v5257, %v5485
      %5487 = vst [vmem:[%s700 + $0x68] sm:$0x1] %v5486
      %v5488 = vld [vmem:[%s700 + $0x6c] sm:$0xf]
      %v5489 = vsel %vm702, %v5264, %v5488
      %5490 = vst [vmem:[%s700 + $0x6c] sm:$0xf] %v5489
      %5491 = vst [vmem:[%s700 + $0x70] sm:$0xf] %v5273
      %v5492 = vld [vmem:[%s700 + $0x74] sm:$0x1]
      %v5493 = vsel %vm235, %v5274, %v5492
      %5494 = vst [vmem:[%s700 + $0x74] sm:$0x1] %v5493
      %v5495 = vld [vmem:[%s700 + $0x78] sm:$0xf]
      %v5496 = vsel %vm702, %v5281, %v5495
      %5497 = vst [vmem:[%s700 + $0x78] sm:$0xf] %v5496
      %5498 = vst [vmem:[%s700 + $0x7c] sm:$0xf] %v5290
      %v5499 = vld [vmem:[%s700 + $0x80] sm:$0x1]
      %v5500 = vsel %vm235, %v5291, %v5499
      %5501 = vst [vmem:[%s700 + $0x80] sm:$0x1] %v5500
      %v5502 = vld [vmem:[%s700 + $0x84] sm:$0xf]
      %v5503 = vsel %vm702, %v5298, %v5502
      %5504 = vst [vmem:[%s700 + $0x84] sm:$0xf] %v5503
      %5505 = vst [vmem:[%s700 + $0x88] sm:$0xf] %v5307
      %v5506 = vld [vmem:[%s700 + $0x8c] sm:$0x1]
      %v5507 = vsel %vm235, %v5308, %v5506
      %5508 = vst [vmem:[%s700 + $0x8c] sm:$0x1] %v5507
      %v5509 = vld [vmem:[%s700 + $0x90] sm:$0xf]
      %v5510 = vsel %vm702, %v5315, %v5509
      %5511 = vst [vmem:[%s700 + $0x90] sm:$0xf] %v5510
      %5512 = vst [vmem:[%s700 + $0x94] sm:$0xf] %v5324
      %v5513 = vld [vmem:[%s700 + $0x98] sm:$0x1]
      %v5514 = vsel %vm235, %v5325, %v5513
      %5515 = vst [vmem:[%s700 + $0x98] sm:$0x1] %v5514
      %v5516 = vld [vmem:[%s700 + $0x9c] sm:$0xf]
      %v5517 = vsel %vm702, %v5332, %v5516
      %5518 = vst [vmem:[%s700 + $0x9c] sm:$0xf] %v5517
      %5519 = vst [vmem:[%s700 + $0xa0] sm:$0xf] %v5341
      %v5520 = vld [vmem:[%s700 + $0xa4] sm:$0x1]
      %v5521 = vsel %vm235, %v5342, %v5520
      %5522 = vst [vmem:[%s700 + $0xa4] sm:$0x1] %v5521
      %v5523 = vld [vmem:[%s700 + $0xa8] sm:$0xf]
      %v5524 = vsel %vm702, %v5349, %v5523
      %5525 = vst [vmem:[%s700 + $0xa8] sm:$0xf] %v5524
      %5526 = vst [vmem:[%s700 + $0xac] sm:$0xf] %v5358
      %v5527 = vld [vmem:[%s700 + $0xb0] sm:$0x1]
      %v5528 = vsel %vm235, %v5359, %v5527
      %5529 = vst [vmem:[%s700 + $0xb0] sm:$0x1] %v5528
      %v5530 = vld [vmem:[%s700 + $0xb4] sm:$0xf]
      %v5531 = vsel %vm702, %v5366, %v5530
      %5532 = vst [vmem:[%s700 + $0xb4] sm:$0xf] %v5531
      %5533 = vst [vmem:[%s700 + $0xb8] sm:$0xf] %v5375
      %v5534 = vld [vmem:[%s700 + $0xbc] sm:$0x1]
      %v5535 = vsel %vm235, %v5376, %v5534
      %5536 = vst [vmem:[%s700 + $0xbc] sm:$0x1] %v5535
      %v5537 = vld [vmem:[#allocation2] sm:$0xf]
      %v5538 = vld [vmem:[#allocation2 + $0x4] sm:$0xf]
      %v5539 = vld [vmem:[#allocation2 + $0xc] sm:$0xf]
      %v5540 = vld [vmem:[#allocation2 + $0x10] sm:$0xf]
      %v5541 = vld [vmem:[#allocation2 + $0x18] sm:$0xf]
      %v5542 = vld [vmem:[#allocation2 + $0x1c] sm:$0xf]
      %v5543 = vld [vmem:[#allocation2 + $0x24] sm:$0xf]
      %v5544 = vld [vmem:[#allocation2 + $0x28] sm:$0xf]
      %v5545 = vld [vmem:[#allocation2 + $0x30] sm:$0xf]
      %v5546 = vld [vmem:[#allocation2 + $0x34] sm:$0xf]
      %v5547 = vld [vmem:[#allocation2 + $0x3c] sm:$0xf]
      %v5548 = vld [vmem:[#allocation2 + $0x40] sm:$0xf]
      %v5549 = vld [vmem:[#allocation2 + $0x48] sm:$0xf]
      %v5550 = vld [vmem:[#allocation2 + $0x4c] sm:$0xf]
      %v5551 = vld [vmem:[#allocation2 + $0x54] sm:$0xf]
      %v5552 = vld [vmem:[#allocation2 + $0x58] sm:$0xf]
      %v5553 = vld [vmem:[#allocation2 + $0x60] sm:$0xf]
      %v5554 = vld [vmem:[#allocation2 + $0x64] sm:$0xf]
      %v5555 = vld [vmem:[#allocation2 + $0x6c] sm:$0xf]
      %v5556 = vld [vmem:[#allocation2 + $0x70] sm:$0xf]
      %v5557 = vld [vmem:[#allocation2 + $0x78] sm:$0xf]
      %v5558 = vld [vmem:[#allocation2 + $0x7c] sm:$0xf]
      %v5559 = vld [vmem:[#allocation2 + $0x84] sm:$0xf]
      %v5560 = vld [vmem:[#allocation2 + $0x88] sm:$0xf]
      %v5561 = vld [vmem:[#allocation2 + $0x90] sm:$0xf]
      %v5562 = vld [vmem:[#allocation2 + $0x94] sm:$0xf]
      %v5563 = vld [vmem:[#allocation2 + $0x9c] sm:$0xf]
      %v5564 = vld [vmem:[#allocation2 + $0xa0] sm:$0xf]
      %v5565 = vld [vmem:[#allocation2 + $0xa8] sm:$0xf]
      %v5566 = vld [vmem:[#allocation2 + $0xac] sm:$0xf]
      %v5567 = vld [vmem:[#allocation2 + $0xb4] sm:$0xf]
      %v5568 = vld [vmem:[#allocation2 + $0xb8] sm:$0xf]
      %v5601 = vunpack.c.l.b16 %v5537
      %v5602 = vunpack.c.l.b16 %v5538
      %v5603 = vunpack.c.l.b16 %v5539
      %v5604 = vunpack.c.l.b16 %v5540
      %v5605 = vunpack.c.l.b16 %v5541
      %v5606 = vunpack.c.l.b16 %v5542
      %v5607 = vunpack.c.l.b16 %v5543
      %v5608 = vunpack.c.l.b16 %v5544
      %v5609 = vunpack.c.l.b16 %v5545
      %v5610 = vunpack.c.l.b16 %v5546
      %v5611 = vunpack.c.l.b16 %v5547
      %v5612 = vunpack.c.l.b16 %v5548
      %v5613 = vunpack.c.l.b16 %v5549
      %v5614 = vunpack.c.l.b16 %v5550
      %v5615 = vunpack.c.l.b16 %v5551
      %v5616 = vunpack.c.l.b16 %v5552
      %v5617 = vunpack.c.l.b16 %v5553
      %v5618 = vunpack.c.l.b16 %v5554
      %v5619 = vunpack.c.l.b16 %v5555
      %v5620 = vunpack.c.l.b16 %v5556
      %v5621 = vunpack.c.l.b16 %v5557
      %v5622 = vunpack.c.l.b16 %v5558
      %v5623 = vunpack.c.l.b16 %v5559
      %v5624 = vunpack.c.l.b16 %v5560
      %v5625 = vunpack.c.l.b16 %v5561
      %v5626 = vunpack.c.l.b16 %v5562
      %v5627 = vunpack.c.l.b16 %v5563
      %v5628 = vunpack.c.l.b16 %v5564
      %v5629 = vunpack.c.l.b16 %v5565
      %v5630 = vunpack.c.l.b16 %v5566
      %v5631 = vunpack.c.l.b16 %v5567
      %v5632 = vunpack.c.l.b16 %v5568
      %v5633 = vpack.c.b16 %v5602, %v5601
      %v5634 = vpack.c.b16 %v5604, %v5603
      %v5635 = vpack.c.b16 %v5606, %v5605
      %v5636 = vpack.c.b16 %v5608, %v5607
      %v5637 = vpack.c.b16 %v5610, %v5609
      %v5638 = vpack.c.b16 %v5612, %v5611
      %v5639 = vpack.c.b16 %v5614, %v5613
      %v5640 = vpack.c.b16 %v5616, %v5615
      %v5641 = vpack.c.b16 %v5618, %v5617
      %v5642 = vpack.c.b16 %v5620, %v5619
      %v5643 = vpack.c.b16 %v5622, %v5621
      %v5644 = vpack.c.b16 %v5624, %v5623
      %v5645 = vpack.c.b16 %v5626, %v5625
      %v5646 = vpack.c.b16 %v5628, %v5627
      %v5647 = vpack.c.b16 %v5630, %v5629
      %v5648 = vpack.c.b16 %v5632, %v5631
      %5665 = vst [vmem:[#allocation3] sm:$0xff] %v5633
      %5666 = vst [vmem:[#allocation3 + $0x18] sm:$0xff] %v5634
      %5667 = vst [vmem:[#allocation3 + $0x30] sm:$0xff] %v5635
      %5668 = vst [vmem:[#allocation3 + $0x48] sm:$0xff] %v5636
      %5669 = vst [vmem:[#allocation3 + $0x60] sm:$0xff] %v5637
      %5670 = vst [vmem:[#allocation3 + $0x78] sm:$0xff] %v5638
      %5671 = vst [vmem:[#allocation3 + $0x90] sm:$0xff] %v5639
      %5672 = vst [vmem:[#allocation3 + $0xa8] sm:$0xff] %v5640
      %5673 = vst [vmem:[#allocation3 + $0xc0] sm:$0xff] %v5641
      %5674 = vst [vmem:[#allocation3 + $0xd8] sm:$0xff] %v5642
      %5675 = vst [vmem:[#allocation3 + $0xf0] sm:$0xff] %v5643
      %5676 = vst [vmem:[#allocation3 + $0x108] sm:$0xff] %v5644
      %5677 = vst [vmem:[#allocation3 + $0x120] sm:$0xff] %v5645
      %5678 = vst [vmem:[#allocation3 + $0x138] sm:$0xff] %v5646
      %5679 = vst [vmem:[#allocation3 + $0x150] sm:$0xff] %v5647
      %5680 = vst [vmem:[#allocation3 + $0x168] sm:$0xff] %v5648
      %v5681 = vld [vmem:[#allocation2] sm:$0xf]
      %v5682 = vld [vmem:[#allocation2 + $0x4] sm:$0xf]
      %v5683 = vld [vmem:[#allocation2 + $0x8] sm:$0x1]
      %v5684 = vld [vmem:[#allocation2 + $0xc] sm:$0xf]
      %v5685 = vld [vmem:[#allocation2 + $0x10] sm:$0xf]
      %v5686 = vld [vmem:[#allocation2 + $0x14] sm:$0x1]
      %v5687 = vld [vmem:[#allocation2 + $0x18] sm:$0xf]
      %v5688 = vld [vmem:[#allocation2 + $0x1c] sm:$0xf]
      %v5689 = vld [vmem:[#allocation2 + $0x20] sm:$0x1]
      %v5690 = vld [vmem:[#allocation2 + $0x24] sm:$0xf]
      %v5691 = vld [vmem:[#allocation2 + $0x28] sm:$0xf]
      %v5692 = vld [vmem:[#allocation2 + $0x2c] sm:$0x1]
      %v5693 = vld [vmem:[#allocation2 + $0x30] sm:$0xf]
      %v5694 = vld [vmem:[#allocation2 + $0x34] sm:$0xf]
      %v5695 = vld [vmem:[#allocation2 + $0x38] sm:$0x1]
      %v5696 = vld [vmem:[#allocation2 + $0x3c] sm:$0xf]
      %v5697 = vld [vmem:[#allocation2 + $0x40] sm:$0xf]
      %v5698 = vld [vmem:[#allocation2 + $0x44] sm:$0x1]
      %v5699 = vld [vmem:[#allocation2 + $0x48] sm:$0xf]
      %v5700 = vld [vmem:[#allocation2 + $0x4c] sm:$0xf]
      %v5701 = vld [vmem:[#allocation2 + $0x50] sm:$0x1]
      %v5702 = vld [vmem:[#allocation2 + $0x54] sm:$0xf]
      %v5703 = vld [vmem:[#allocation2 + $0x58] sm:$0xf]
      %v5704 = vld [vmem:[#allocation2 + $0x5c] sm:$0x1]
      %v5705 = vld [vmem:[#allocation2 + $0x60] sm:$0xf]
      %v5706 = vld [vmem:[#allocation2 + $0x64] sm:$0xf]
      %v5707 = vld [vmem:[#allocation2 + $0x68] sm:$0x1]
      %v5708 = vld [vmem:[#allocation2 + $0x6c] sm:$0xf]
      %v5709 = vld [vmem:[#allocation2 + $0x70] sm:$0xf]
      %v5710 = vld [vmem:[#allocation2 + $0x74] sm:$0x1]
      %v5711 = vld [vmem:[#allocation2 + $0x78] sm:$0xf]
      %v5712 = vld [vmem:[#allocation2 + $0x7c] sm:$0xf]
      %v5713 = vld [vmem:[#allocation2 + $0x80] sm:$0x1]
      %v5714 = vld [vmem:[#allocation2 + $0x84] sm:$0xf]
      %v5715 = vld [vmem:[#allocation2 + $0x88] sm:$0xf]
      %v5716 = vld [vmem:[#allocation2 + $0x8c] sm:$0x1]
      %v5717 = vld [vmem:[#allocation2 + $0x90] sm:$0xf]
      %v5718 = vld [vmem:[#allocation2 + $0x94] sm:$0xf]
      %v5719 = vld [vmem:[#allocation2 + $0x98] sm:$0x1]
      %v5720 = vld [vmem:[#allocation2 + $0x9c] sm:$0xf]
      %v5721 = vld [vmem:[#allocation2 + $0xa0] sm:$0xf]
      %v5722 = vld [vmem:[#allocation2 + $0xa4] sm:$0x1]
      %v5723 = vld [vmem:[#allocation2 + $0xa8] sm:$0xf]
      %v5724 = vld [vmem:[#allocation2 + $0xac] sm:$0xf]
      %v5725 = vld [vmem:[#allocation2 + $0xb0] sm:$0x1]
      %v5726 = vld [vmem:[#allocation2 + $0xb4] sm:$0xf]
      %v5727 = vld [vmem:[#allocation2 + $0xb8] sm:$0xf]
      %v5728 = vld [vmem:[#allocation2 + $0xbc] sm:$0x1]
      %v5777 = vunpack.c.l.b16 %v5681
      %v5778 = vunpack.c.l.b16 %v5682
      %v5779 = vunpack.c.l.b16 %v5683
      %v5780 = vunpack.c.l.b16 %v5684
      %v5781 = vunpack.c.l.b16 %v5685
      %v5782 = vunpack.c.l.b16 %v5686
      %v5783 = vunpack.c.l.b16 %v5687
      %v5784 = vunpack.c.l.b16 %v5688
      %v5785 = vunpack.c.l.b16 %v5689
      %v5786 = vunpack.c.l.b16 %v5690
      %v5787 = vunpack.c.l.b16 %v5691
      %v5788 = vunpack.c.l.b16 %v5692
      %v5789 = vunpack.c.l.b16 %v5693
      %v5790 = vunpack.c.l.b16 %v5694
      %v5791 = vunpack.c.l.b16 %v5695
      %v5792 = vunpack.c.l.b16 %v5696
      %v5793 = vunpack.c.l.b16 %v5697
      %v5794 = vunpack.c.l.b16 %v5698
      %v5795 = vunpack.c.l.b16 %v5699
      %v5796 = vunpack.c.l.b16 %v5700
      %v5797 = vunpack.c.l.b16 %v5701
      %v5798 = vunpack.c.l.b16 %v5702
      %v5799 = vunpack.c.l.b16 %v5703
      %v5800 = vunpack.c.l.b16 %v5704
      %v5801 = vunpack.c.l.b16 %v5705
      %v5802 = vunpack.c.l.b16 %v5706
      %v5803 = vunpack.c.l.b16 %v5707
      %v5804 = vunpack.c.l.b16 %v5708
      %v5805 = vunpack.c.l.b16 %v5709
      %v5806 = vunpack.c.l.b16 %v5710
      %v5807 = vunpack.c.l.b16 %v5711
      %v5808 = vunpack.c.l.b16 %v5712
      %v5809 = vunpack.c.l.b16 %v5713
      %v5810 = vunpack.c.l.b16 %v5714
      %v5811 = vunpack.c.l.b16 %v5715
      %v5812 = vunpack.c.l.b16 %v5716
      %v5813 = vunpack.c.l.b16 %v5717
      %v5814 = vunpack.c.l.b16 %v5718
      %v5815 = vunpack.c.l.b16 %v5719
      %v5816 = vunpack.c.l.b16 %v5720
      %v5817 = vunpack.c.l.b16 %v5721
      %v5818 = vunpack.c.l.b16 %v5722
      %v5819 = vunpack.c.l.b16 %v5723
      %v5820 = vunpack.c.l.b16 %v5724
      %v5821 = vunpack.c.l.b16 %v5725
      %v5822 = vunpack.c.l.b16 %v5726
      %v5823 = vunpack.c.l.b16 %v5727
      %v5824 = vunpack.c.l.b16 %v5728
      %v5825 = vpack.c.b16 %v5778, %v5777
      %v5826 = vpack.c.b16 %v5779, %v5779
      %v5827 = vpack.c.b16 %v5781, %v5780
      %v5828 = vpack.c.b16 %v5782, %v5782
      %v5829 = vpack.c.b16 %v5784, %v5783
      %v5830 = vpack.c.b16 %v5785, %v5785
      %v5831 = vpack.c.b16 %v5787, %v5786
      %v5832 = vpack.c.b16 %v5788, %v5788
      %v5833 = vpack.c.b16 %v5790, %v5789
      %v5834 = vpack.c.b16 %v5791, %v5791
      %v5835 = vpack.c.b16 %v5793, %v5792
      %v5836 = vpack.c.b16 %v5794, %v5794
      %v5837 = vpack.c.b16 %v5796, %v5795
      %v5838 = vpack.c.b16 %v5797, %v5797
      %v5839 = vpack.c.b16 %v5799, %v5798
      %v5840 = vpack.c.b16 %v5800, %v5800
      %v5841 = vpack.c.b16 %v5802, %v5801
      %v5842 = vpack.c.b16 %v5803, %v5803
      %v5843 = vpack.c.b16 %v5805, %v5804
      %v5844 = vpack.c.b16 %v5806, %v5806
      %v5845 = vpack.c.b16 %v5808, %v5807
      %v5846 = vpack.c.b16 %v5809, %v5809
      %v5847 = vpack.c.b16 %v5811, %v5810
      %v5848 = vpack.c.b16 %v5812, %v5812
      %v5849 = vpack.c.b16 %v5814, %v5813
      %v5850 = vpack.c.b16 %v5815, %v5815
      %v5851 = vpack.c.b16 %v5817, %v5816
      %v5852 = vpack.c.b16 %v5818, %v5818
      %v5853 = vpack.c.b16 %v5820, %v5819
      %v5854 = vpack.c.b16 %v5821, %v5821
      %v5855 = vpack.c.b16 %v5823, %v5822
      %v5856 = vpack.c.b16 %v5824, %v5824
      %v5858 = vshrl.u32 %v5825, 16
      %v5860 = vshll.u32 %v5825, 16
      %v5862 = vrot.slane %v5860, 1
      %v5863 = vor.u32 %v5858, %v5862
      %v5865 = vshll.u32 %v5826, 16
      %v5867 = vrot.slane %v5865, 1
      %v5868 = vsel %vm1135, %v5863, %v5867
      %v5870 = vshrl.u32 %v5827, 16
      %v5872 = vshll.u32 %v5827, 16
      %v5874 = vrot.slane %v5872, 1
      %v5875 = vor.u32 %v5870, %v5874
      %v5877 = vshll.u32 %v5828, 16
      %v5879 = vrot.slane %v5877, 1
      %v5880 = vsel %vm1135, %v5875, %v5879
      %v5882 = vshrl.u32 %v5829, 16
      %v5884 = vshll.u32 %v5829, 16
      %v5886 = vrot.slane %v5884, 1
      %v5887 = vor.u32 %v5882, %v5886
      %v5889 = vshll.u32 %v5830, 16
      %v5891 = vrot.slane %v5889, 1
      %v5892 = vsel %vm1135, %v5887, %v5891
      %v5894 = vshrl.u32 %v5831, 16
      %v5896 = vshll.u32 %v5831, 16
      %v5898 = vrot.slane %v5896, 1
      %v5899 = vor.u32 %v5894, %v5898
      %v5901 = vshll.u32 %v5832, 16
      %v5903 = vrot.slane %v5901, 1
      %v5904 = vsel %vm1135, %v5899, %v5903
      %v5906 = vshrl.u32 %v5833, 16
      %v5908 = vshll.u32 %v5833, 16
      %v5910 = vrot.slane %v5908, 1
      %v5911 = vor.u32 %v5906, %v5910
      %v5913 = vshll.u32 %v5834, 16
      %v5915 = vrot.slane %v5913, 1
      %v5916 = vsel %vm1135, %v5911, %v5915
      %v5918 = vshrl.u32 %v5835, 16
      %v5920 = vshll.u32 %v5835, 16
      %v5922 = vrot.slane %v5920, 1
      %v5923 = vor.u32 %v5918, %v5922
      %v5925 = vshll.u32 %v5836, 16
      %v5927 = vrot.slane %v5925, 1
      %v5928 = vsel %vm1135, %v5923, %v5927
      %v5930 = vshrl.u32 %v5837, 16
      %v5932 = vshll.u32 %v5837, 16
      %v5934 = vrot.slane %v5932, 1
      %v5935 = vor.u32 %v5930, %v5934
      %v5937 = vshll.u32 %v5838, 16
      %v5939 = vrot.slane %v5937, 1
      %v5940 = vsel %vm1135, %v5935, %v5939
      %v5942 = vshrl.u32 %v5839, 16
      %v5944 = vshll.u32 %v5839, 16
      %v5946 = vrot.slane %v5944, 1
      %v5947 = vor.u32 %v5942, %v5946
      %v5949 = vshll.u32 %v5840, 16
      %v5951 = vrot.slane %v5949, 1
      %v5952 = vsel %vm1135, %v5947, %v5951
      %v5954 = vshrl.u32 %v5841, 16
      %v5956 = vshll.u32 %v5841, 16
      %v5958 = vrot.slane %v5956, 1
      %v5959 = vor.u32 %v5954, %v5958
      %v5961 = vshll.u32 %v5842, 16
      %v5963 = vrot.slane %v5961, 1
      %v5964 = vsel %vm1135, %v5959, %v5963
      %v5966 = vshrl.u32 %v5843, 16
      %v5968 = vshll.u32 %v5843, 16
      %v5970 = vrot.slane %v5968, 1
      %v5971 = vor.u32 %v5966, %v5970
      %v5973 = vshll.u32 %v5844, 16
      %v5975 = vrot.slane %v5973, 1
      %v5976 = vsel %vm1135, %v5971, %v5975
      %v5978 = vshrl.u32 %v5845, 16
      %v5980 = vshll.u32 %v5845, 16
      %v5982 = vrot.slane %v5980, 1
      %v5983 = vor.u32 %v5978, %v5982
      %v5985 = vshll.u32 %v5846, 16
      %v5987 = vrot.slane %v5985, 1
      %v5988 = vsel %vm1135, %v5983, %v5987
      %v5990 = vshrl.u32 %v5847, 16
      %v5992 = vshll.u32 %v5847, 16
      %v5994 = vrot.slane %v5992, 1
      %v5995 = vor.u32 %v5990, %v5994
      %v5997 = vshll.u32 %v5848, 16
      %v5999 = vrot.slane %v5997, 1
      %v6000 = vsel %vm1135, %v5995, %v5999
      %v6002 = vshrl.u32 %v5849, 16
      %v6004 = vshll.u32 %v5849, 16
      %v6006 = vrot.slane %v6004, 1
      %v6007 = vor.u32 %v6002, %v6006
      %v6009 = vshll.u32 %v5850, 16
      %v6011 = vrot.slane %v6009, 1
      %v6012 = vsel %vm1135, %v6007, %v6011
      %v6014 = vshrl.u32 %v5851, 16
      %v6016 = vshll.u32 %v5851, 16
      %v6018 = vrot.slane %v6016, 1
      %v6019 = vor.u32 %v6014, %v6018
      %v6021 = vshll.u32 %v5852, 16
      %v6023 = vrot.slane %v6021, 1
      %v6024 = vsel %vm1135, %v6019, %v6023
      %v6026 = vshrl.u32 %v5853, 16
      %v6028 = vshll.u32 %v5853, 16
      %v6030 = vrot.slane %v6028, 1
      %v6031 = vor.u32 %v6026, %v6030
      %v6033 = vshll.u32 %v5854, 16
      %v6035 = vrot.slane %v6033, 1
      %v6036 = vsel %vm1135, %v6031, %v6035
      %v6038 = vshrl.u32 %v5855, 16
      %v6040 = vshll.u32 %v5855, 16
      %v6042 = vrot.slane %v6040, 1
      %v6043 = vor.u32 %v6038, %v6042
      %v6045 = vshll.u32 %v5856, 16
      %v6047 = vrot.slane %v6045, 1
      %v6048 = vsel %vm1135, %v6043, %v6047
      %6065 = vst [vmem:[#allocation3 + $0x8] sm:$0xff] %v5868
      %6066 = vst [vmem:[#allocation3 + $0x20] sm:$0xff] %v5880
      %6067 = vst [vmem:[#allocation3 + $0x38] sm:$0xff] %v5892
      %6068 = vst [vmem:[#allocation3 + $0x50] sm:$0xff] %v5904
      %6069 = vst [vmem:[#allocation3 + $0x68] sm:$0xff] %v5916
      %6070 = vst [vmem:[#allocation3 + $0x80] sm:$0xff] %v5928
      %6071 = vst [vmem:[#allocation3 + $0x98] sm:$0xff] %v5940
      %6072 = vst [vmem:[#allocation3 + $0xb0] sm:$0xff] %v5952
      %6073 = vst [vmem:[#allocation3 + $0xc8] sm:$0xff] %v5964
      %6074 = vst [vmem:[#allocation3 + $0xe0] sm:$0xff] %v5976
      %6075 = vst [vmem:[#allocation3 + $0xf8] sm:$0xff] %v5988
      %6076 = vst [vmem:[#allocation3 + $0x110] sm:$0xff] %v6000
      %6077 = vst [vmem:[#allocation3 + $0x128] sm:$0xff] %v6012
      %6078 = vst [vmem:[#allocation3 + $0x140] sm:$0xff] %v6024
      %6079 = vst [vmem:[#allocation3 + $0x158] sm:$0xff] %v6036
      %6080 = vst [vmem:[#allocation3 + $0x170] sm:$0xff] %v6048
      %v6081 = vld [vmem:[#allocation2] sm:$0xe]
      %v6082 = vld [vmem:[#allocation2 + $0x4] sm:$0xf]
      %v6083 = vld [vmem:[#allocation2 + $0x8] sm:$0x1]
      %v6084 = vld [vmem:[#allocation2 + $0xc] sm:$0xe]
      %v6085 = vld [vmem:[#allocation2 + $0x10] sm:$0xf]
      %v6086 = vld [vmem:[#allocation2 + $0x14] sm:$0x1]
      %v6087 = vld [vmem:[#allocation2 + $0x18] sm:$0xe]
      %v6088 = vld [vmem:[#allocation2 + $0x1c] sm:$0xf]
      %v6089 = vld [vmem:[#allocation2 + $0x20] sm:$0x1]
      %v6090 = vld [vmem:[#allocation2 + $0x24] sm:$0xe]
      %v6091 = vld [vmem:[#allocation2 + $0x28] sm:$0xf]
      %v6092 = vld [vmem:[#allocation2 + $0x2c] sm:$0x1]
      %v6093 = vld [vmem:[#allocation2 + $0x30] sm:$0xe]
      %v6094 = vld [vmem:[#allocation2 + $0x34] sm:$0xf]
      %v6095 = vld [vmem:[#allocation2 + $0x38] sm:$0x1]
      %v6096 = vld [vmem:[#allocation2 + $0x3c] sm:$0xe]
      %v6097 = vld [vmem:[#allocation2 + $0x40] sm:$0xf]
      %v6098 = vld [vmem:[#allocation2 + $0x44] sm:$0x1]
      %v6099 = vld [vmem:[#allocation2 + $0x48] sm:$0xe]
      %v6100 = vld [vmem:[#allocation2 + $0x4c] sm:$0xf]
      %v6101 = vld [vmem:[#allocation2 + $0x50] sm:$0x1]
      %v6102 = vld [vmem:[#allocation2 + $0x54] sm:$0xe]
      %v6103 = vld [vmem:[#allocation2 + $0x58] sm:$0xf]
      %v6104 = vld [vmem:[#allocation2 + $0x5c] sm:$0x1]
      %v6105 = vld [vmem:[#allocation2 + $0x60] sm:$0xe]
      %v6106 = vld [vmem:[#allocation2 + $0x64] sm:$0xf]
      %v6107 = vld [vmem:[#allocation2 + $0x68] sm:$0x1]
      %v6108 = vld [vmem:[#allocation2 + $0x6c] sm:$0xe]
      %v6109 = vld [vmem:[#allocation2 + $0x70] sm:$0xf]
      %v6110 = vld [vmem:[#allocation2 + $0x74] sm:$0x1]
      %v6111 = vld [vmem:[#allocation2 + $0x78] sm:$0xe]
      %v6112 = vld [vmem:[#allocation2 + $0x7c] sm:$0xf]
      %v6113 = vld [vmem:[#allocation2 + $0x80] sm:$0x1]
      %v6114 = vld [vmem:[#allocation2 + $0x84] sm:$0xe]
      %v6115 = vld [vmem:[#allocation2 + $0x88] sm:$0xf]
      %v6116 = vld [vmem:[#allocation2 + $0x8c] sm:$0x1]
      %v6117 = vld [vmem:[#allocation2 + $0x90] sm:$0xe]
      %v6118 = vld [vmem:[#allocation2 + $0x94] sm:$0xf]
      %v6119 = vld [vmem:[#allocation2 + $0x98] sm:$0x1]
      %v6120 = vld [vmem:[#allocation2 + $0x9c] sm:$0xe]
      %v6121 = vld [vmem:[#allocation2 + $0xa0] sm:$0xf]
      %v6122 = vld [vmem:[#allocation2 + $0xa4] sm:$0x1]
      %v6123 = vld [vmem:[#allocation2 + $0xa8] sm:$0xe]
      %v6124 = vld [vmem:[#allocation2 + $0xac] sm:$0xf]
      %v6125 = vld [vmem:[#allocation2 + $0xb0] sm:$0x1]
      %v6126 = vld [vmem:[#allocation2 + $0xb4] sm:$0xe]
      %v6127 = vld [vmem:[#allocation2 + $0xb8] sm:$0xf]
      %v6128 = vld [vmem:[#allocation2 + $0xbc] sm:$0x1]
      %v6177 = vunpack.c.l.b16 %v6081
      %v6178 = vunpack.c.l.b16 %v6082
      %v6179 = vunpack.c.l.b16 %v6083
      %v6180 = vunpack.c.l.b16 %v6084
      %v6181 = vunpack.c.l.b16 %v6085
      %v6182 = vunpack.c.l.b16 %v6086
      %v6183 = vunpack.c.l.b16 %v6087
      %v6184 = vunpack.c.l.b16 %v6088
      %v6185 = vunpack.c.l.b16 %v6089
      %v6186 = vunpack.c.l.b16 %v6090
      %v6187 = vunpack.c.l.b16 %v6091
      %v6188 = vunpack.c.l.b16 %v6092
      %v6189 = vunpack.c.l.b16 %v6093
      %v6190 = vunpack.c.l.b16 %v6094
      %v6191 = vunpack.c.l.b16 %v6095
      %v6192 = vunpack.c.l.b16 %v6096
      %v6193 = vunpack.c.l.b16 %v6097
      %v6194 = vunpack.c.l.b16 %v6098
      %v6195 = vunpack.c.l.b16 %v6099
      %v6196 = vunpack.c.l.b16 %v6100
      %v6197 = vunpack.c.l.b16 %v6101
      %v6198 = vunpack.c.l.b16 %v6102
      %v6199 = vunpack.c.l.b16 %v6103
      %v6200 = vunpack.c.l.b16 %v6104
      %v6201 = vunpack.c.l.b16 %v6105
      %v6202 = vunpack.c.l.b16 %v6106
      %v6203 = vunpack.c.l.b16 %v6107
      %v6204 = vunpack.c.l.b16 %v6108
      %v6205 = vunpack.c.l.b16 %v6109
      %v6206 = vunpack.c.l.b16 %v6110
      %v6207 = vunpack.c.l.b16 %v6111
      %v6208 = vunpack.c.l.b16 %v6112
      %v6209 = vunpack.c.l.b16 %v6113
      %v6210 = vunpack.c.l.b16 %v6114
      %v6211 = vunpack.c.l.b16 %v6115
      %v6212 = vunpack.c.l.b16 %v6116
      %v6213 = vunpack.c.l.b16 %v6117
      %v6214 = vunpack.c.l.b16 %v6118
      %v6215 = vunpack.c.l.b16 %v6119
      %v6216 = vunpack.c.l.b16 %v6120
      %v6217 = vunpack.c.l.b16 %v6121
      %v6218 = vunpack.c.l.b16 %v6122
      %v6219 = vunpack.c.l.b16 %v6123
      %v6220 = vunpack.c.l.b16 %v6124
      %v6221 = vunpack.c.l.b16 %v6125
      %v6222 = vunpack.c.l.b16 %v6126
      %v6223 = vunpack.c.l.b16 %v6127
      %v6224 = vunpack.c.l.b16 %v6128
      %v6225 = vpack.c.b16 %v6178, %v6177
      %v6226 = vpack.c.b16 %v6179, %v6179
      %v6227 = vpack.c.b16 %v6181, %v6180
      %v6228 = vpack.c.b16 %v6182, %v6182
      %v6229 = vpack.c.b16 %v6184, %v6183
      %v6230 = vpack.c.b16 %v6185, %v6185
      %v6231 = vpack.c.b16 %v6187, %v6186
      %v6232 = vpack.c.b16 %v6188, %v6188
      %v6233 = vpack.c.b16 %v6190, %v6189
      %v6234 = vpack.c.b16 %v6191, %v6191
      %v6235 = vpack.c.b16 %v6193, %v6192
      %v6236 = vpack.c.b16 %v6194, %v6194
      %v6237 = vpack.c.b16 %v6196, %v6195
      %v6238 = vpack.c.b16 %v6197, %v6197
      %v6239 = vpack.c.b16 %v6199, %v6198
      %v6240 = vpack.c.b16 %v6200, %v6200
      %v6241 = vpack.c.b16 %v6202, %v6201
      %v6242 = vpack.c.b16 %v6203, %v6203
      %v6243 = vpack.c.b16 %v6205, %v6204
      %v6244 = vpack.c.b16 %v6206, %v6206
      %v6245 = vpack.c.b16 %v6208, %v6207
      %v6246 = vpack.c.b16 %v6209, %v6209
      %v6247 = vpack.c.b16 %v6211, %v6210
      %v6248 = vpack.c.b16 %v6212, %v6212
      %v6249 = vpack.c.b16 %v6214, %v6213
      %v6250 = vpack.c.b16 %v6215, %v6215
      %v6251 = vpack.c.b16 %v6217, %v6216
      %v6252 = vpack.c.b16 %v6218, %v6218
      %v6253 = vpack.c.b16 %v6220, %v6219
      %v6254 = vpack.c.b16 %v6221, %v6221
      %v6255 = vpack.c.b16 %v6223, %v6222
      %v6256 = vpack.c.b16 %v6224, %v6224
      %v6257 = vrot.slane %v6225, 1
      %v6258 = vrot.slane %v6226, 1
      %v6259 = vsel %vm1536, %v6257, %v6258
      %v6260 = vrot.slane %v6227, 1
      %v6261 = vrot.slane %v6228, 1
      %v6262 = vsel %vm1536, %v6260, %v6261
      %v6263 = vrot.slane %v6229, 1
      %v6264 = vrot.slane %v6230, 1
      %v6265 = vsel %vm1536, %v6263, %v6264
      %v6266 = vrot.slane %v6231, 1
      %v6267 = vrot.slane %v6232, 1
      %v6268 = vsel %vm1536, %v6266, %v6267
      %v6269 = vrot.slane %v6233, 1
      %v6270 = vrot.slane %v6234, 1
      %v6271 = vsel %vm1536, %v6269, %v6270
      %v6272 = vrot.slane %v6235, 1
      %v6273 = vrot.slane %v6236, 1
      %v6274 = vsel %vm1536, %v6272, %v6273
      %v6275 = vrot.slane %v6237, 1
      %v6276 = vrot.slane %v6238, 1
      %v6277 = vsel %vm1536, %v6275, %v6276
      %v6278 = vrot.slane %v6239, 1
      %v6279 = vrot.slane %v6240, 1
      %v6280 = vsel %vm1536, %v6278, %v6279
      %v6281 = vrot.slane %v6241, 1
      %v6282 = vrot.slane %v6242, 1
      %v6283 = vsel %vm1536, %v6281, %v6282
      %v6284 = vrot.slane %v6243, 1
      %v6285 = vrot.slane %v6244, 1
      %v6286 = vsel %vm1536, %v6284, %v6285
      %v6287 = vrot.slane %v6245, 1
      %v6288 = vrot.slane %v6246, 1
      %v6289 = vsel %vm1536, %v6287, %v6288
      %v6290 = vrot.slane %v6247, 1
      %v6291 = vrot.slane %v6248, 1
      %v6292 = vsel %vm1536, %v6290, %v6291
      %v6293 = vrot.slane %v6249, 1
      %v6294 = vrot.slane %v6250, 1
      %v6295 = vsel %vm1536, %v6293, %v6294
      %v6296 = vrot.slane %v6251, 1
      %v6297 = vrot.slane %v6252, 1
      %v6298 = vsel %vm1536, %v6296, %v6297
      %v6299 = vrot.slane %v6253, 1
      %v6300 = vrot.slane %v6254, 1
      %v6301 = vsel %vm1536, %v6299, %v6300
      %v6302 = vrot.slane %v6255, 1
      %v6303 = vrot.slane %v6256, 1
      %v6304 = vsel %vm1536, %v6302, %v6303
      %6321 = vst [vmem:[#allocation3 + $0x10] sm:$0xff] %v6259
      %6322 = vst [vmem:[#allocation3 + $0x28] sm:$0xff] %v6262
      %6323 = vst [vmem:[#allocation3 + $0x40] sm:$0xff] %v6265
      %6324 = vst [vmem:[#allocation3 + $0x58] sm:$0xff] %v6268
      %6325 = vst [vmem:[#allocation3 + $0x70] sm:$0xff] %v6271
      %6326 = vst [vmem:[#allocation3 + $0x88] sm:$0xff] %v6274
      %6327 = vst [vmem:[#allocation3 + $0xa0] sm:$0xff] %v6277
      %6328 = vst [vmem:[#allocation3 + $0xb8] sm:$0xff] %v6280
      %6329 = vst [vmem:[#allocation3 + $0xd0] sm:$0xff] %v6283
      %6330 = vst [vmem:[#allocation3 + $0xe8] sm:$0xff] %v6286
      %6331 = vst [vmem:[#allocation3 + $0x100] sm:$0xff] %v6289
      %6332 = vst [vmem:[#allocation3 + $0x118] sm:$0xff] %v6292
      %6333 = vst [vmem:[#allocation3 + $0x130] sm:$0xff] %v6295
      %6334 = vst [vmem:[#allocation3 + $0x148] sm:$0xff] %v6298
      %6335 = vst [vmem:[#allocation3 + $0x160] sm:$0xff] %v6301
      %6336 = vst [vmem:[#allocation3 + $0x178] sm:$0xff] %v6304
      %v6337 = vld [vmem:[#allocation3] sm:$0xff]
      %v6338 = vld [vmem:[#allocation3 + $0x8] sm:$0xff]
      %v6339 = vld [vmem:[#allocation3 + $0x10] sm:$0xff]
      %v6340 = vld [vmem:[#allocation3 + $0x18] sm:$0xff]
      %v6341 = vld [vmem:[#allocation3 + $0x20] sm:$0xff]
      %v6342 = vld [vmem:[#allocation3 + $0x28] sm:$0xff]
      %v6343 = vld [vmem:[#allocation3 + $0x30] sm:$0xff]
      %v6344 = vld [vmem:[#allocation3 + $0x38] sm:$0xff]
      %v6345 = vld [vmem:[#allocation3 + $0x40] sm:$0xff]
      %v6346 = vld [vmem:[#allocation3 + $0x48] sm:$0xff]
      %v6347 = vld [vmem:[#allocation3 + $0x50] sm:$0xff]
      %v6348 = vld [vmem:[#allocation3 + $0x58] sm:$0xff]
      %v6349 = vld [vmem:[#allocation3 + $0x60] sm:$0xff]
      %v6350 = vld [vmem:[#allocation3 + $0x68] sm:$0xff]
      %v6351 = vld [vmem:[#allocation3 + $0x70] sm:$0xff]
      %v6352 = vld [vmem:[#allocation3 + $0x78] sm:$0xff]
      %v6353 = vld [vmem:[#allocation3 + $0x80] sm:$0xff]
      %v6354 = vld [vmem:[#allocation3 + $0x88] sm:$0xff]
      %v6355 = vld [vmem:[#allocation3 + $0x90] sm:$0xff]
      %v6356 = vld [vmem:[#allocation3 + $0x98] sm:$0xff]
      %v6357 = vld [vmem:[#allocation3 + $0xa0] sm:$0xff]
      %v6358 = vld [vmem:[#allocation3 + $0xa8] sm:$0xff]
      %v6359 = vld [vmem:[#allocation3 + $0xb0] sm:$0xff]
      %v6360 = vld [vmem:[#allocation3 + $0xb8] sm:$0xff]
      %v6361 = vld [vmem:[#allocation3 + $0xc0] sm:$0xff]
      %v6362 = vld [vmem:[#allocation3 + $0xc8] sm:$0xff]
      %v6363 = vld [vmem:[#allocation3 + $0xd0] sm:$0xff]
      %v6364 = vld [vmem:[#allocation3 + $0xd8] sm:$0xff]
      %v6365 = vld [vmem:[#allocation3 + $0xe0] sm:$0xff]
      %v6366 = vld [vmem:[#allocation3 + $0xe8] sm:$0xff]
      %v6367 = vld [vmem:[#allocation3 + $0xf0] sm:$0xff]
      %v6368 = vld [vmem:[#allocation3 + $0xf8] sm:$0xff]
      %v6369 = vld [vmem:[#allocation3 + $0x100] sm:$0xff]
      %v6370 = vld [vmem:[#allocation3 + $0x108] sm:$0xff]
      %v6371 = vld [vmem:[#allocation3 + $0x110] sm:$0xff]
      %v6372 = vld [vmem:[#allocation3 + $0x118] sm:$0xff]
      %v6373 = vld [vmem:[#allocation3 + $0x120] sm:$0xff]
      %v6374 = vld [vmem:[#allocation3 + $0x128] sm:$0xff]
      %v6375 = vld [vmem:[#allocation3 + $0x130] sm:$0xff]
      %v6376 = vld [vmem:[#allocation3 + $0x138] sm:$0xff]
      %v6377 = vld [vmem:[#allocation3 + $0x140] sm:$0xff]
      %v6378 = vld [vmem:[#allocation3 + $0x148] sm:$0xff]
      %v6379 = vld [vmem:[#allocation3 + $0x150] sm:$0xff]
      %v6380 = vld [vmem:[#allocation3 + $0x158] sm:$0xff]
      %v6381 = vld [vmem:[#allocation3 + $0x160] sm:$0xff]
      %v6382 = vld [vmem:[#allocation3 + $0x168] sm:$0xff]
      %v6383 = vld [vmem:[#allocation3 + $0x170] sm:$0xff]
      %v6384 = vld [vmem:[#allocation3 + $0x178] sm:$0xff]
      %v6385 = vld [vmem:[%s3] sm:$0xf]
      %v6386 = vld [vmem:[%s3 + $0x4] sm:$0xf]
      %v6387 = vld [vmem:[%s3 + $0x8] sm:$0xf]
      %v6388 = vld [vmem:[%s3 + $0xc] sm:$0xf]
      %v6389 = vld [vmem:[%s3 + $0x10] sm:$0xf]
      %v6390 = vld [vmem:[%s3 + $0x14] sm:$0xf]
      %v6391 = vld [vmem:[%s3 + $0x18] sm:$0xf]
      %v6392 = vld [vmem:[%s3 + $0x1c] sm:$0xf]
      %v6393 = vld [vmem:[%s3 + $0x20] sm:$0xf]
      %v6394 = vld [vmem:[%s3 + $0x24] sm:$0xf]
      %v6395 = vld [vmem:[%s3 + $0x28] sm:$0xf]
      %v6396 = vld [vmem:[%s3 + $0x2c] sm:$0xf]
      %v6397 = vld [vmem:[%s3 + $0x30] sm:$0xf]
      %v6398 = vld [vmem:[%s3 + $0x34] sm:$0xf]
      %v6399 = vld [vmem:[%s3 + $0x38] sm:$0xf]
      %v6400 = vld [vmem:[%s3 + $0x3c] sm:$0xf]
      %v6401 = vld [vmem:[%s3 + $0x40] sm:$0xf]
      %v6402 = vld [vmem:[%s3 + $0x44] sm:$0xf]
      %v6403 = vld [vmem:[%s3 + $0x48] sm:$0xf]
      %v6404 = vld [vmem:[%s3 + $0x4c] sm:$0xf]
      %v6405 = vld [vmem:[%s3 + $0x50] sm:$0xf]
      %v6406 = vld [vmem:[%s3 + $0x54] sm:$0xf]
      %v6407 = vld [vmem:[%s3 + $0x58] sm:$0xf]
      %v6408 = vld [vmem:[%s3 + $0x5c] sm:$0xf]
      %v6409 = vld [vmem:[%s3 + $0x60] sm:$0xf]
      %v6410 = vld [vmem:[%s3 + $0x64] sm:$0xf]
      %v6411 = vld [vmem:[%s3 + $0x68] sm:$0xf]
      %v6412 = vld [vmem:[%s3 + $0x6c] sm:$0xf]
      %v6413 = vld [vmem:[%s3 + $0x70] sm:$0xf]
      %v6414 = vld [vmem:[%s3 + $0x74] sm:$0xf]
      %v6415 = vld [vmem:[%s3 + $0x78] sm:$0xf]
      %v6416 = vld [vmem:[%s3 + $0x7c] sm:$0xf]
      %v6417 = vld [vmem:[%s3 + $0x80] sm:$0xf]
      %v6418 = vld [vmem:[%s3 + $0x84] sm:$0xf]
      %v6419 = vld [vmem:[%s3 + $0x88] sm:$0xf]
      %v6420 = vld [vmem:[%s3 + $0x8c] sm:$0xf]
      %v6421 = vld [vmem:[%s3 + $0x90] sm:$0xf]
      %v6422 = vld [vmem:[%s3 + $0x94] sm:$0xf]
      %v6423 = vld [vmem:[%s3 + $0x98] sm:$0xf]
      %v6424 = vld [vmem:[%s3 + $0x9c] sm:$0xf]
      %v6425 = vld [vmem:[%s3 + $0xa0] sm:$0xf]
      %v6426 = vld [vmem:[%s3 + $0xa4] sm:$0xf]
      %v6427 = vld [vmem:[%s3 + $0xa8] sm:$0xf]
      %v6428 = vld [vmem:[%s3 + $0xac] sm:$0xf]
      %v6429 = vld [vmem:[%s3 + $0xb0] sm:$0xf]
      %v6430 = vld [vmem:[%s3 + $0xb4] sm:$0xf]
      %v6431 = vld [vmem:[%s3 + $0xb8] sm:$0xf]
      %v6432 = vld [vmem:[%s3 + $0xbc] sm:$0xf]
      %v6433 = vld [vmem:[%s700] sm:$0xf]
      %v6434 = vld [vmem:[%s700 + $0x4] sm:$0xf]
      %v6435 = vld [vmem:[%s700 + $0xc] sm:$0xf]
      %v6436 = vld [vmem:[%s700 + $0x10] sm:$0xf]
      %v6437 = vld [vmem:[%s700 + $0x18] sm:$0xf]
      %v6438 = vld [vmem:[%s700 + $0x1c] sm:$0xf]
      %v6439 = vld [vmem:[%s700 + $0x24] sm:$0xf]
      %v6440 = vld [vmem:[%s700 + $0x28] sm:$0xf]
      %v6441 = vld [vmem:[%s700 + $0x30] sm:$0xf]
      %v6442 = vld [vmem:[%s700 + $0x34] sm:$0xf]
      %v6443 = vld [vmem:[%s700 + $0x3c] sm:$0xf]
      %v6444 = vld [vmem:[%s700 + $0x40] sm:$0xf]
      %v6445 = vld [vmem:[%s700 + $0x48] sm:$0xf]
      %v6446 = vld [vmem:[%s700 + $0x4c] sm:$0xf]
      %v6447 = vld [vmem:[%s700 + $0x54] sm:$0xf]
      %v6448 = vld [vmem:[%s700 + $0x58] sm:$0xf]
      %v6449 = vld [vmem:[%s700 + $0x60] sm:$0xf]
      %v6450 = vld [vmem:[%s700 + $0x64] sm:$0xf]
      %v6451 = vld [vmem:[%s700 + $0x6c] sm:$0xf]
      %v6452 = vld [vmem:[%s700 + $0x70] sm:$0xf]
      %v6453 = vld [vmem:[%s700 + $0x78] sm:$0xf]
      %v6454 = vld [vmem:[%s700 + $0x7c] sm:$0xf]
      %v6455 = vld [vmem:[%s700 + $0x84] sm:$0xf]
      %v6456 = vld [vmem:[%s700 + $0x88] sm:$0xf]
      %v6457 = vld [vmem:[%s700 + $0x90] sm:$0xf]
      %v6458 = vld [vmem:[%s700 + $0x94] sm:$0xf]
      %v6459 = vld [vmem:[%s700 + $0x9c] sm:$0xf]
      %v6460 = vld [vmem:[%s700 + $0xa0] sm:$0xf]
      %v6461 = vld [vmem:[%s700 + $0xa8] sm:$0xf]
      %v6462 = vld [vmem:[%s700 + $0xac] sm:$0xf]
      %v6463 = vld [vmem:[%s700 + $0xb4] sm:$0xf]
      %v6464 = vld [vmem:[%s700 + $0xb8] sm:$0xf]
      %v6497 = vunpack.c.l.b16 %v6433
      %v6498 = vunpack.c.l.b16 %v6434
      %v6499 = vunpack.c.l.b16 %v6435
      %v6500 = vunpack.c.l.b16 %v6436
      %v6501 = vunpack.c.l.b16 %v6437
      %v6502 = vunpack.c.l.b16 %v6438
      %v6503 = vunpack.c.l.b16 %v6439
      %v6504 = vunpack.c.l.b16 %v6440
      %v6505 = vunpack.c.l.b16 %v6441
      %v6506 = vunpack.c.l.b16 %v6442
      %v6507 = vunpack.c.l.b16 %v6443
      %v6508 = vunpack.c.l.b16 %v6444
      %v6509 = vunpack.c.l.b16 %v6445
      %v6510 = vunpack.c.l.b16 %v6446
      %v6511 = vunpack.c.l.b16 %v6447
      %v6512 = vunpack.c.l.b16 %v6448
      %v6513 = vunpack.c.l.b16 %v6449
      %v6514 = vunpack.c.l.b16 %v6450
      %v6515 = vunpack.c.l.b16 %v6451
      %v6516 = vunpack.c.l.b16 %v6452
      %v6517 = vunpack.c.l.b16 %v6453
      %v6518 = vunpack.c.l.b16 %v6454
      %v6519 = vunpack.c.l.b16 %v6455
      %v6520 = vunpack.c.l.b16 %v6456
      %v6521 = vunpack.c.l.b16 %v6457
      %v6522 = vunpack.c.l.b16 %v6458
      %v6523 = vunpack.c.l.b16 %v6459
      %v6524 = vunpack.c.l.b16 %v6460
      %v6525 = vunpack.c.l.b16 %v6461
      %v6526 = vunpack.c.l.b16 %v6462
      %v6527 = vunpack.c.l.b16 %v6463
      %v6528 = vunpack.c.l.b16 %v6464
      %v6529 = vpack.c.b16 %v6498, %v6497
      %v6530 = vpack.c.b16 %v6500, %v6499
      %v6531 = vpack.c.b16 %v6502, %v6501
      %v6532 = vpack.c.b16 %v6504, %v6503
      %v6533 = vpack.c.b16 %v6506, %v6505
      %v6534 = vpack.c.b16 %v6508, %v6507
      %v6535 = vpack.c.b16 %v6510, %v6509
      %v6536 = vpack.c.b16 %v6512, %v6511
      %v6537 = vpack.c.b16 %v6514, %v6513
      %v6538 = vpack.c.b16 %v6516, %v6515
      %v6539 = vpack.c.b16 %v6518, %v6517
      %v6540 = vpack.c.b16 %v6520, %v6519
      %v6541 = vpack.c.b16 %v6522, %v6521
      %v6542 = vpack.c.b16 %v6524, %v6523
      %v6543 = vpack.c.b16 %v6526, %v6525
      %v6544 = vpack.c.b16 %v6528, %v6527
      %6561 = vst [vmem:[#allocation3] sm:$0xff] %v6529
      %6562 = vst [vmem:[#allocation3 + $0x18] sm:$0xff] %v6530
      %6563 = vst [vmem:[#allocation3 + $0x30] sm:$0xff] %v6531
      %6564 = vst [vmem:[#allocation3 + $0x48] sm:$0xff] %v6532
      %6565 = vst [vmem:[#allocation3 + $0x60] sm:$0xff] %v6533
      %6566 = vst [vmem:[#allocation3 + $0x78] sm:$0xff] %v6534
      %6567 = vst [vmem:[#allocation3 + $0x90] sm:$0xff] %v6535
      %6568 = vst [vmem:[#allocation3 + $0xa8] sm:$0xff] %v6536
      %6569 = vst [vmem:[#allocation3 + $0xc0] sm:$0xff] %v6537
      %6570 = vst [vmem:[#allocation3 + $0xd8] sm:$0xff] %v6538
      %6571 = vst [vmem:[#allocation3 + $0xf0] sm:$0xff] %v6539
      %6572 = vst [vmem:[#allocation3 + $0x108] sm:$0xff] %v6540
      %6573 = vst [vmem:[#allocation3 + $0x120] sm:$0xff] %v6541
      %6574 = vst [vmem:[#allocation3 + $0x138] sm:$0xff] %v6542
      %6575 = vst [vmem:[#allocation3 + $0x150] sm:$0xff] %v6543
      %6576 = vst [vmem:[#allocation3 + $0x168] sm:$0xff] %v6544
      %v6577 = vld [vmem:[%s700] sm:$0xf]
      %v6578 = vld [vmem:[%s700 + $0x4] sm:$0xf]
      %v6579 = vld [vmem:[%s700 + $0x8] sm:$0x1]
      %v6580 = vld [vmem:[%s700 + $0xc] sm:$0xf]
      %v6581 = vld [vmem:[%s700 + $0x10] sm:$0xf]
      %v6582 = vld [vmem:[%s700 + $0x14] sm:$0x1]
      %v6583 = vld [vmem:[%s700 + $0x18] sm:$0xf]
      %v6584 = vld [vmem:[%s700 + $0x1c] sm:$0xf]
      %v6585 = vld [vmem:[%s700 + $0x20] sm:$0x1]
      %v6586 = vld [vmem:[%s700 + $0x24] sm:$0xf]
      %v6587 = vld [vmem:[%s700 + $0x28] sm:$0xf]
      %v6588 = vld [vmem:[%s700 + $0x2c] sm:$0x1]
      %v6589 = vld [vmem:[%s700 + $0x30] sm:$0xf]
      %v6590 = vld [vmem:[%s700 + $0x34] sm:$0xf]
      %v6591 = vld [vmem:[%s700 + $0x38] sm:$0x1]
      %v6592 = vld [vmem:[%s700 + $0x3c] sm:$0xf]
      %v6593 = vld [vmem:[%s700 + $0x40] sm:$0xf]
      %v6594 = vld [vmem:[%s700 + $0x44] sm:$0x1]
      %v6595 = vld [vmem:[%s700 + $0x48] sm:$0xf]
      %v6596 = vld [vmem:[%s700 + $0x4c] sm:$0xf]
      %v6597 = vld [vmem:[%s700 + $0x50] sm:$0x1]
      %v6598 = vld [vmem:[%s700 + $0x54] sm:$0xf]
      %v6599 = vld [vmem:[%s700 + $0x58] sm:$0xf]
      %v6600 = vld [vmem:[%s700 + $0x5c] sm:$0x1]
      %v6601 = vld [vmem:[%s700 + $0x60] sm:$0xf]
      %v6602 = vld [vmem:[%s700 + $0x64] sm:$0xf]
      %v6603 = vld [vmem:[%s700 + $0x68] sm:$0x1]
      %v6604 = vld [vmem:[%s700 + $0x6c] sm:$0xf]
      %v6605 = vld [vmem:[%s700 + $0x70] sm:$0xf]
      %v6606 = vld [vmem:[%s700 + $0x74] sm:$0x1]
      %v6607 = vld [vmem:[%s700 + $0x78] sm:$0xf]
      %v6608 = vld [vmem:[%s700 + $0x7c] sm:$0xf]
      %v6609 = vld [vmem:[%s700 + $0x80] sm:$0x1]
      %v6610 = vld [vmem:[%s700 + $0x84] sm:$0xf]
      %v6611 = vld [vmem:[%s700 + $0x88] sm:$0xf]
      %v6612 = vld [vmem:[%s700 + $0x8c] sm:$0x1]
      %v6613 = vld [vmem:[%s700 + $0x90] sm:$0xf]
      %v6614 = vld [vmem:[%s700 + $0x94] sm:$0xf]
      %v6615 = vld [vmem:[%s700 + $0x98] sm:$0x1]
      %v6616 = vld [vmem:[%s700 + $0x9c] sm:$0xf]
      %v6617 = vld [vmem:[%s700 + $0xa0] sm:$0xf]
      %v6618 = vld [vmem:[%s700 + $0xa4] sm:$0x1]
      %v6619 = vld [vmem:[%s700 + $0xa8] sm:$0xf]
      %v6620 = vld [vmem:[%s700 + $0xac] sm:$0xf]
      %v6621 = vld [vmem:[%s700 + $0xb0] sm:$0x1]
      %v6622 = vld [vmem:[%s700 + $0xb4] sm:$0xf]
      %v6623 = vld [vmem:[%s700 + $0xb8] sm:$0xf]
      %v6624 = vld [vmem:[%s700 + $0xbc] sm:$0x1]
      %v6673 = vunpack.c.l.b16 %v6577
      %v6674 = vunpack.c.l.b16 %v6578
      %v6675 = vunpack.c.l.b16 %v6579
      %v6676 = vunpack.c.l.b16 %v6580
      %v6677 = vunpack.c.l.b16 %v6581
      %v6678 = vunpack.c.l.b16 %v6582
      %v6679 = vunpack.c.l.b16 %v6583
      %v6680 = vunpack.c.l.b16 %v6584
      %v6681 = vunpack.c.l.b16 %v6585
      %v6682 = vunpack.c.l.b16 %v6586
      %v6683 = vunpack.c.l.b16 %v6587
      %v6684 = vunpack.c.l.b16 %v6588
      %v6685 = vunpack.c.l.b16 %v6589
      %v6686 = vunpack.c.l.b16 %v6590
      %v6687 = vunpack.c.l.b16 %v6591
      %v6688 = vunpack.c.l.b16 %v6592
      %v6689 = vunpack.c.l.b16 %v6593
      %v6690 = vunpack.c.l.b16 %v6594
      %v6691 = vunpack.c.l.b16 %v6595
      %v6692 = vunpack.c.l.b16 %v6596
      %v6693 = vunpack.c.l.b16 %v6597
      %v6694 = vunpack.c.l.b16 %v6598
      %v6695 = vunpack.c.l.b16 %v6599
      %v6696 = vunpack.c.l.b16 %v6600
      %v6697 = vunpack.c.l.b16 %v6601
      %v6698 = vunpack.c.l.b16 %v6602
      %v6699 = vunpack.c.l.b16 %v6603
      %v6700 = vunpack.c.l.b16 %v6604
      %v6701 = vunpack.c.l.b16 %v6605
      %v6702 = vunpack.c.l.b16 %v6606
      %v6703 = vunpack.c.l.b16 %v6607
      %v6704 = vunpack.c.l.b16 %v6608
      %v6705 = vunpack.c.l.b16 %v6609
      %v6706 = vunpack.c.l.b16 %v6610
      %v6707 = vunpack.c.l.b16 %v6611
      %v6708 = vunpack.c.l.b16 %v6612
      %v6709 = vunpack.c.l.b16 %v6613
      %v6710 = vunpack.c.l.b16 %v6614
      %v6711 = vunpack.c.l.b16 %v6615
      %v6712 = vunpack.c.l.b16 %v6616
      %v6713 = vunpack.c.l.b16 %v6617
      %v6714 = vunpack.c.l.b16 %v6618
      %v6715 = vunpack.c.l.b16 %v6619
      %v6716 = vunpack.c.l.b16 %v6620
      %v6717 = vunpack.c.l.b16 %v6621
      %v6718 = vunpack.c.l.b16 %v6622
      %v6719 = vunpack.c.l.b16 %v6623
      %v6720 = vunpack.c.l.b16 %v6624
      %v6721 = vpack.c.b16 %v6674, %v6673
      %v6722 = vpack.c.b16 %v6675, %v6675
      %v6723 = vpack.c.b16 %v6677, %v6676
      %v6724 = vpack.c.b16 %v6678, %v6678
      %v6725 = vpack.c.b16 %v6680, %v6679
      %v6726 = vpack.c.b16 %v6681, %v6681
      %v6727 = vpack.c.b16 %v6683, %v6682
      %v6728 = vpack.c.b16 %v6684, %v6684
      %v6729 = vpack.c.b16 %v6686, %v6685
      %v6730 = vpack.c.b16 %v6687, %v6687
      %v6731 = vpack.c.b16 %v6689, %v6688
      %v6732 = vpack.c.b16 %v6690, %v6690
      %v6733 = vpack.c.b16 %v6692, %v6691
      %v6734 = vpack.c.b16 %v6693, %v6693
      %v6735 = vpack.c.b16 %v6695, %v6694
      %v6736 = vpack.c.b16 %v6696, %v6696
      %v6737 = vpack.c.b16 %v6698, %v6697
      %v6738 = vpack.c.b16 %v6699, %v6699
      %v6739 = vpack.c.b16 %v6701, %v6700
      %v6740 = vpack.c.b16 %v6702, %v6702
      %v6741 = vpack.c.b16 %v6704, %v6703
      %v6742 = vpack.c.b16 %v6705, %v6705
      %v6743 = vpack.c.b16 %v6707, %v6706
      %v6744 = vpack.c.b16 %v6708, %v6708
      %v6745 = vpack.c.b16 %v6710, %v6709
      %v6746 = vpack.c.b16 %v6711, %v6711
      %v6747 = vpack.c.b16 %v6713, %v6712
      %v6748 = vpack.c.b16 %v6714, %v6714
      %v6749 = vpack.c.b16 %v6716, %v6715
      %v6750 = vpack.c.b16 %v6717, %v6717
      %v6751 = vpack.c.b16 %v6719, %v6718
      %v6752 = vpack.c.b16 %v6720, %v6720
      %v6754 = vshrl.u32 %v6721, 16
      %v6756 = vshll.u32 %v6721, 16
      %v6758 = vrot.slane %v6756, 1
      %v6759 = vor.u32 %v6754, %v6758
      %v6761 = vshll.u32 %v6722, 16
      %v6763 = vrot.slane %v6761, 1
      %v6764 = vsel %vm1135, %v6759, %v6763
      %v6766 = vshrl.u32 %v6723, 16
      %v6768 = vshll.u32 %v6723, 16
      %v6770 = vrot.slane %v6768, 1
      %v6771 = vor.u32 %v6766, %v6770
      %v6773 = vshll.u32 %v6724, 16
      %v6775 = vrot.slane %v6773, 1
      %v6776 = vsel %vm1135, %v6771, %v6775
      %v6778 = vshrl.u32 %v6725, 16
      %v6780 = vshll.u32 %v6725, 16
      %v6782 = vrot.slane %v6780, 1
      %v6783 = vor.u32 %v6778, %v6782
      %v6785 = vshll.u32 %v6726, 16
      %v6787 = vrot.slane %v6785, 1
      %v6788 = vsel %vm1135, %v6783, %v6787
      %v6790 = vshrl.u32 %v6727, 16
      %v6792 = vshll.u32 %v6727, 16
      %v6794 = vrot.slane %v6792, 1
      %v6795 = vor.u32 %v6790, %v6794
      %v6797 = vshll.u32 %v6728, 16
      %v6799 = vrot.slane %v6797, 1
      %v6800 = vsel %vm1135, %v6795, %v6799
      %v6802 = vshrl.u32 %v6729, 16
      %v6804 = vshll.u32 %v6729, 16
      %v6806 = vrot.slane %v6804, 1
      %v6807 = vor.u32 %v6802, %v6806
      %v6809 = vshll.u32 %v6730, 16
      %v6811 = vrot.slane %v6809, 1
      %v6812 = vsel %vm1135, %v6807, %v6811
      %v6814 = vshrl.u32 %v6731, 16
      %v6816 = vshll.u32 %v6731, 16
      %v6818 = vrot.slane %v6816, 1
      %v6819 = vor.u32 %v6814, %v6818
      %v6821 = vshll.u32 %v6732, 16
      %v6823 = vrot.slane %v6821, 1
      %v6824 = vsel %vm1135, %v6819, %v6823
      %v6826 = vshrl.u32 %v6733, 16
      %v6828 = vshll.u32 %v6733, 16
      %v6830 = vrot.slane %v6828, 1
      %v6831 = vor.u32 %v6826, %v6830
      %v6833 = vshll.u32 %v6734, 16
      %v6835 = vrot.slane %v6833, 1
      %v6836 = vsel %vm1135, %v6831, %v6835
      %v6838 = vshrl.u32 %v6735, 16
      %v6840 = vshll.u32 %v6735, 16
      %v6842 = vrot.slane %v6840, 1
      %v6843 = vor.u32 %v6838, %v6842
      %v6845 = vshll.u32 %v6736, 16
      %v6847 = vrot.slane %v6845, 1
      %v6848 = vsel %vm1135, %v6843, %v6847
      %v6850 = vshrl.u32 %v6737, 16
      %v6852 = vshll.u32 %v6737, 16
      %v6854 = vrot.slane %v6852, 1
      %v6855 = vor.u32 %v6850, %v6854
      %v6857 = vshll.u32 %v6738, 16
      %v6859 = vrot.slane %v6857, 1
      %v6860 = vsel %vm1135, %v6855, %v6859
      %v6862 = vshrl.u32 %v6739, 16
      %v6864 = vshll.u32 %v6739, 16
      %v6866 = vrot.slane %v6864, 1
      %v6867 = vor.u32 %v6862, %v6866
      %v6869 = vshll.u32 %v6740, 16
      %v6871 = vrot.slane %v6869, 1
      %v6872 = vsel %vm1135, %v6867, %v6871
      %v6874 = vshrl.u32 %v6741, 16
      %v6876 = vshll.u32 %v6741, 16
      %v6878 = vrot.slane %v6876, 1
      %v6879 = vor.u32 %v6874, %v6878
      %v6881 = vshll.u32 %v6742, 16
      %v6883 = vrot.slane %v6881, 1
      %v6884 = vsel %vm1135, %v6879, %v6883
      %v6886 = vshrl.u32 %v6743, 16
      %v6888 = vshll.u32 %v6743, 16
      %v6890 = vrot.slane %v6888, 1
      %v6891 = vor.u32 %v6886, %v6890
      %v6893 = vshll.u32 %v6744, 16
      %v6895 = vrot.slane %v6893, 1
      %v6896 = vsel %vm1135, %v6891, %v6895
      %v6898 = vshrl.u32 %v6745, 16
      %v6900 = vshll.u32 %v6745, 16
      %v6902 = vrot.slane %v6900, 1
      %v6903 = vor.u32 %v6898, %v6902
      %v6905 = vshll.u32 %v6746, 16
      %v6907 = vrot.slane %v6905, 1
      %v6908 = vsel %vm1135, %v6903, %v6907
      %v6910 = vshrl.u32 %v6747, 16
      %v6912 = vshll.u32 %v6747, 16
      %v6914 = vrot.slane %v6912, 1
      %v6915 = vor.u32 %v6910, %v6914
      %v6917 = vshll.u32 %v6748, 16
      %v6919 = vrot.slane %v6917, 1
      %v6920 = vsel %vm1135, %v6915, %v6919
      %v6922 = vshrl.u32 %v6749, 16
      %v6924 = vshll.u32 %v6749, 16
      %v6926 = vrot.slane %v6924, 1
      %v6927 = vor.u32 %v6922, %v6926
      %v6929 = vshll.u32 %v6750, 16
      %v6931 = vrot.slane %v6929, 1
      %v6932 = vsel %vm1135, %v6927, %v6931
      %v6934 = vshrl.u32 %v6751, 16
      %v6936 = vshll.u32 %v6751, 16
      %v6938 = vrot.slane %v6936, 1
      %v6939 = vor.u32 %v6934, %v6938
      %v6941 = vshll.u32 %v6752, 16
      %v6943 = vrot.slane %v6941, 1
      %v6944 = vsel %vm1135, %v6939, %v6943
      %6961 = vst [vmem:[#allocation3 + $0x8] sm:$0xff] %v6764
      %6962 = vst [vmem:[#allocation3 + $0x20] sm:$0xff] %v6776
      %6963 = vst [vmem:[#allocation3 + $0x38] sm:$0xff] %v6788
      %6964 = vst [vmem:[#allocation3 + $0x50] sm:$0xff] %v6800
      %6965 = vst [vmem:[#allocation3 + $0x68] sm:$0xff] %v6812
      %6966 = vst [vmem:[#allocation3 + $0x80] sm:$0xff] %v6824
      %6967 = vst [vmem:[#allocation3 + $0x98] sm:$0xff] %v6836
      %6968 = vst [vmem:[#allocation3 + $0xb0] sm:$0xff] %v6848
      %6969 = vst [vmem:[#allocation3 + $0xc8] sm:$0xff] %v6860
      %6970 = vst [vmem:[#allocation3 + $0xe0] sm:$0xff] %v6872
      %6971 = vst [vmem:[#allocation3 + $0xf8] sm:$0xff] %v6884
      %6972 = vst [vmem:[#allocation3 + $0x110] sm:$0xff] %v6896
      %6973 = vst [vmem:[#allocation3 + $0x128] sm:$0xff] %v6908
      %6974 = vst [vmem:[#allocation3 + $0x140] sm:$0xff] %v6920
      %6975 = vst [vmem:[#allocation3 + $0x158] sm:$0xff] %v6932
      %6976 = vst [vmem:[#allocation3 + $0x170] sm:$0xff] %v6944
      %v6977 = vld [vmem:[%s700] sm:$0xe]
      %v6978 = vld [vmem:[%s700 + $0x4] sm:$0xf]
      %v6979 = vld [vmem:[%s700 + $0x8] sm:$0x1]
      %v6980 = vld [vmem:[%s700 + $0xc] sm:$0xe]
      %v6981 = vld [vmem:[%s700 + $0x10] sm:$0xf]
      %v6982 = vld [vmem:[%s700 + $0x14] sm:$0x1]
      %v6983 = vld [vmem:[%s700 + $0x18] sm:$0xe]
      %v6984 = vld [vmem:[%s700 + $0x1c] sm:$0xf]
      %v6985 = vld [vmem:[%s700 + $0x20] sm:$0x1]
      %v6986 = vld [vmem:[%s700 + $0x24] sm:$0xe]
      %v6987 = vld [vmem:[%s700 + $0x28] sm:$0xf]
      %v6988 = vld [vmem:[%s700 + $0x2c] sm:$0x1]
      %v6989 = vld [vmem:[%s700 + $0x30] sm:$0xe]
      %v6990 = vld [vmem:[%s700 + $0x34] sm:$0xf]
      %v6991 = vld [vmem:[%s700 + $0x38] sm:$0x1]
      %v6992 = vld [vmem:[%s700 + $0x3c] sm:$0xe]
      %v6993 = vld [vmem:[%s700 + $0x40] sm:$0xf]
      %v6994 = vld [vmem:[%s700 + $0x44] sm:$0x1]
      %v6995 = vld [vmem:[%s700 + $0x48] sm:$0xe]
      %v6996 = vld [vmem:[%s700 + $0x4c] sm:$0xf]
      %v6997 = vld [vmem:[%s700 + $0x50] sm:$0x1]
      %v6998 = vld [vmem:[%s700 + $0x54] sm:$0xe]
      %v6999 = vld [vmem:[%s700 + $0x58] sm:$0xf]
      %v7000 = vld [vmem:[%s700 + $0x5c] sm:$0x1]
      %v7001 = vld [vmem:[%s700 + $0x60] sm:$0xe]
      %v7002 = vld [vmem:[%s700 + $0x64] sm:$0xf]
      %v7003 = vld [vmem:[%s700 + $0x68] sm:$0x1]
      %v7004 = vld [vmem:[%s700 + $0x6c] sm:$0xe]
      %v7005 = vld [vmem:[%s700 + $0x70] sm:$0xf]
      %v7006 = vld [vmem:[%s700 + $0x74] sm:$0x1]
      %v7007 = vld [vmem:[%s700 + $0x78] sm:$0xe]
      %v7008 = vld [vmem:[%s700 + $0x7c] sm:$0xf]
      %v7009 = vld [vmem:[%s700 + $0x80] sm:$0x1]
      %v7010 = vld [vmem:[%s700 + $0x84] sm:$0xe]
      %v7011 = vld [vmem:[%s700 + $0x88] sm:$0xf]
      %v7012 = vld [vmem:[%s700 + $0x8c] sm:$0x1]
      %v7013 = vld [vmem:[%s700 + $0x90] sm:$0xe]
      %v7014 = vld [vmem:[%s700 + $0x94] sm:$0xf]
      %v7015 = vld [vmem:[%s700 + $0x98] sm:$0x1]
      %v7016 = vld [vmem:[%s700 + $0x9c] sm:$0xe]
      %v7017 = vld [vmem:[%s700 + $0xa0] sm:$0xf]
      %v7018 = vld [vmem:[%s700 + $0xa4] sm:$0x1]
      %v7019 = vld [vmem:[%s700 + $0xa8] sm:$0xe]
      %v7020 = vld [vmem:[%s700 + $0xac] sm:$0xf]
      %v7021 = vld [vmem:[%s700 + $0xb0] sm:$0x1]
      %v7022 = vld [vmem:[%s700 + $0xb4] sm:$0xe]
      %v7023 = vld [vmem:[%s700 + $0xb8] sm:$0xf]
      %v7024 = vld [vmem:[%s700 + $0xbc] sm:$0x1]
      %v7073 = vunpack.c.l.b16 %v6977
      %v7074 = vunpack.c.l.b16 %v6978
      %v7075 = vunpack.c.l.b16 %v6979
      %v7076 = vunpack.c.l.b16 %v6980
      %v7077 = vunpack.c.l.b16 %v6981
      %v7078 = vunpack.c.l.b16 %v6982
      %v7079 = vunpack.c.l.b16 %v6983
      %v7080 = vunpack.c.l.b16 %v6984
      %v7081 = vunpack.c.l.b16 %v6985
      %v7082 = vunpack.c.l.b16 %v6986
      %v7083 = vunpack.c.l.b16 %v6987
      %v7084 = vunpack.c.l.b16 %v6988
      %v7085 = vunpack.c.l.b16 %v6989
      %v7086 = vunpack.c.l.b16 %v6990
      %v7087 = vunpack.c.l.b16 %v6991
      %v7088 = vunpack.c.l.b16 %v6992
      %v7089 = vunpack.c.l.b16 %v6993
      %v7090 = vunpack.c.l.b16 %v6994
      %v7091 = vunpack.c.l.b16 %v6995
      %v7092 = vunpack.c.l.b16 %v6996
      %v7093 = vunpack.c.l.b16 %v6997
      %v7094 = vunpack.c.l.b16 %v6998
      %v7095 = vunpack.c.l.b16 %v6999
      %v7096 = vunpack.c.l.b16 %v7000
      %v7097 = vunpack.c.l.b16 %v7001
      %v7098 = vunpack.c.l.b16 %v7002
      %v7099 = vunpack.c.l.b16 %v7003
      %v7100 = vunpack.c.l.b16 %v7004
      %v7101 = vunpack.c.l.b16 %v7005
      %v7102 = vunpack.c.l.b16 %v7006
      %v7103 = vunpack.c.l.b16 %v7007
      %v7104 = vunpack.c.l.b16 %v7008
      %v7105 = vunpack.c.l.b16 %v7009
      %v7106 = vunpack.c.l.b16 %v7010
      %v7107 = vunpack.c.l.b16 %v7011
      %v7108 = vunpack.c.l.b16 %v7012
      %v7109 = vunpack.c.l.b16 %v7013
      %v7110 = vunpack.c.l.b16 %v7014
      %v7111 = vunpack.c.l.b16 %v7015
      %v7112 = vunpack.c.l.b16 %v7016
      %v7113 = vunpack.c.l.b16 %v7017
      %v7114 = vunpack.c.l.b16 %v7018
      %v7115 = vunpack.c.l.b16 %v7019
      %v7116 = vunpack.c.l.b16 %v7020
      %v7117 = vunpack.c.l.b16 %v7021
      %v7118 = vunpack.c.l.b16 %v7022
      %v7119 = vunpack.c.l.b16 %v7023
      %v7120 = vunpack.c.l.b16 %v7024
      %v7121 = vpack.c.b16 %v7074, %v7073
      %v7122 = vpack.c.b16 %v7075, %v7075
      %v7123 = vpack.c.b16 %v7077, %v7076
      %v7124 = vpack.c.b16 %v7078, %v7078
      %v7125 = vpack.c.b16 %v7080, %v7079
      %v7126 = vpack.c.b16 %v7081, %v7081
      %v7127 = vpack.c.b16 %v7083, %v7082
      %v7128 = vpack.c.b16 %v7084, %v7084
      %v7129 = vpack.c.b16 %v7086, %v7085
      %v7130 = vpack.c.b16 %v7087, %v7087
      %v7131 = vpack.c.b16 %v7089, %v7088
      %v7132 = vpack.c.b16 %v7090, %v7090
      %v7133 = vpack.c.b16 %v7092, %v7091
      %v7134 = vpack.c.b16 %v7093, %v7093
      %v7135 = vpack.c.b16 %v7095, %v7094
      %v7136 = vpack.c.b16 %v7096, %v7096
      %v7137 = vpack.c.b16 %v7098, %v7097
      %v7138 = vpack.c.b16 %v7099, %v7099
      %v7139 = vpack.c.b16 %v7101, %v7100
      %v7140 = vpack.c.b16 %v7102, %v7102
      %v7141 = vpack.c.b16 %v7104, %v7103
      %v7142 = vpack.c.b16 %v7105, %v7105
      %v7143 = vpack.c.b16 %v7107, %v7106
      %v7144 = vpack.c.b16 %v7108, %v7108
      %v7145 = vpack.c.b16 %v7110, %v7109
      %v7146 = vpack.c.b16 %v7111, %v7111
      %v7147 = vpack.c.b16 %v7113, %v7112
      %v7148 = vpack.c.b16 %v7114, %v7114
      %v7149 = vpack.c.b16 %v7116, %v7115
      %v7150 = vpack.c.b16 %v7117, %v7117
      %v7151 = vpack.c.b16 %v7119, %v7118
      %v7152 = vpack.c.b16 %v7120, %v7120
      %v7153 = vrot.slane %v7121, 1
      %v7154 = vrot.slane %v7122, 1
      %v7155 = vsel %vm1536, %v7153, %v7154
      %v7156 = vrot.slane %v7123, 1
      %v7157 = vrot.slane %v7124, 1
      %v7158 = vsel %vm1536, %v7156, %v7157
      %v7159 = vrot.slane %v7125, 1
      %v7160 = vrot.slane %v7126, 1
      %v7161 = vsel %vm1536, %v7159, %v7160
      %v7162 = vrot.slane %v7127, 1
      %v7163 = vrot.slane %v7128, 1
      %v7164 = vsel %vm1536, %v7162, %v7163
      %v7165 = vrot.slane %v7129, 1
      %v7166 = vrot.slane %v7130, 1
      %v7167 = vsel %vm1536, %v7165, %v7166
      %v7168 = vrot.slane %v7131, 1
      %v7169 = vrot.slane %v7132, 1
      %v7170 = vsel %vm1536, %v7168, %v7169
      %v7171 = vrot.slane %v7133, 1
      %v7172 = vrot.slane %v7134, 1
      %v7173 = vsel %vm1536, %v7171, %v7172
      %v7174 = vrot.slane %v7135, 1
      %v7175 = vrot.slane %v7136, 1
      %v7176 = vsel %vm1536, %v7174, %v7175
      %v7177 = vrot.slane %v7137, 1
      %v7178 = vrot.slane %v7138, 1
      %v7179 = vsel %vm1536, %v7177, %v7178
      %v7180 = vrot.slane %v7139, 1
      %v7181 = vrot.slane %v7140, 1
      %v7182 = vsel %vm1536, %v7180, %v7181
      %v7183 = vrot.slane %v7141, 1
      %v7184 = vrot.slane %v7142, 1
      %v7185 = vsel %vm1536, %v7183, %v7184
      %v7186 = vrot.slane %v7143, 1
      %v7187 = vrot.slane %v7144, 1
      %v7188 = vsel %vm1536, %v7186, %v7187
      %v7189 = vrot.slane %v7145, 1
      %v7190 = vrot.slane %v7146, 1
      %v7191 = vsel %vm1536, %v7189, %v7190
      %v7192 = vrot.slane %v7147, 1
      %v7193 = vrot.slane %v7148, 1
      %v7194 = vsel %vm1536, %v7192, %v7193
      %v7195 = vrot.slane %v7149, 1
      %v7196 = vrot.slane %v7150, 1
      %v7197 = vsel %vm1536, %v7195, %v7196
      %v7198 = vrot.slane %v7151, 1
      %v7199 = vrot.slane %v7152, 1
      %v7200 = vsel %vm1536, %v7198, %v7199
      %7217 = vst [vmem:[#allocation3 + $0x10] sm:$0xff] %v7155
      %7218 = vst [vmem:[#allocation3 + $0x28] sm:$0xff] %v7158
      %7219 = vst [vmem:[#allocation3 + $0x40] sm:$0xff] %v7161
      %7220 = vst [vmem:[#allocation3 + $0x58] sm:$0xff] %v7164
      %7221 = vst [vmem:[#allocation3 + $0x70] sm:$0xff] %v7167
      %7222 = vst [vmem:[#allocation3 + $0x88] sm:$0xff] %v7170
      %7223 = vst [vmem:[#allocation3 + $0xa0] sm:$0xff] %v7173
      %7224 = vst [vmem:[#allocation3 + $0xb8] sm:$0xff] %v7176
      %7225 = vst [vmem:[#allocation3 + $0xd0] sm:$0xff] %v7179
      %7226 = vst [vmem:[#allocation3 + $0xe8] sm:$0xff] %v7182
      %7227 = vst [vmem:[#allocation3 + $0x100] sm:$0xff] %v7185
      %7228 = vst [vmem:[#allocation3 + $0x118] sm:$0xff] %v7188
      %7229 = vst [vmem:[#allocation3 + $0x130] sm:$0xff] %v7191
      %7230 = vst [vmem:[#allocation3 + $0x148] sm:$0xff] %v7194
      %7231 = vst [vmem:[#allocation3 + $0x160] sm:$0xff] %v7197
      %7232 = vst [vmem:[#allocation3 + $0x178] sm:$0xff] %v7200
      %v7233 = vld [vmem:[#allocation3] sm:$0xff]
      %v7234 = vld [vmem:[#allocation3 + $0x8] sm:$0xff]
      %v7235 = vld [vmem:[#allocation3 + $0x10] sm:$0xff]
      %v7236 = vld [vmem:[#allocation3 + $0x18] sm:$0xff]
      %v7237 = vld [vmem:[#allocation3 + $0x20] sm:$0xff]
      %v7238 = vld [vmem:[#allocation3 + $0x28] sm:$0xff]
      %v7239 = vld [vmem:[#allocation3 + $0x30] sm:$0xff]
      %v7240 = vld [vmem:[#allocation3 + $0x38] sm:$0xff]
      %v7241 = vld [vmem:[#allocation3 + $0x40] sm:$0xff]
      %v7242 = vld [vmem:[#allocation3 + $0x48] sm:$0xff]
      %v7243 = vld [vmem:[#allocation3 + $0x50] sm:$0xff]
      %v7244 = vld [vmem:[#allocation3 + $0x58] sm:$0xff]
      %v7245 = vld [vmem:[#allocation3 + $0x60] sm:$0xff]
      %v7246 = vld [vmem:[#allocation3 + $0x68] sm:$0xff]
      %v7247 = vld [vmem:[#allocation3 + $0x70] sm:$0xff]
      %v7248 = vld [vmem:[#allocation3 + $0x78] sm:$0xff]
      %v7249 = vld [vmem:[#allocation3 + $0x80] sm:$0xff]
      %v7250 = vld [vmem:[#allocation3 + $0x88] sm:$0xff]
      %v7251 = vld [vmem:[#allocation3 + $0x90] sm:$0xff]
      %v7252 = vld [vmem:[#allocation3 + $0x98] sm:$0xff]
      %v7253 = vld [vmem:[#allocation3 + $0xa0] sm:$0xff]
      %v7254 = vld [vmem:[#allocation3 + $0xa8] sm:$0xff]
      %v7255 = vld [vmem:[#allocation3 + $0xb0] sm:$0xff]
      %v7256 = vld [vmem:[#allocation3 + $0xb8] sm:$0xff]
      %v7257 = vld [vmem:[#allocation3 + $0xc0] sm:$0xff]
      %v7258 = vld [vmem:[#allocation3 + $0xc8] sm:$0xff]
      %v7259 = vld [vmem:[#allocation3 + $0xd0] sm:$0xff]
      %v7260 = vld [vmem:[#allocation3 + $0xd8] sm:$0xff]
      %v7261 = vld [vmem:[#allocation3 + $0xe0] sm:$0xff]
      %v7262 = vld [vmem:[#allocation3 + $0xe8] sm:$0xff]
      %v7263 = vld [vmem:[#allocation3 + $0xf0] sm:$0xff]
      %v7264 = vld [vmem:[#allocation3 + $0xf8] sm:$0xff]
      %v7265 = vld [vmem:[#allocation3 + $0x100] sm:$0xff]
      %v7266 = vld [vmem:[#allocation3 + $0x108] sm:$0xff]
      %v7267 = vld [vmem:[#allocation3 + $0x110] sm:$0xff]
      %v7268 = vld [vmem:[#allocation3 + $0x118] sm:$0xff]
      %v7269 = vld [vmem:[#allocation3 + $0x120] sm:$0xff]
      %v7270 = vld [vmem:[#allocation3 + $0x128] sm:$0xff]
      %v7271 = vld [vmem:[#allocation3 + $0x130] sm:$0xff]
      %v7272 = vld [vmem:[#allocation3 + $0x138] sm:$0xff]
      %v7273 = vld [vmem:[#allocation3 + $0x140] sm:$0xff]
      %v7274 = vld [vmem:[#allocation3 + $0x148] sm:$0xff]
      %v7275 = vld [vmem:[#allocation3 + $0x150] sm:$0xff]
      %v7276 = vld [vmem:[#allocation3 + $0x158] sm:$0xff]
      %v7277 = vld [vmem:[#allocation3 + $0x160] sm:$0xff]
      %v7278 = vld [vmem:[#allocation3 + $0x168] sm:$0xff]
      %v7279 = vld [vmem:[#allocation3 + $0x170] sm:$0xff]
      %v7280 = vld [vmem:[#allocation3 + $0x178] sm:$0xff]
      %s7281 = scalar_lea.vmem %s3, 192
      %v7282 = vld [vmem:[%s7281] sm:$0xf]
      %v7283 = vld [vmem:[%s7281 + $0x4] sm:$0xf]
      %v7284 = vld [vmem:[%s7281 + $0x8] sm:$0xf]
      %v7285 = vld [vmem:[%s7281 + $0xc] sm:$0xf]
      %v7286 = vld [vmem:[%s7281 + $0x10] sm:$0xf]
      %v7287 = vld [vmem:[%s7281 + $0x14] sm:$0xf]
      %v7288 = vld [vmem:[%s7281 + $0x18] sm:$0xf]
      %v7289 = vld [vmem:[%s7281 + $0x1c] sm:$0xf]
      %v7290 = vld [vmem:[%s7281 + $0x20] sm:$0xf]
      %v7291 = vld [vmem:[%s7281 + $0x24] sm:$0xf]
      %v7292 = vld [vmem:[%s7281 + $0x28] sm:$0xf]
      %v7293 = vld [vmem:[%s7281 + $0x2c] sm:$0xf]
      %v7294 = vld [vmem:[%s7281 + $0x30] sm:$0xf]
      %v7295 = vld [vmem:[%s7281 + $0x34] sm:$0xf]
      %v7296 = vld [vmem:[%s7281 + $0x38] sm:$0xf]
      %v7297 = vld [vmem:[%s7281 + $0x3c] sm:$0xf]
      %v7298 = vld [vmem:[%s7281 + $0x40] sm:$0xf]
      %v7299 = vld [vmem:[%s7281 + $0x44] sm:$0xf]
      %v7300 = vld [vmem:[%s7281 + $0x48] sm:$0xf]
      %v7301 = vld [vmem:[%s7281 + $0x4c] sm:$0xf]
      %v7302 = vld [vmem:[%s7281 + $0x50] sm:$0xf]
      %v7303 = vld [vmem:[%s7281 + $0x54] sm:$0xf]
      %v7304 = vld [vmem:[%s7281 + $0x58] sm:$0xf]
      %v7305 = vld [vmem:[%s7281 + $0x5c] sm:$0xf]
      %v7306 = vld [vmem:[%s7281 + $0x60] sm:$0xf]
      %v7307 = vld [vmem:[%s7281 + $0x64] sm:$0xf]
      %v7308 = vld [vmem:[%s7281 + $0x68] sm:$0xf]
      %v7309 = vld [vmem:[%s7281 + $0x6c] sm:$0xf]
      %v7310 = vld [vmem:[%s7281 + $0x70] sm:$0xf]
      %v7311 = vld [vmem:[%s7281 + $0x74] sm:$0xf]
      %v7312 = vld [vmem:[%s7281 + $0x78] sm:$0xf]
      %v7313 = vld [vmem:[%s7281 + $0x7c] sm:$0xf]
      %v7314 = vld [vmem:[%s7281 + $0x80] sm:$0xf]
      %v7315 = vld [vmem:[%s7281 + $0x84] sm:$0xf]
      %v7316 = vld [vmem:[%s7281 + $0x88] sm:$0xf]
      %v7317 = vld [vmem:[%s7281 + $0x8c] sm:$0xf]
      %v7318 = vld [vmem:[%s7281 + $0x90] sm:$0xf]
      %v7319 = vld [vmem:[%s7281 + $0x94] sm:$0xf]
      %v7320 = vld [vmem:[%s7281 + $0x98] sm:$0xf]
      %v7321 = vld [vmem:[%s7281 + $0x9c] sm:$0xf]
      %v7322 = vld [vmem:[%s7281 + $0xa0] sm:$0xf]
      %v7323 = vld [vmem:[%s7281 + $0xa4] sm:$0xf]
      %v7324 = vld [vmem:[%s7281 + $0xa8] sm:$0xf]
      %v7325 = vld [vmem:[%s7281 + $0xac] sm:$0xf]
      %v7326 = vld [vmem:[%s7281 + $0xb0] sm:$0xf]
      %v7327 = vld [vmem:[%s7281 + $0xb4] sm:$0xf]
      %v7328 = vld [vmem:[%s7281 + $0xb8] sm:$0xf]
      %v7329 = vld [vmem:[%s7281 + $0xbc] sm:$0xf]
      %v7378 = vunpack.c.l.b16 %v7282
      %v7379 = vunpack.c.l.b16 %v7283
      %v7380 = vunpack.c.l.b16 %v7284
      %v7381 = vunpack.c.l.b16 %v7285
      %v7382 = vunpack.c.l.b16 %v7286
      %v7383 = vunpack.c.l.b16 %v7287
      %v7384 = vunpack.c.l.b16 %v7288
      %v7385 = vunpack.c.l.b16 %v7289
      %v7386 = vunpack.c.l.b16 %v7290
      %v7387 = vunpack.c.l.b16 %v7291
      %v7388 = vunpack.c.l.b16 %v7292
      %v7389 = vunpack.c.l.b16 %v7293
      %v7390 = vunpack.c.l.b16 %v7294
      %v7391 = vunpack.c.l.b16 %v7295
      %v7392 = vunpack.c.l.b16 %v7296
      %v7393 = vunpack.c.l.b16 %v7297
      %v7394 = vunpack.c.l.b16 %v7298
      %v7395 = vunpack.c.l.b16 %v7299
      %v7396 = vunpack.c.l.b16 %v7300
      %v7397 = vunpack.c.l.b16 %v7301
      %v7398 = vunpack.c.l.b16 %v7302
      %v7399 = vunpack.c.l.b16 %v7303
      %v7400 = vunpack.c.l.b16 %v7304
      %v7401 = vunpack.c.l.b16 %v7305
      %v7402 = vunpack.c.l.b16 %v7306
      %v7403 = vunpack.c.l.b16 %v7307
      %v7404 = vunpack.c.l.b16 %v7308
      %v7405 = vunpack.c.l.b16 %v7309
      %v7406 = vunpack.c.l.b16 %v7310
      %v7407 = vunpack.c.l.b16 %v7311
      %v7408 = vunpack.c.l.b16 %v7312
      %v7409 = vunpack.c.l.b16 %v7313
      %v7410 = vunpack.c.l.b16 %v7314
      %v7411 = vunpack.c.l.b16 %v7315
      %v7412 = vunpack.c.l.b16 %v7316
      %v7413 = vunpack.c.l.b16 %v7317
      %v7414 = vunpack.c.l.b16 %v7318
      %v7415 = vunpack.c.l.b16 %v7319
      %v7416 = vunpack.c.l.b16 %v7320
      %v7417 = vunpack.c.l.b16 %v7321
      %v7418 = vunpack.c.l.b16 %v7322
      %v7419 = vunpack.c.l.b16 %v7323
      %v7420 = vunpack.c.l.b16 %v7324
      %v7421 = vunpack.c.l.b16 %v7325
      %v7422 = vunpack.c.l.b16 %v7326
      %v7423 = vunpack.c.l.b16 %v7327
      %v7424 = vunpack.c.l.b16 %v7328
      %v7425 = vunpack.c.l.b16 %v7329
      %v7426 = vpack.c.b16 %v7379, %v7378
      %v7427 = vpack.c.b16 %v7381, %v7380
      %v7428 = vpack.c.b16 %v7383, %v7382
      %v7429 = vpack.c.b16 %v7385, %v7384
      %v7430 = vpack.c.b16 %v7387, %v7386
      %v7431 = vpack.c.b16 %v7389, %v7388
      %v7432 = vpack.c.b16 %v7391, %v7390
      %v7433 = vpack.c.b16 %v7393, %v7392
      %v7434 = vpack.c.b16 %v7395, %v7394
      %v7435 = vpack.c.b16 %v7397, %v7396
      %v7436 = vpack.c.b16 %v7399, %v7398
      %v7437 = vpack.c.b16 %v7401, %v7400
      %v7438 = vpack.c.b16 %v7403, %v7402
      %v7439 = vpack.c.b16 %v7405, %v7404
      %v7440 = vpack.c.b16 %v7407, %v7406
      %v7441 = vpack.c.b16 %v7409, %v7408
      %v7442 = vpack.c.b16 %v7411, %v7410
      %v7443 = vpack.c.b16 %v7413, %v7412
      %v7444 = vpack.c.b16 %v7415, %v7414
      %v7445 = vpack.c.b16 %v7417, %v7416
      %v7446 = vpack.c.b16 %v7419, %v7418
      %v7447 = vpack.c.b16 %v7421, %v7420
      %v7448 = vpack.c.b16 %v7423, %v7422
      %v7449 = vpack.c.b16 %v7425, %v7424
      %7474 = vmatprep.subr.bf16.mxu0 0
      %7475 = vmatpush1.bf16.msra.mxu0 %v7426
      %7476 = vmatprep.subr.bf16.mxu0 0
      %7477 = vmatpush1.bf16.msra.mxu0 %v7427
      %7478 = vmatprep.subr.bf16.mxu0 0
      %7479 = vmatpush1.bf16.msra.mxu0 %v7428
      %7480 = vmatprep.subr.bf16.mxu0 0
      %7481 = vmatpush1.bf16.msra.mxu0 %v7429
      %7482 = vmatprep.subr.bf16.mxu0 0
      %7483 = vmatpush1.bf16.msra.mxu0 %v7430
      %7484 = vmatprep.subr.bf16.mxu0 0
      %7485 = vmatpush1.bf16.msra.mxu0 %v7431
      %7486 = vmatprep.subr.bf16.mxu0 0
      %7487 = vmatpush1.bf16.msra.mxu0 %v7432
      %7488 = vmatprep.subr.bf16.mxu0 0
      %7489 = vmatpush1.bf16.msra.mxu0 %v7433
      %7490 = vmatprep.subr.bf16.mxu0 0
      %7491 = vmatpush1.bf16.msra.mxu0 %v7434
      %7492 = vmatprep.subr.bf16.mxu0 0
      %7493 = vmatpush1.bf16.msra.mxu0 %v7435
      %7494 = vmatprep.subr.bf16.mxu0 0
      %7495 = vmatpush1.bf16.msra.mxu0 %v7436
      %7496 = vmatprep.subr.bf16.mxu0 0
      %7497 = vmatpush1.bf16.msra.mxu0 %v7437
      %7498 = vmatprep.subr.bf16.mxu0 0
      %7499 = vmatpush1.bf16.msra.mxu0 %v7438
      %7500 = vmatprep.subr.bf16.mxu0 0
      %7501 = vmatpush1.bf16.msra.mxu0 %v7439
      %7502 = vmatprep.subr.bf16.mxu0 0
      %7503 = vmatpush1.bf16.msra.mxu0 %v7440
      %7504 = vmatprep.subr.bf16.mxu0 0
      %7505 = vmatpush1.bf16.msra.mxu0 %v7441
      %7506 = vmatprep.mubr.bf16.mxu0 %v7234
      %7507 = vmatmul.mubr.bf16.gmra.mrb[0].mxu0 %v7233
      %v7508 = vpop.f32.mrb[0].mxu0
      %v7509 = vadd.f32 0.0, %v7508
      %v7510 = vpop.f32.mrb[0].mxu0
      %v7511 = vpop.f32.mrb[0].mxu0
      %v7512 = vadd.f32 0.0, %v7511
      %v7513 = vpop.f32.mrb[0].mxu0
      %7514 = vmatprep.mubr.bf16.mxu0 %v7237
      %7515 = vmatmul.mubr.bf16.gmra.mrb[0].mxu0 %v7236
      %v7516 = vpop.f32.mrb[0].mxu0
      %v7517 = vadd.f32 0.0, %v7516
      %v7518 = vpop.f32.mrb[0].mxu0
      %v7519 = vpop.f32.mrb[0].mxu0
      %v7520 = vadd.f32 0.0, %v7519
      %v7521 = vpop.f32.mrb[0].mxu0
      %7522 = vmatprep.mubr.bf16.mxu0 %v7240
      %7523 = vmatmul.mubr.bf16.gmra.mrb[0].mxu0 %v7239
      %v7524 = vpop.f32.mrb[0].mxu0
      %v7525 = vadd.f32 0.0, %v7524
      %v7526 = vpop.f32.mrb[0].mxu0
      %v7527 = vpop.f32.mrb[0].mxu0
      %v7528 = vadd.f32 0.0, %v7527
      %v7529 = vpop.f32.mrb[0].mxu0
      %7530 = vmatprep.mubr.bf16.mxu0 %v7243
      %7531 = vmatmul.mubr.bf16.gmra.mrb[0].mxu0 %v7242
      %v7532 = vpop.f32.mrb[0].mxu0
      %v7533 = vadd.f32 0.0, %v7532
      %v7534 = vpop.f32.mrb[0].mxu0
      %v7535 = vpop.f32.mrb[0].mxu0
      %v7536 = vadd.f32 0.0, %v7535
      %v7537 = vpop.f32.mrb[0].mxu0
      %7538 = vmatprep.mubr.bf16.mxu0 %v7246
      %7539 = vmatmul.mubr.bf16.gmra.mrb[0].mxu0 %v7245
      %v7540 = vpop.f32.mrb[0].mxu0
      %v7541 = vadd.f32 0.0, %v7540
      %v7542 = vpop.f32.mrb[0].mxu0
      %v7543 = vpop.f32.mrb[0].mxu0
      %v7544 = vadd.f32 0.0, %v7543
      %v7545 = vpop.f32.mrb[0].mxu0
      %7546 = vmatprep.mubr.bf16.mxu0 %v7249
      %7547 = vmatmul.mubr.bf16.gmra.mrb[0].mxu0 %v7248
      %v7548 = vpop.f32.mrb[0].mxu0
      %v7549 = vadd.f32 0.0, %v7548
      %v7550 = vpop.f32.mrb[0].mxu0
      %v7551 = vpop.f32.mrb[0].mxu0
      %v7552 = vadd.f32 0.0, %v7551
      %v7553 = vpop.f32.mrb[0].mxu0
      %7554 = vmatprep.mubr.bf16.mxu0 %v7252
      %7555 = vmatmul.mubr.bf16.gmra.mrb[0].mxu0 %v7251
      %v7556 = vpop.f32.mrb[0].mxu0
      %v7557 = vadd.f32 0.0, %v7556
      %v7558 = vpop.f32.mrb[0].mxu0
      %v7559 = vpop.f32.mrb[0].mxu0
      %v7560 = vadd.f32 0.0, %v7559
      %v7561 = vpop.f32.mrb[0].mxu0
      %7562 = vmatprep.mubr.bf16.mxu0 %v7255
      %7563 = vmatmul.mubr.bf16.gmra.mrb[0].mxu0 %v7254
      %v7564 = vpop.f32.mrb[0].mxu0
      %v7565 = vadd.f32 0.0, %v7564
      %v7566 = vpop.f32.mrb[0].mxu0
      %v7567 = vpop.f32.mrb[0].mxu0
      %v7568 = vadd.f32 0.0, %v7567
      %v7569 = vpop.f32.mrb[0].mxu0
      %7570 = vmatprep.mubr.bf16.mxu0 %v7258
      %7571 = vmatmul.mubr.bf16.gmra.mrb[0].mxu0 %v7257
      %v7572 = vpop.f32.mrb[0].mxu0
      %v7573 = vadd.f32 0.0, %v7572
      %v7574 = vpop.f32.mrb[0].mxu0
      %v7575 = vpop.f32.mrb[0].mxu0
      %v7576 = vadd.f32 0.0, %v7575
      %v7577 = vpop.f32.mrb[0].mxu0
      %7578 = vmatprep.mubr.bf16.mxu0 %v7261
      %7579 = vmatmul.mubr.bf16.gmra.mrb[0].mxu0 %v7260
      %v7580 = vpop.f32.mrb[0].mxu0
      %v7581 = vadd.f32 0.0, %v7580
      %v7582 = vpop.f32.mrb[0].mxu0
      %v7583 = vpop.f32.mrb[0].mxu0
      %v7584 = vadd.f32 0.0, %v7583
      %v7585 = vpop.f32.mrb[0].mxu0
      %7586 = vmatprep.mubr.bf16.mxu0 %v7264
      %7587 = vmatmul.mubr.bf16.gmra.mrb[0].mxu0 %v7263
      %v7588 = vpop.f32.mrb[0].mxu0
      %v7589 = vadd.f32 0.0, %v7588
      %v7590 = vpop.f32.mrb[0].mxu0
      %v7591 = vpop.f32.mrb[0].mxu0
      %v7592 = vadd.f32 0.0, %v7591
      %v7593 = vpop.f32.mrb[0].mxu0
      %7594 = vmatprep.mubr.bf16.mxu0 %v7267
      %7595 = vmatmul.mubr.bf16.gmra.mrb[0].mxu0 %v7266
      %v7596 = vpop.f32.mrb[0].mxu0
      %v7597 = vadd.f32 0.0, %v7596
      %v7598 = vpop.f32.mrb[0].mxu0
      %v7599 = vpop.f32.mrb[0].mxu0
      %v7600 = vadd.f32 0.0, %v7599
      %v7601 = vpop.f32.mrb[0].mxu0
      %7602 = vmatprep.mubr.bf16.mxu0 %v7270
      %7603 = vmatmul.mubr.bf16.gmra.mrb[0].mxu0 %v7269
      %v7604 = vpop.f32.mrb[0].mxu0
      %v7605 = vadd.f32 0.0, %v7604
      %v7606 = vpop.f32.mrb[0].mxu0
      %v7607 = vpop.f32.mrb[0].mxu0
      %v7608 = vadd.f32 0.0, %v7607
      %v7609 = vpop.f32.mrb[0].mxu0
      %7610 = vmatprep.mubr.bf16.mxu0 %v7273
      %7611 = vmatmul.mubr.bf16.gmra.mrb[0].mxu0 %v7272
      %v7612 = vpop.f32.mrb[0].mxu0
      %v7613 = vadd.f32 0.0, %v7612
      %v7614 = vpop.f32.mrb[0].mxu0
      %v7615 = vpop.f32.mrb[0].mxu0
      %v7616 = vadd.f32 0.0, %v7615
      %v7617 = vpop.f32.mrb[0].mxu0
      %7618 = vmatprep.mubr.bf16.mxu0 %v7276
      %7619 = vmatmul.mubr.bf16.gmra.mrb[0].mxu0 %v7275
      %v7620 = vpop.f32.mrb[0].mxu0
      %v7621 = vadd.f32 0.0, %v7620
      %v7622 = vpop.f32.mrb[0].mxu0
      %v7623 = vpop.f32.mrb[0].mxu0
      %v7624 = vadd.f32 0.0, %v7623
      %v7625 = vpop.f32.mrb[0].mxu0
      %7626 = vmatprep.mubr.bf16.mxu0 %v7279
      %7627 = vmatmul.mubr.bf16.gmra.mrb[0].mxu0 %v7278
      %v7628 = vpop.f32.mrb[0].mxu0
      %v7629 = vadd.f32 0.0, %v7628
      %v7630 = vpop.f32.mrb[0].mxu0
      %v7631 = vpop.f32.mrb[0].mxu0
      %v7632 = vadd.f32 0.0, %v7631
      %v7633 = vpop.f32.mrb[0].mxu0
      %7634 = vdwg.mxu0
      %7635 = vmatprep.subr.bf16.mxu0 0
      %7636 = vmatpush1.bf16.msra.mxu0 %v7442
      %7637 = vmatprep.subr.bf16.mxu0 0
      %7638 = vmatpush1.bf16.msra.mxu0 %v7443
      %7639 = vmatprep.subr.bf16.mxu0 0
      %7640 = vmatpush1.bf16.msra.mxu0 %v7444
      %7641 = vmatprep.subr.bf16.mxu0 0
      %7642 = vmatpush1.bf16.msra.mxu0 %v7445
      %7643 = vmatprep.subr.bf16.mxu0 0
      %7644 = vmatpush1.bf16.msra.mxu0 %v7446
      %7645 = vmatprep.subr.bf16.mxu0 0
      %7646 = vmatpush1.bf16.msra.mxu0 %v7447
      %7647 = vmatprep.subr.bf16.mxu0 0
      %7648 = vmatpush1.bf16.msra.mxu0 %v7448
      %7649 = vmatprep.subr.bf16.mxu0 0
      %7650 = vmatpush1.bf16.msra.mxu0 %v7449
      %7651 = vmatprep.subr.bf16.mxu0 0
      %7652 = vmatpush1.bf16.msra.mxu0 0
      %7653 = vmatprep.subr.bf16.mxu0 0
      %7654 = vmatpush1.bf16.msra.mxu0 0
      %7655 = vmatprep.subr.bf16.mxu0 0
      %7656 = vmatpush1.bf16.msra.mxu0 0
      %7657 = vmatprep.subr.bf16.mxu0 0
      %7658 = vmatpush1.bf16.msra.mxu0 0
      %7659 = vmatprep.subr.bf16.mxu0 0
      %7660 = vmatpush1.bf16.msra.mxu0 0
      %7661 = vmatprep.subr.bf16.mxu0 0
      %7662 = vmatpush1.bf16.msra.mxu0 0
      %7663 = vmatprep.subr.bf16.mxu0 0
      %7664 = vmatpush1.bf16.msra.mxu0 0
      %7665 = vmatprep.subr.bf16.mxu0 0
      %7666 = vmatpush1.bf16.msra.mxu0 0
      %7667 = vmatprep.mubr.bf16.mxu0 0
      %7668 = vmatmul.mubr.bf16.gmra.mrb[0].mxu0 %v7235
      %v7669 = vpop.f32.mrb[0].mxu0
      %v7670 = vadd.f32 %v7509, %v7669
      %v7671 = vpop.f32.mrb[0].mxu0
      %v7672 = vpop.f32.mrb[0].mxu0
      %v7673 = vadd.f32 %v7512, %v7672
      %v7674 = vpop.f32.mrb[0].mxu0
      %7675 = vmatprep.mubr.bf16.mxu0 0
      %7676 = vmatmul.mubr.bf16.gmra.mrb[0].mxu0 %v7238
      %v7677 = vpop.f32.mrb[0].mxu0
      %v7678 = vadd.f32 %v7517, %v7677
      %v7679 = vpop.f32.mrb[0].mxu0
      %v7680 = vpop.f32.mrb[0].mxu0
      %v7681 = vadd.f32 %v7520, %v7680
      %v7682 = vpop.f32.mrb[0].mxu0
      %7683 = vmatprep.mubr.bf16.mxu0 0
      %7684 = vmatmul.mubr.bf16.gmra.mrb[0].mxu0 %v7241
      %v7685 = vpop.f32.mrb[0].mxu0
      %v7686 = vadd.f32 %v7525, %v7685
      %v7687 = vpop.f32.mrb[0].mxu0
      %v7688 = vpop.f32.mrb[0].mxu0
      %v7689 = vadd.f32 %v7528, %v7688
      %v7690 = vpop.f32.mrb[0].mxu0
      %7691 = vmatprep.mubr.bf16.mxu0 0
      %7692 = vmatmul.mubr.bf16.gmra.mrb[0].mxu0 %v7244
      %v7693 = vpop.f32.mrb[0].mxu0
      %v7694 = vadd.f32 %v7533, %v7693
      %v7695 = vpop.f32.mrb[0].mxu0
      %v7696 = vpop.f32.mrb[0].mxu0
      %v7697 = vadd.f32 %v7536, %v7696
      %v7698 = vpop.f32.mrb[0].mxu0
      %7699 = vmatprep.mubr.bf16.mxu0 0
      %7700 = vmatmul.mubr.bf16.gmra.mrb[0].mxu0 %v7247
      %v7701 = vpop.f32.mrb[0].mxu0
      %v7702 = vadd.f32 %v7541, %v7701
      %v7703 = vpop.f32.mrb[0].mxu0
      %v7704 = vpop.f32.mrb[0].mxu0
      %v7705 = vadd.f32 %v7544, %v7704
      %v7706 = vpop.f32.mrb[0].mxu0
      %7707 = vmatprep.mubr.bf16.mxu0 0
      %7708 = vmatmul.mubr.bf16.gmra.mrb[0].mxu0 %v7250
      %v7709 = vpop.f32.mrb[0].mxu0
      %v7710 = vadd.f32 %v7549, %v7709
      %v7711 = vpop.f32.mrb[0].mxu0
      %v7712 = vpop.f32.mrb[0].mxu0
      %v7713 = vadd.f32 %v7552, %v7712
      %v7714 = vpop.f32.mrb[0].mxu0
      %7715 = vmatprep.mubr.bf16.mxu0 0
      %7716 = vmatmul.mubr.bf16.gmra.mrb[0].mxu0 %v7253
      %v7717 = vpop.f32.mrb[0].mxu0
      %v7718 = vadd.f32 %v7557, %v7717
      %v7719 = vpop.f32.mrb[0].mxu0
      %v7720 = vpop.f32.mrb[0].mxu0
      %v7721 = vadd.f32 %v7560, %v7720
      %v7722 = vpop.f32.mrb[0].mxu0
      %7723 = vmatprep.mubr.bf16.mxu0 0
      %7724 = vmatmul.mubr.bf16.gmra.mrb[0].mxu0 %v7256
      %v7725 = vpop.f32.mrb[0].mxu0
      %v7726 = vadd.f32 %v7565, %v7725
      %v7727 = vpop.f32.mrb[0].mxu0
      %v7728 = vpop.f32.mrb[0].mxu0
      %v7729 = vadd.f32 %v7568, %v7728
      %v7730 = vpop.f32.mrb[0].mxu0
      %7731 = vmatprep.mubr.bf16.mxu0 0
      %7732 = vmatmul.mubr.bf16.gmra.mrb[0].mxu0 %v7259
      %v7733 = vpop.f32.mrb[0].mxu0
      %v7734 = vadd.f32 %v7573, %v7733
      %v7735 = vpop.f32.mrb[0].mxu0
      %v7736 = vpop.f32.mrb[0].mxu0
      %v7737 = vadd.f32 %v7576, %v7736
      %v7738 = vpop.f32.mrb[0].mxu0
      %7739 = vmatprep.mubr.bf16.mxu0 0
      %7740 = vmatmul.mubr.bf16.gmra.mrb[0].mxu0 %v7262
      %v7741 = vpop.f32.mrb[0].mxu0
      %v7742 = vadd.f32 %v7581, %v7741
      %v7743 = vpop.f32.mrb[0].mxu0
      %v7744 = vpop.f32.mrb[0].mxu0
      %v7745 = vadd.f32 %v7584, %v7744
      %v7746 = vpop.f32.mrb[0].mxu0
      %7747 = vmatprep.mubr.bf16.mxu0 0
      %7748 = vmatmul.mubr.bf16.gmra.mrb[0].mxu0 %v7265
      %v7749 = vpop.f32.mrb[0].mxu0
      %v7750 = vadd.f32 %v7589, %v7749
      %v7751 = vpop.f32.mrb[0].mxu0
      %v7752 = vpop.f32.mrb[0].mxu0
      %v7753 = vadd.f32 %v7592, %v7752
      %v7754 = vpop.f32.mrb[0].mxu0
      %7755 = vmatprep.mubr.bf16.mxu0 0
      %7756 = vmatmul.mubr.bf16.gmra.mrb[0].mxu0 %v7268
      %v7757 = vpop.f32.mrb[0].mxu0
      %v7758 = vadd.f32 %v7597, %v7757
      %v7759 = vpop.f32.mrb[0].mxu0
      %v7760 = vpop.f32.mrb[0].mxu0
      %v7761 = vadd.f32 %v7600, %v7760
      %v7762 = vpop.f32.mrb[0].mxu0
      %7763 = vmatprep.mubr.bf16.mxu0 0
      %7764 = vmatmul.mubr.bf16.gmra.mrb[0].mxu0 %v7271
      %v7765 = vpop.f32.mrb[0].mxu0
      %v7766 = vadd.f32 %v7605, %v7765
      %v7767 = vpop.f32.mrb[0].mxu0
      %v7768 = vpop.f32.mrb[0].mxu0
      %v7769 = vadd.f32 %v7608, %v7768
      %v7770 = vpop.f32.mrb[0].mxu0
      %7771 = vmatprep.mubr.bf16.mxu0 0
      %7772 = vmatmul.mubr.bf16.gmra.mrb[0].mxu0 %v7274
      %v7773 = vpop.f32.mrb[0].mxu0
      %v7774 = vadd.f32 %v7613, %v7773
      %v7775 = vpop.f32.mrb[0].mxu0
      %v7776 = vpop.f32.mrb[0].mxu0
      %v7777 = vadd.f32 %v7616, %v7776
      %v7778 = vpop.f32.mrb[0].mxu0
      %7779 = vmatprep.mubr.bf16.mxu0 0
      %7780 = vmatmul.mubr.bf16.gmra.mrb[0].mxu0 %v7277
      %v7781 = vpop.f32.mrb[0].mxu0
      %v7782 = vadd.f32 %v7621, %v7781
      %v7783 = vpop.f32.mrb[0].mxu0
      %v7784 = vpop.f32.mrb[0].mxu0
      %v7785 = vadd.f32 %v7624, %v7784
      %v7786 = vpop.f32.mrb[0].mxu0
      %7787 = vmatprep.mubr.bf16.mxu0 0
      %7788 = vmatmul.mubr.bf16.gmra.mrb[0].mxu0 %v7280
      %v7789 = vpop.f32.mrb[0].mxu0
      %v7790 = vadd.f32 %v7629, %v7789
      %v7791 = vpop.f32.mrb[0].mxu0
      %v7792 = vpop.f32.mrb[0].mxu0
      %v7793 = vadd.f32 %v7632, %v7792
      %v7794 = vpop.f32.mrb[0].mxu0
      %7795 = vdwg.mxu0
      %v7844 = vunpack.c.l.b16 %v6385
      %v7845 = vunpack.c.l.b16 %v6386
      %v7846 = vunpack.c.l.b16 %v6387
      %v7847 = vunpack.c.l.b16 %v6388
      %v7848 = vunpack.c.l.b16 %v6389
      %v7849 = vunpack.c.l.b16 %v6390
      %v7850 = vunpack.c.l.b16 %v6391
      %v7851 = vunpack.c.l.b16 %v6392
      %v7852 = vunpack.c.l.b16 %v6393
      %v7853 = vunpack.c.l.b16 %v6394
      %v7854 = vunpack.c.l.b16 %v6395
      %v7855 = vunpack.c.l.b16 %v6396
      %v7856 = vunpack.c.l.b16 %v6397
      %v7857 = vunpack.c.l.b16 %v6398
      %v7858 = vunpack.c.l.b16 %v6399
      %v7859 = vunpack.c.l.b16 %v6400
      %v7860 = vunpack.c.l.b16 %v6401
      %v7861 = vunpack.c.l.b16 %v6402
      %v7862 = vunpack.c.l.b16 %v6403
      %v7863 = vunpack.c.l.b16 %v6404
      %v7864 = vunpack.c.l.b16 %v6405
      %v7865 = vunpack.c.l.b16 %v6406
      %v7866 = vunpack.c.l.b16 %v6407
      %v7867 = vunpack.c.l.b16 %v6408
      %v7868 = vunpack.c.l.b16 %v6409
      %v7869 = vunpack.c.l.b16 %v6410
      %v7870 = vunpack.c.l.b16 %v6411
      %v7871 = vunpack.c.l.b16 %v6412
      %v7872 = vunpack.c.l.b16 %v6413
      %v7873 = vunpack.c.l.b16 %v6414
      %v7874 = vunpack.c.l.b16 %v6415
      %v7875 = vunpack.c.l.b16 %v6416
      %v7876 = vunpack.c.l.b16 %v6417
      %v7877 = vunpack.c.l.b16 %v6418
      %v7878 = vunpack.c.l.b16 %v6419
      %v7879 = vunpack.c.l.b16 %v6420
      %v7880 = vunpack.c.l.b16 %v6421
      %v7881 = vunpack.c.l.b16 %v6422
      %v7882 = vunpack.c.l.b16 %v6423
      %v7883 = vunpack.c.l.b16 %v6424
      %v7884 = vunpack.c.l.b16 %v6425
      %v7885 = vunpack.c.l.b16 %v6426
      %v7886 = vunpack.c.l.b16 %v6427
      %v7887 = vunpack.c.l.b16 %v6428
      %v7888 = vunpack.c.l.b16 %v6429
      %v7889 = vunpack.c.l.b16 %v6430
      %v7890 = vunpack.c.l.b16 %v6431
      %v7891 = vunpack.c.l.b16 %v6432
      %v7892 = vpack.c.b16 %v7845, %v7844
      %v7893 = vpack.c.b16 %v7847, %v7846
      %v7894 = vpack.c.b16 %v7849, %v7848
      %v7895 = vpack.c.b16 %v7851, %v7850
      %v7896 = vpack.c.b16 %v7853, %v7852
      %v7897 = vpack.c.b16 %v7855, %v7854
      %v7898 = vpack.c.b16 %v7857, %v7856
      %v7899 = vpack.c.b16 %v7859, %v7858
      %v7900 = vpack.c.b16 %v7861, %v7860
      %v7901 = vpack.c.b16 %v7863, %v7862
      %v7902 = vpack.c.b16 %v7865, %v7864
      %v7903 = vpack.c.b16 %v7867, %v7866
      %v7904 = vpack.c.b16 %v7869, %v7868
      %v7905 = vpack.c.b16 %v7871, %v7870
      %v7906 = vpack.c.b16 %v7873, %v7872
      %v7907 = vpack.c.b16 %v7875, %v7874
      %v7908 = vpack.c.b16 %v7877, %v7876
      %v7909 = vpack.c.b16 %v7879, %v7878
      %v7910 = vpack.c.b16 %v7881, %v7880
      %v7911 = vpack.c.b16 %v7883, %v7882
      %v7912 = vpack.c.b16 %v7885, %v7884
      %v7913 = vpack.c.b16 %v7887, %v7886
      %v7914 = vpack.c.b16 %v7889, %v7888
      %v7915 = vpack.c.b16 %v7891, %v7890
      %7940 = vmatprep.subr.bf16.mxu0 0
      %7941 = vmatpush1.bf16.msra.mxu0 %v7892
      %7942 = vmatprep.subr.bf16.mxu0 0
      %7943 = vmatpush1.bf16.msra.mxu0 %v7893
      %7944 = vmatprep.subr.bf16.mxu0 0
      %7945 = vmatpush1.bf16.msra.mxu0 %v7894
      %7946 = vmatprep.subr.bf16.mxu0 0
      %7947 = vmatpush1.bf16.msra.mxu0 %v7895
      %7948 = vmatprep.subr.bf16.mxu0 0
      %7949 = vmatpush1.bf16.msra.mxu0 %v7896
      %7950 = vmatprep.subr.bf16.mxu0 0
      %7951 = vmatpush1.bf16.msra.mxu0 %v7897
      %7952 = vmatprep.subr.bf16.mxu0 0
      %7953 = vmatpush1.bf16.msra.mxu0 %v7898
      %7954 = vmatprep.subr.bf16.mxu0 0
      %7955 = vmatpush1.bf16.msra.mxu0 %v7899
      %7956 = vmatprep.subr.bf16.mxu0 0
      %7957 = vmatpush1.bf16.msra.mxu0 %v7900
      %7958 = vmatprep.subr.bf16.mxu0 0
      %7959 = vmatpush1.bf16.msra.mxu0 %v7901
      %7960 = vmatprep.subr.bf16.mxu0 0
      %7961 = vmatpush1.bf16.msra.mxu0 %v7902
      %7962 = vmatprep.subr.bf16.mxu0 0
      %7963 = vmatpush1.bf16.msra.mxu0 %v7903
      %7964 = vmatprep.subr.bf16.mxu0 0
      %7965 = vmatpush1.bf16.msra.mxu0 %v7904
      %7966 = vmatprep.subr.bf16.mxu0 0
      %7967 = vmatpush1.bf16.msra.mxu0 %v7905
      %7968 = vmatprep.subr.bf16.mxu0 0
      %7969 = vmatpush1.bf16.msra.mxu0 %v7906
      %7970 = vmatprep.subr.bf16.mxu0 0
      %7971 = vmatpush1.bf16.msra.mxu0 %v7907
      %7972 = vmatprep.mubr.bf16.mxu0 %v6338
      %7973 = vmatmul.mubr.bf16.gmra.mrb[0].mxu0 %v6337
      %v7974 = vpop.f32.mrb[0].mxu0
      %v7975 = vadd.f32 %v7670, %v7974
      %v7976 = vpop.f32.mrb[0].mxu0
      %v7977 = vpop.f32.mrb[0].mxu0
      %v7978 = vadd.f32 %v7673, %v7977
      %v7979 = vpop.f32.mrb[0].mxu0
      %7980 = vmatprep.mubr.bf16.mxu0 %v6341
      %7981 = vmatmul.mubr.bf16.gmra.mrb[0].mxu0 %v6340
      %v7982 = vpop.f32.mrb[0].mxu0
      %v7983 = vadd.f32 %v7678, %v7982
      %v7984 = vpop.f32.mrb[0].mxu0
      %v7985 = vpop.f32.mrb[0].mxu0
      %v7986 = vadd.f32 %v7681, %v7985
      %v7987 = vpop.f32.mrb[0].mxu0
      %7988 = vmatprep.mubr.bf16.mxu0 %v6344
      %7989 = vmatmul.mubr.bf16.gmra.mrb[0].mxu0 %v6343
      %v7990 = vpop.f32.mrb[0].mxu0
      %v7991 = vadd.f32 %v7686, %v7990
      %v7992 = vpop.f32.mrb[0].mxu0
      %v7993 = vpop.f32.mrb[0].mxu0
      %v7994 = vadd.f32 %v7689, %v7993
      %v7995 = vpop.f32.mrb[0].mxu0
      %7996 = vmatprep.mubr.bf16.mxu0 %v6347
      %7997 = vmatmul.mubr.bf16.gmra.mrb[0].mxu0 %v6346
      %v7998 = vpop.f32.mrb[0].mxu0
      %v7999 = vadd.f32 %v7694, %v7998
      %v8000 = vpop.f32.mrb[0].mxu0
      %v8001 = vpop.f32.mrb[0].mxu0
      %v8002 = vadd.f32 %v7697, %v8001
      %v8003 = vpop.f32.mrb[0].mxu0
      %8004 = vmatprep.mubr.bf16.mxu0 %v6350
      %8005 = vmatmul.mubr.bf16.gmra.mrb[0].mxu0 %v6349
      %v8006 = vpop.f32.mrb[0].mxu0
      %v8007 = vadd.f32 %v7702, %v8006
      %v8008 = vpop.f32.mrb[0].mxu0
      %v8009 = vpop.f32.mrb[0].mxu0
      %v8010 = vadd.f32 %v7705, %v8009
      %v8011 = vpop.f32.mrb[0].mxu0
      %8012 = vmatprep.mubr.bf16.mxu0 %v6353
      %8013 = vmatmul.mubr.bf16.gmra.mrb[0].mxu0 %v6352
      %v8014 = vpop.f32.mrb[0].mxu0
      %v8015 = vadd.f32 %v7710, %v8014
      %v8016 = vpop.f32.mrb[0].mxu0
      %v8017 = vpop.f32.mrb[0].mxu0
      %v8018 = vadd.f32 %v7713, %v8017
      %v8019 = vpop.f32.mrb[0].mxu0
      %8020 = vmatprep.mubr.bf16.mxu0 %v6356
      %8021 = vmatmul.mubr.bf16.gmra.mrb[0].mxu0 %v6355
      %v8022 = vpop.f32.mrb[0].mxu0
      %v8023 = vadd.f32 %v7718, %v8022
      %v8024 = vpop.f32.mrb[0].mxu0
      %v8025 = vpop.f32.mrb[0].mxu0
      %v8026 = vadd.f32 %v7721, %v8025
      %v8027 = vpop.f32.mrb[0].mxu0
      %8028 = vmatprep.mubr.bf16.mxu0 %v6359
      %8029 = vmatmul.mubr.bf16.gmra.mrb[0].mxu0 %v6358
      %v8030 = vpop.f32.mrb[0].mxu0
      %v8031 = vadd.f32 %v7726, %v8030
      %v8032 = vpop.f32.mrb[0].mxu0
      %v8033 = vpop.f32.mrb[0].mxu0
      %v8034 = vadd.f32 %v7729, %v8033
      %v8035 = vpop.f32.mrb[0].mxu0
      %8036 = vmatprep.mubr.bf16.mxu0 %v6362
      %8037 = vmatmul.mubr.bf16.gmra.mrb[0].mxu0 %v6361
      %v8038 = vpop.f32.mrb[0].mxu0
      %v8039 = vadd.f32 %v7734, %v8038
      %v8040 = vpop.f32.mrb[0].mxu0
      %v8041 = vpop.f32.mrb[0].mxu0
      %v8042 = vadd.f32 %v7737, %v8041
      %v8043 = vpop.f32.mrb[0].mxu0
      %8044 = vmatprep.mubr.bf16.mxu0 %v6365
      %8045 = vmatmul.mubr.bf16.gmra.mrb[0].mxu0 %v6364
      %v8046 = vpop.f32.mrb[0].mxu0
      %v8047 = vadd.f32 %v7742, %v8046
      %v8048 = vpop.f32.mrb[0].mxu0
      %v8049 = vpop.f32.mrb[0].mxu0
      %v8050 = vadd.f32 %v7745, %v8049
      %v8051 = vpop.f32.mrb[0].mxu0
      %8052 = vmatprep.mubr.bf16.mxu0 %v6368
      %8053 = vmatmul.mubr.bf16.gmra.mrb[0].mxu0 %v6367
      %v8054 = vpop.f32.mrb[0].mxu0
      %v8055 = vadd.f32 %v7750, %v8054
      %v8056 = vpop.f32.mrb[0].mxu0
      %v8057 = vpop.f32.mrb[0].mxu0
      %v8058 = vadd.f32 %v7753, %v8057
      %v8059 = vpop.f32.mrb[0].mxu0
      %8060 = vmatprep.mubr.bf16.mxu0 %v6371
      %8061 = vmatmul.mubr.bf16.gmra.mrb[0].mxu0 %v6370
      %v8062 = vpop.f32.mrb[0].mxu0
      %v8063 = vadd.f32 %v7758, %v8062
      %v8064 = vpop.f32.mrb[0].mxu0
      %v8065 = vpop.f32.mrb[0].mxu0
      %v8066 = vadd.f32 %v7761, %v8065
      %v8067 = vpop.f32.mrb[0].mxu0
      %8068 = vmatprep.mubr.bf16.mxu0 %v6374
      %8069 = vmatmul.mubr.bf16.gmra.mrb[0].mxu0 %v6373
      %v8070 = vpop.f32.mrb[0].mxu0
      %v8071 = vadd.f32 %v7766, %v8070
      %v8072 = vpop.f32.mrb[0].mxu0
      %v8073 = vpop.f32.mrb[0].mxu0
      %v8074 = vadd.f32 %v7769, %v8073
      %v8075 = vpop.f32.mrb[0].mxu0
      %8076 = vmatprep.mubr.bf16.mxu0 %v6377
      %8077 = vmatmul.mubr.bf16.gmra.mrb[0].mxu0 %v6376
      %v8078 = vpop.f32.mrb[0].mxu0
      %v8079 = vadd.f32 %v7774, %v8078
      %v8080 = vpop.f32.mrb[0].mxu0
      %v8081 = vpop.f32.mrb[0].mxu0
      %v8082 = vadd.f32 %v7777, %v8081
      %v8083 = vpop.f32.mrb[0].mxu0
      %8084 = vmatprep.mubr.bf16.mxu0 %v6380
      %8085 = vmatmul.mubr.bf16.gmra.mrb[0].mxu0 %v6379
      %v8086 = vpop.f32.mrb[0].mxu0
      %v8087 = vadd.f32 %v7782, %v8086
      %v8088 = vpop.f32.mrb[0].mxu0
      %v8089 = vpop.f32.mrb[0].mxu0
      %v8090 = vadd.f32 %v7785, %v8089
      %v8091 = vpop.f32.mrb[0].mxu0
      %8092 = vmatprep.mubr.bf16.mxu0 %v6383
      %8093 = vmatmul.mubr.bf16.gmra.mrb[0].mxu0 %v6382
      %v8094 = vpop.f32.mrb[0].mxu0
      %v8095 = vadd.f32 %v7790, %v8094
      %v8096 = vpop.f32.mrb[0].mxu0
      %v8097 = vpop.f32.mrb[0].mxu0
      %v8098 = vadd.f32 %v7793, %v8097
      %v8099 = vpop.f32.mrb[0].mxu0
      %8100 = vdwg.mxu0
      %8101 = vmatprep.subr.bf16.mxu0 0
      %8102 = vmatpush1.bf16.msra.mxu0 %v7908
      %8103 = vmatprep.subr.bf16.mxu0 0
      %8104 = vmatpush1.bf16.msra.mxu0 %v7909
      %8105 = vmatprep.subr.bf16.mxu0 0
      %8106 = vmatpush1.bf16.msra.mxu0 %v7910
      %8107 = vmatprep.subr.bf16.mxu0 0
      %8108 = vmatpush1.bf16.msra.mxu0 %v7911
      %8109 = vmatprep.subr.bf16.mxu0 0
      %8110 = vmatpush1.bf16.msra.mxu0 %v7912
      %8111 = vmatprep.subr.bf16.mxu0 0
      %8112 = vmatpush1.bf16.msra.mxu0 %v7913
      %8113 = vmatprep.subr.bf16.mxu0 0
      %8114 = vmatpush1.bf16.msra.mxu0 %v7914
      %8115 = vmatprep.subr.bf16.mxu0 0
      %8116 = vmatpush1.bf16.msra.mxu0 %v7915
      %8117 = vmatprep.subr.bf16.mxu0 0
      %8118 = vmatpush1.bf16.msra.mxu0 0
      %8119 = vmatprep.subr.bf16.mxu0 0
      %8120 = vmatpush1.bf16.msra.mxu0 0
      %8121 = vmatprep.subr.bf16.mxu0 0
      %8122 = vmatpush1.bf16.msra.mxu0 0
      %8123 = vmatprep.subr.bf16.mxu0 0
      %8124 = vmatpush1.bf16.msra.mxu0 0
      %8125 = vmatprep.subr.bf16.mxu0 0
      %8126 = vmatpush1.bf16.msra.mxu0 0
      %8127 = vmatprep.subr.bf16.mxu0 0
      %8128 = vmatpush1.bf16.msra.mxu0 0
      %8129 = vmatprep.subr.bf16.mxu0 0
      %8130 = vmatpush1.bf16.msra.mxu0 0
      %8131 = vmatprep.subr.bf16.mxu0 0
      %8132 = vmatpush1.bf16.msra.mxu0 0
      %8133 = vmatprep.mubr.bf16.mxu0 0
      %8134 = vmatmul.mubr.bf16.gmra.mrb[0].mxu0 %v6339
      %v8135 = vpop.f32.mrb[0].mxu0
      %v8136 = vadd.f32 %v7975, %v8135
      %v8137 = vpop.f32.mrb[0].mxu0
      %v8138 = vpop.f32.mrb[0].mxu0
      %v8139 = vadd.f32 %v7978, %v8138
      %v8140 = vpop.f32.mrb[0].mxu0
      %8141 = vmatprep.mubr.bf16.mxu0 0
      %8142 = vmatmul.mubr.bf16.gmra.mrb[0].mxu0 %v6342
      %v8143 = vpop.f32.mrb[0].mxu0
      %v8144 = vadd.f32 %v7983, %v8143
      %v8145 = vpop.f32.mrb[0].mxu0
      %v8146 = vpop.f32.mrb[0].mxu0
      %v8147 = vadd.f32 %v7986, %v8146
      %v8148 = vpop.f32.mrb[0].mxu0
      %8149 = vmatprep.mubr.bf16.mxu0 0
      %8150 = vmatmul.mubr.bf16.gmra.mrb[0].mxu0 %v6345
      %v8151 = vpop.f32.mrb[0].mxu0
      %v8152 = vadd.f32 %v7991, %v8151
      %v8153 = vpop.f32.mrb[0].mxu0
      %v8154 = vpop.f32.mrb[0].mxu0
      %v8155 = vadd.f32 %v7994, %v8154
      %v8156 = vpop.f32.mrb[0].mxu0
      %8157 = vmatprep.mubr.bf16.mxu0 0
      %8158 = vmatmul.mubr.bf16.gmra.mrb[0].mxu0 %v6348
      %v8159 = vpop.f32.mrb[0].mxu0
      %v8160 = vadd.f32 %v7999, %v8159
      %v8161 = vpop.f32.mrb[0].mxu0
      %v8162 = vpop.f32.mrb[0].mxu0
      %v8163 = vadd.f32 %v8002, %v8162
      %v8164 = vpop.f32.mrb[0].mxu0
      %8165 = vmatprep.mubr.bf16.mxu0 0
      %8166 = vmatmul.mubr.bf16.gmra.mrb[0].mxu0 %v6351
      %v8167 = vpop.f32.mrb[0].mxu0
      %v8168 = vadd.f32 %v8007, %v8167
      %v8169 = vpop.f32.mrb[0].mxu0
      %v8170 = vpop.f32.mrb[0].mxu0
      %v8171 = vadd.f32 %v8010, %v8170
      %v8172 = vpop.f32.mrb[0].mxu0
      %8173 = vmatprep.mubr.bf16.mxu0 0
      %8174 = vmatmul.mubr.bf16.gmra.mrb[0].mxu0 %v6354
      %v8175 = vpop.f32.mrb[0].mxu0
      %v8176 = vadd.f32 %v8015, %v8175
      %v8177 = vpop.f32.mrb[0].mxu0
      %v8178 = vpop.f32.mrb[0].mxu0
      %v8179 = vadd.f32 %v8018, %v8178
      %v8180 = vpop.f32.mrb[0].mxu0
      %8181 = vmatprep.mubr.bf16.mxu0 0
      %8182 = vmatmul.mubr.bf16.gmra.mrb[0].mxu0 %v6357
      %v8183 = vpop.f32.mrb[0].mxu0
      %v8184 = vadd.f32 %v8023, %v8183
      %v8185 = vpop.f32.mrb[0].mxu0
      %v8186 = vpop.f32.mrb[0].mxu0
      %v8187 = vadd.f32 %v8026, %v8186
      %v8188 = vpop.f32.mrb[0].mxu0
      %8189 = vmatprep.mubr.bf16.mxu0 0
      %8190 = vmatmul.mubr.bf16.gmra.mrb[0].mxu0 %v6360
      %v8191 = vpop.f32.mrb[0].mxu0
      %v8192 = vadd.f32 %v8031, %v8191
      %v8193 = vpop.f32.mrb[0].mxu0
      %v8194 = vpop.f32.mrb[0].mxu0
      %v8195 = vadd.f32 %v8034, %v8194
      %v8196 = vpop.f32.mrb[0].mxu0
      %8197 = vmatprep.mubr.bf16.mxu0 0
      %8198 = vmatmul.mubr.bf16.gmra.mrb[0].mxu0 %v6363
      %v8199 = vpop.f32.mrb[0].mxu0
      %v8200 = vadd.f32 %v8039, %v8199
      %v8201 = vpop.f32.mrb[0].mxu0
      %v8202 = vpop.f32.mrb[0].mxu0
      %v8203 = vadd.f32 %v8042, %v8202
      %v8204 = vpop.f32.mrb[0].mxu0
      %8205 = vmatprep.mubr.bf16.mxu0 0
      %8206 = vmatmul.mubr.bf16.gmra.mrb[0].mxu0 %v6366
      %v8207 = vpop.f32.mrb[0].mxu0
      %v8208 = vadd.f32 %v8047, %v8207
      %v8209 = vpop.f32.mrb[0].mxu0
      %v8210 = vpop.f32.mrb[0].mxu0
      %v8211 = vadd.f32 %v8050, %v8210
      %v8212 = vpop.f32.mrb[0].mxu0
      %8213 = vmatprep.mubr.bf16.mxu0 0
      %8214 = vmatmul.mubr.bf16.gmra.mrb[0].mxu0 %v6369
      %v8215 = vpop.f32.mrb[0].mxu0
      %v8216 = vadd.f32 %v8055, %v8215
      %v8217 = vpop.f32.mrb[0].mxu0
      %v8218 = vpop.f32.mrb[0].mxu0
      %v8219 = vadd.f32 %v8058, %v8218
      %v8220 = vpop.f32.mrb[0].mxu0
      %8221 = vmatprep.mubr.bf16.mxu0 0
      %8222 = vmatmul.mubr.bf16.gmra.mrb[0].mxu0 %v6372
      %v8223 = vpop.f32.mrb[0].mxu0
      %v8224 = vadd.f32 %v8063, %v8223
      %v8225 = vpop.f32.mrb[0].mxu0
      %v8226 = vpop.f32.mrb[0].mxu0
      %v8227 = vadd.f32 %v8066, %v8226
      %v8228 = vpop.f32.mrb[0].mxu0
      %8229 = vmatprep.mubr.bf16.mxu0 0
      %8230 = vmatmul.mubr.bf16.gmra.mrb[0].mxu0 %v6375
      %v8231 = vpop.f32.mrb[0].mxu0
      %v8232 = vadd.f32 %v8071, %v8231
      %v8233 = vpop.f32.mrb[0].mxu0
      %v8234 = vpop.f32.mrb[0].mxu0
      %v8235 = vadd.f32 %v8074, %v8234
      %v8236 = vpop.f32.mrb[0].mxu0
      %8237 = vmatprep.mubr.bf16.mxu0 0
      %8238 = vmatmul.mubr.bf16.gmra.mrb[0].mxu0 %v6378
      %v8239 = vpop.f32.mrb[0].mxu0
      %v8240 = vadd.f32 %v8079, %v8239
      %v8241 = vpop.f32.mrb[0].mxu0
      %v8242 = vpop.f32.mrb[0].mxu0
      %v8243 = vadd.f32 %v8082, %v8242
      %v8244 = vpop.f32.mrb[0].mxu0
      %8245 = vmatprep.mubr.bf16.mxu0 0
      %8246 = vmatmul.mubr.bf16.gmra.mrb[0].mxu0 %v6381
      %v8247 = vpop.f32.mrb[0].mxu0
      %v8248 = vadd.f32 %v8087, %v8247
      %v8249 = vpop.f32.mrb[0].mxu0
      %v8250 = vpop.f32.mrb[0].mxu0
      %v8251 = vadd.f32 %v8090, %v8250
      %v8252 = vpop.f32.mrb[0].mxu0
      %8253 = vmatprep.mubr.bf16.mxu0 0
      %8254 = vmatmul.mubr.bf16.gmra.mrb[0].mxu0 %v6384
      %v8255 = vpop.f32.mrb[0].mxu0
      %v8256 = vadd.f32 %v8095, %v8255
      %v8257 = vpop.f32.mrb[0].mxu0
      %v8258 = vpop.f32.mrb[0].mxu0
      %v8259 = vadd.f32 %v8098, %v8258
      %v8260 = vpop.f32.mrb[0].mxu0
      %8261 = vdwg.mxu0
      %v8262 = vld [vmem:[%s3542] sm:$0xf]
      %v8263 = vld [vmem:[%s3542 + $0x4] sm:$0xf]
      %v8264 = vld [vmem:[%s3542 + $0xc] sm:$0xf]
      %v8265 = vld [vmem:[%s3542 + $0x10] sm:$0xf]
      %v8266 = vld [vmem:[%s3542 + $0x18] sm:$0xf]
      %v8267 = vld [vmem:[%s3542 + $0x1c] sm:$0xf]
      %v8268 = vld [vmem:[%s3542 + $0x24] sm:$0xf]
      %v8269 = vld [vmem:[%s3542 + $0x28] sm:$0xf]
      %v8270 = vld [vmem:[%s3542 + $0x30] sm:$0xf]
      %v8271 = vld [vmem:[%s3542 + $0x34] sm:$0xf]
      %v8272 = vld [vmem:[%s3542 + $0x3c] sm:$0xf]
      %v8273 = vld [vmem:[%s3542 + $0x40] sm:$0xf]
      %v8274 = vld [vmem:[%s3542 + $0x48] sm:$0xf]
      %v8275 = vld [vmem:[%s3542 + $0x4c] sm:$0xf]
      %v8276 = vld [vmem:[%s3542 + $0x54] sm:$0xf]
      %v8277 = vld [vmem:[%s3542 + $0x58] sm:$0xf]
      %v8278 = vld [vmem:[%s3542 + $0x60] sm:$0xf]
      %v8279 = vld [vmem:[%s3542 + $0x64] sm:$0xf]
      %v8280 = vld [vmem:[%s3542 + $0x6c] sm:$0xf]
      %v8281 = vld [vmem:[%s3542 + $0x70] sm:$0xf]
      %v8282 = vld [vmem:[%s3542 + $0x78] sm:$0xf]
      %v8283 = vld [vmem:[%s3542 + $0x7c] sm:$0xf]
      %v8284 = vld [vmem:[%s3542 + $0x84] sm:$0xf]
      %v8285 = vld [vmem:[%s3542 + $0x88] sm:$0xf]
      %v8286 = vld [vmem:[%s3542 + $0x90] sm:$0xf]
      %v8287 = vld [vmem:[%s3542 + $0x94] sm:$0xf]
      %v8288 = vld [vmem:[%s3542 + $0x9c] sm:$0xf]
      %v8289 = vld [vmem:[%s3542 + $0xa0] sm:$0xf]
      %v8290 = vld [vmem:[%s3542 + $0xa8] sm:$0xf]
      %v8291 = vld [vmem:[%s3542 + $0xac] sm:$0xf]
      %v8292 = vld [vmem:[%s3542 + $0xb4] sm:$0xf]
      %v8293 = vld [vmem:[%s3542 + $0xb8] sm:$0xf]
      %v8326 = vunpack.c.l.b16 %v8262
      %v8327 = vunpack.c.l.b16 %v8263
      %v8328 = vunpack.c.l.b16 %v8264
      %v8329 = vunpack.c.l.b16 %v8265
      %v8330 = vunpack.c.l.b16 %v8266
      %v8331 = vunpack.c.l.b16 %v8267
      %v8332 = vunpack.c.l.b16 %v8268
      %v8333 = vunpack.c.l.b16 %v8269
      %v8334 = vunpack.c.l.b16 %v8270
      %v8335 = vunpack.c.l.b16 %v8271
      %v8336 = vunpack.c.l.b16 %v8272
      %v8337 = vunpack.c.l.b16 %v8273
      %v8338 = vunpack.c.l.b16 %v8274
      %v8339 = vunpack.c.l.b16 %v8275
      %v8340 = vunpack.c.l.b16 %v8276
      %v8341 = vunpack.c.l.b16 %v8277
      %v8342 = vunpack.c.l.b16 %v8278
      %v8343 = vunpack.c.l.b16 %v8279
      %v8344 = vunpack.c.l.b16 %v8280
      %v8345 = vunpack.c.l.b16 %v8281
      %v8346 = vunpack.c.l.b16 %v8282
      %v8347 = vunpack.c.l.b16 %v8283
      %v8348 = vunpack.c.l.b16 %v8284
      %v8349 = vunpack.c.l.b16 %v8285
      %v8350 = vunpack.c.l.b16 %v8286
      %v8351 = vunpack.c.l.b16 %v8287
      %v8352 = vunpack.c.l.b16 %v8288
      %v8353 = vunpack.c.l.b16 %v8289
      %v8354 = vunpack.c.l.b16 %v8290
      %v8355 = vunpack.c.l.b16 %v8291
      %v8356 = vunpack.c.l.b16 %v8292
      %v8357 = vunpack.c.l.b16 %v8293
      %v8358 = vpack.c.b16 %v8327, %v8326
      %v8359 = vpack.c.b16 %v8329, %v8328
      %v8360 = vpack.c.b16 %v8331, %v8330
      %v8361 = vpack.c.b16 %v8333, %v8332
      %v8362 = vpack.c.b16 %v8335, %v8334
      %v8363 = vpack.c.b16 %v8337, %v8336
      %v8364 = vpack.c.b16 %v8339, %v8338
      %v8365 = vpack.c.b16 %v8341, %v8340
      %v8366 = vpack.c.b16 %v8343, %v8342
      %v8367 = vpack.c.b16 %v8345, %v8344
      %v8368 = vpack.c.b16 %v8347, %v8346
      %v8369 = vpack.c.b16 %v8349, %v8348
      %v8370 = vpack.c.b16 %v8351, %v8350
      %v8371 = vpack.c.b16 %v8353, %v8352
      %v8372 = vpack.c.b16 %v8355, %v8354
      %v8373 = vpack.c.b16 %v8357, %v8356
      %8390 = vst [vmem:[#allocation3] sm:$0xff] %v8358
      %8391 = vst [vmem:[#allocation3 + $0x18] sm:$0xff] %v8359
      %8392 = vst [vmem:[#allocation3 + $0x30] sm:$0xff] %v8360
      %8393 = vst [vmem:[#allocation3 + $0x48] sm:$0xff] %v8361
      %8394 = vst [vmem:[#allocation3 + $0x60] sm:$0xff] %v8362
      %8395 = vst [vmem:[#allocation3 + $0x78] sm:$0xff] %v8363
      %8396 = vst [vmem:[#allocation3 + $0x90] sm:$0xff] %v8364
      %8397 = vst [vmem:[#allocation3 + $0xa8] sm:$0xff] %v8365
      %8398 = vst [vmem:[#allocation3 + $0xc0] sm:$0xff] %v8366
      %8399 = vst [vmem:[#allocation3 + $0xd8] sm:$0xff] %v8367
      %8400 = vst [vmem:[#allocation3 + $0xf0] sm:$0xff] %v8368
      %8401 = vst [vmem:[#allocation3 + $0x108] sm:$0xff] %v8369
      %8402 = vst [vmem:[#allocation3 + $0x120] sm:$0xff] %v8370
      %8403 = vst [vmem:[#allocation3 + $0x138] sm:$0xff] %v8371
      %8404 = vst [vmem:[#allocation3 + $0x150] sm:$0xff] %v8372
      %8405 = vst [vmem:[#allocation3 + $0x168] sm:$0xff] %v8373
      %v8406 = vld [vmem:[%s3542] sm:$0xf]
      %v8407 = vld [vmem:[%s3542 + $0x4] sm:$0xf]
      %v8408 = vld [vmem:[%s3542 + $0x8] sm:$0x1]
      %v8409 = vld [vmem:[%s3542 + $0xc] sm:$0xf]
      %v8410 = vld [vmem:[%s3542 + $0x10] sm:$0xf]
      %v8411 = vld [vmem:[%s3542 + $0x14] sm:$0x1]
      %v8412 = vld [vmem:[%s3542 + $0x18] sm:$0xf]
      %v8413 = vld [vmem:[%s3542 + $0x1c] sm:$0xf]
      %v8414 = vld [vmem:[%s3542 + $0x20] sm:$0x1]
      %v8415 = vld [vmem:[%s3542 + $0x24] sm:$0xf]
      %v8416 = vld [vmem:[%s3542 + $0x28] sm:$0xf]
      %v8417 = vld [vmem:[%s3542 + $0x2c] sm:$0x1]
      %v8418 = vld [vmem:[%s3542 + $0x30] sm:$0xf]
      %v8419 = vld [vmem:[%s3542 + $0x34] sm:$0xf]
      %v8420 = vld [vmem:[%s3542 + $0x38] sm:$0x1]
      %v8421 = vld [vmem:[%s3542 + $0x3c] sm:$0xf]
      %v8422 = vld [vmem:[%s3542 + $0x40] sm:$0xf]
      %v8423 = vld [vmem:[%s3542 + $0x44] sm:$0x1]
      %v8424 = vld [vmem:[%s3542 + $0x48] sm:$0xf]
      %v8425 = vld [vmem:[%s3542 + $0x4c] sm:$0xf]
      %v8426 = vld [vmem:[%s3542 + $0x50] sm:$0x1]
      %v8427 = vld [vmem:[%s3542 + $0x54] sm:$0xf]
      %v8428 = vld [vmem:[%s3542 + $0x58] sm:$0xf]
      %v8429 = vld [vmem:[%s3542 + $0x5c] sm:$0x1]
      %v8430 = vld [vmem:[%s3542 + $0x60] sm:$0xf]
      %v8431 = vld [vmem:[%s3542 + $0x64] sm:$0xf]
      %v8432 = vld [vmem:[%s3542 + $0x68] sm:$0x1]
      %v8433 = vld [vmem:[%s3542 + $0x6c] sm:$0xf]
      %v8434 = vld [vmem:[%s3542 + $0x70] sm:$0xf]
      %v8435 = vld [vmem:[%s3542 + $0x74] sm:$0x1]
      %v8436 = vld [vmem:[%s3542 + $0x78] sm:$0xf]
      %v8437 = vld [vmem:[%s3542 + $0x7c] sm:$0xf]
      %v8438 = vld [vmem:[%s3542 + $0x80] sm:$0x1]
      %v8439 = vld [vmem:[%s3542 + $0x84] sm:$0xf]
      %v8440 = vld [vmem:[%s3542 + $0x88] sm:$0xf]
      %v8441 = vld [vmem:[%s3542 + $0x8c] sm:$0x1]
      %v8442 = vld [vmem:[%s3542 + $0x90] sm:$0xf]
      %v8443 = vld [vmem:[%s3542 + $0x94] sm:$0xf]
      %v8444 = vld [vmem:[%s3542 + $0x98] sm:$0x1]
      %v8445 = vld [vmem:[%s3542 + $0x9c] sm:$0xf]
      %v8446 = vld [vmem:[%s3542 + $0xa0] sm:$0xf]
      %v8447 = vld [vmem:[%s3542 + $0xa4] sm:$0x1]
      %v8448 = vld [vmem:[%s3542 + $0xa8] sm:$0xf]
      %v8449 = vld [vmem:[%s3542 + $0xac] sm:$0xf]
      %v8450 = vld [vmem:[%s3542 + $0xb0] sm:$0x1]
      %v8451 = vld [vmem:[%s3542 + $0xb4] sm:$0xf]
      %v8452 = vld [vmem:[%s3542 + $0xb8] sm:$0xf]
      %v8453 = vld [vmem:[%s3542 + $0xbc] sm:$0x1]
      %v8502 = vunpack.c.l.b16 %v8406
      %v8503 = vunpack.c.l.b16 %v8407
      %v8504 = vunpack.c.l.b16 %v8408
      %v8505 = vunpack.c.l.b16 %v8409
      %v8506 = vunpack.c.l.b16 %v8410
      %v8507 = vunpack.c.l.b16 %v8411
      %v8508 = vunpack.c.l.b16 %v8412
      %v8509 = vunpack.c.l.b16 %v8413
      %v8510 = vunpack.c.l.b16 %v8414
      %v8511 = vunpack.c.l.b16 %v8415
      %v8512 = vunpack.c.l.b16 %v8416
      %v8513 = vunpack.c.l.b16 %v8417
      %v8514 = vunpack.c.l.b16 %v8418
      %v8515 = vunpack.c.l.b16 %v8419
      %v8516 = vunpack.c.l.b16 %v8420
      %v8517 = vunpack.c.l.b16 %v8421
      %v8518 = vunpack.c.l.b16 %v8422
      %v8519 = vunpack.c.l.b16 %v8423
      %v8520 = vunpack.c.l.b16 %v8424
      %v8521 = vunpack.c.l.b16 %v8425
      %v8522 = vunpack.c.l.b16 %v8426
      %v8523 = vunpack.c.l.b16 %v8427
      %v8524 = vunpack.c.l.b16 %v8428
      %v8525 = vunpack.c.l.b16 %v8429
      %v8526 = vunpack.c.l.b16 %v8430
      %v8527 = vunpack.c.l.b16 %v8431
      %v8528 = vunpack.c.l.b16 %v8432
      %v8529 = vunpack.c.l.b16 %v8433
      %v8530 = vunpack.c.l.b16 %v8434
      %v8531 = vunpack.c.l.b16 %v8435
      %v8532 = vunpack.c.l.b16 %v8436
      %v8533 = vunpack.c.l.b16 %v8437
      %v8534 = vunpack.c.l.b16 %v8438
      %v8535 = vunpack.c.l.b16 %v8439
      %v8536 = vunpack.c.l.b16 %v8440
      %v8537 = vunpack.c.l.b16 %v8441
      %v8538 = vunpack.c.l.b16 %v8442
      %v8539 = vunpack.c.l.b16 %v8443
      %v8540 = vunpack.c.l.b16 %v8444
      %v8541 = vunpack.c.l.b16 %v8445
      %v8542 = vunpack.c.l.b16 %v8446
      %v8543 = vunpack.c.l.b16 %v8447
      %v8544 = vunpack.c.l.b16 %v8448
      %v8545 = vunpack.c.l.b16 %v8449
      %v8546 = vunpack.c.l.b16 %v8450
      %v8547 = vunpack.c.l.b16 %v8451
      %v8548 = vunpack.c.l.b16 %v8452
      %v8549 = vunpack.c.l.b16 %v8453
      %v8550 = vpack.c.b16 %v8503, %v8502
      %v8551 = vpack.c.b16 %v8504, %v8504
      %v8552 = vpack.c.b16 %v8506, %v8505
      %v8553 = vpack.c.b16 %v8507, %v8507
      %v8554 = vpack.c.b16 %v8509, %v8508
      %v8555 = vpack.c.b16 %v8510, %v8510
      %v8556 = vpack.c.b16 %v8512, %v8511
      %v8557 = vpack.c.b16 %v8513, %v8513
      %v8558 = vpack.c.b16 %v8515, %v8514
      %v8559 = vpack.c.b16 %v8516, %v8516
      %v8560 = vpack.c.b16 %v8518, %v8517
      %v8561 = vpack.c.b16 %v8519, %v8519
      %v8562 = vpack.c.b16 %v8521, %v8520
      %v8563 = vpack.c.b16 %v8522, %v8522
      %v8564 = vpack.c.b16 %v8524, %v8523
      %v8565 = vpack.c.b16 %v8525, %v8525
      %v8566 = vpack.c.b16 %v8527, %v8526
      %v8567 = vpack.c.b16 %v8528, %v8528
      %v8568 = vpack.c.b16 %v8530, %v8529
      %v8569 = vpack.c.b16 %v8531, %v8531
      %v8570 = vpack.c.b16 %v8533, %v8532
      %v8571 = vpack.c.b16 %v8534, %v8534
      %v8572 = vpack.c.b16 %v8536, %v8535
      %v8573 = vpack.c.b16 %v8537, %v8537
      %v8574 = vpack.c.b16 %v8539, %v8538
      %v8575 = vpack.c.b16 %v8540, %v8540
      %v8576 = vpack.c.b16 %v8542, %v8541
      %v8577 = vpack.c.b16 %v8543, %v8543
      %v8578 = vpack.c.b16 %v8545, %v8544
      %v8579 = vpack.c.b16 %v8546, %v8546
      %v8580 = vpack.c.b16 %v8548, %v8547
      %v8581 = vpack.c.b16 %v8549, %v8549
      %v8583 = vshrl.u32 %v8550, 16
      %v8585 = vshll.u32 %v8550, 16
      %v8587 = vrot.slane %v8585, 1
      %v8588 = vor.u32 %v8583, %v8587
      %v8590 = vshll.u32 %v8551, 16
      %v8592 = vrot.slane %v8590, 1
      %v8593 = vsel %vm1135, %v8588, %v8592
      %v8595 = vshrl.u32 %v8552, 16
      %v8597 = vshll.u32 %v8552, 16
      %v8599 = vrot.slane %v8597, 1
      %v8600 = vor.u32 %v8595, %v8599
      %v8602 = vshll.u32 %v8553, 16
      %v8604 = vrot.slane %v8602, 1
      %v8605 = vsel %vm1135, %v8600, %v8604
      %v8607 = vshrl.u32 %v8554, 16
      %v8609 = vshll.u32 %v8554, 16
      %v8611 = vrot.slane %v8609, 1
      %v8612 = vor.u32 %v8607, %v8611
      %v8614 = vshll.u32 %v8555, 16
      %v8616 = vrot.slane %v8614, 1
      %v8617 = vsel %vm1135, %v8612, %v8616
      %v8619 = vshrl.u32 %v8556, 16
      %v8621 = vshll.u32 %v8556, 16
      %v8623 = vrot.slane %v8621, 1
      %v8624 = vor.u32 %v8619, %v8623
      %v8626 = vshll.u32 %v8557, 16
      %v8628 = vrot.slane %v8626, 1
      %v8629 = vsel %vm1135, %v8624, %v8628
      %v8631 = vshrl.u32 %v8558, 16
      %v8633 = vshll.u32 %v8558, 16
      %v8635 = vrot.slane %v8633, 1
      %v8636 = vor.u32 %v8631, %v8635
      %v8638 = vshll.u32 %v8559, 16
      %v8640 = vrot.slane %v8638, 1
      %v8641 = vsel %vm1135, %v8636, %v8640
      %v8643 = vshrl.u32 %v8560, 16
      %v8645 = vshll.u32 %v8560, 16
      %v8647 = vrot.slane %v8645, 1
      %v8648 = vor.u32 %v8643, %v8647
      %v8650 = vshll.u32 %v8561, 16
      %v8652 = vrot.slane %v8650, 1
      %v8653 = vsel %vm1135, %v8648, %v8652
      %v8655 = vshrl.u32 %v8562, 16
      %v8657 = vshll.u32 %v8562, 16
      %v8659 = vrot.slane %v8657, 1
      %v8660 = vor.u32 %v8655, %v8659
      %v8662 = vshll.u32 %v8563, 16
      %v8664 = vrot.slane %v8662, 1
      %v8665 = vsel %vm1135, %v8660, %v8664
      %v8667 = vshrl.u32 %v8564, 16
      %v8669 = vshll.u32 %v8564, 16
      %v8671 = vrot.slane %v8669, 1
      %v8672 = vor.u32 %v8667, %v8671
      %v8674 = vshll.u32 %v8565, 16
      %v8676 = vrot.slane %v8674, 1
      %v8677 = vsel %vm1135, %v8672, %v8676
      %v8679 = vshrl.u32 %v8566, 16
      %v8681 = vshll.u32 %v8566, 16
      %v8683 = vrot.slane %v8681, 1
      %v8684 = vor.u32 %v8679, %v8683
      %v8686 = vshll.u32 %v8567, 16
      %v8688 = vrot.slane %v8686, 1
      %v8689 = vsel %vm1135, %v8684, %v8688
      %v8691 = vshrl.u32 %v8568, 16
      %v8693 = vshll.u32 %v8568, 16
      %v8695 = vrot.slane %v8693, 1
      %v8696 = vor.u32 %v8691, %v8695
      %v8698 = vshll.u32 %v8569, 16
      %v8700 = vrot.slane %v8698, 1
      %v8701 = vsel %vm1135, %v8696, %v8700
      %v8703 = vshrl.u32 %v8570, 16
      %v8705 = vshll.u32 %v8570, 16
      %v8707 = vrot.slane %v8705, 1
      %v8708 = vor.u32 %v8703, %v8707
      %v8710 = vshll.u32 %v8571, 16
      %v8712 = vrot.slane %v8710, 1
      %v8713 = vsel %vm1135, %v8708, %v8712
      %v8715 = vshrl.u32 %v8572, 16
      %v8717 = vshll.u32 %v8572, 16
      %v8719 = vrot.slane %v8717, 1
      %v8720 = vor.u32 %v8715, %v8719
      %v8722 = vshll.u32 %v8573, 16
      %v8724 = vrot.slane %v8722, 1
      %v8725 = vsel %vm1135, %v8720, %v8724
      %v8727 = vshrl.u32 %v8574, 16
      %v8729 = vshll.u32 %v8574, 16
      %v8731 = vrot.slane %v8729, 1
      %v8732 = vor.u32 %v8727, %v8731
      %v8734 = vshll.u32 %v8575, 16
      %v8736 = vrot.slane %v8734, 1
      %v8737 = vsel %vm1135, %v8732, %v8736
      %v8739 = vshrl.u32 %v8576, 16
      %v8741 = vshll.u32 %v8576, 16
      %v8743 = vrot.slane %v8741, 1
      %v8744 = vor.u32 %v8739, %v8743
      %v8746 = vshll.u32 %v8577, 16
      %v8748 = vrot.slane %v8746, 1
      %v8749 = vsel %vm1135, %v8744, %v8748
      %v8751 = vshrl.u32 %v8578, 16
      %v8753 = vshll.u32 %v8578, 16
      %v8755 = vrot.slane %v8753, 1
      %v8756 = vor.u32 %v8751, %v8755
      %v8758 = vshll.u32 %v8579, 16
      %v8760 = vrot.slane %v8758, 1
      %v8761 = vsel %vm1135, %v8756, %v8760
      %v8763 = vshrl.u32 %v8580, 16
      %v8765 = vshll.u32 %v8580, 16
      %v8767 = vrot.slane %v8765, 1
      %v8768 = vor.u32 %v8763, %v8767
      %v8770 = vshll.u32 %v8581, 16
      %v8772 = vrot.slane %v8770, 1
      %v8773 = vsel %vm1135, %v8768, %v8772
      %8790 = vst [vmem:[#allocation3 + $0x8] sm:$0xff] %v8593
      %8791 = vst [vmem:[#allocation3 + $0x20] sm:$0xff] %v8605
      %8792 = vst [vmem:[#allocation3 + $0x38] sm:$0xff] %v8617
      %8793 = vst [vmem:[#allocation3 + $0x50] sm:$0xff] %v8629
      %8794 = vst [vmem:[#allocation3 + $0x68] sm:$0xff] %v8641
      %8795 = vst [vmem:[#allocation3 + $0x80] sm:$0xff] %v8653
      %8796 = vst [vmem:[#allocation3 + $0x98] sm:$0xff] %v8665
      %8797 = vst [vmem:[#allocation3 + $0xb0] sm:$0xff] %v8677
      %8798 = vst [vmem:[#allocation3 + $0xc8] sm:$0xff] %v8689
      %8799 = vst [vmem:[#allocation3 + $0xe0] sm:$0xff] %v8701
      %8800 = vst [vmem:[#allocation3 + $0xf8] sm:$0xff] %v8713
      %8801 = vst [vmem:[#allocation3 + $0x110] sm:$0xff] %v8725
      %8802 = vst [vmem:[#allocation3 + $0x128] sm:$0xff] %v8737
      %8803 = vst [vmem:[#allocation3 + $0x140] sm:$0xff] %v8749
      %8804 = vst [vmem:[#allocation3 + $0x158] sm:$0xff] %v8761
      %8805 = vst [vmem:[#allocation3 + $0x170] sm:$0xff] %v8773
      %v8806 = vld [vmem:[%s3542] sm:$0xe]
      %v8807 = vld [vmem:[%s3542 + $0x4] sm:$0xf]
      %v8808 = vld [vmem:[%s3542 + $0x8] sm:$0x1]
      %v8809 = vld [vmem:[%s3542 + $0xc] sm:$0xe]
      %v8810 = vld [vmem:[%s3542 + $0x10] sm:$0xf]
      %v8811 = vld [vmem:[%s3542 + $0x14] sm:$0x1]
      %v8812 = vld [vmem:[%s3542 + $0x18] sm:$0xe]
      %v8813 = vld [vmem:[%s3542 + $0x1c] sm:$0xf]
      %v8814 = vld [vmem:[%s3542 + $0x20] sm:$0x1]
      %v8815 = vld [vmem:[%s3542 + $0x24] sm:$0xe]
      %v8816 = vld [vmem:[%s3542 + $0x28] sm:$0xf]
      %v8817 = vld [vmem:[%s3542 + $0x2c] sm:$0x1]
      %v8818 = vld [vmem:[%s3542 + $0x30] sm:$0xe]
      %v8819 = vld [vmem:[%s3542 + $0x34] sm:$0xf]
      %v8820 = vld [vmem:[%s3542 + $0x38] sm:$0x1]
      %v8821 = vld [vmem:[%s3542 + $0x3c] sm:$0xe]
      %v8822 = vld [vmem:[%s3542 + $0x40] sm:$0xf]
      %v8823 = vld [vmem:[%s3542 + $0x44] sm:$0x1]
      %v8824 = vld [vmem:[%s3542 + $0x48] sm:$0xe]
      %v8825 = vld [vmem:[%s3542 + $0x4c] sm:$0xf]
      %v8826 = vld [vmem:[%s3542 + $0x50] sm:$0x1]
      %v8827 = vld [vmem:[%s3542 + $0x54] sm:$0xe]
      %v8828 = vld [vmem:[%s3542 + $0x58] sm:$0xf]
      %v8829 = vld [vmem:[%s3542 + $0x5c] sm:$0x1]
      %v8830 = vld [vmem:[%s3542 + $0x60] sm:$0xe]
      %v8831 = vld [vmem:[%s3542 + $0x64] sm:$0xf]
      %v8832 = vld [vmem:[%s3542 + $0x68] sm:$0x1]
      %v8833 = vld [vmem:[%s3542 + $0x6c] sm:$0xe]
      %v8834 = vld [vmem:[%s3542 + $0x70] sm:$0xf]
      %v8835 = vld [vmem:[%s3542 + $0x74] sm:$0x1]
      %v8836 = vld [vmem:[%s3542 + $0x78] sm:$0xe]
      %v8837 = vld [vmem:[%s3542 + $0x7c] sm:$0xf]
      %v8838 = vld [vmem:[%s3542 + $0x80] sm:$0x1]
      %v8839 = vld [vmem:[%s3542 + $0x84] sm:$0xe]
      %v8840 = vld [vmem:[%s3542 + $0x88] sm:$0xf]
      %v8841 = vld [vmem:[%s3542 + $0x8c] sm:$0x1]
      %v8842 = vld [vmem:[%s3542 + $0x90] sm:$0xe]
      %v8843 = vld [vmem:[%s3542 + $0x94] sm:$0xf]
      %v8844 = vld [vmem:[%s3542 + $0x98] sm:$0x1]
      %v8845 = vld [vmem:[%s3542 + $0x9c] sm:$0xe]
      %v8846 = vld [vmem:[%s3542 + $0xa0] sm:$0xf]
      %v8847 = vld [vmem:[%s3542 + $0xa4] sm:$0x1]
      %v8848 = vld [vmem:[%s3542 + $0xa8] sm:$0xe]
      %v8849 = vld [vmem:[%s3542 + $0xac] sm:$0xf]
      %v8850 = vld [vmem:[%s3542 + $0xb0] sm:$0x1]
      %v8851 = vld [vmem:[%s3542 + $0xb4] sm:$0xe]
      %v8852 = vld [vmem:[%s3542 + $0xb8] sm:$0xf]
      %v8853 = vld [vmem:[%s3542 + $0xbc] sm:$0x1]
      %v8902 = vunpack.c.l.b16 %v8806
      %v8903 = vunpack.c.l.b16 %v8807
      %v8904 = vunpack.c.l.b16 %v8808
      %v8905 = vunpack.c.l.b16 %v8809
      %v8906 = vunpack.c.l.b16 %v8810
      %v8907 = vunpack.c.l.b16 %v8811
      %v8908 = vunpack.c.l.b16 %v8812
      %v8909 = vunpack.c.l.b16 %v8813
      %v8910 = vunpack.c.l.b16 %v8814
      %v8911 = vunpack.c.l.b16 %v8815
      %v8912 = vunpack.c.l.b16 %v8816
      %v8913 = vunpack.c.l.b16 %v8817
      %v8914 = vunpack.c.l.b16 %v8818
      %v8915 = vunpack.c.l.b16 %v8819
      %v8916 = vunpack.c.l.b16 %v8820
      %v8917 = vunpack.c.l.b16 %v8821
      %v8918 = vunpack.c.l.b16 %v8822
      %v8919 = vunpack.c.l.b16 %v8823
      %v8920 = vunpack.c.l.b16 %v8824
      %v8921 = vunpack.c.l.b16 %v8825
      %v8922 = vunpack.c.l.b16 %v8826
      %v8923 = vunpack.c.l.b16 %v8827
      %v8924 = vunpack.c.l.b16 %v8828
      %v8925 = vunpack.c.l.b16 %v8829
      %v8926 = vunpack.c.l.b16 %v8830
      %v8927 = vunpack.c.l.b16 %v8831
      %v8928 = vunpack.c.l.b16 %v8832
      %v8929 = vunpack.c.l.b16 %v8833
      %v8930 = vunpack.c.l.b16 %v8834
      %v8931 = vunpack.c.l.b16 %v8835
      %v8932 = vunpack.c.l.b16 %v8836
      %v8933 = vunpack.c.l.b16 %v8837
      %v8934 = vunpack.c.l.b16 %v8838
      %v8935 = vunpack.c.l.b16 %v8839
      %v8936 = vunpack.c.l.b16 %v8840
      %v8937 = vunpack.c.l.b16 %v8841
      %v8938 = vunpack.c.l.b16 %v8842
      %v8939 = vunpack.c.l.b16 %v8843
      %v8940 = vunpack.c.l.b16 %v8844
      %v8941 = vunpack.c.l.b16 %v8845
      %v8942 = vunpack.c.l.b16 %v8846
      %v8943 = vunpack.c.l.b16 %v8847
      %v8944 = vunpack.c.l.b16 %v8848
      %v8945 = vunpack.c.l.b16 %v8849
      %v8946 = vunpack.c.l.b16 %v8850
      %v8947 = vunpack.c.l.b16 %v8851
      %v8948 = vunpack.c.l.b16 %v8852
      %v8949 = vunpack.c.l.b16 %v8853
      %v8950 = vpack.c.b16 %v8903, %v8902
      %v8951 = vpack.c.b16 %v8904, %v8904
      %v8952 = vpack.c.b16 %v8906, %v8905
      %v8953 = vpack.c.b16 %v8907, %v8907
      %v8954 = vpack.c.b16 %v8909, %v8908
      %v8955 = vpack.c.b16 %v8910, %v8910
      %v8956 = vpack.c.b16 %v8912, %v8911
      %v8957 = vpack.c.b16 %v8913, %v8913
      %v8958 = vpack.c.b16 %v8915, %v8914
      %v8959 = vpack.c.b16 %v8916, %v8916
      %v8960 = vpack.c.b16 %v8918, %v8917
      %v8961 = vpack.c.b16 %v8919, %v8919
      %v8962 = vpack.c.b16 %v8921, %v8920
      %v8963 = vpack.c.b16 %v8922, %v8922
      %v8964 = vpack.c.b16 %v8924, %v8923
      %v8965 = vpack.c.b16 %v8925, %v8925
      %v8966 = vpack.c.b16 %v8927, %v8926
      %v8967 = vpack.c.b16 %v8928, %v8928
      %v8968 = vpack.c.b16 %v8930, %v8929
      %v8969 = vpack.c.b16 %v8931, %v8931
      %v8970 = vpack.c.b16 %v8933, %v8932
      %v8971 = vpack.c.b16 %v8934, %v8934
      %v8972 = vpack.c.b16 %v8936, %v8935
      %v8973 = vpack.c.b16 %v8937, %v8937
      %v8974 = vpack.c.b16 %v8939, %v8938
      %v8975 = vpack.c.b16 %v8940, %v8940
      %v8976 = vpack.c.b16 %v8942, %v8941
      %v8977 = vpack.c.b16 %v8943, %v8943
      %v8978 = vpack.c.b16 %v8945, %v8944
      %v8979 = vpack.c.b16 %v8946, %v8946
      %v8980 = vpack.c.b16 %v8948, %v8947
      %v8981 = vpack.c.b16 %v8949, %v8949
      %v8982 = vrot.slane %v8950, 1
      %v8983 = vrot.slane %v8951, 1
      %v8984 = vsel %vm1536, %v8982, %v8983
      %v8985 = vrot.slane %v8952, 1
      %v8986 = vrot.slane %v8953, 1
      %v8987 = vsel %vm1536, %v8985, %v8986
      %v8988 = vrot.slane %v8954, 1
      %v8989 = vrot.slane %v8955, 1
      %v8990 = vsel %vm1536, %v8988, %v8989
      %v8991 = vrot.slane %v8956, 1
      %v8992 = vrot.slane %v8957, 1
      %v8993 = vsel %vm1536, %v8991, %v8992
      %v8994 = vrot.slane %v8958, 1
      %v8995 = vrot.slane %v8959, 1
      %v8996 = vsel %vm1536, %v8994, %v8995
      %v8997 = vrot.slane %v8960, 1
      %v8998 = vrot.slane %v8961, 1
      %v8999 = vsel %vm1536, %v8997, %v8998
      %v9000 = vrot.slane %v8962, 1
      %v9001 = vrot.slane %v8963, 1
      %v9002 = vsel %vm1536, %v9000, %v9001
      %v9003 = vrot.slane %v8964, 1
      %v9004 = vrot.slane %v8965, 1
      %v9005 = vsel %vm1536, %v9003, %v9004
      %v9006 = vrot.slane %v8966, 1
      %v9007 = vrot.slane %v8967, 1
      %v9008 = vsel %vm1536, %v9006, %v9007
      %v9009 = vrot.slane %v8968, 1
      %v9010 = vrot.slane %v8969, 1
      %v9011 = vsel %vm1536, %v9009, %v9010
      %v9012 = vrot.slane %v8970, 1
      %v9013 = vrot.slane %v8971, 1
      %v9014 = vsel %vm1536, %v9012, %v9013
      %v9015 = vrot.slane %v8972, 1
      %v9016 = vrot.slane %v8973, 1
      %v9017 = vsel %vm1536, %v9015, %v9016
      %v9018 = vrot.slane %v8974, 1
      %v9019 = vrot.slane %v8975, 1
      %v9020 = vsel %vm1536, %v9018, %v9019
      %v9021 = vrot.slane %v8976, 1
      %v9022 = vrot.slane %v8977, 1
      %v9023 = vsel %vm1536, %v9021, %v9022
      %v9024 = vrot.slane %v8978, 1
      %v9025 = vrot.slane %v8979, 1
      %v9026 = vsel %vm1536, %v9024, %v9025
      %v9027 = vrot.slane %v8980, 1
      %v9028 = vrot.slane %v8981, 1
      %v9029 = vsel %vm1536, %v9027, %v9028
      %9046 = vst [vmem:[#allocation3 + $0x10] sm:$0xff] %v8984
      %9047 = vst [vmem:[#allocation3 + $0x28] sm:$0xff] %v8987
      %9048 = vst [vmem:[#allocation3 + $0x40] sm:$0xff] %v8990
      %9049 = vst [vmem:[#allocation3 + $0x58] sm:$0xff] %v8993
      %9050 = vst [vmem:[#allocation3 + $0x70] sm:$0xff] %v8996
      %9051 = vst [vmem:[#allocation3 + $0x88] sm:$0xff] %v8999
      %9052 = vst [vmem:[#allocation3 + $0xa0] sm:$0xff] %v9002
      %9053 = vst [vmem:[#allocation3 + $0xb8] sm:$0xff] %v9005
      %9054 = vst [vmem:[#allocation3 + $0xd0] sm:$0xff] %v9008
      %9055 = vst [vmem:[#allocation3 + $0xe8] sm:$0xff] %v9011
      %9056 = vst [vmem:[#allocation3 + $0x100] sm:$0xff] %v9014
      %9057 = vst [vmem:[#allocation3 + $0x118] sm:$0xff] %v9017
      %9058 = vst [vmem:[#allocation3 + $0x130] sm:$0xff] %v9020
      %9059 = vst [vmem:[#allocation3 + $0x148] sm:$0xff] %v9023
      %9060 = vst [vmem:[#allocation3 + $0x160] sm:$0xff] %v9026
      %9061 = vst [vmem:[#allocation3 + $0x178] sm:$0xff] %v9029
      %v9062 = vld [vmem:[#allocation3] sm:$0xff]
      %v9063 = vld [vmem:[#allocation3 + $0x8] sm:$0xff]
      %v9064 = vld [vmem:[#allocation3 + $0x10] sm:$0xff]
      %v9065 = vld [vmem:[#allocation3 + $0x18] sm:$0xff]
      %v9066 = vld [vmem:[#allocation3 + $0x20] sm:$0xff]
      %v9067 = vld [vmem:[#allocation3 + $0x28] sm:$0xff]
      %v9068 = vld [vmem:[#allocation3 + $0x30] sm:$0xff]
      %v9069 = vld [vmem:[#allocation3 + $0x38] sm:$0xff]
      %v9070 = vld [vmem:[#allocation3 + $0x40] sm:$0xff]
      %v9071 = vld [vmem:[#allocation3 + $0x48] sm:$0xff]
      %v9072 = vld [vmem:[#allocation3 + $0x50] sm:$0xff]
      %v9073 = vld [vmem:[#allocation3 + $0x58] sm:$0xff]
      %v9074 = vld [vmem:[#allocation3 + $0x60] sm:$0xff]
      %v9075 = vld [vmem:[#allocation3 + $0x68] sm:$0xff]
      %v9076 = vld [vmem:[#allocation3 + $0x70] sm:$0xff]
      %v9077 = vld [vmem:[#allocation3 + $0x78] sm:$0xff]
      %v9078 = vld [vmem:[#allocation3 + $0x80] sm:$0xff]
      %v9079 = vld [vmem:[#allocation3 + $0x88] sm:$0xff]
      %v9080 = vld [vmem:[#allocation3 + $0x90] sm:$0xff]
      %v9081 = vld [vmem:[#allocation3 + $0x98] sm:$0xff]
      %v9082 = vld [vmem:[#allocation3 + $0xa0] sm:$0xff]
      %v9083 = vld [vmem:[#allocation3 + $0xa8] sm:$0xff]
      %v9084 = vld [vmem:[#allocation3 + $0xb0] sm:$0xff]
      %v9085 = vld [vmem:[#allocation3 + $0xb8] sm:$0xff]
      %v9086 = vld [vmem:[#allocation3 + $0xc0] sm:$0xff]
      %v9087 = vld [vmem:[#allocation3 + $0xc8] sm:$0xff]
      %v9088 = vld [vmem:[#allocation3 + $0xd0] sm:$0xff]
      %v9089 = vld [vmem:[#allocation3 + $0xd8] sm:$0xff]
      %v9090 = vld [vmem:[#allocation3 + $0xe0] sm:$0xff]
      %v9091 = vld [vmem:[#allocation3 + $0xe8] sm:$0xff]
      %v9092 = vld [vmem:[#allocation3 + $0xf0] sm:$0xff]
      %v9093 = vld [vmem:[#allocation3 + $0xf8] sm:$0xff]
      %v9094 = vld [vmem:[#allocation3 + $0x100] sm:$0xff]
      %v9095 = vld [vmem:[#allocation3 + $0x108] sm:$0xff]
      %v9096 = vld [vmem:[#allocation3 + $0x110] sm:$0xff]
      %v9097 = vld [vmem:[#allocation3 + $0x118] sm:$0xff]
      %v9098 = vld [vmem:[#allocation3 + $0x120] sm:$0xff]
      %v9099 = vld [vmem:[#allocation3 + $0x128] sm:$0xff]
      %v9100 = vld [vmem:[#allocation3 + $0x130] sm:$0xff]
      %v9101 = vld [vmem:[#allocation3 + $0x138] sm:$0xff]
      %v9102 = vld [vmem:[#allocation3 + $0x140] sm:$0xff]
      %v9103 = vld [vmem:[#allocation3 + $0x148] sm:$0xff]
      %v9104 = vld [vmem:[#allocation3 + $0x150] sm:$0xff]
      %v9105 = vld [vmem:[#allocation3 + $0x158] sm:$0xff]
      %v9106 = vld [vmem:[#allocation3 + $0x160] sm:$0xff]
      %v9107 = vld [vmem:[#allocation3 + $0x168] sm:$0xff]
      %v9108 = vld [vmem:[#allocation3 + $0x170] sm:$0xff]
      %v9109 = vld [vmem:[#allocation3 + $0x178] sm:$0xff]
      %s9110 = scalar_lea.vmem %s3, 384
      %v9111 = vld [vmem:[%s9110] sm:$0xf]
      %v9112 = vld [vmem:[%s9110 + $0x4] sm:$0xf]
      %v9113 = vld [vmem:[%s9110 + $0x8] sm:$0xf]
      %v9114 = vld [vmem:[%s9110 + $0xc] sm:$0xf]
      %v9115 = vld [vmem:[%s9110 + $0x10] sm:$0xf]
      %v9116 = vld [vmem:[%s9110 + $0x14] sm:$0xf]
      %v9117 = vld [vmem:[%s9110 + $0x18] sm:$0xf]
      %v9118 = vld [vmem:[%s9110 + $0x1c] sm:$0xf]
      %v9119 = vld [vmem:[%s9110 + $0x20] sm:$0xf]
      %v9120 = vld [vmem:[%s9110 + $0x24] sm:$0xf]
      %v9121 = vld [vmem:[%s9110 + $0x28] sm:$0xf]
      %v9122 = vld [vmem:[%s9110 + $0x2c] sm:$0xf]
      %v9123 = vld [vmem:[%s9110 + $0x30] sm:$0xf]
      %v9124 = vld [vmem:[%s9110 + $0x34] sm:$0xf]
      %v9125 = vld [vmem:[%s9110 + $0x38] sm:$0xf]
      %v9126 = vld [vmem:[%s9110 + $0x3c] sm:$0xf]
      %v9127 = vld [vmem:[%s9110 + $0x40] sm:$0xf]
      %v9128 = vld [vmem:[%s9110 + $0x44] sm:$0xf]
      %v9129 = vld [vmem:[%s9110 + $0x48] sm:$0xf]
      %v9130 = vld [vmem:[%s9110 + $0x4c] sm:$0xf]
      %v9131 = vld [vmem:[%s9110 + $0x50] sm:$0xf]
      %v9132 = vld [vmem:[%s9110 + $0x54] sm:$0xf]
      %v9133 = vld [vmem:[%s9110 + $0x58] sm:$0xf]
      %v9134 = vld [vmem:[%s9110 + $0x5c] sm:$0xf]
      %v9135 = vld [vmem:[%s9110 + $0x60] sm:$0xf]
      %v9136 = vld [vmem:[%s9110 + $0x64] sm:$0xf]
      %v9137 = vld [vmem:[%s9110 + $0x68] sm:$0xf]
      %v9138 = vld [vmem:[%s9110 + $0x6c] sm:$0xf]
      %v9139 = vld [vmem:[%s9110 + $0x70] sm:$0xf]
      %v9140 = vld [vmem:[%s9110 + $0x74] sm:$0xf]
      %v9141 = vld [vmem:[%s9110 + $0x78] sm:$0xf]
      %v9142 = vld [vmem:[%s9110 + $0x7c] sm:$0xf]
      %v9143 = vld [vmem:[%s9110 + $0x80] sm:$0xf]
      %v9144 = vld [vmem:[%s9110 + $0x84] sm:$0xf]
      %v9145 = vld [vmem:[%s9110 + $0x88] sm:$0xf]
      %v9146 = vld [vmem:[%s9110 + $0x8c] sm:$0xf]
      %v9147 = vld [vmem:[%s9110 + $0x90] sm:$0xf]
      %v9148 = vld [vmem:[%s9110 + $0x94] sm:$0xf]
      %v9149 = vld [vmem:[%s9110 + $0x98] sm:$0xf]
      %v9150 = vld [vmem:[%s9110 + $0x9c] sm:$0xf]
      %v9151 = vld [vmem:[%s9110 + $0xa0] sm:$0xf]
      %v9152 = vld [vmem:[%s9110 + $0xa4] sm:$0xf]
      %v9153 = vld [vmem:[%s9110 + $0xa8] sm:$0xf]
      %v9154 = vld [vmem:[%s9110 + $0xac] sm:$0xf]
      %v9155 = vld [vmem:[%s9110 + $0xb0] sm:$0xf]
      %v9156 = vld [vmem:[%s9110 + $0xb4] sm:$0xf]
      %v9157 = vld [vmem:[%s9110 + $0xb8] sm:$0xf]
      %v9158 = vld [vmem:[%s9110 + $0xbc] sm:$0xf]
      %v9207 = vunpack.c.l.b16 %v9111
      %v9208 = vunpack.c.l.b16 %v9112
      %v9209 = vunpack.c.l.b16 %v9113
      %v9210 = vunpack.c.l.b16 %v9114
      %v9211 = vunpack.c.l.b16 %v9115
      %v9212 = vunpack.c.l.b16 %v9116
      %v9213 = vunpack.c.l.b16 %v9117
      %v9214 = vunpack.c.l.b16 %v9118
      %v9215 = vunpack.c.l.b16 %v9119
      %v9216 = vunpack.c.l.b16 %v9120
      %v9217 = vunpack.c.l.b16 %v9121
      %v9218 = vunpack.c.l.b16 %v9122
      %v9219 = vunpack.c.l.b16 %v9123
      %v9220 = vunpack.c.l.b16 %v9124
      %v9221 = vunpack.c.l.b16 %v9125
      %v9222 = vunpack.c.l.b16 %v9126
      %v9223 = vunpack.c.l.b16 %v9127
      %v9224 = vunpack.c.l.b16 %v9128
      %v9225 = vunpack.c.l.b16 %v9129
      %v9226 = vunpack.c.l.b16 %v9130
      %v9227 = vunpack.c.l.b16 %v9131
      %v9228 = vunpack.c.l.b16 %v9132
      %v9229 = vunpack.c.l.b16 %v9133
      %v9230 = vunpack.c.l.b16 %v9134
      %v9231 = vunpack.c.l.b16 %v9135
      %v9232 = vunpack.c.l.b16 %v9136
      %v9233 = vunpack.c.l.b16 %v9137
      %v9234 = vunpack.c.l.b16 %v9138
      %v9235 = vunpack.c.l.b16 %v9139
      %v9236 = vunpack.c.l.b16 %v9140
      %v9237 = vunpack.c.l.b16 %v9141
      %v9238 = vunpack.c.l.b16 %v9142
      %v9239 = vunpack.c.l.b16 %v9143
      %v9240 = vunpack.c.l.b16 %v9144
      %v9241 = vunpack.c.l.b16 %v9145
      %v9242 = vunpack.c.l.b16 %v9146
      %v9243 = vunpack.c.l.b16 %v9147
      %v9244 = vunpack.c.l.b16 %v9148
      %v9245 = vunpack.c.l.b16 %v9149
      %v9246 = vunpack.c.l.b16 %v9150
      %v9247 = vunpack.c.l.b16 %v9151
      %v9248 = vunpack.c.l.b16 %v9152
      %v9249 = vunpack.c.l.b16 %v9153
      %v9250 = vunpack.c.l.b16 %v9154
      %v9251 = vunpack.c.l.b16 %v9155
      %v9252 = vunpack.c.l.b16 %v9156
      %v9253 = vunpack.c.l.b16 %v9157
      %v9254 = vunpack.c.l.b16 %v9158
      %v9255 = vpack.c.b16 %v9208, %v9207
      %v9256 = vpack.c.b16 %v9210, %v9209
      %v9257 = vpack.c.b16 %v9212, %v9211
      %v9258 = vpack.c.b16 %v9214, %v9213
      %v9259 = vpack.c.b16 %v9216, %v9215
      %v9260 = vpack.c.b16 %v9218, %v9217
      %v9261 = vpack.c.b16 %v9220, %v9219
      %v9262 = vpack.c.b16 %v9222, %v9221
      %v9263 = vpack.c.b16 %v9224, %v9223
      %v9264 = vpack.c.b16 %v9226, %v9225
      %v9265 = vpack.c.b16 %v9228, %v9227
      %v9266 = vpack.c.b16 %v9230, %v9229
      %v9267 = vpack.c.b16 %v9232, %v9231
      %v9268 = vpack.c.b16 %v9234, %v9233
      %v9269 = vpack.c.b16 %v9236, %v9235
      %v9270 = vpack.c.b16 %v9238, %v9237
      %v9271 = vpack.c.b16 %v9240, %v9239
      %v9272 = vpack.c.b16 %v9242, %v9241
      %v9273 = vpack.c.b16 %v9244, %v9243
      %v9274 = vpack.c.b16 %v9246, %v9245
      %v9275 = vpack.c.b16 %v9248, %v9247
      %v9276 = vpack.c.b16 %v9250, %v9249
      %v9277 = vpack.c.b16 %v9252, %v9251
      %v9278 = vpack.c.b16 %v9254, %v9253
      %9303 = vmatprep.subr.bf16.mxu0 0
      %9304 = vmatpush1.bf16.msra.mxu0 %v9255
      %9305 = vmatprep.subr.bf16.mxu0 0
      %9306 = vmatpush1.bf16.msra.mxu0 %v9256
      %9307 = vmatprep.subr.bf16.mxu0 0
      %9308 = vmatpush1.bf16.msra.mxu0 %v9257
      %9309 = vmatprep.subr.bf16.mxu0 0
      %9310 = vmatpush1.bf16.msra.mxu0 %v9258
      %9311 = vmatprep.subr.bf16.mxu0 0
      %9312 = vmatpush1.bf16.msra.mxu0 %v9259
      %9313 = vmatprep.subr.bf16.mxu0 0
      %9314 = vmatpush1.bf16.msra.mxu0 %v9260
      %9315 = vmatprep.subr.bf16.mxu0 0
      %9316 = vmatpush1.bf16.msra.mxu0 %v9261
      %9317 = vmatprep.subr.bf16.mxu0 0
      %9318 = vmatpush1.bf16.msra.mxu0 %v9262
      %9319 = vmatprep.subr.bf16.mxu0 0
      %9320 = vmatpush1.bf16.msra.mxu0 %v9263
      %9321 = vmatprep.subr.bf16.mxu0 0
      %9322 = vmatpush1.bf16.msra.mxu0 %v9264
      %9323 = vmatprep.subr.bf16.mxu0 0
      %9324 = vmatpush1.bf16.msra.mxu0 %v9265
      %9325 = vmatprep.subr.bf16.mxu0 0
      %9326 = vmatpush1.bf16.msra.mxu0 %v9266
      %9327 = vmatprep.subr.bf16.mxu0 0
      %9328 = vmatpush1.bf16.msra.mxu0 %v9267
      %9329 = vmatprep.subr.bf16.mxu0 0
      %9330 = vmatpush1.bf16.msra.mxu0 %v9268
      %9331 = vmatprep.subr.bf16.mxu0 0
      %9332 = vmatpush1.bf16.msra.mxu0 %v9269
      %9333 = vmatprep.subr.bf16.mxu0 0
      %9334 = vmatpush1.bf16.msra.mxu0 %v9270
      %9335 = vmatprep.mubr.bf16.mxu0 %v9063
      %9336 = vmatmul.mubr.bf16.gmra.mrb[0].mxu0 %v9062
      %v9337 = vpop.f32.mrb[0].mxu0
      %v9338 = vadd.f32 0.0, %v9337
      %v9339 = vpop.f32.mrb[0].mxu0
      %v9340 = vpop.f32.mrb[0].mxu0
      %v9341 = vadd.f32 0.0, %v9340
      %v9342 = vpop.f32.mrb[0].mxu0
      %9343 = vmatprep.mubr.bf16.mxu0 %v9066
      %9344 = vmatmul.mubr.bf16.gmra.mrb[0].mxu0 %v9065
      %v9345 = vpop.f32.mrb[0].mxu0
      %v9346 = vadd.f32 0.0, %v9345
      %v9347 = vpop.f32.mrb[0].mxu0
      %v9348 = vpop.f32.mrb[0].mxu0
      %v9349 = vadd.f32 0.0, %v9348
      %v9350 = vpop.f32.mrb[0].mxu0
      %9351 = vmatprep.mubr.bf16.mxu0 %v9069
      %9352 = vmatmul.mubr.bf16.gmra.mrb[0].mxu0 %v9068
      %v9353 = vpop.f32.mrb[0].mxu0
      %v9354 = vadd.f32 0.0, %v9353
      %v9355 = vpop.f32.mrb[0].mxu0
      %v9356 = vpop.f32.mrb[0].mxu0
      %v9357 = vadd.f32 0.0, %v9356
      %v9358 = vpop.f32.mrb[0].mxu0
      %9359 = vmatprep.mubr.bf16.mxu0 %v9072
      %9360 = vmatmul.mubr.bf16.gmra.mrb[0].mxu0 %v9071
      %v9361 = vpop.f32.mrb[0].mxu0
      %v9362 = vadd.f32 0.0, %v9361
      %v9363 = vpop.f32.mrb[0].mxu0
      %v9364 = vpop.f32.mrb[0].mxu0
      %v9365 = vadd.f32 0.0, %v9364
      %v9366 = vpop.f32.mrb[0].mxu0
      %9367 = vmatprep.mubr.bf16.mxu0 %v9075
      %9368 = vmatmul.mubr.bf16.gmra.mrb[0].mxu0 %v9074
      %v9369 = vpop.f32.mrb[0].mxu0
      %v9370 = vadd.f32 0.0, %v9369
      %v9371 = vpop.f32.mrb[0].mxu0
      %v9372 = vpop.f32.mrb[0].mxu0
      %v9373 = vadd.f32 0.0, %v9372
      %v9374 = vpop.f32.mrb[0].mxu0
      %9375 = vmatprep.mubr.bf16.mxu0 %v9078
      %9376 = vmatmul.mubr.bf16.gmra.mrb[0].mxu0 %v9077
      %v9377 = vpop.f32.mrb[0].mxu0
      %v9378 = vadd.f32 0.0, %v9377
      %v9379 = vpop.f32.mrb[0].mxu0
      %v9380 = vpop.f32.mrb[0].mxu0
      %v9381 = vadd.f32 0.0, %v9380
      %v9382 = vpop.f32.mrb[0].mxu0
      %9383 = vmatprep.mubr.bf16.mxu0 %v9081
      %9384 = vmatmul.mubr.bf16.gmra.mrb[0].mxu0 %v9080
      %v9385 = vpop.f32.mrb[0].mxu0
      %v9386 = vadd.f32 0.0, %v9385
      %v9387 = vpop.f32.mrb[0].mxu0
      %v9388 = vpop.f32.mrb[0].mxu0
      %v9389 = vadd.f32 0.0, %v9388
      %v9390 = vpop.f32.mrb[0].mxu0
      %9391 = vmatprep.mubr.bf16.mxu0 %v9084
      %9392 = vmatmul.mubr.bf16.gmra.mrb[0].mxu0 %v9083
      %v9393 = vpop.f32.mrb[0].mxu0
      %v9394 = vadd.f32 0.0, %v9393
      %v9395 = vpop.f32.mrb[0].mxu0
      %v9396 = vpop.f32.mrb[0].mxu0
      %v9397 = vadd.f32 0.0, %v9396
      %v9398 = vpop.f32.mrb[0].mxu0
      %9399 = vmatprep.mubr.bf16.mxu0 %v9087
      %9400 = vmatmul.mubr.bf16.gmra.mrb[0].mxu0 %v9086
      %v9401 = vpop.f32.mrb[0].mxu0
      %v9402 = vadd.f32 0.0, %v9401
      %v9403 = vpop.f32.mrb[0].mxu0
      %v9404 = vpop.f32.mrb[0].mxu0
      %v9405 = vadd.f32 0.0, %v9404
      %v9406 = vpop.f32.mrb[0].mxu0
      %9407 = vmatprep.mubr.bf16.mxu0 %v9090
      %9408 = vmatmul.mubr.bf16.gmra.mrb[0].mxu0 %v9089
      %v9409 = vpop.f32.mrb[0].mxu0
      %v9410 = vadd.f32 0.0, %v9409
      %v9411 = vpop.f32.mrb[0].mxu0
      %v9412 = vpop.f32.mrb[0].mxu0
      %v9413 = vadd.f32 0.0, %v9412
      %v9414 = vpop.f32.mrb[0].mxu0
      %9415 = vmatprep.mubr.bf16.mxu0 %v9093
      %9416 = vmatmul.mubr.bf16.gmra.mrb[0].mxu0 %v9092
      %v9417 = vpop.f32.mrb[0].mxu0
      %v9418 = vadd.f32 0.0, %v9417
      %v9419 = vpop.f32.mrb[0].mxu0
      %v9420 = vpop.f32.mrb[0].mxu0
      %v9421 = vadd.f32 0.0, %v9420
      %v9422 = vpop.f32.mrb[0].mxu0
      %9423 = vmatprep.mubr.bf16.mxu0 %v9096
      %9424 = vmatmul.mubr.bf16.gmra.mrb[0].mxu0 %v9095
      %v9425 = vpop.f32.mrb[0].mxu0
      %v9426 = vadd.f32 0.0, %v9425
      %v9427 = vpop.f32.mrb[0].mxu0
      %v9428 = vpop.f32.mrb[0].mxu0
      %v9429 = vadd.f32 0.0, %v9428
      %v9430 = vpop.f32.mrb[0].mxu0
      %9431 = vmatprep.mubr.bf16.mxu0 %v9099
      %9432 = vmatmul.mubr.bf16.gmra.mrb[0].mxu0 %v9098
      %v9433 = vpop.f32.mrb[0].mxu0
      %v9434 = vadd.f32 0.0, %v9433
      %v9435 = vpop.f32.mrb[0].mxu0
      %v9436 = vpop.f32.mrb[0].mxu0
      %v9437 = vadd.f32 0.0, %v9436
      %v9438 = vpop.f32.mrb[0].mxu0
      %9439 = vmatprep.mubr.bf16.mxu0 %v9102
      %9440 = vmatmul.mubr.bf16.gmra.mrb[0].mxu0 %v9101
      %v9441 = vpop.f32.mrb[0].mxu0
      %v9442 = vadd.f32 0.0, %v9441
      %v9443 = vpop.f32.mrb[0].mxu0
      %v9444 = vpop.f32.mrb[0].mxu0
      %v9445 = vadd.f32 0.0, %v9444
      %v9446 = vpop.f32.mrb[0].mxu0
      %9447 = vmatprep.mubr.bf16.mxu0 %v9105
      %9448 = vmatmul.mubr.bf16.gmra.mrb[0].mxu0 %v9104
      %v9449 = vpop.f32.mrb[0].mxu0
      %v9450 = vadd.f32 0.0, %v9449
      %v9451 = vpop.f32.mrb[0].mxu0
      %v9452 = vpop.f32.mrb[0].mxu0
      %v9453 = vadd.f32 0.0, %v9452
      %v9454 = vpop.f32.mrb[0].mxu0
      %9455 = vmatprep.mubr.bf16.mxu0 %v9108
      %9456 = vmatmul.mubr.bf16.gmra.mrb[0].mxu0 %v9107
      %v9457 = vpop.f32.mrb[0].mxu0
      %v9458 = vadd.f32 0.0, %v9457
      %v9459 = vpop.f32.mrb[0].mxu0
      %v9460 = vpop.f32.mrb[0].mxu0
      %v9461 = vadd.f32 0.0, %v9460
      %v9462 = vpop.f32.mrb[0].mxu0
      %9463 = vdwg.mxu0
      %9464 = vmatprep.subr.bf16.mxu0 0
      %9465 = vmatpush1.bf16.msra.mxu0 %v9271
      %9466 = vmatprep.subr.bf16.mxu0 0
      %9467 = vmatpush1.bf16.msra.mxu0 %v9272
      %9468 = vmatprep.subr.bf16.mxu0 0
      %9469 = vmatpush1.bf16.msra.mxu0 %v9273
      %9470 = vmatprep.subr.bf16.mxu0 0
      %9471 = vmatpush1.bf16.msra.mxu0 %v9274
      %9472 = vmatprep.subr.bf16.mxu0 0
      %9473 = vmatpush1.bf16.msra.mxu0 %v9275
      %9474 = vmatprep.subr.bf16.mxu0 0
      %9475 = vmatpush1.bf16.msra.mxu0 %v9276
      %9476 = vmatprep.subr.bf16.mxu0 0
      %9477 = vmatpush1.bf16.msra.mxu0 %v9277
      %9478 = vmatprep.subr.bf16.mxu0 0
      %9479 = vmatpush1.bf16.msra.mxu0 %v9278
      %9480 = vmatprep.subr.bf16.mxu0 0
      %9481 = vmatpush1.bf16.msra.mxu0 0
      %9482 = vmatprep.subr.bf16.mxu0 0
      %9483 = vmatpush1.bf16.msra.mxu0 0
      %9484 = vmatprep.subr.bf16.mxu0 0
      %9485 = vmatpush1.bf16.msra.mxu0 0
      %9486 = vmatprep.subr.bf16.mxu0 0
      %9487 = vmatpush1.bf16.msra.mxu0 0
      %9488 = vmatprep.subr.bf16.mxu0 0
      %9489 = vmatpush1.bf16.msra.mxu0 0
      %9490 = vmatprep.subr.bf16.mxu0 0
      %9491 = vmatpush1.bf16.msra.mxu0 0
      %9492 = vmatprep.subr.bf16.mxu0 0
      %9493 = vmatpush1.bf16.msra.mxu0 0
      %9494 = vmatprep.subr.bf16.mxu0 0
      %9495 = vmatpush1.bf16.msra.mxu0 0
      %9496 = vmatprep.mubr.bf16.mxu0 0
      %9497 = vmatmul.mubr.bf16.gmra.mrb[0].mxu0 %v9064
      %v9498 = vpop.f32.mrb[0].mxu0
      %v9499 = vadd.f32 %v9338, %v9498
      %v9500 = vpop.f32.mrb[0].mxu0
      %v9501 = vpop.f32.mrb[0].mxu0
      %v9502 = vadd.f32 %v9341, %v9501
      %v9503 = vpop.f32.mrb[0].mxu0
      %9504 = vmatprep.mubr.bf16.mxu0 0
      %9505 = vmatmul.mubr.bf16.gmra.mrb[0].mxu0 %v9067
      %v9506 = vpop.f32.mrb[0].mxu0
      %v9507 = vadd.f32 %v9346, %v9506
      %v9508 = vpop.f32.mrb[0].mxu0
      %v9509 = vpop.f32.mrb[0].mxu0
      %v9510 = vadd.f32 %v9349, %v9509
      %v9511 = vpop.f32.mrb[0].mxu0
      %9512 = vmatprep.mubr.bf16.mxu0 0
      %9513 = vmatmul.mubr.bf16.gmra.mrb[0].mxu0 %v9070
      %v9514 = vpop.f32.mrb[0].mxu0
      %v9515 = vadd.f32 %v9354, %v9514
      %v9516 = vpop.f32.mrb[0].mxu0
      %v9517 = vpop.f32.mrb[0].mxu0
      %v9518 = vadd.f32 %v9357, %v9517
      %v9519 = vpop.f32.mrb[0].mxu0
      %9520 = vmatprep.mubr.bf16.mxu0 0
      %9521 = vmatmul.mubr.bf16.gmra.mrb[0].mxu0 %v9073
      %v9522 = vpop.f32.mrb[0].mxu0
      %v9523 = vadd.f32 %v9362, %v9522
      %v9524 = vpop.f32.mrb[0].mxu0
      %v9525 = vpop.f32.mrb[0].mxu0
      %v9526 = vadd.f32 %v9365, %v9525
      %v9527 = vpop.f32.mrb[0].mxu0
      %9528 = vmatprep.mubr.bf16.mxu0 0
      %9529 = vmatmul.mubr.bf16.gmra.mrb[0].mxu0 %v9076
      %v9530 = vpop.f32.mrb[0].mxu0
      %v9531 = vadd.f32 %v9370, %v9530
      %v9532 = vpop.f32.mrb[0].mxu0
      %v9533 = vpop.f32.mrb[0].mxu0
      %v9534 = vadd.f32 %v9373, %v9533
      %v9535 = vpop.f32.mrb[0].mxu0
      %9536 = vmatprep.mubr.bf16.mxu0 0
      %9537 = vmatmul.mubr.bf16.gmra.mrb[0].mxu0 %v9079
      %v9538 = vpop.f32.mrb[0].mxu0
      %v9539 = vadd.f32 %v9378, %v9538
      %v9540 = vpop.f32.mrb[0].mxu0
      %v9541 = vpop.f32.mrb[0].mxu0
      %v9542 = vadd.f32 %v9381, %v9541
      %v9543 = vpop.f32.mrb[0].mxu0
      %9544 = vmatprep.mubr.bf16.mxu0 0
      %9545 = vmatmul.mubr.bf16.gmra.mrb[0].mxu0 %v9082
      %v9546 = vpop.f32.mrb[0].mxu0
      %v9547 = vadd.f32 %v9386, %v9546
      %v9548 = vpop.f32.mrb[0].mxu0
      %v9549 = vpop.f32.mrb[0].mxu0
      %v9550 = vadd.f32 %v9389, %v9549
      %v9551 = vpop.f32.mrb[0].mxu0
      %9552 = vmatprep.mubr.bf16.mxu0 0
      %9553 = vmatmul.mubr.bf16.gmra.mrb[0].mxu0 %v9085
      %v9554 = vpop.f32.mrb[0].mxu0
      %v9555 = vadd.f32 %v9394, %v9554
      %v9556 = vpop.f32.mrb[0].mxu0
      %v9557 = vpop.f32.mrb[0].mxu0
      %v9558 = vadd.f32 %v9397, %v9557
      %v9559 = vpop.f32.mrb[0].mxu0
      %9560 = vmatprep.mubr.bf16.mxu0 0
      %9561 = vmatmul.mubr.bf16.gmra.mrb[0].mxu0 %v9088
      %v9562 = vpop.f32.mrb[0].mxu0
      %v9563 = vadd.f32 %v9402, %v9562
      %v9564 = vpop.f32.mrb[0].mxu0
      %v9565 = vpop.f32.mrb[0].mxu0
      %v9566 = vadd.f32 %v9405, %v9565
      %v9567 = vpop.f32.mrb[0].mxu0
      %9568 = vmatprep.mubr.bf16.mxu0 0
      %9569 = vmatmul.mubr.bf16.gmra.mrb[0].mxu0 %v9091
      %v9570 = vpop.f32.mrb[0].mxu0
      %v9571 = vadd.f32 %v9410, %v9570
      %v9572 = vpop.f32.mrb[0].mxu0
      %v9573 = vpop.f32.mrb[0].mxu0
      %v9574 = vadd.f32 %v9413, %v9573
      %v9575 = vpop.f32.mrb[0].mxu0
      %9576 = vmatprep.mubr.bf16.mxu0 0
      %9577 = vmatmul.mubr.bf16.gmra.mrb[0].mxu0 %v9094
      %v9578 = vpop.f32.mrb[0].mxu0
      %v9579 = vadd.f32 %v9418, %v9578
      %v9580 = vpop.f32.mrb[0].mxu0
      %v9581 = vpop.f32.mrb[0].mxu0
      %v9582 = vadd.f32 %v9421, %v9581
      %v9583 = vpop.f32.mrb[0].mxu0
      %9584 = vmatprep.mubr.bf16.mxu0 0
      %9585 = vmatmul.mubr.bf16.gmra.mrb[0].mxu0 %v9097
      %v9586 = vpop.f32.mrb[0].mxu0
      %v9587 = vadd.f32 %v9426, %v9586
      %v9588 = vpop.f32.mrb[0].mxu0
      %v9589 = vpop.f32.mrb[0].mxu0
      %v9590 = vadd.f32 %v9429, %v9589
      %v9591 = vpop.f32.mrb[0].mxu0
      %9592 = vmatprep.mubr.bf16.mxu0 0
      %9593 = vmatmul.mubr.bf16.gmra.mrb[0].mxu0 %v9100
      %v9594 = vpop.f32.mrb[0].mxu0
      %v9595 = vadd.f32 %v9434, %v9594
      %v9596 = vpop.f32.mrb[0].mxu0
      %v9597 = vpop.f32.mrb[0].mxu0
      %v9598 = vadd.f32 %v9437, %v9597
      %v9599 = vpop.f32.mrb[0].mxu0
      %9600 = vmatprep.mubr.bf16.mxu0 0
      %9601 = vmatmul.mubr.bf16.gmra.mrb[0].mxu0 %v9103
      %v9602 = vpop.f32.mrb[0].mxu0
      %v9603 = vadd.f32 %v9442, %v9602
      %v9604 = vpop.f32.mrb[0].mxu0
      %v9605 = vpop.f32.mrb[0].mxu0
      %v9606 = vadd.f32 %v9445, %v9605
      %v9607 = vpop.f32.mrb[0].mxu0
      %9608 = vmatprep.mubr.bf16.mxu0 0
      %9609 = vmatmul.mubr.bf16.gmra.mrb[0].mxu0 %v9106
      %v9610 = vpop.f32.mrb[0].mxu0
      %v9611 = vadd.f32 %v9450, %v9610
      %v9612 = vpop.f32.mrb[0].mxu0
      %v9613 = vpop.f32.mrb[0].mxu0
      %v9614 = vadd.f32 %v9453, %v9613
      %v9615 = vpop.f32.mrb[0].mxu0
      %9616 = vmatprep.mubr.bf16.mxu0 0
      %9617 = vmatmul.mubr.bf16.gmra.mrb[0].mxu0 %v9109
      %v9618 = vpop.f32.mrb[0].mxu0
      %v9619 = vadd.f32 %v9458, %v9618
      %v9620 = vpop.f32.mrb[0].mxu0
      %v9621 = vpop.f32.mrb[0].mxu0
      %v9622 = vadd.f32 %v9461, %v9621
      %v9623 = vpop.f32.mrb[0].mxu0
      %9624 = vdwg.mxu0
      %v9625 = vadd.f32 %v8136, %v9499
      %v9626 = vadd.f32 %v8139, %v9502
      %v9627 = vadd.f32 %v8144, %v9507
      %v9628 = vadd.f32 %v8147, %v9510
      %v9629 = vadd.f32 %v8152, %v9515
      %v9630 = vadd.f32 %v8155, %v9518
      %v9631 = vadd.f32 %v8160, %v9523
      %v9632 = vadd.f32 %v8163, %v9526
      %v9633 = vadd.f32 %v8168, %v9531
      %v9634 = vadd.f32 %v8171, %v9534
      %v9635 = vadd.f32 %v8176, %v9539
      %v9636 = vadd.f32 %v8179, %v9542
      %v9637 = vadd.f32 %v8184, %v9547
      %v9638 = vadd.f32 %v8187, %v9550
      %v9639 = vadd.f32 %v8192, %v9555
      %v9640 = vadd.f32 %v8195, %v9558
      %v9641 = vadd.f32 %v8200, %v9563
      %v9642 = vadd.f32 %v8203, %v9566
      %v9643 = vadd.f32 %v8208, %v9571
      %v9644 = vadd.f32 %v8211, %v9574
      %v9645 = vadd.f32 %v8216, %v9579
      %v9646 = vadd.f32 %v8219, %v9582
      %v9647 = vadd.f32 %v8224, %v9587
      %v9648 = vadd.f32 %v8227, %v9590
      %v9649 = vadd.f32 %v8232, %v9595
      %v9650 = vadd.f32 %v8235, %v9598
      %v9651 = vadd.f32 %v8240, %v9603
      %v9652 = vadd.f32 %v8243, %v9606
      %v9653 = vadd.f32 %v8248, %v9611
      %v9654 = vadd.f32 %v8251, %v9614
      %v9655 = vadd.f32 %v8256, %v9619
      %v9656 = vadd.f32 %v8259, %v9622
      %v9657 = vld [vmem:[%s4] sm:$0x1]
      %v9659 = vlaneseq
      %v9660 = vshrl.u32 %v9659, 7
      %v9661 = vsub.s32 0, %v9660
      %v9662 = vrot.slane %v9657, %v9661
      %v9664 = vadd.f32 %v9625, %v9662
      %v9665 = vadd.f32 %v9626, %v9662
      %v9666 = vadd.f32 %v9627, %v9662
      %v9667 = vadd.f32 %v9628, %v9662
      %v9668 = vadd.f32 %v9629, %v9662
      %v9669 = vadd.f32 %v9630, %v9662
      %v9670 = vadd.f32 %v9631, %v9662
      %v9671 = vadd.f32 %v9632, %v9662
      %v9672 = vadd.f32 %v9633, %v9662
      %v9673 = vadd.f32 %v9634, %v9662
      %v9674 = vadd.f32 %v9635, %v9662
      %v9675 = vadd.f32 %v9636, %v9662
      %v9676 = vadd.f32 %v9637, %v9662
      %v9677 = vadd.f32 %v9638, %v9662
      %v9678 = vadd.f32 %v9639, %v9662
      %v9679 = vadd.f32 %v9640, %v9662
      %v9680 = vadd.f32 %v9641, %v9662
      %v9681 = vadd.f32 %v9642, %v9662
      %v9682 = vadd.f32 %v9643, %v9662
      %v9683 = vadd.f32 %v9644, %v9662
      %v9684 = vadd.f32 %v9645, %v9662
      %v9685 = vadd.f32 %v9646, %v9662
      %v9686 = vadd.f32 %v9647, %v9662
      %v9687 = vadd.f32 %v9648, %v9662
      %v9688 = vadd.f32 %v9649, %v9662
      %v9689 = vadd.f32 %v9650, %v9662
      %v9690 = vadd.f32 %v9651, %v9662
      %v9691 = vadd.f32 %v9652, %v9662
      %v9692 = vadd.f32 %v9653, %v9662
      %v9693 = vadd.f32 %v9654, %v9662
      %v9694 = vadd.f32 %v9655, %v9662
      %v9695 = vadd.f32 %v9656, %v9662
      %v9696 = vld [vmem:[%s219] sm:$0xf]
      %v9697 = vld [vmem:[%s219 + $0x4] sm:$0xf]
      %v9698 = vld [vmem:[%s219 + $0x8] sm:$0xf]
      %v9699 = vld [vmem:[%s219 + $0xc] sm:$0xf]
      %v9700 = vld [vmem:[%s219 + $0x10] sm:$0xf]
      %v9701 = vld [vmem:[%s219 + $0x14] sm:$0xf]
      %v9702 = vld [vmem:[%s219 + $0x18] sm:$0xf]
      %v9703 = vld [vmem:[%s219 + $0x1c] sm:$0xf]
      %v9704 = vld [vmem:[%s219 + $0x20] sm:$0xf]
      %v9705 = vld [vmem:[%s219 + $0x24] sm:$0xf]
      %v9706 = vld [vmem:[%s219 + $0x28] sm:$0xf]
      %v9707 = vld [vmem:[%s219 + $0x2c] sm:$0xf]
      %v9708 = vld [vmem:[%s219 + $0x30] sm:$0xf]
      %v9709 = vld [vmem:[%s219 + $0x34] sm:$0xf]
      %v9710 = vld [vmem:[%s219 + $0x38] sm:$0xf]
      %v9711 = vld [vmem:[%s219 + $0x3c] sm:$0xf]
      %v9712 = vld [vmem:[%s219 + $0x40] sm:$0xf]
      %v9713 = vld [vmem:[%s219 + $0x44] sm:$0xf]
      %v9714 = vld [vmem:[%s219 + $0x48] sm:$0xf]
      %v9715 = vld [vmem:[%s219 + $0x4c] sm:$0xf]
      %v9716 = vld [vmem:[%s219 + $0x50] sm:$0xf]
      %v9717 = vld [vmem:[%s219 + $0x54] sm:$0xf]
      %v9718 = vld [vmem:[%s219 + $0x58] sm:$0xf]
      %v9719 = vld [vmem:[%s219 + $0x5c] sm:$0xf]
      %v9720 = vld [vmem:[%s219 + $0x60] sm:$0xf]
      %v9721 = vld [vmem:[%s219 + $0x64] sm:$0xf]
      %v9722 = vld [vmem:[%s219 + $0x68] sm:$0xf]
      %v9723 = vld [vmem:[%s219 + $0x6c] sm:$0xf]
      %v9724 = vld [vmem:[%s219 + $0x70] sm:$0xf]
      %v9725 = vld [vmem:[%s219 + $0x74] sm:$0xf]
      %v9726 = vld [vmem:[%s219 + $0x78] sm:$0xf]
      %v9727 = vld [vmem:[%s219 + $0x7c] sm:$0xf]
      %v9728 = vunpack.c.l.bf16 %v9696
      %v9729 = vunpack.c.l.bf16 %v9697
      %v9730 = vunpack.c.l.bf16 %v9698
      %v9731 = vunpack.c.l.bf16 %v9699
      %v9732 = vunpack.c.l.bf16 %v9700
      %v9733 = vunpack.c.l.bf16 %v9701
      %v9734 = vunpack.c.l.bf16 %v9702
      %v9735 = vunpack.c.l.bf16 %v9703
      %v9736 = vunpack.c.l.bf16 %v9704
      %v9737 = vunpack.c.l.bf16 %v9705
      %v9738 = vunpack.c.l.bf16 %v9706
      %v9739 = vunpack.c.l.bf16 %v9707
      %v9740 = vunpack.c.l.bf16 %v9708
      %v9741 = vunpack.c.l.bf16 %v9709
      %v9742 = vunpack.c.l.bf16 %v9710
      %v9743 = vunpack.c.l.bf16 %v9711
      %v9744 = vunpack.c.l.bf16 %v9712
      %v9745 = vunpack.c.l.bf16 %v9713
      %v9746 = vunpack.c.l.bf16 %v9714
      %v9747 = vunpack.c.l.bf16 %v9715
      %v9748 = vunpack.c.l.bf16 %v9716
      %v9749 = vunpack.c.l.bf16 %v9717
      %v9750 = vunpack.c.l.bf16 %v9718
      %v9751 = vunpack.c.l.bf16 %v9719
      %v9752 = vunpack.c.l.bf16 %v9720
      %v9753 = vunpack.c.l.bf16 %v9721
      %v9754 = vunpack.c.l.bf16 %v9722
      %v9755 = vunpack.c.l.bf16 %v9723
      %v9756 = vunpack.c.l.bf16 %v9724
      %v9757 = vunpack.c.l.bf16 %v9725
      %v9758 = vunpack.c.l.bf16 %v9726
      %v9759 = vunpack.c.l.bf16 %v9727
      %v9760 = vadd.f32 %v9664, %v9728
      %v9761 = vadd.f32 %v9665, %v9729
      %v9762 = vadd.f32 %v9666, %v9730
      %v9763 = vadd.f32 %v9667, %v9731
      %v9764 = vadd.f32 %v9668, %v9732
      %v9765 = vadd.f32 %v9669, %v9733
      %v9766 = vadd.f32 %v9670, %v9734
      %v9767 = vadd.f32 %v9671, %v9735
      %v9768 = vadd.f32 %v9672, %v9736
      %v9769 = vadd.f32 %v9673, %v9737
      %v9770 = vadd.f32 %v9674, %v9738
      %v9771 = vadd.f32 %v9675, %v9739
      %v9772 = vadd.f32 %v9676, %v9740
      %v9773 = vadd.f32 %v9677, %v9741
      %v9774 = vadd.f32 %v9678, %v9742
      %v9775 = vadd.f32 %v9679, %v9743
      %v9776 = vadd.f32 %v9680, %v9744
      %v9777 = vadd.f32 %v9681, %v9745
      %v9778 = vadd.f32 %v9682, %v9746
      %v9779 = vadd.f32 %v9683, %v9747
      %v9780 = vadd.f32 %v9684, %v9748
      %v9781 = vadd.f32 %v9685, %v9749
      %v9782 = vadd.f32 %v9686, %v9750
      %v9783 = vadd.f32 %v9687, %v9751
      %v9784 = vadd.f32 %v9688, %v9752
      %v9785 = vadd.f32 %v9689, %v9753
      %v9786 = vadd.f32 %v9690, %v9754
      %v9787 = vadd.f32 %v9691, %v9755
      %v9788 = vadd.f32 %v9692, %v9756
      %v9789 = vadd.f32 %v9693, %v9757
      %v9790 = vadd.f32 %v9694, %v9758
      %v9791 = vadd.f32 %v9695, %v9759
      %v9792 = vmax.f32 %v9760, 0.0
      %v9793 = vmax.f32 %v9761, 0.0
      %v9794 = vmax.f32 %v9762, 0.0
      %v9795 = vmax.f32 %v9763, 0.0
      %v9796 = vmax.f32 %v9764, 0.0
      %v9797 = vmax.f32 %v9765, 0.0
      %v9798 = vmax.f32 %v9766, 0.0
      %v9799 = vmax.f32 %v9767, 0.0
      %v9800 = vmax.f32 %v9768, 0.0
      %v9801 = vmax.f32 %v9769, 0.0
      %v9802 = vmax.f32 %v9770, 0.0
      %v9803 = vmax.f32 %v9771, 0.0
      %v9804 = vmax.f32 %v9772, 0.0
      %v9805 = vmax.f32 %v9773, 0.0
      %v9806 = vmax.f32 %v9774, 0.0
      %v9807 = vmax.f32 %v9775, 0.0
      %v9808 = vmax.f32 %v9776, 0.0
      %v9809 = vmax.f32 %v9777, 0.0
      %v9810 = vmax.f32 %v9778, 0.0
      %v9811 = vmax.f32 %v9779, 0.0
      %v9812 = vmax.f32 %v9780, 0.0
      %v9813 = vmax.f32 %v9781, 0.0
      %v9814 = vmax.f32 %v9782, 0.0
      %v9815 = vmax.f32 %v9783, 0.0
      %v9816 = vmax.f32 %v9784, 0.0
      %v9817 = vmax.f32 %v9785, 0.0
      %v9818 = vmax.f32 %v9786, 0.0
      %v9819 = vmax.f32 %v9787, 0.0
      %v9820 = vmax.f32 %v9788, 0.0
      %v9821 = vmax.f32 %v9789, 0.0
      %v9822 = vmax.f32 %v9790, 0.0
      %v9823 = vmax.f32 %v9791, 0.0
      %v9824 = vpack.c.bf16 %v9793, %v9792
      %v9825 = vpack.c.bf16 %v9795, %v9794
      %v9826 = vpack.c.bf16 %v9797, %v9796
      %v9827 = vpack.c.bf16 %v9799, %v9798
      %v9828 = vpack.c.bf16 %v9801, %v9800
      %v9829 = vpack.c.bf16 %v9803, %v9802
      %v9830 = vpack.c.bf16 %v9805, %v9804
      %v9831 = vpack.c.bf16 %v9807, %v9806
      %v9832 = vpack.c.bf16 %v9809, %v9808
      %v9833 = vpack.c.bf16 %v9811, %v9810
      %v9834 = vpack.c.bf16 %v9813, %v9812
      %v9835 = vpack.c.bf16 %v9815, %v9814
      %v9836 = vpack.c.bf16 %v9817, %v9816
      %v9837 = vpack.c.bf16 %v9819, %v9818
      %v9838 = vpack.c.bf16 %v9821, %v9820
      %v9839 = vpack.c.bf16 %v9823, %v9822
      %v9856 = vunpack.c.l.b16 %v9824
      %v9857 = vunpack.c.h.b16 %v9824
      %v9858 = vunpack.c.l.b16 %v9825
      %v9859 = vunpack.c.h.b16 %v9825
      %v9860 = vunpack.c.l.b16 %v9826
      %v9861 = vunpack.c.h.b16 %v9826
      %v9862 = vunpack.c.l.b16 %v9827
      %v9863 = vunpack.c.h.b16 %v9827
      %v9864 = vunpack.c.l.b16 %v9828
      %v9865 = vunpack.c.h.b16 %v9828
      %v9866 = vunpack.c.l.b16 %v9829
      %v9867 = vunpack.c.h.b16 %v9829
      %v9868 = vunpack.c.l.b16 %v9830
      %v9869 = vunpack.c.h.b16 %v9830
      %v9870 = vunpack.c.l.b16 %v9831
      %v9871 = vunpack.c.h.b16 %v9831
      %v9872 = vunpack.c.l.b16 %v9832
      %v9873 = vunpack.c.h.b16 %v9832
      %v9874 = vunpack.c.l.b16 %v9833
      %v9875 = vunpack.c.h.b16 %v9833
      %v9876 = vunpack.c.l.b16 %v9834
      %v9877 = vunpack.c.h.b16 %v9834
      %v9878 = vunpack.c.l.b16 %v9835
      %v9879 = vunpack.c.h.b16 %v9835
      %v9880 = vunpack.c.l.b16 %v9836
      %v9881 = vunpack.c.h.b16 %v9836
      %v9882 = vunpack.c.l.b16 %v9837
      %v9883 = vunpack.c.h.b16 %v9837
      %v9884 = vunpack.c.l.b16 %v9838
      %v9885 = vunpack.c.h.b16 %v9838
      %v9886 = vunpack.c.l.b16 %v9839
      %v9887 = vunpack.c.h.b16 %v9839
      %v9888 = vpack.c.b16 %v9856, %v9856
      %v9889 = vpack.c.b16 %v9857, %v9857
      %v9890 = vpack.c.b16 %v9858, %v9858
      %v9891 = vpack.c.b16 %v9859, %v9859
      %v9892 = vpack.c.b16 %v9860, %v9860
      %v9893 = vpack.c.b16 %v9861, %v9861
      %v9894 = vpack.c.b16 %v9862, %v9862
      %v9895 = vpack.c.b16 %v9863, %v9863
      %v9896 = vpack.c.b16 %v9864, %v9864
      %v9897 = vpack.c.b16 %v9865, %v9865
      %v9898 = vpack.c.b16 %v9866, %v9866
      %v9899 = vpack.c.b16 %v9867, %v9867
      %v9900 = vpack.c.b16 %v9868, %v9868
      %v9901 = vpack.c.b16 %v9869, %v9869
      %v9902 = vpack.c.b16 %v9870, %v9870
      %v9903 = vpack.c.b16 %v9871, %v9871
      %v9904 = vpack.c.b16 %v9872, %v9872
      %v9905 = vpack.c.b16 %v9873, %v9873
      %v9906 = vpack.c.b16 %v9874, %v9874
      %v9907 = vpack.c.b16 %v9875, %v9875
      %v9908 = vpack.c.b16 %v9876, %v9876
      %v9909 = vpack.c.b16 %v9877, %v9877
      %v9910 = vpack.c.b16 %v9878, %v9878
      %v9911 = vpack.c.b16 %v9879, %v9879
      %v9912 = vpack.c.b16 %v9880, %v9880
      %v9913 = vpack.c.b16 %v9881, %v9881
      %v9914 = vpack.c.b16 %v9882, %v9882
      %v9915 = vpack.c.b16 %v9883, %v9883
      %v9916 = vpack.c.b16 %v9884, %v9884
      %v9917 = vpack.c.b16 %v9885, %v9885
      %v9918 = vpack.c.b16 %v9886, %v9886
      %v9919 = vpack.c.b16 %v9887, %v9887
      %9952 = vst [vmem:[%s224] sm:$0xf] %v9888
      %9953 = vst [vmem:[%s224 + $0x4] sm:$0xf] %v9889
      %9954 = vst [vmem:[%s224 + $0x8] sm:$0xf] %v9890
      %9955 = vst [vmem:[%s224 + $0xc] sm:$0xf] %v9891
      %9956 = vst [vmem:[%s224 + $0x10] sm:$0xf] %v9892
      %9957 = vst [vmem:[%s224 + $0x14] sm:$0xf] %v9893
      %9958 = vst [vmem:[%s224 + $0x18] sm:$0xf] %v9894
      %9959 = vst [vmem:[%s224 + $0x1c] sm:$0xf] %v9895
      %9960 = vst [vmem:[%s224 + $0x20] sm:$0xf] %v9896
      %9961 = vst [vmem:[%s224 + $0x24] sm:$0xf] %v9897
      %9962 = vst [vmem:[%s224 + $0x28] sm:$0xf] %v9898
      %9963 = vst [vmem:[%s224 + $0x2c] sm:$0xf] %v9899
      %9964 = vst [vmem:[%s224 + $0x30] sm:$0xf] %v9900
      %9965 = vst [vmem:[%s224 + $0x34] sm:$0xf] %v9901
      %9966 = vst [vmem:[%s224 + $0x38] sm:$0xf] %v9902
      %9967 = vst [vmem:[%s224 + $0x3c] sm:$0xf] %v9903
      %9968 = vst [vmem:[%s224 + $0x40] sm:$0xf] %v9904
      %9969 = vst [vmem:[%s224 + $0x44] sm:$0xf] %v9905
      %9970 = vst [vmem:[%s224 + $0x48] sm:$0xf] %v9906
      %9971 = vst [vmem:[%s224 + $0x4c] sm:$0xf] %v9907
      %9972 = vst [vmem:[%s224 + $0x50] sm:$0xf] %v9908
      %9973 = vst [vmem:[%s224 + $0x54] sm:$0xf] %v9909
      %9974 = vst [vmem:[%s224 + $0x58] sm:$0xf] %v9910
      %9975 = vst [vmem:[%s224 + $0x5c] sm:$0xf] %v9911
      %9976 = vst [vmem:[%s224 + $0x60] sm:$0xf] %v9912
      %9977 = vst [vmem:[%s224 + $0x64] sm:$0xf] %v9913
      %9978 = vst [vmem:[%s224 + $0x68] sm:$0xf] %v9914
      %9979 = vst [vmem:[%s224 + $0x6c] sm:$0xf] %v9915
      %9980 = vst [vmem:[%s224 + $0x70] sm:$0xf] %v9916
      %9981 = vst [vmem:[%s224 + $0x74] sm:$0xf] %v9917
      %9982 = vst [vmem:[%s224 + $0x78] sm:$0xf] %v9918
      %9983 = vst [vmem:[%s224 + $0x7c] sm:$0xf] %v9919
      %p9984 = scmp.lt.s32.totalorder %s16, 1
      %s9985 = scalar_select %p9984, %s16, 1
      %s9986 = smul.addr %s9985, 32
      %s9987 = smul.addr %s9986, 4
      %s9988 = scalar_lea.vmem %s5, %s9987
      // Predicated region
      $region41: #{basic_block_pallas.1} parent=39 // pred_check
        %p9989 = pneg %p144
      $region42: #{basic_block_pallas.1} parent=39 // pred_check_branch
        %9991 = sbr.rel (%p9989) target = $region44
      $region43: #{basic_block_pallas.1} parent=39 // pred_region
        _
      $region44: #{basic_block_pallas.1} parent=39 // pred_fallthru
        _
    $region40: #{basic_block_pallas.1} parent=5 // pred_fallthru
      _
    %p9992 = scmp.le.s32.totalorder 2, %s11
    // Predicated region
    $region45: #{basic_block_pallas.1} parent=5 // pred_check
      %p9993 = pneg %p9992
    $region46: #{basic_block_pallas.1} parent=5 // pred_check_branch
      %9995 = sbr.rel (%p9993) target = $region48
    $region47: #{basic_block_pallas.1} parent=5 // pred_region
      %s9996 = ssub.s32 %s11, 2
      // Predicated region
      $region49: #{basic_block_pallas.1} parent=47 // pred_check
        %p9997 = pneg %p150
      $region50: #{basic_block_pallas.1} parent=47 // pred_check_branch
        %9999 = sbr.rel (%p9997) target = $region52
      $region51: #{basic_block_pallas.1} parent=47 // pred_region
        %p10000 = scmp.lt.s32.totalorder %s17, 1
        %s10001 = scalar_select %p10000, %s17, 1
        %s10002 = smul.addr %s10001, 32
        %s10003 = smul.addr %s10002, 4
        %s10004 = scalar_lea.vmem %s5, %s10003
      $region52: #{basic_block_pallas.1} parent=47 // pred_fallthru
        _
    $region48: #{basic_block_pallas.1} parent=5 // pred_fallthru
      _
  $region6: #{basic_block_pallas.1} parent=0 // loop_footer
    %s15 = sadd.s32 1, %s11
  $region7: #{basic_block_pallas.1} parent=0 // loop_footer_branch
    %10 = sbr.rel target = $region3
  $region8: #{basic_block_pallas.1} parent=0 // loop_exit
    _

</llo_original>
